<compile_context>
chip_gen: v6e
topology: v6e:2x2x1
jax: 0.10.0
libtpu: 0.0.40
codegen_flags: <defaults>
</compile_context>

<pallas_src>
import functools

import numpy as np
import jax
import jax.numpy as jnp
from jax import lax
from jax.experimental import pallas as pl
from jax.experimental.pallas import tpu as pltpu

EPS = 1e-5          # PyTorch BatchNorm2d default eps
LANE = 128

# (kind, Cin, Cout, k, stride, pad, activation)  -- matches the nn.Module
LAYERS = [
    ("conv", 3, 16, 3, 2, 1, "relu"),
    ("conv", 16, 32, 3, 2, 1, "relu"),
    ("conv", 32, 64, 3, 2, 1, "relu"),
    ("conv", 64, 64, 3, 2, 1, "relu"),
    ("conv", 64, 128, 3, 2, 1, "relu"),
    ("conv", 128, 128, 3, 1, 1, "relu"),
    ("conv", 128, 128, 3, 1, 1, "relu"),
    ("convT", 128, 256, 4, 2, 1, "relu"),
    ("conv", 256, 512, 1, 1, 0, "relu"),
    ("conv", 512, 15, 1, 1, 0, "sigmoid"),     # self.output
]
OUT_CHANNELS = LAYERS[-1][2]


def _round_up(x, m):
    return ((x + m - 1) // m) * m


# ----------------------------------------------------------------------------
# Host-side constant gather matrices: one 0/1 matrix per kernel tap mapping
# flattened input positions -> flattened output positions.  They encode the
# spatial shift, the stride, the zero padding and (for ConvTranspose2d) the
# input dilation, so inside the kernel a conv is just small dense matmuls.
# ----------------------------------------------------------------------------
def _conv_taps(hin, win, k, s, p):
    ho = (hin + 2 * p - k) // s + 1
    wo = (win + 2 * p - k) // s + 1
    taps = []
    for ky in range(k):
        for kx in range(k):
            g = np.zeros((ho * wo, hin * win), np.float32)
            for i in range(ho):
                r = s * i + ky - p
                if r < 0 or r >= hin:
                    continue
                for j in range(wo):
                    c = s * j + kx - p
                    if 0 <= c < win:
                        g[i * wo + j, r * win + c] = 1.0
            taps.append(((ky, kx), g if g.any() else None))
    return ho, wo, taps


def _convt_taps(hin, win, k, s, p):
    # ConvTranspose2d == conv over the stride-dilated input, padded by k-1-p,
    # with the spatially flipped / channel-swapped kernel (output_padding=0).
    hd, wd = s * (hin - 1) + 1, s * (win - 1) + 1
    pe = k - 1 - p
    ho = hd + 2 * pe - k + 1
    wo = wd + 2 * pe - k + 1
    taps = []
    for ky in range(k):
        for kx in range(k):
            g = np.zeros((ho * wo, hin * win), np.float32)
            for i in range(ho):
                rd = i + ky - pe
                if rd < 0 or rd >= hd or rd % s:
                    continue
                for j in range(wo):
                    cd = j + kx - pe
                    if 0 <= cd < wd and cd % s == 0:
                        g[i * wo + j, (rd // s) * win + (cd // s)] = 1.0
            taps.append(((ky, kx), g if g.any() else None))
    return ho, wo, taps


# ----------------------------------------------------------------------------
# Parameter preparation: fold BN into weights/bias, build per-tap weight
# stacks + gather stacks, pad the last layer's Cout to a full 128-lane store.
# ----------------------------------------------------------------------------
def _prepare_net(params, h0, w0):
    inputs, meta = [], []
    h, w = h0, w0
    flops_per_image = 0

    for li, (spec, lp) in enumerate(zip(LAYERS, params)):
        kind, cin, cout, k, s, p, act = spec
        scale = lp["gamma"] / jnp.sqrt(lp["var"] + EPS)          # (cout,)
        bias = (lp["b"] - lp["mean"]) * scale + lp["beta"]       # (cout,)

        if li == 0:
            # First layer: patches come pre-gathered from the wrapper, so it
            # degenerates to a single identity-tap matmul with the flattened,
            # BN-scaled weight.
            ho = (h + 2 * p - k) // s + 1
            wo = (w + 2 * p - k) // s + 1
            w_flat = jnp.transpose(lp["w"], (2, 3, 1, 0)).reshape(k * k * cin, cout)
            w_list = [w_flat * scale[None, :]]
            g_arrs, g_slots = [], [None]
            flops_per_image += 2 * (ho * wo) * (k * k * cin) * cout
        else:
            if kind == "conv":
                ho, wo, taps = _conv_taps(h, w, k, s, p)
            else:
                ho, wo, taps = _convt_taps(h, w, k, s, p)
            w_list, g_arrs, g_slots = [], [], []
            for (ky, kx), g in taps:
                if g is None:           # this tap only ever reads zero padding
                    continue
                if kind == "conv":
                    w_t = lp["w"][:, :, ky, kx].T                     # (cin, cout)
                else:
                    w_t = lp["w"][:, :, k - 1 - ky, k - 1 - kx]       # (cin, cout)
                w_list.append(w_t * scale[None, :])
                if g.shape[0] == g.shape[1] and np.array_equal(g, np.eye(g.shape[0])):
                    g_slots.append(None)                              # identity gather
                else:
                    g_slots.append(len(g_arrs))
                    g_arrs.append(g)
                    flops_per_image += 2 * (ho * wo) * (h * w) * cin
                flops_per_image += 2 * (ho * wo) * cin * cout

        # Lane-dense final store: pad last layer's Cout up to 128 lanes.
        c_store = _round_up(cout, LANE) if li == len(LAYERS) - 1 else cout
        w_stack = jnp.stack(w_list, axis=0)                           # (T, cin, cout)
        if c_store != cout:
            w_stack = jnp.pad(w_stack, ((0, 0), (0, 0), (0, c_store - cout)))
            bias = jnp.pad(bias, (0, c_store - cout))

        if g_arrs:
            inputs.append(jnp.asarray(np.stack(g_arrs, axis=0), dtype=jnp.bfloat16))
        inputs.append(w_stack.astype(jnp.bfloat16))
        inputs.append(bias[None, :].astype(jnp.float32))
        meta.append(dict(has_g=bool(g_arrs), g_slots=tuple(g_slots), act=act))
        h, w = ho, wo

    return inputs, meta, (h, w), flops_per_image


# ----------------------------------------------------------------------------
# The single fused Pallas kernel: one grid step == one image through all
# 10 (conv/convT + folded-BN + activation) layers.
# ----------------------------------------------------------------------------
def _make_kernel(meta, n_in):
    def kernel(*refs):
        in_refs = refs[:n_in]
        out_ref = refs[n_in]
        pos = 0
        a = in_refs[pos][0]                       # (M1, k*k*Cin) f32 layer-1 patches
        pos += 1
        for m in meta:
            g_ref = None
            if m["has_g"]:
                g_ref = in_refs[pos]; pos += 1
            w_ref = in_refs[pos]; pos += 1        # (T, Cin, Cout) bf16 (BN-scaled)
            b_ref = in_refs[pos]; pos += 1        # (1, Cout) f32 (BN-folded)

            a_bf = a.astype(jnp.bfloat16)
            acc = None
            for slot, g_idx in enumerate(m["g_slots"]):
                if g_idx is None:                 # identity gather (1x1 conv etc.)
                    p_t = a_bf
                else:
                    p_t = jnp.dot(g_ref[g_idx], a_bf,
                                  preferred_element_type=jnp.float32
                                  ).astype(jnp.bfloat16)
                contrib = jnp.dot(p_t, w_ref[slot],
                                  preferred_element_type=jnp.float32)
                acc = contrib if acc is None else acc + contrib
            y = acc + b_ref[...]                  # f32 epilogue
            a = jnp.maximum(y, 0.0) if m["act"] == "relu" else jax.nn.sigmoid(y)
        out_ref[0] = a.astype(out_ref.dtype)      # (M_last, 128) lane-dense store
    return kernel


def _const_map(i, nd):
    return (0,) * nd


def _first_layer_patches(x_nhwc, k, s, p):
    """3x3/stride-2 im2col of the raw input only (tiny, stays in XLA)."""
    n, h, w, c = x_nhwc.shape
    xp = jnp.pad(x_nhwc, ((0, 0), (p, p), (p, p), (0, 0)))
    ho = (h + 2 * p - k) // s + 1
    wo = (w + 2 * p - k) // s + 1
    cols = [xp[:, ky:ky + s * ho:s, kx:kx + s * wo:s, :]
            for ky in range(k) for kx in range(k)]
    patches = jnp.concatenate(cols, axis=-1)              # (N, Ho, Wo, k*k*C)
    return patches.reshape(n, ho * wo, k * k * c)


# ----------------------------------------------------------------------------
# Public forward (NCHW in, NCHW out) and a pure-JAX reference for checking.
# ----------------------------------------------------------------------------
@jax.jit
def pallas_forward(x_nchw, params):
    x = jnp.transpose(x_nchw, (0, 2, 3, 1)).astype(jnp.float32)    # NHWC
    n, h, w, _ = x.shape
    k0, s0, p0 = LAYERS[0][3], LAYERS[0][4], LAYERS[0][5]
    patches1 = _first_layer_patches(x, k0, s0, p0)                 # (N, M1, K1)

    net_inputs, meta, (hl, wl), flops_img = _prepare_net(params, h, w)
    m_last = hl * wl
    c_last = _round_up(OUT_CHANNELS, LANE)

    all_inputs = [patches1] + net_inputs
    in_specs = [pl.BlockSpec((1,) + patches1.shape[1:], lambda i: (i, 0, 0))]
    for arr in net_inputs:           # weights / gathers / biases: whole array,
        in_specs.append(             # constant block -> loaded into VMEM once
            pl.BlockSpec(arr.shape, functools.partial(_const_map, nd=arr.ndim)))
    out_spec = pl.BlockSpec((1, m_last, c_last), lambda i: (i, 0, 0))

    bytes_accessed = int(sum(int(np.prod(a.shape)) * a.dtype.itemsize
                             for a in all_inputs) + n * m_last * c_last * 4)
    cost = pl.CostEstimate(flops=int(n * flops_img),
                           transcendentals=int(n * m_last * c_last),
                           bytes_accessed=bytes_accessed)

    out = pl.pallas_call(
        _make_kernel(meta, len(all_inputs)),
        out_shape=jax.ShapeDtypeStruct((n, m_last, c_last), jnp.float32),
        grid=(n,),
        in_specs=in_specs,
        out_specs=out_spec,
        compiler_params=pltpu.CompilerParams(
            dimension_semantics=("parallel",),     # v7x: one image per TensorCore
            vmem_limit_bytes=32 * 1024 * 1024),
        cost_estimate=cost,
    )(*all_inputs)

    y = out[:, :, :OUT_CHANNELS].reshape(n, hl, wl, OUT_CHANNELS)
    return jnp.transpose(y, (0, 3, 1, 2))                          # NCHW


def ref_forward(x_nchw, params):
    x = jnp.transpose(x_nchw, (0, 2, 3, 1))
    for (kind, _ci, _co, k, s, pad, act), p in zip(LAYERS, params):
        if kind == "conv":
            w_hwio = jnp.transpose(p["w"], (2, 3, 1, 0))
            y = lax.conv_general_dilated(
                x, w_hwio, (s, s), [(pad, pad), (pad, pad)],
                dimension_numbers=("NHWC", "HWIO", "NHWC")) + p["b"]
        else:
            w_eq = jnp.transpose(p["w"][:, :, ::-1, ::-1], (1, 0, 2, 3))
            w_hwio = jnp.transpose(w_eq, (2, 3, 1, 0))
            y = lax.conv_general_dilated(
                x, w_hwio, (1, 1), [(k - 1 - pad,) * 2] * 2,
                lhs_dilation=(s, s),
                dimension_numbers=("NHWC", "HWIO", "NHWC")) + p["b"]
        y = (y - p["mean"]) / jnp.sqrt(p["var"] + EPS) * p["gamma"] + p["beta"]
        x = jnp.maximum(y, 0.0) if act == "relu" else jax.nn.sigmoid(y)
    return jnp.transpose(x, (0, 3, 1, 2))


def init_params(key):
    params = []
    keys = jax.random.split(key, len(LAYERS))
    for (kind, cin, cout, k, _s, _p, _a), kk in zip(LAYERS, keys):
        ks = jax.random.split(kk, 6)
        fan = cin * k * k
        if kind == "conv":
            w = jax.random.normal(ks[0], (cout, cin, k, k), jnp.float32) / np.sqrt(fan)
        else:  # ConvTranspose2d weight layout: (Cin, Cout, k, k)
            w = jax.random.normal(ks[0], (cin, cout, k, k), jnp.float32) / np.sqrt(fan)
        params.append(dict(
            w=w,
            b=0.1 * jax.random.normal(ks[1], (cout,), jnp.float32),
            gamma=1.0 + 0.1 * jax.random.normal(ks[2], (cout,), jnp.float32),
            beta=0.1 * jax.random.normal(ks[3], (cout,), jnp.float32),
            mean=0.1 * jax.random.normal(ks[4], (cout,), jnp.float32),
            var=1.0 + 0.1 * jnp.abs(jax.random.normal(ks[5], (cout,), jnp.float32)),
        ))
    return params


if __name__ == "__main__":
    key = jax.random.PRNGKey(0)
    k_in, k_params = jax.random.split(key)
    # Small input consistent with the module: batch=2, RGB, 32x32 spatial.
    x = jax.random.normal(k_in, (2, 3, 32, 32), jnp.float32)   # NCHW
    params = init_params(k_params)

    y = jax.block_until_ready(pallas_forward(x, params))

    # Spatial chain: 32 -> 16 -> 8 -> 4 -> 2 -> 1 -> 1 -> 1 -> (convT) 2 -> 2 -> 2
    assert y.shape == (2, 15, 2, 2), y.shape

    y_ref = jax.block_until_ready(ref_forward(x, params))
    max_err = float(jnp.max(jnp.abs(y - y_ref)))
    # bf16 MXU operands vs f32 reference: allow a little slack on the
    # post-sigmoid outputs.
    assert max_err < 5e-2, f"max abs err {max_err}"

    print("KERNEL_OK")
</pallas_src>

<mosaic_0001>
module attributes {stable_mosaic.version = 11 : i64} {
  func.func @kernel(%arg0: i32, %arg1: memref<1x256x27xf32, #tpu.memory_space<vmem>>, %arg2: memref<1x27x16xbf16, #tpu.memory_space<vmem>>, %arg3: memref<1x16xf32, #tpu.memory_space<vmem>>, %arg4: memref<9x64x256xbf16, #tpu.memory_space<vmem>>, %arg5: memref<9x16x32xbf16, #tpu.memory_space<vmem>>, %arg6: memref<1x32xf32, #tpu.memory_space<vmem>>, %arg7: memref<9x16x64xbf16, #tpu.memory_space<vmem>>, %arg8: memref<9x32x64xbf16, #tpu.memory_space<vmem>>, %arg9: memref<1x64xf32, #tpu.memory_space<vmem>>, %arg10: memref<9x4x16xbf16, #tpu.memory_space<vmem>>, %arg11: memref<9x64x64xbf16, #tpu.memory_space<vmem>>, %arg12: memref<1x64xf32, #tpu.memory_space<vmem>>, %arg13: memref<4x1x4xbf16, #tpu.memory_space<vmem>>, %arg14: memref<4x64x128xbf16, #tpu.memory_space<vmem>>, %arg15: memref<1x128xf32, #tpu.memory_space<vmem>>, %arg16: memref<1x128x128xbf16, #tpu.memory_space<vmem>>, %arg17: memref<1x128xf32, #tpu.memory_space<vmem>>, %arg18: memref<1x128x128xbf16, #tpu.memory_space<vmem>>, %arg19: memref<1x128xf32, #tpu.memory_space<vmem>>, %arg20: memref<4x4x1xbf16, #tpu.memory_space<vmem>>, %arg21: memref<4x128x256xbf16, #tpu.memory_space<vmem>>, %arg22: memref<1x256xf32, #tpu.memory_space<vmem>>, %arg23: memref<1x256x512xbf16, #tpu.memory_space<vmem>>, %arg24: memref<1x512xf32, #tpu.memory_space<vmem>>, %arg25: memref<1x512x128xbf16, #tpu.memory_space<vmem>>, %arg26: memref<1x128xf32, #tpu.memory_space<vmem>>, %arg27: memref<1x4x128xf32, #tpu.memory_space<vmem>>) attributes {dimension_semantics = [#tpu.dimension_semantics<parallel>], iteration_bounds = array<i64: 2>, scalar_prefetch = 0 : i64, scratch_operands = 0 : i64, tpu.core_type = #tpu.core_type<tc>, window_params = [{transform_indices = @transform_0, window_bounds = array<i64: 1, 256, 27>}, {pipeline_mode = #tpu.pipeline_mode<synchronous>, transform_indices = @transform_1, window_bounds = array<i64: 1, 27, 16>}, {pipeline_mode = #tpu.pipeline_mode<synchronous>, transform_indices = @transform_2, window_bounds = array<i64: 1, 16>}, {pipeline_mode = #tpu.pipeline_mode<synchronous>, transform_indices = @transform_3, window_bounds = array<i64: 9, 64, 256>}, {pipeline_mode = #tpu.pipeline_mode<synchronous>, transform_indices = @transform_4, window_bounds = array<i64: 9, 16, 32>}, {pipeline_mode = #tpu.pipeline_mode<synchronous>, transform_indices = @transform_5, window_bounds = array<i64: 1, 32>}, {pipeline_mode = #tpu.pipeline_mode<synchronous>, transform_indices = @transform_6, window_bounds = array<i64: 9, 16, 64>}, {pipeline_mode = #tpu.pipeline_mode<synchronous>, transform_indices = @transform_7, window_bounds = array<i64: 9, 32, 64>}, {pipeline_mode = #tpu.pipeline_mode<synchronous>, transform_indices = @transform_8, window_bounds = array<i64: 1, 64>}, {pipeline_mode = #tpu.pipeline_mode<synchronous>, transform_indices = @transform_9, window_bounds = array<i64: 9, 4, 16>}, {pipeline_mode = #tpu.pipeline_mode<synchronous>, transform_indices = @transform_10, window_bounds = array<i64: 9, 64, 64>}, {pipeline_mode = #tpu.pipeline_mode<synchronous>, transform_indices = @transform_11, window_bounds = array<i64: 1, 64>}, {pipeline_mode = #tpu.pipeline_mode<synchronous>, transform_indices = @transform_12, window_bounds = array<i64: 4, 1, 4>}, {pipeline_mode = #tpu.pipeline_mode<synchronous>, transform_indices = @transform_13, window_bounds = array<i64: 4, 64, 128>}, {pipeline_mode = #tpu.pipeline_mode<synchronous>, transform_indices = @transform_14, window_bounds = array<i64: 1, 128>}, {pipeline_mode = #tpu.pipeline_mode<synchronous>, transform_indices = @transform_15, window_bounds = array<i64: 1, 128, 128>}, {pipeline_mode = #tpu.pipeline_mode<synchronous>, transform_indices = @transform_16, window_bounds = array<i64: 1, 128>}, {pipeline_mode = #tpu.pipeline_mode<synchronous>, transform_indices = @transform_17, window_bounds = array<i64: 1, 128, 128>}, {pipeline_mode = #tpu.pipeline_mode<synchronous>, transform_indices = @transform_18, window_bounds = array<i64: 1, 128>}, {pipeline_mode = #tpu.pipeline_mode<synchronous>, transform_indices = @transform_19, window_bounds = array<i64: 4, 4, 1>}, {pipeline_mode = #tpu.pipeline_mode<synchronous>, transform_indices = @transform_20, window_bounds = array<i64: 4, 128, 256>}, {pipeline_mode = #tpu.pipeline_mode<synchronous>, transform_indices = @transform_21, window_bounds = array<i64: 1, 256>}, {pipeline_mode = #tpu.pipeline_mode<synchronous>, transform_indices = @transform_22, window_bounds = array<i64: 1, 256, 512>}, {pipeline_mode = #tpu.pipeline_mode<synchronous>, transform_indices = @transform_23, window_bounds = array<i64: 1, 512>}, {pipeline_mode = #tpu.pipeline_mode<synchronous>, transform_indices = @transform_24, window_bounds = array<i64: 1, 512, 128>}, {pipeline_mode = #tpu.pipeline_mode<synchronous>, transform_indices = @transform_25, window_bounds = array<i64: 1, 128>}, {transform_indices = @transform_26, window_bounds = array<i64: 1, 4, 128>}]} {
    %c0 = arith.constant 0 : index
    %c0_0 = arith.constant 0 : index
    %c0_1 = arith.constant 0 : index
    %0 = vector.load %arg1[%c0, %c0_0, %c0_1] : memref<1x256x27xf32, #tpu.memory_space<vmem>>, vector<1x256x27xf32>
    %1 = vector.shape_cast %0 : vector<1x256x27xf32> to vector<256x27xf32>
    %2 = arith.truncf %1 : vector<256x27xf32> to vector<256x27xbf16>
    %c0_2 = arith.constant 0 : index
    %c0_3 = arith.constant 0 : index
    %c0_4 = arith.constant 0 : index
    %3 = vector.load %arg2[%c0_2, %c0_3, %c0_4] : memref<1x27x16xbf16, #tpu.memory_space<vmem>>, vector<1x27x16xbf16>
    %4 = vector.shape_cast %3 : vector<1x27x16xbf16> to vector<27x16xbf16>
    %cst = arith.constant dense<0.000000e+00> : vector<256x16xf32>
    %5 = tpu.matmul %2, %4, %cst {dimension_numbers = #tpu.dot_dimension_numbers<[1], [0], [0], [1], [0, 0, 1, 1], [], []>} : vector<256x27xbf16>, vector<27x16xbf16>, vector<256x16xf32> -> vector<256x16xf32>
    %c0_5 = arith.constant 0 : index
    %c0_6 = arith.constant 0 : index
    %6 = vector.load %arg3[%c0_5, %c0_6] : memref<1x16xf32, #tpu.memory_space<vmem>>, vector<1x16xf32>
    %7 = vector.broadcast %6 : vector<1x16xf32> to vector<256x16xf32>
    %8 = arith.addf %5, %7 : vector<256x16xf32>
    %cst_7 = arith.constant 0.000000e+00 : f32
    %9 = vector.broadcast %cst_7 : f32 to vector<256x16xf32>
    %10 = arith.maximumf %8, %9 : vector<256x16xf32>
    %11 = arith.truncf %10 : vector<256x16xf32> to vector<256x16xbf16>
    %c0_8 = arith.constant 0 : index
    %c0_9 = arith.constant 0 : index
    %c0_10 = arith.constant 0 : index
    %12 = vector.load %arg4[%c0_8, %c0_9, %c0_10] : memref<9x64x256xbf16, #tpu.memory_space<vmem>>, vector<1x64x256xbf16>
    %13 = vector.shape_cast %12 : vector<1x64x256xbf16> to vector<64x256xbf16>
    %cst_11 = arith.constant dense<0.000000e+00> : vector<64x16xf32>
    %14 = tpu.matmul %13, %11, %cst_11 {dimension_numbers = #tpu.dot_dimension_numbers<[1], [0], [0], [1], [0, 0, 1, 1], [], []>} : vector<64x256xbf16>, vector<256x16xbf16>, vector<64x16xf32> -> vector<64x16xf32>
    %15 = arith.truncf %14 : vector<64x16xf32> to vector<64x16xbf16>
    %c0_12 = arith.constant 0 : index
    %c0_13 = arith.constant 0 : index
    %c0_14 = arith.constant 0 : index
    %16 = vector.load %arg5[%c0_12, %c0_13, %c0_14] : memref<9x16x32xbf16, #tpu.memory_space<vmem>>, vector<1x16x32xbf16>
    %17 = vector.shape_cast %16 : vector<1x16x32xbf16> to vector<16x32xbf16>
    %cst_15 = arith.constant dense<0.000000e+00> : vector<64x32xf32>
    %18 = tpu.matmul %15, %17, %cst_15 {dimension_numbers = #tpu.dot_dimension_numbers<[1], [0], [0], [1], [0, 0, 1, 1], [], []>} : vector<64x16xbf16>, vector<16x32xbf16>, vector<64x32xf32> -> vector<64x32xf32>
    %c1 = arith.constant 1 : index
    %c0_16 = arith.constant 0 : index
    %c0_17 = arith.constant 0 : index
    %19 = vector.load %arg4[%c1, %c0_16, %c0_17] : memref<9x64x256xbf16, #tpu.memory_space<vmem>>, vector<1x64x256xbf16>
    %20 = vector.shape_cast %19 : vector<1x64x256xbf16> to vector<64x256xbf16>
    %cst_18 = arith.constant dense<0.000000e+00> : vector<64x16xf32>
    %21 = tpu.matmul %20, %11, %cst_18 {dimension_numbers = #tpu.dot_dimension_numbers<[1], [0], [0], [1], [0, 0, 1, 1], [], []>} : vector<64x256xbf16>, vector<256x16xbf16>, vector<64x16xf32> -> vector<64x16xf32>
    %22 = arith.truncf %21 : vector<64x16xf32> to vector<64x16xbf16>
    %c1_19 = arith.constant 1 : index
    %c0_20 = arith.constant 0 : index
    %c0_21 = arith.constant 0 : index
    %23 = vector.load %arg5[%c1_19, %c0_20, %c0_21] : memref<9x16x32xbf16, #tpu.memory_space<vmem>>, vector<1x16x32xbf16>
    %24 = vector.shape_cast %23 : vector<1x16x32xbf16> to vector<16x32xbf16>
    %cst_22 = arith.constant dense<0.000000e+00> : vector<64x32xf32>
    %25 = tpu.matmul %22, %24, %cst_22 {dimension_numbers = #tpu.dot_dimension_numbers<[1], [0], [0], [1], [0, 0, 1, 1], [], []>} : vector<64x16xbf16>, vector<16x32xbf16>, vector<64x32xf32> -> vector<64x32xf32>
    %26 = arith.addf %18, %25 : vector<64x32xf32>
    %c2 = arith.constant 2 : index
    %c0_23 = arith.constant 0 : index
    %c0_24 = arith.constant 0 : index
    %27 = vector.load %arg4[%c2, %c0_23, %c0_24] : memref<9x64x256xbf16, #tpu.memory_space<vmem>>, vector<1x64x256xbf16>
    %28 = vector.shape_cast %27 : vector<1x64x256xbf16> to vector<64x256xbf16>
    %cst_25 = arith.constant dense<0.000000e+00> : vector<64x16xf32>
    %29 = tpu.matmul %28, %11, %cst_25 {dimension_numbers = #tpu.dot_dimension_numbers<[1], [0], [0], [1], [0, 0, 1, 1], [], []>} : vector<64x256xbf16>, vector<256x16xbf16>, vector<64x16xf32> -> vector<64x16xf32>
    %30 = arith.truncf %29 : vector<64x16xf32> to vector<64x16xbf16>
    %c2_26 = arith.constant 2 : index
    %c0_27 = arith.constant 0 : index
    %c0_28 = arith.constant 0 : index
    %31 = vector.load %arg5[%c2_26, %c0_27, %c0_28] : memref<9x16x32xbf16, #tpu.memory_space<vmem>>, vector<1x16x32xbf16>
    %32 = vector.shape_cast %31 : vector<1x16x32xbf16> to vector<16x32xbf16>
    %cst_29 = arith.constant dense<0.000000e+00> : vector<64x32xf32>
    %33 = tpu.matmul %30, %32, %cst_29 {dimension_numbers = #tpu.dot_dimension_numbers<[1], [0], [0], [1], [0, 0, 1, 1], [], []>} : vector<64x16xbf16>, vector<16x32xbf16>, vector<64x32xf32> -> vector<64x32xf32>
    %34 = arith.addf %26, %33 : vector<64x32xf32>
    %c3 = arith.constant 3 : index
    %c0_30 = arith.constant 0 : index
    %c0_31 = arith.constant 0 : index
    %35 = vector.load %arg4[%c3, %c0_30, %c0_31] : memref<9x64x256xbf16, #tpu.memory_space<vmem>>, vector<1x64x256xbf16>
    %36 = vector.shape_cast %35 : vector<1x64x256xbf16> to vector<64x256xbf16>
    %cst_32 = arith.constant dense<0.000000e+00> : vector<64x16xf32>
    %37 = tpu.matmul %36, %11, %cst_32 {dimension_numbers = #tpu.dot_dimension_numbers<[1], [0], [0], [1], [0, 0, 1, 1], [], []>} : vector<64x256xbf16>, vector<256x16xbf16>, vector<64x16xf32> -> vector<64x16xf32>
    %38 = arith.truncf %37 : vector<64x16xf32> to vector<64x16xbf16>
    %c3_33 = arith.constant 3 : index
    %c0_34 = arith.constant 0 : index
    %c0_35 = arith.constant 0 : index
    %39 = vector.load %arg5[%c3_33, %c0_34, %c0_35] : memref<9x16x32xbf16, #tpu.memory_space<vmem>>, vector<1x16x32xbf16>
    %40 = vector.shape_cast %39 : vector<1x16x32xbf16> to vector<16x32xbf16>
    %cst_36 = arith.constant dense<0.000000e+00> : vector<64x32xf32>
    %41 = tpu.matmul %38, %40, %cst_36 {dimension_numbers = #tpu.dot_dimension_numbers<[1], [0], [0], [1], [0, 0, 1, 1], [], []>} : vector<64x16xbf16>, vector<16x32xbf16>, vector<64x32xf32> -> vector<64x32xf32>
    %42 = arith.addf %34, %41 : vector<64x32xf32>
    %c4 = arith.constant 4 : index
    %c0_37 = arith.constant 0 : index
    %c0_38 = arith.constant 0 : index
    %43 = vector.load %arg4[%c4, %c0_37, %c0_38] : memref<9x64x256xbf16, #tpu.memory_space<vmem>>, vector<1x64x256xbf16>
    %44 = vector.shape_cast %43 : vector<1x64x256xbf16> to vector<64x256xbf16>
    %cst_39 = arith.constant dense<0.000000e+00> : vector<64x16xf32>
    %45 = tpu.matmul %44, %11, %cst_39 {dimension_numbers = #tpu.dot_dimension_numbers<[1], [0], [0], [1], [0, 0, 1, 1], [], []>} : vector<64x256xbf16>, vector<256x16xbf16>, vector<64x16xf32> -> vector<64x16xf32>
    %46 = arith.truncf %45 : vector<64x16xf32> to vector<64x16xbf16>
    %c4_40 = arith.constant 4 : index
    %c0_41 = arith.constant 0 : index
    %c0_42 = arith.constant 0 : index
    %47 = vector.load %arg5[%c4_40, %c0_41, %c0_42] : memref<9x16x32xbf16, #tpu.memory_space<vmem>>, vector<1x16x32xbf16>
    %48 = vector.shape_cast %47 : vector<1x16x32xbf16> to vector<16x32xbf16>
    %cst_43 = arith.constant dense<0.000000e+00> : vector<64x32xf32>
    %49 = tpu.matmul %46, %48, %cst_43 {dimension_numbers = #tpu.dot_dimension_numbers<[1], [0], [0], [1], [0, 0, 1, 1], [], []>} : vector<64x16xbf16>, vector<16x32xbf16>, vector<64x32xf32> -> vector<64x32xf32>
    %50 = arith.addf %42, %49 : vector<64x32xf32>
    %c5 = arith.constant 5 : index
    %c0_44 = arith.constant 0 : index
    %c0_45 = arith.constant 0 : index
    %51 = vector.load %arg4[%c5, %c0_44, %c0_45] : memref<9x64x256xbf16, #tpu.memory_space<vmem>>, vector<1x64x256xbf16>
    %52 = vector.shape_cast %51 : vector<1x64x256xbf16> to vector<64x256xbf16>
    %cst_46 = arith.constant dense<0.000000e+00> : vector<64x16xf32>
    %53 = tpu.matmul %52, %11, %cst_46 {dimension_numbers = #tpu.dot_dimension_numbers<[1], [0], [0], [1], [0, 0, 1, 1], [], []>} : vector<64x256xbf16>, vector<256x16xbf16>, vector<64x16xf32> -> vector<64x16xf32>
    %54 = arith.truncf %53 : vector<64x16xf32> to vector<64x16xbf16>
    %c5_47 = arith.constant 5 : index
    %c0_48 = arith.constant 0 : index
    %c0_49 = arith.constant 0 : index
    %55 = vector.load %arg5[%c5_47, %c0_48, %c0_49] : memref<9x16x32xbf16, #tpu.memory_space<vmem>>, vector<1x16x32xbf16>
    %56 = vector.shape_cast %55 : vector<1x16x32xbf16> to vector<16x32xbf16>
    %cst_50 = arith.constant dense<0.000000e+00> : vector<64x32xf32>
    %57 = tpu.matmul %54, %56, %cst_50 {dimension_numbers = #tpu.dot_dimension_numbers<[1], [0], [0], [1], [0, 0, 1, 1], [], []>} : vector<64x16xbf16>, vector<16x32xbf16>, vector<64x32xf32> -> vector<64x32xf32>
    %58 = arith.addf %50, %57 : vector<64x32xf32>
    %c6 = arith.constant 6 : index
    %c0_51 = arith.constant 0 : index
    %c0_52 = arith.constant 0 : index
    %59 = vector.load %arg4[%c6, %c0_51, %c0_52] : memref<9x64x256xbf16, #tpu.memory_space<vmem>>, vector<1x64x256xbf16>
    %60 = vector.shape_cast %59 : vector<1x64x256xbf16> to vector<64x256xbf16>
    %cst_53 = arith.constant dense<0.000000e+00> : vector<64x16xf32>
    %61 = tpu.matmul %60, %11, %cst_53 {dimension_numbers = #tpu.dot_dimension_numbers<[1], [0], [0], [1], [0, 0, 1, 1], [], []>} : vector<64x256xbf16>, vector<256x16xbf16>, vector<64x16xf32> -> vector<64x16xf32>
    %62 = arith.truncf %61 : vector<64x16xf32> to vector<64x16xbf16>
    %c6_54 = arith.constant 6 : index
    %c0_55 = arith.constant 0 : index
    %c0_56 = arith.constant 0 : index
    %63 = vector.load %arg5[%c6_54, %c0_55, %c0_56] : memref<9x16x32xbf16, #tpu.memory_space<vmem>>, vector<1x16x32xbf16>
    %64 = vector.shape_cast %63 : vector<1x16x32xbf16> to vector<16x32xbf16>
    %cst_57 = arith.constant dense<0.000000e+00> : vector<64x32xf32>
    %65 = tpu.matmul %62, %64, %cst_57 {dimension_numbers = #tpu.dot_dimension_numbers<[1], [0], [0], [1], [0, 0, 1, 1], [], []>} : vector<64x16xbf16>, vector<16x32xbf16>, vector<64x32xf32> -> vector<64x32xf32>
    %66 = arith.addf %58, %65 : vector<64x32xf32>
    %c7 = arith.constant 7 : index
    %c0_58 = arith.constant 0 : index
    %c0_59 = arith.constant 0 : index
    %67 = vector.load %arg4[%c7, %c0_58, %c0_59] : memref<9x64x256xbf16, #tpu.memory_space<vmem>>, vector<1x64x256xbf16>
    %68 = vector.shape_cast %67 : vector<1x64x256xbf16> to vector<64x256xbf16>
    %cst_60 = arith.constant dense<0.000000e+00> : vector<64x16xf32>
    %69 = tpu.matmul %68, %11, %cst_60 {dimension_numbers = #tpu.dot_dimension_numbers<[1], [0], [0], [1], [0, 0, 1, 1], [], []>} : vector<64x256xbf16>, vector<256x16xbf16>, vector<64x16xf32> -> vector<64x16xf32>
    %70 = arith.truncf %69 : vector<64x16xf32> to vector<64x16xbf16>
    %c7_61 = arith.constant 7 : index
    %c0_62 = arith.constant 0 : index
    %c0_63 = arith.constant 0 : index
    %71 = vector.load %arg5[%c7_61, %c0_62, %c0_63] : memref<9x16x32xbf16, #tpu.memory_space<vmem>>, vector<1x16x32xbf16>
    %72 = vector.shape_cast %71 : vector<1x16x32xbf16> to vector<16x32xbf16>
    %cst_64 = arith.constant dense<0.000000e+00> : vector<64x32xf32>
    %73 = tpu.matmul %70, %72, %cst_64 {dimension_numbers = #tpu.dot_dimension_numbers<[1], [0], [0], [1], [0, 0, 1, 1], [], []>} : vector<64x16xbf16>, vector<16x32xbf16>, vector<64x32xf32> -> vector<64x32xf32>
    %74 = arith.addf %66, %73 : vector<64x32xf32>
    %c8 = arith.constant 8 : index
    %c0_65 = arith.constant 0 : index
    %c0_66 = arith.constant 0 : index
    %75 = vector.load %arg4[%c8, %c0_65, %c0_66] : memref<9x64x256xbf16, #tpu.memory_space<vmem>>, vector<1x64x256xbf16>
    %76 = vector.shape_cast %75 : vector<1x64x256xbf16> to vector<64x256xbf16>
    %cst_67 = arith.constant dense<0.000000e+00> : vector<64x16xf32>
    %77 = tpu.matmul %76, %11, %cst_67 {dimension_numbers = #tpu.dot_dimension_numbers<[1], [0], [0], [1], [0, 0, 1, 1], [], []>} : vector<64x256xbf16>, vector<256x16xbf16>, vector<64x16xf32> -> vector<64x16xf32>
    %78 = arith.truncf %77 : vector<64x16xf32> to vector<64x16xbf16>
    %c8_68 = arith.constant 8 : index
    %c0_69 = arith.constant 0 : index
    %c0_70 = arith.constant 0 : index
    %79 = vector.load %arg5[%c8_68, %c0_69, %c0_70] : memref<9x16x32xbf16, #tpu.memory_space<vmem>>, vector<1x16x32xbf16>
    %80 = vector.shape_cast %79 : vector<1x16x32xbf16> to vector<16x32xbf16>
    %cst_71 = arith.constant dense<0.000000e+00> : vector<64x32xf32>
    %81 = tpu.matmul %78, %80, %cst_71 {dimension_numbers = #tpu.dot_dimension_numbers<[1], [0], [0], [1], [0, 0, 1, 1], [], []>} : vector<64x16xbf16>, vector<16x32xbf16>, vector<64x32xf32> -> vector<64x32xf32>
    %82 = arith.addf %74, %81 : vector<64x32xf32>
    %c0_72 = arith.constant 0 : index
    %c0_73 = arith.constant 0 : index
    %83 = vector.load %arg6[%c0_72, %c0_73] : memref<1x32xf32, #tpu.memory_space<vmem>>, vector<1x32xf32>
    %84 = vector.broadcast %83 : vector<1x32xf32> to vector<64x32xf32>
    %85 = arith.addf %82, %84 : vector<64x32xf32>
    %cst_74 = arith.constant 0.000000e+00 : f32
    %86 = vector.broadcast %cst_74 : f32 to vector<64x32xf32>
    %87 = arith.maximumf %85, %86 : vector<64x32xf32>
    %88 = arith.truncf %87 : vector<64x32xf32> to vector<64x32xbf16>
    %c0_75 = arith.constant 0 : index
    %c0_76 = arith.constant 0 : index
    %c0_77 = arith.constant 0 : index
    %89 = vector.load %arg7[%c0_75, %c0_76, %c0_77] : memref<9x16x64xbf16, #tpu.memory_space<vmem>>, vector<1x16x64xbf16>
    %90 = vector.shape_cast %89 : vector<1x16x64xbf16> to vector<16x64xbf16>
    %cst_78 = arith.constant dense<0.000000e+00> : vector<16x32xf32>
    %91 = tpu.matmul %90, %88, %cst_78 {dimension_numbers = #tpu.dot_dimension_numbers<[1], [0], [0], [1], [0, 0, 1, 1], [], []>} : vector<16x64xbf16>, vector<64x32xbf16>, vector<16x32xf32> -> vector<16x32xf32>
    %92 = arith.truncf %91 : vector<16x32xf32> to vector<16x32xbf16>
    %c0_79 = arith.constant 0 : index
    %c0_80 = arith.constant 0 : index
    %c0_81 = arith.constant 0 : index
    %93 = vector.load %arg8[%c0_79, %c0_80, %c0_81] : memref<9x32x64xbf16, #tpu.memory_space<vmem>>, vector<1x32x64xbf16>
    %94 = vector.shape_cast %93 : vector<1x32x64xbf16> to vector<32x64xbf16>
    %cst_82 = arith.constant dense<0.000000e+00> : vector<16x64xf32>
    %95 = tpu.matmul %92, %94, %cst_82 {dimension_numbers = #tpu.dot_dimension_numbers<[1], [0], [0], [1], [0, 0, 1, 1], [], []>} : vector<16x32xbf16>, vector<32x64xbf16>, vector<16x64xf32> -> vector<16x64xf32>
    %c1_83 = arith.constant 1 : index
    %c0_84 = arith.constant 0 : index
    %c0_85 = arith.constant 0 : index
    %96 = vector.load %arg7[%c1_83, %c0_84, %c0_85] : memref<9x16x64xbf16, #tpu.memory_space<vmem>>, vector<1x16x64xbf16>
    %97 = vector.shape_cast %96 : vector<1x16x64xbf16> to vector<16x64xbf16>
    %cst_86 = arith.constant dense<0.000000e+00> : vector<16x32xf32>
    %98 = tpu.matmul %97, %88, %cst_86 {dimension_numbers = #tpu.dot_dimension_numbers<[1], [0], [0], [1], [0, 0, 1, 1], [], []>} : vector<16x64xbf16>, vector<64x32xbf16>, vector<16x32xf32> -> vector<16x32xf32>
    %99 = arith.truncf %98 : vector<16x32xf32> to vector<16x32xbf16>
    %c1_87 = arith.constant 1 : index
    %c0_88 = arith.constant 0 : index
    %c0_89 = arith.constant 0 : index
    %100 = vector.load %arg8[%c1_87, %c0_88, %c0_89] : memref<9x32x64xbf16, #tpu.memory_space<vmem>>, vector<1x32x64xbf16>
    %101 = vector.shape_cast %100 : vector<1x32x64xbf16> to vector<32x64xbf16>
    %cst_90 = arith.constant dense<0.000000e+00> : vector<16x64xf32>
    %102 = tpu.matmul %99, %101, %cst_90 {dimension_numbers = #tpu.dot_dimension_numbers<[1], [0], [0], [1], [0, 0, 1, 1], [], []>} : vector<16x32xbf16>, vector<32x64xbf16>, vector<16x64xf32> -> vector<16x64xf32>
    %103 = arith.addf %95, %102 : vector<16x64xf32>
    %c2_91 = arith.constant 2 : index
    %c0_92 = arith.constant 0 : index
    %c0_93 = arith.constant 0 : index
    %104 = vector.load %arg7[%c2_91, %c0_92, %c0_93] : memref<9x16x64xbf16, #tpu.memory_space<vmem>>, vector<1x16x64xbf16>
    %105 = vector.shape_cast %104 : vector<1x16x64xbf16> to vector<16x64xbf16>
    %cst_94 = arith.constant dense<0.000000e+00> : vector<16x32xf32>
    %106 = tpu.matmul %105, %88, %cst_94 {dimension_numbers = #tpu.dot_dimension_numbers<[1], [0], [0], [1], [0, 0, 1, 1], [], []>} : vector<16x64xbf16>, vector<64x32xbf16>, vector<16x32xf32> -> vector<16x32xf32>
    %107 = arith.truncf %106 : vector<16x32xf32> to vector<16x32xbf16>
    %c2_95 = arith.constant 2 : index
    %c0_96 = arith.constant 0 : index
    %c0_97 = arith.constant 0 : index
    %108 = vector.load %arg8[%c2_95, %c0_96, %c0_97] : memref<9x32x64xbf16, #tpu.memory_space<vmem>>, vector<1x32x64xbf16>
    %109 = vector.shape_cast %108 : vector<1x32x64xbf16> to vector<32x64xbf16>
    %cst_98 = arith.constant dense<0.000000e+00> : vector<16x64xf32>
    %110 = tpu.matmul %107, %109, %cst_98 {dimension_numbers = #tpu.dot_dimension_numbers<[1], [0], [0], [1], [0, 0, 1, 1], [], []>} : vector<16x32xbf16>, vector<32x64xbf16>, vector<16x64xf32> -> vector<16x64xf32>
    %111 = arith.addf %103, %110 : vector<16x64xf32>
    %c3_99 = arith.constant 3 : index
    %c0_100 = arith.constant 0 : index
    %c0_101 = arith.constant 0 : index
    %112 = vector.load %arg7[%c3_99, %c0_100, %c0_101] : memref<9x16x64xbf16, #tpu.memory_space<vmem>>, vector<1x16x64xbf16>
    %113 = vector.shape_cast %112 : vector<1x16x64xbf16> to vector<16x64xbf16>
    %cst_102 = arith.constant dense<0.000000e+00> : vector<16x32xf32>
    %114 = tpu.matmul %113, %88, %cst_102 {dimension_numbers = #tpu.dot_dimension_numbers<[1], [0], [0], [1], [0, 0, 1, 1], [], []>} : vector<16x64xbf16>, vector<64x32xbf16>, vector<16x32xf32> -> vector<16x32xf32>
    %115 = arith.truncf %114 : vector<16x32xf32> to vector<16x32xbf16>
    %c3_103 = arith.constant 3 : index
    %c0_104 = arith.constant 0 : index
    %c0_105 = arith.constant 0 : index
    %116 = vector.load %arg8[%c3_103, %c0_104, %c0_105] : memref<9x32x64xbf16, #tpu.memory_space<vmem>>, vector<1x32x64xbf16>
    %117 = vector.shape_cast %116 : vector<1x32x64xbf16> to vector<32x64xbf16>
    %cst_106 = arith.constant dense<0.000000e+00> : vector<16x64xf32>
    %118 = tpu.matmul %115, %117, %cst_106 {dimension_numbers = #tpu.dot_dimension_numbers<[1], [0], [0], [1], [0, 0, 1, 1], [], []>} : vector<16x32xbf16>, vector<32x64xbf16>, vector<16x64xf32> -> vector<16x64xf32>
    %119 = arith.addf %111, %118 : vector<16x64xf32>
    %c4_107 = arith.constant 4 : index
    %c0_108 = arith.constant 0 : index
    %c0_109 = arith.constant 0 : index
    %120 = vector.load %arg7[%c4_107, %c0_108, %c0_109] : memref<9x16x64xbf16, #tpu.memory_space<vmem>>, vector<1x16x64xbf16>
    %121 = vector.shape_cast %120 : vector<1x16x64xbf16> to vector<16x64xbf16>
    %cst_110 = arith.constant dense<0.000000e+00> : vector<16x32xf32>
    %122 = tpu.matmul %121, %88, %cst_110 {dimension_numbers = #tpu.dot_dimension_numbers<[1], [0], [0], [1], [0, 0, 1, 1], [], []>} : vector<16x64xbf16>, vector<64x32xbf16>, vector<16x32xf32> -> vector<16x32xf32>
    %123 = arith.truncf %122 : vector<16x32xf32> to vector<16x32xbf16>
    %c4_111 = arith.constant 4 : index
    %c0_112 = arith.constant 0 : index
    %c0_113 = arith.constant 0 : index
    %124 = vector.load %arg8[%c4_111, %c0_112, %c0_113] : memref<9x32x64xbf16, #tpu.memory_space<vmem>>, vector<1x32x64xbf16>
    %125 = vector.shape_cast %124 : vector<1x32x64xbf16> to vector<32x64xbf16>
    %cst_114 = arith.constant dense<0.000000e+00> : vector<16x64xf32>
    %126 = tpu.matmul %123, %125, %cst_114 {dimension_numbers = #tpu.dot_dimension_numbers<[1], [0], [0], [1], [0, 0, 1, 1], [], []>} : vector<16x32xbf16>, vector<32x64xbf16>, vector<16x64xf32> -> vector<16x64xf32>
    %127 = arith.addf %119, %126 : vector<16x64xf32>
    %c5_115 = arith.constant 5 : index
    %c0_116 = arith.constant 0 : index
    %c0_117 = arith.constant 0 : index
    %128 = vector.load %arg7[%c5_115, %c0_116, %c0_117] : memref<9x16x64xbf16, #tpu.memory_space<vmem>>, vector<1x16x64xbf16>
    %129 = vector.shape_cast %128 : vector<1x16x64xbf16> to vector<16x64xbf16>
    %cst_118 = arith.constant dense<0.000000e+00> : vector<16x32xf32>
    %130 = tpu.matmul %129, %88, %cst_118 {dimension_numbers = #tpu.dot_dimension_numbers<[1], [0], [0], [1], [0, 0, 1, 1], [], []>} : vector<16x64xbf16>, vector<64x32xbf16>, vector<16x32xf32> -> vector<16x32xf32>
    %131 = arith.truncf %130 : vector<16x32xf32> to vector<16x32xbf16>
    %c5_119 = arith.constant 5 : index
    %c0_120 = arith.constant 0 : index
    %c0_121 = arith.constant 0 : index
    %132 = vector.load %arg8[%c5_119, %c0_120, %c0_121] : memref<9x32x64xbf16, #tpu.memory_space<vmem>>, vector<1x32x64xbf16>
    %133 = vector.shape_cast %132 : vector<1x32x64xbf16> to vector<32x64xbf16>
    %cst_122 = arith.constant dense<0.000000e+00> : vector<16x64xf32>
    %134 = tpu.matmul %131, %133, %cst_122 {dimension_numbers = #tpu.dot_dimension_numbers<[1], [0], [0], [1], [0, 0, 1, 1], [], []>} : vector<16x32xbf16>, vector<32x64xbf16>, vector<16x64xf32> -> vector<16x64xf32>
    %135 = arith.addf %127, %134 : vector<16x64xf32>
    %c6_123 = arith.constant 6 : index
    %c0_124 = arith.constant 0 : index
    %c0_125 = arith.constant 0 : index
    %136 = vector.load %arg7[%c6_123, %c0_124, %c0_125] : memref<9x16x64xbf16, #tpu.memory_space<vmem>>, vector<1x16x64xbf16>
    %137 = vector.shape_cast %136 : vector<1x16x64xbf16> to vector<16x64xbf16>
    %cst_126 = arith.constant dense<0.000000e+00> : vector<16x32xf32>
    %138 = tpu.matmul %137, %88, %cst_126 {dimension_numbers = #tpu.dot_dimension_numbers<[1], [0], [0], [1], [0, 0, 1, 1], [], []>} : vector<16x64xbf16>, vector<64x32xbf16>, vector<16x32xf32> -> vector<16x32xf32>
    %139 = arith.truncf %138 : vector<16x32xf32> to vector<16x32xbf16>
    %c6_127 = arith.constant 6 : index
    %c0_128 = arith.constant 0 : index
    %c0_129 = arith.constant 0 : index
    %140 = vector.load %arg8[%c6_127, %c0_128, %c0_129] : memref<9x32x64xbf16, #tpu.memory_space<vmem>>, vector<1x32x64xbf16>
    %141 = vector.shape_cast %140 : vector<1x32x64xbf16> to vector<32x64xbf16>
    %cst_130 = arith.constant dense<0.000000e+00> : vector<16x64xf32>
    %142 = tpu.matmul %139, %141, %cst_130 {dimension_numbers = #tpu.dot_dimension_numbers<[1], [0], [0], [1], [0, 0, 1, 1], [], []>} : vector<16x32xbf16>, vector<32x64xbf16>, vector<16x64xf32> -> vector<16x64xf32>
    %143 = arith.addf %135, %142 : vector<16x64xf32>
    %c7_131 = arith.constant 7 : index
    %c0_132 = arith.constant 0 : index
    %c0_133 = arith.constant 0 : index
    %144 = vector.load %arg7[%c7_131, %c0_132, %c0_133] : memref<9x16x64xbf16, #tpu.memory_space<vmem>>, vector<1x16x64xbf16>
    %145 = vector.shape_cast %144 : vector<1x16x64xbf16> to vector<16x64xbf16>
    %cst_134 = arith.constant dense<0.000000e+00> : vector<16x32xf32>
    %146 = tpu.matmul %145, %88, %cst_134 {dimension_numbers = #tpu.dot_dimension_numbers<[1], [0], [0], [1], [0, 0, 1, 1], [], []>} : vector<16x64xbf16>, vector<64x32xbf16>, vector<16x32xf32> -> vector<16x32xf32>
    %147 = arith.truncf %146 : vector<16x32xf32> to vector<16x32xbf16>
    %c7_135 = arith.constant 7 : index
    %c0_136 = arith.constant 0 : index
    %c0_137 = arith.constant 0 : index
    %148 = vector.load %arg8[%c7_135, %c0_136, %c0_137] : memref<9x32x64xbf16, #tpu.memory_space<vmem>>, vector<1x32x64xbf16>
    %149 = vector.shape_cast %148 : vector<1x32x64xbf16> to vector<32x64xbf16>
    %cst_138 = arith.constant dense<0.000000e+00> : vector<16x64xf32>
    %150 = tpu.matmul %147, %149, %cst_138 {dimension_numbers = #tpu.dot_dimension_numbers<[1], [0], [0], [1], [0, 0, 1, 1], [], []>} : vector<16x32xbf16>, vector<32x64xbf16>, vector<16x64xf32> -> vector<16x64xf32>
    %151 = arith.addf %143, %150 : vector<16x64xf32>
    %c8_139 = arith.constant 8 : index
    %c0_140 = arith.constant 0 : index
    %c0_141 = arith.constant 0 : index
    %152 = vector.load %arg7[%c8_139, %c0_140, %c0_141] : memref<9x16x64xbf16, #tpu.memory_space<vmem>>, vector<1x16x64xbf16>
    %153 = vector.shape_cast %152 : vector<1x16x64xbf16> to vector<16x64xbf16>
    %cst_142 = arith.constant dense<0.000000e+00> : vector<16x32xf32>
    %154 = tpu.matmul %153, %88, %cst_142 {dimension_numbers = #tpu.dot_dimension_numbers<[1], [0], [0], [1], [0, 0, 1, 1], [], []>} : vector<16x64xbf16>, vector<64x32xbf16>, vector<16x32xf32> -> vector<16x32xf32>
    %155 = arith.truncf %154 : vector<16x32xf32> to vector<16x32xbf16>
    %c8_143 = arith.constant 8 : index
    %c0_144 = arith.constant 0 : index
    %c0_145 = arith.constant 0 : index
    %156 = vector.load %arg8[%c8_143, %c0_144, %c0_145] : memref<9x32x64xbf16, #tpu.memory_space<vmem>>, vector<1x32x64xbf16>
    %157 = vector.shape_cast %156 : vector<1x32x64xbf16> to vector<32x64xbf16>
    %cst_146 = arith.constant dense<0.000000e+00> : vector<16x64xf32>
    %158 = tpu.matmul %155, %157, %cst_146 {dimension_numbers = #tpu.dot_dimension_numbers<[1], [0], [0], [1], [0, 0, 1, 1], [], []>} : vector<16x32xbf16>, vector<32x64xbf16>, vector<16x64xf32> -> vector<16x64xf32>
    %159 = arith.addf %151, %158 : vector<16x64xf32>
    %c0_147 = arith.constant 0 : index
    %c0_148 = arith.constant 0 : index
    %160 = vector.load %arg9[%c0_147, %c0_148] : memref<1x64xf32, #tpu.memory_space<vmem>>, vector<1x64xf32>
    %161 = vector.broadcast %160 : vector<1x64xf32> to vector<16x64xf32>
    %162 = arith.addf %159, %161 : vector<16x64xf32>
    %cst_149 = arith.constant 0.000000e+00 : f32
    %163 = vector.broadcast %cst_149 : f32 to vector<16x64xf32>
    %164 = arith.maximumf %162, %163 : vector<16x64xf32>
    %165 = arith.truncf %164 : vector<16x64xf32> to vector<16x64xbf16>
    %c0_150 = arith.constant 0 : index
    %c0_151 = arith.constant 0 : index
    %c0_152 = arith.constant 0 : index
    %166 = vector.load %arg10[%c0_150, %c0_151, %c0_152] : memref<9x4x16xbf16, #tpu.memory_space<vmem>>, vector<1x4x16xbf16>
    %167 = vector.shape_cast %166 : vector<1x4x16xbf16> to vector<4x16xbf16>
    %cst_153 = arith.constant dense<0.000000e+00> : vector<4x64xf32>
    %168 = tpu.matmul %167, %165, %cst_153 {dimension_numbers = #tpu.dot_dimension_numbers<[1], [0], [0], [1], [0, 0, 1, 1], [], []>} : vector<4x16xbf16>, vector<16x64xbf16>, vector<4x64xf32> -> vector<4x64xf32>
    %169 = arith.truncf %168 : vector<4x64xf32> to vector<4x64xbf16>
    %c0_154 = arith.constant 0 : index
    %c0_155 = arith.constant 0 : index
    %c0_156 = arith.constant 0 : index
    %170 = vector.load %arg11[%c0_154, %c0_155, %c0_156] : memref<9x64x64xbf16, #tpu.memory_space<vmem>>, vector<1x64x64xbf16>
    %171 = vector.shape_cast %170 : vector<1x64x64xbf16> to vector<64x64xbf16>
    %cst_157 = arith.constant dense<0.000000e+00> : vector<4x64xf32>
    %172 = tpu.matmul %169, %171, %cst_157 {dimension_numbers = #tpu.dot_dimension_numbers<[1], [0], [0], [1], [0, 0, 1, 1], [], []>} : vector<4x64xbf16>, vector<64x64xbf16>, vector<4x64xf32> -> vector<4x64xf32>
    %c1_158 = arith.constant 1 : index
    %c0_159 = arith.constant 0 : index
    %c0_160 = arith.constant 0 : index
    %173 = vector.load %arg10[%c1_158, %c0_159, %c0_160] : memref<9x4x16xbf16, #tpu.memory_space<vmem>>, vector<1x4x16xbf16>
    %174 = vector.shape_cast %173 : vector<1x4x16xbf16> to vector<4x16xbf16>
    %cst_161 = arith.constant dense<0.000000e+00> : vector<4x64xf32>
    %175 = tpu.matmul %174, %165, %cst_161 {dimension_numbers = #tpu.dot_dimension_numbers<[1], [0], [0], [1], [0, 0, 1, 1], [], []>} : vector<4x16xbf16>, vector<16x64xbf16>, vector<4x64xf32> -> vector<4x64xf32>
    %176 = arith.truncf %175 : vector<4x64xf32> to vector<4x64xbf16>
    %c1_162 = arith.constant 1 : index
    %c0_163 = arith.constant 0 : index
    %c0_164 = arith.constant 0 : index
    %177 = vector.load %arg11[%c1_162, %c0_163, %c0_164] : memref<9x64x64xbf16, #tpu.memory_space<vmem>>, vector<1x64x64xbf16>
    %178 = vector.shape_cast %177 : vector<1x64x64xbf16> to vector<64x64xbf16>
    %cst_165 = arith.constant dense<0.000000e+00> : vector<4x64xf32>
    %179 = tpu.matmul %176, %178, %cst_165 {dimension_numbers = #tpu.dot_dimension_numbers<[1], [0], [0], [1], [0, 0, 1, 1], [], []>} : vector<4x64xbf16>, vector<64x64xbf16>, vector<4x64xf32> -> vector<4x64xf32>
    %180 = arith.addf %172, %179 : vector<4x64xf32>
    %c2_166 = arith.constant 2 : index
    %c0_167 = arith.constant 0 : index
    %c0_168 = arith.constant 0 : index
    %181 = vector.load %arg10[%c2_166, %c0_167, %c0_168] : memref<9x4x16xbf16, #tpu.memory_space<vmem>>, vector<1x4x16xbf16>
    %182 = vector.shape_cast %181 : vector<1x4x16xbf16> to vector<4x16xbf16>
    %cst_169 = arith.constant dense<0.000000e+00> : vector<4x64xf32>
    %183 = tpu.matmul %182, %165, %cst_169 {dimension_numbers = #tpu.dot_dimension_numbers<[1], [0], [0], [1], [0, 0, 1, 1], [], []>} : vector<4x16xbf16>, vector<16x64xbf16>, vector<4x64xf32> -> vector<4x64xf32>
    %184 = arith.truncf %183 : vector<4x64xf32> to vector<4x64xbf16>
    %c2_170 = arith.constant 2 : index
    %c0_171 = arith.constant 0 : index
    %c0_172 = arith.constant 0 : index
    %185 = vector.load %arg11[%c2_170, %c0_171, %c0_172] : memref<9x64x64xbf16, #tpu.memory_space<vmem>>, vector<1x64x64xbf16>
    %186 = vector.shape_cast %185 : vector<1x64x64xbf16> to vector<64x64xbf16>
    %cst_173 = arith.constant dense<0.000000e+00> : vector<4x64xf32>
    %187 = tpu.matmul %184, %186, %cst_173 {dimension_numbers = #tpu.dot_dimension_numbers<[1], [0], [0], [1], [0, 0, 1, 1], [], []>} : vector<4x64xbf16>, vector<64x64xbf16>, vector<4x64xf32> -> vector<4x64xf32>
    %188 = arith.addf %180, %187 : vector<4x64xf32>
    %c3_174 = arith.constant 3 : index
    %c0_175 = arith.constant 0 : index
    %c0_176 = arith.constant 0 : index
    %189 = vector.load %arg10[%c3_174, %c0_175, %c0_176] : memref<9x4x16xbf16, #tpu.memory_space<vmem>>, vector<1x4x16xbf16>
    %190 = vector.shape_cast %189 : vector<1x4x16xbf16> to vector<4x16xbf16>
    %cst_177 = arith.constant dense<0.000000e+00> : vector<4x64xf32>
    %191 = tpu.matmul %190, %165, %cst_177 {dimension_numbers = #tpu.dot_dimension_numbers<[1], [0], [0], [1], [0, 0, 1, 1], [], []>} : vector<4x16xbf16>, vector<16x64xbf16>, vector<4x64xf32> -> vector<4x64xf32>
    %192 = arith.truncf %191 : vector<4x64xf32> to vector<4x64xbf16>
    %c3_178 = arith.constant 3 : index
    %c0_179 = arith.constant 0 : index
    %c0_180 = arith.constant 0 : index
    %193 = vector.load %arg11[%c3_178, %c0_179, %c0_180] : memref<9x64x64xbf16, #tpu.memory_space<vmem>>, vector<1x64x64xbf16>
    %194 = vector.shape_cast %193 : vector<1x64x64xbf16> to vector<64x64xbf16>
    %cst_181 = arith.constant dense<0.000000e+00> : vector<4x64xf32>
    %195 = tpu.matmul %192, %194, %cst_181 {dimension_numbers = #tpu.dot_dimension_numbers<[1], [0], [0], [1], [0, 0, 1, 1], [], []>} : vector<4x64xbf16>, vector<64x64xbf16>, vector<4x64xf32> -> vector<4x64xf32>
    %196 = arith.addf %188, %195 : vector<4x64xf32>
    %c4_182 = arith.constant 4 : index
    %c0_183 = arith.constant 0 : index
    %c0_184 = arith.constant 0 : index
    %197 = vector.load %arg10[%c4_182, %c0_183, %c0_184] : memref<9x4x16xbf16, #tpu.memory_space<vmem>>, vector<1x4x16xbf16>
    %198 = vector.shape_cast %197 : vector<1x4x16xbf16> to vector<4x16xbf16>
    %cst_185 = arith.constant dense<0.000000e+00> : vector<4x64xf32>
    %199 = tpu.matmul %198, %165, %cst_185 {dimension_numbers = #tpu.dot_dimension_numbers<[1], [0], [0], [1], [0, 0, 1, 1], [], []>} : vector<4x16xbf16>, vector<16x64xbf16>, vector<4x64xf32> -> vector<4x64xf32>
    %200 = arith.truncf %199 : vector<4x64xf32> to vector<4x64xbf16>
    %c4_186 = arith.constant 4 : index
    %c0_187 = arith.constant 0 : index
    %c0_188 = arith.constant 0 : index
    %201 = vector.load %arg11[%c4_186, %c0_187, %c0_188] : memref<9x64x64xbf16, #tpu.memory_space<vmem>>, vector<1x64x64xbf16>
    %202 = vector.shape_cast %201 : vector<1x64x64xbf16> to vector<64x64xbf16>
    %cst_189 = arith.constant dense<0.000000e+00> : vector<4x64xf32>
    %203 = tpu.matmul %200, %202, %cst_189 {dimension_numbers = #tpu.dot_dimension_numbers<[1], [0], [0], [1], [0, 0, 1, 1], [], []>} : vector<4x64xbf16>, vector<64x64xbf16>, vector<4x64xf32> -> vector<4x64xf32>
    %204 = arith.addf %196, %203 : vector<4x64xf32>
    %c5_190 = arith.constant 5 : index
    %c0_191 = arith.constant 0 : index
    %c0_192 = arith.constant 0 : index
    %205 = vector.load %arg10[%c5_190, %c0_191, %c0_192] : memref<9x4x16xbf16, #tpu.memory_space<vmem>>, vector<1x4x16xbf16>
    %206 = vector.shape_cast %205 : vector<1x4x16xbf16> to vector<4x16xbf16>
    %cst_193 = arith.constant dense<0.000000e+00> : vector<4x64xf32>
    %207 = tpu.matmul %206, %165, %cst_193 {dimension_numbers = #tpu.dot_dimension_numbers<[1], [0], [0], [1], [0, 0, 1, 1], [], []>} : vector<4x16xbf16>, vector<16x64xbf16>, vector<4x64xf32> -> vector<4x64xf32>
    %208 = arith.truncf %207 : vector<4x64xf32> to vector<4x64xbf16>
    %c5_194 = arith.constant 5 : index
    %c0_195 = arith.constant 0 : index
    %c0_196 = arith.constant 0 : index
    %209 = vector.load %arg11[%c5_194, %c0_195, %c0_196] : memref<9x64x64xbf16, #tpu.memory_space<vmem>>, vector<1x64x64xbf16>
    %210 = vector.shape_cast %209 : vector<1x64x64xbf16> to vector<64x64xbf16>
    %cst_197 = arith.constant dense<0.000000e+00> : vector<4x64xf32>
    %211 = tpu.matmul %208, %210, %cst_197 {dimension_numbers = #tpu.dot_dimension_numbers<[1], [0], [0], [1], [0, 0, 1, 1], [], []>} : vector<4x64xbf16>, vector<64x64xbf16>, vector<4x64xf32> -> vector<4x64xf32>
    %212 = arith.addf %204, %211 : vector<4x64xf32>
    %c6_198 = arith.constant 6 : index
    %c0_199 = arith.constant 0 : index
    %c0_200 = arith.constant 0 : index
    %213 = vector.load %arg10[%c6_198, %c0_199, %c0_200] : memref<9x4x16xbf16, #tpu.memory_space<vmem>>, vector<1x4x16xbf16>
    %214 = vector.shape_cast %213 : vector<1x4x16xbf16> to vector<4x16xbf16>
    %cst_201 = arith.constant dense<0.000000e+00> : vector<4x64xf32>
    %215 = tpu.matmul %214, %165, %cst_201 {dimension_numbers = #tpu.dot_dimension_numbers<[1], [0], [0], [1], [0, 0, 1, 1], [], []>} : vector<4x16xbf16>, vector<16x64xbf16>, vector<4x64xf32> -> vector<4x64xf32>
    %216 = arith.truncf %215 : vector<4x64xf32> to vector<4x64xbf16>
    %c6_202 = arith.constant 6 : index
    %c0_203 = arith.constant 0 : index
    %c0_204 = arith.constant 0 : index
    %217 = vector.load %arg11[%c6_202, %c0_203, %c0_204] : memref<9x64x64xbf16, #tpu.memory_space<vmem>>, vector<1x64x64xbf16>
    %218 = vector.shape_cast %217 : vector<1x64x64xbf16> to vector<64x64xbf16>
    %cst_205 = arith.constant dense<0.000000e+00> : vector<4x64xf32>
    %219 = tpu.matmul %216, %218, %cst_205 {dimension_numbers = #tpu.dot_dimension_numbers<[1], [0], [0], [1], [0, 0, 1, 1], [], []>} : vector<4x64xbf16>, vector<64x64xbf16>, vector<4x64xf32> -> vector<4x64xf32>
    %220 = arith.addf %212, %219 : vector<4x64xf32>
    %c7_206 = arith.constant 7 : index
    %c0_207 = arith.constant 0 : index
    %c0_208 = arith.constant 0 : index
    %221 = vector.load %arg10[%c7_206, %c0_207, %c0_208] : memref<9x4x16xbf16, #tpu.memory_space<vmem>>, vector<1x4x16xbf16>
    %222 = vector.shape_cast %221 : vector<1x4x16xbf16> to vector<4x16xbf16>
    %cst_209 = arith.constant dense<0.000000e+00> : vector<4x64xf32>
    %223 = tpu.matmul %222, %165, %cst_209 {dimension_numbers = #tpu.dot_dimension_numbers<[1], [0], [0], [1], [0, 0, 1, 1], [], []>} : vector<4x16xbf16>, vector<16x64xbf16>, vector<4x64xf32> -> vector<4x64xf32>
    %224 = arith.truncf %223 : vector<4x64xf32> to vector<4x64xbf16>
    %c7_210 = arith.constant 7 : index
    %c0_211 = arith.constant 0 : index
    %c0_212 = arith.constant 0 : index
    %225 = vector.load %arg11[%c7_210, %c0_211, %c0_212] : memref<9x64x64xbf16, #tpu.memory_space<vmem>>, vector<1x64x64xbf16>
    %226 = vector.shape_cast %225 : vector<1x64x64xbf16> to vector<64x64xbf16>
    %cst_213 = arith.constant dense<0.000000e+00> : vector<4x64xf32>
    %227 = tpu.matmul %224, %226, %cst_213 {dimension_numbers = #tpu.dot_dimension_numbers<[1], [0], [0], [1], [0, 0, 1, 1], [], []>} : vector<4x64xbf16>, vector<64x64xbf16>, vector<4x64xf32> -> vector<4x64xf32>
    %228 = arith.addf %220, %227 : vector<4x64xf32>
    %c8_214 = arith.constant 8 : index
    %c0_215 = arith.constant 0 : index
    %c0_216 = arith.constant 0 : index
    %229 = vector.load %arg10[%c8_214, %c0_215, %c0_216] : memref<9x4x16xbf16, #tpu.memory_space<vmem>>, vector<1x4x16xbf16>
    %230 = vector.shape_cast %229 : vector<1x4x16xbf16> to vector<4x16xbf16>
    %cst_217 = arith.constant dense<0.000000e+00> : vector<4x64xf32>
    %231 = tpu.matmul %230, %165, %cst_217 {dimension_numbers = #tpu.dot_dimension_numbers<[1], [0], [0], [1], [0, 0, 1, 1], [], []>} : vector<4x16xbf16>, vector<16x64xbf16>, vector<4x64xf32> -> vector<4x64xf32>
    %232 = arith.truncf %231 : vector<4x64xf32> to vector<4x64xbf16>
    %c8_218 = arith.constant 8 : index
    %c0_219 = arith.constant 0 : index
    %c0_220 = arith.constant 0 : index
    %233 = vector.load %arg11[%c8_218, %c0_219, %c0_220] : memref<9x64x64xbf16, #tpu.memory_space<vmem>>, vector<1x64x64xbf16>
    %234 = vector.shape_cast %233 : vector<1x64x64xbf16> to vector<64x64xbf16>
    %cst_221 = arith.constant dense<0.000000e+00> : vector<4x64xf32>
    %235 = tpu.matmul %232, %234, %cst_221 {dimension_numbers = #tpu.dot_dimension_numbers<[1], [0], [0], [1], [0, 0, 1, 1], [], []>} : vector<4x64xbf16>, vector<64x64xbf16>, vector<4x64xf32> -> vector<4x64xf32>
    %236 = arith.addf %228, %235 : vector<4x64xf32>
    %c0_222 = arith.constant 0 : index
    %c0_223 = arith.constant 0 : index
    %237 = vector.load %arg12[%c0_222, %c0_223] : memref<1x64xf32, #tpu.memory_space<vmem>>, vector<1x64xf32>
    %238 = vector.broadcast %237 : vector<1x64xf32> to vector<4x64xf32>
    %239 = arith.addf %236, %238 : vector<4x64xf32>
    %cst_224 = arith.constant 0.000000e+00 : f32
    %240 = vector.broadcast %cst_224 : f32 to vector<4x64xf32>
    %241 = arith.maximumf %239, %240 : vector<4x64xf32>
    %242 = arith.truncf %241 : vector<4x64xf32> to vector<4x64xbf16>
    %c0_225 = arith.constant 0 : index
    %c0_226 = arith.constant 0 : index
    %c0_227 = arith.constant 0 : index
    %243 = vector.load %arg13[%c0_225, %c0_226, %c0_227] : memref<4x1x4xbf16, #tpu.memory_space<vmem>>, vector<1x1x4xbf16>
    %244 = vector.shape_cast %243 : vector<1x1x4xbf16> to vector<1x4xbf16>
    %cst_228 = arith.constant dense<0.000000e+00> : vector<1x64xf32>
    %245 = tpu.matmul %244, %242, %cst_228 {dimension_numbers = #tpu.dot_dimension_numbers<[1], [0], [0], [1], [0, 0, 1, 1], [], []>} : vector<1x4xbf16>, vector<4x64xbf16>, vector<1x64xf32> -> vector<1x64xf32>
    %246 = arith.truncf %245 : vector<1x64xf32> to vector<1x64xbf16>
    %c0_229 = arith.constant 0 : index
    %c0_230 = arith.constant 0 : index
    %c0_231 = arith.constant 0 : index
    %247 = vector.load %arg14[%c0_229, %c0_230, %c0_231] : memref<4x64x128xbf16, #tpu.memory_space<vmem>>, vector<1x64x128xbf16>
    %248 = vector.shape_cast %247 : vector<1x64x128xbf16> to vector<64x128xbf16>
    %cst_232 = arith.constant dense<0.000000e+00> : vector<1x128xf32>
    %249 = tpu.matmul %246, %248, %cst_232 {dimension_numbers = #tpu.dot_dimension_numbers<[1], [0], [0], [1], [0, 0, 1, 1], [], []>} : vector<1x64xbf16>, vector<64x128xbf16>, vector<1x128xf32> -> vector<1x128xf32>
    %c1_233 = arith.constant 1 : index
    %c0_234 = arith.constant 0 : index
    %c0_235 = arith.constant 0 : index
    %250 = vector.load %arg13[%c1_233, %c0_234, %c0_235] : memref<4x1x4xbf16, #tpu.memory_space<vmem>>, vector<1x1x4xbf16>
    %251 = vector.shape_cast %250 : vector<1x1x4xbf16> to vector<1x4xbf16>
    %cst_236 = arith.constant dense<0.000000e+00> : vector<1x64xf32>
    %252 = tpu.matmul %251, %242, %cst_236 {dimension_numbers = #tpu.dot_dimension_numbers<[1], [0], [0], [1], [0, 0, 1, 1], [], []>} : vector<1x4xbf16>, vector<4x64xbf16>, vector<1x64xf32> -> vector<1x64xf32>
    %253 = arith.truncf %252 : vector<1x64xf32> to vector<1x64xbf16>
    %c1_237 = arith.constant 1 : index
    %c0_238 = arith.constant 0 : index
    %c0_239 = arith.constant 0 : index
    %254 = vector.load %arg14[%c1_237, %c0_238, %c0_239] : memref<4x64x128xbf16, #tpu.memory_space<vmem>>, vector<1x64x128xbf16>
    %255 = vector.shape_cast %254 : vector<1x64x128xbf16> to vector<64x128xbf16>
    %cst_240 = arith.constant dense<0.000000e+00> : vector<1x128xf32>
    %256 = tpu.matmul %253, %255, %cst_240 {dimension_numbers = #tpu.dot_dimension_numbers<[1], [0], [0], [1], [0, 0, 1, 1], [], []>} : vector<1x64xbf16>, vector<64x128xbf16>, vector<1x128xf32> -> vector<1x128xf32>
    %257 = arith.addf %249, %256 : vector<1x128xf32>
    %c2_241 = arith.constant 2 : index
    %c0_242 = arith.constant 0 : index
    %c0_243 = arith.constant 0 : index
    %258 = vector.load %arg13[%c2_241, %c0_242, %c0_243] : memref<4x1x4xbf16, #tpu.memory_space<vmem>>, vector<1x1x4xbf16>
    %259 = vector.shape_cast %258 : vector<1x1x4xbf16> to vector<1x4xbf16>
    %cst_244 = arith.constant dense<0.000000e+00> : vector<1x64xf32>
    %260 = tpu.matmul %259, %242, %cst_244 {dimension_numbers = #tpu.dot_dimension_numbers<[1], [0], [0], [1], [0, 0, 1, 1], [], []>} : vector<1x4xbf16>, vector<4x64xbf16>, vector<1x64xf32> -> vector<1x64xf32>
    %261 = arith.truncf %260 : vector<1x64xf32> to vector<1x64xbf16>
    %c2_245 = arith.constant 2 : index
    %c0_246 = arith.constant 0 : index
    %c0_247 = arith.constant 0 : index
    %262 = vector.load %arg14[%c2_245, %c0_246, %c0_247] : memref<4x64x128xbf16, #tpu.memory_space<vmem>>, vector<1x64x128xbf16>
    %263 = vector.shape_cast %262 : vector<1x64x128xbf16> to vector<64x128xbf16>
    %cst_248 = arith.constant dense<0.000000e+00> : vector<1x128xf32>
    %264 = tpu.matmul %261, %263, %cst_248 {dimension_numbers = #tpu.dot_dimension_numbers<[1], [0], [0], [1], [0, 0, 1, 1], [], []>} : vector<1x64xbf16>, vector<64x128xbf16>, vector<1x128xf32> -> vector<1x128xf32>
    %265 = arith.addf %257, %264 : vector<1x128xf32>
    %c3_249 = arith.constant 3 : index
    %c0_250 = arith.constant 0 : index
    %c0_251 = arith.constant 0 : index
    %266 = vector.load %arg13[%c3_249, %c0_250, %c0_251] : memref<4x1x4xbf16, #tpu.memory_space<vmem>>, vector<1x1x4xbf16>
    %267 = vector.shape_cast %266 : vector<1x1x4xbf16> to vector<1x4xbf16>
    %cst_252 = arith.constant dense<0.000000e+00> : vector<1x64xf32>
    %268 = tpu.matmul %267, %242, %cst_252 {dimension_numbers = #tpu.dot_dimension_numbers<[1], [0], [0], [1], [0, 0, 1, 1], [], []>} : vector<1x4xbf16>, vector<4x64xbf16>, vector<1x64xf32> -> vector<1x64xf32>
    %269 = arith.truncf %268 : vector<1x64xf32> to vector<1x64xbf16>
    %c3_253 = arith.constant 3 : index
    %c0_254 = arith.constant 0 : index
    %c0_255 = arith.constant 0 : index
    %270 = vector.load %arg14[%c3_253, %c0_254, %c0_255] : memref<4x64x128xbf16, #tpu.memory_space<vmem>>, vector<1x64x128xbf16>
    %271 = vector.shape_cast %270 : vector<1x64x128xbf16> to vector<64x128xbf16>
    %cst_256 = arith.constant dense<0.000000e+00> : vector<1x128xf32>
    %272 = tpu.matmul %269, %271, %cst_256 {dimension_numbers = #tpu.dot_dimension_numbers<[1], [0], [0], [1], [0, 0, 1, 1], [], []>} : vector<1x64xbf16>, vector<64x128xbf16>, vector<1x128xf32> -> vector<1x128xf32>
    %273 = arith.addf %265, %272 : vector<1x128xf32>
    %c0_257 = arith.constant 0 : index
    %c0_258 = arith.constant 0 : index
    %274 = vector.load %arg15[%c0_257, %c0_258] : memref<1x128xf32, #tpu.memory_space<vmem>>, vector<1x128xf32>
    %275 = arith.addf %273, %274 : vector<1x128xf32>
    %cst_259 = arith.constant 0.000000e+00 : f32
    %276 = vector.broadcast %cst_259 : f32 to vector<1x128xf32>
    %277 = arith.maximumf %275, %276 : vector<1x128xf32>
    %278 = arith.truncf %277 : vector<1x128xf32> to vector<1x128xbf16>
    %c0_260 = arith.constant 0 : index
    %c0_261 = arith.constant 0 : index
    %c0_262 = arith.constant 0 : index
    %279 = vector.load %arg16[%c0_260, %c0_261, %c0_262] : memref<1x128x128xbf16, #tpu.memory_space<vmem>>, vector<1x128x128xbf16>
    %280 = vector.shape_cast %279 : vector<1x128x128xbf16> to vector<128x128xbf16>
    %cst_263 = arith.constant dense<0.000000e+00> : vector<1x128xf32>
    %281 = tpu.matmul %278, %280, %cst_263 {dimension_numbers = #tpu.dot_dimension_numbers<[1], [0], [0], [1], [0, 0, 1, 1], [], []>} : vector<1x128xbf16>, vector<128x128xbf16>, vector<1x128xf32> -> vector<1x128xf32>
    %c0_264 = arith.constant 0 : index
    %c0_265 = arith.constant 0 : index
    %282 = vector.load %arg17[%c0_264, %c0_265] : memref<1x128xf32, #tpu.memory_space<vmem>>, vector<1x128xf32>
    %283 = arith.addf %281, %282 : vector<1x128xf32>
    %cst_266 = arith.constant 0.000000e+00 : f32
    %284 = vector.broadcast %cst_266 : f32 to vector<1x128xf32>
    %285 = arith.maximumf %283, %284 : vector<1x128xf32>
    %286 = arith.truncf %285 : vector<1x128xf32> to vector<1x128xbf16>
    %c0_267 = arith.constant 0 : index
    %c0_268 = arith.constant 0 : index
    %c0_269 = arith.constant 0 : index
    %287 = vector.load %arg18[%c0_267, %c0_268, %c0_269] : memref<1x128x128xbf16, #tpu.memory_space<vmem>>, vector<1x128x128xbf16>
    %288 = vector.shape_cast %287 : vector<1x128x128xbf16> to vector<128x128xbf16>
    %cst_270 = arith.constant dense<0.000000e+00> : vector<1x128xf32>
    %289 = tpu.matmul %286, %288, %cst_270 {dimension_numbers = #tpu.dot_dimension_numbers<[1], [0], [0], [1], [0, 0, 1, 1], [], []>} : vector<1x128xbf16>, vector<128x128xbf16>, vector<1x128xf32> -> vector<1x128xf32>
    %c0_271 = arith.constant 0 : index
    %c0_272 = arith.constant 0 : index
    %290 = vector.load %arg19[%c0_271, %c0_272] : memref<1x128xf32, #tpu.memory_space<vmem>>, vector<1x128xf32>
    %291 = arith.addf %289, %290 : vector<1x128xf32>
    %cst_273 = arith.constant 0.000000e+00 : f32
    %292 = vector.broadcast %cst_273 : f32 to vector<1x128xf32>
    %293 = arith.maximumf %291, %292 : vector<1x128xf32>
    %294 = arith.truncf %293 : vector<1x128xf32> to vector<1x128xbf16>
    %c0_274 = arith.constant 0 : index
    %c0_275 = arith.constant 0 : index
    %c0_276 = arith.constant 0 : index
    %295 = vector.load %arg20[%c0_274, %c0_275, %c0_276] : memref<4x4x1xbf16, #tpu.memory_space<vmem>>, vector<1x4x1xbf16>
    %296 = vector.shape_cast %295 : vector<1x4x1xbf16> to vector<4x1xbf16>
    %cst_277 = arith.constant dense<0.000000e+00> : vector<4x128xf32>
    %297 = tpu.matmul %296, %294, %cst_277 {dimension_numbers = #tpu.dot_dimension_numbers<[1], [0], [0], [1], [0, 0, 1, 1], [], []>} : vector<4x1xbf16>, vector<1x128xbf16>, vector<4x128xf32> -> vector<4x128xf32>
    %298 = arith.truncf %297 : vector<4x128xf32> to vector<4x128xbf16>
    %c0_278 = arith.constant 0 : index
    %c0_279 = arith.constant 0 : index
    %c0_280 = arith.constant 0 : index
    %299 = vector.load %arg21[%c0_278, %c0_279, %c0_280] : memref<4x128x256xbf16, #tpu.memory_space<vmem>>, vector<1x128x256xbf16>
    %300 = vector.shape_cast %299 : vector<1x128x256xbf16> to vector<128x256xbf16>
    %cst_281 = arith.constant dense<0.000000e+00> : vector<4x256xf32>
    %301 = tpu.matmul %298, %300, %cst_281 {dimension_numbers = #tpu.dot_dimension_numbers<[1], [0], [0], [1], [0, 0, 1, 1], [], []>} : vector<4x128xbf16>, vector<128x256xbf16>, vector<4x256xf32> -> vector<4x256xf32>
    %c1_282 = arith.constant 1 : index
    %c0_283 = arith.constant 0 : index
    %c0_284 = arith.constant 0 : index
    %302 = vector.load %arg20[%c1_282, %c0_283, %c0_284] : memref<4x4x1xbf16, #tpu.memory_space<vmem>>, vector<1x4x1xbf16>
    %303 = vector.shape_cast %302 : vector<1x4x1xbf16> to vector<4x1xbf16>
    %cst_285 = arith.constant dense<0.000000e+00> : vector<4x128xf32>
    %304 = tpu.matmul %303, %294, %cst_285 {dimension_numbers = #tpu.dot_dimension_numbers<[1], [0], [0], [1], [0, 0, 1, 1], [], []>} : vector<4x1xbf16>, vector<1x128xbf16>, vector<4x128xf32> -> vector<4x128xf32>
    %305 = arith.truncf %304 : vector<4x128xf32> to vector<4x128xbf16>
    %c1_286 = arith.constant 1 : index
    %c0_287 = arith.constant 0 : index
    %c0_288 = arith.constant 0 : index
    %306 = vector.load %arg21[%c1_286, %c0_287, %c0_288] : memref<4x128x256xbf16, #tpu.memory_space<vmem>>, vector<1x128x256xbf16>
    %307 = vector.shape_cast %306 : vector<1x128x256xbf16> to vector<128x256xbf16>
    %cst_289 = arith.constant dense<0.000000e+00> : vector<4x256xf32>
    %308 = tpu.matmul %305, %307, %cst_289 {dimension_numbers = #tpu.dot_dimension_numbers<[1], [0], [0], [1], [0, 0, 1, 1], [], []>} : vector<4x128xbf16>, vector<128x256xbf16>, vector<4x256xf32> -> vector<4x256xf32>
    %309 = arith.addf %301, %308 : vector<4x256xf32>
    %c2_290 = arith.constant 2 : index
    %c0_291 = arith.constant 0 : index
    %c0_292 = arith.constant 0 : index
    %310 = vector.load %arg20[%c2_290, %c0_291, %c0_292] : memref<4x4x1xbf16, #tpu.memory_space<vmem>>, vector<1x4x1xbf16>
    %311 = vector.shape_cast %310 : vector<1x4x1xbf16> to vector<4x1xbf16>
    %cst_293 = arith.constant dense<0.000000e+00> : vector<4x128xf32>
    %312 = tpu.matmul %311, %294, %cst_293 {dimension_numbers = #tpu.dot_dimension_numbers<[1], [0], [0], [1], [0, 0, 1, 1], [], []>} : vector<4x1xbf16>, vector<1x128xbf16>, vector<4x128xf32> -> vector<4x128xf32>
    %313 = arith.truncf %312 : vector<4x128xf32> to vector<4x128xbf16>
    %c2_294 = arith.constant 2 : index
    %c0_295 = arith.constant 0 : index
    %c0_296 = arith.constant 0 : index
    %314 = vector.load %arg21[%c2_294, %c0_295, %c0_296] : memref<4x128x256xbf16, #tpu.memory_space<vmem>>, vector<1x128x256xbf16>
    %315 = vector.shape_cast %314 : vector<1x128x256xbf16> to vector<128x256xbf16>
    %cst_297 = arith.constant dense<0.000000e+00> : vector<4x256xf32>
    %316 = tpu.matmul %313, %315, %cst_297 {dimension_numbers = #tpu.dot_dimension_numbers<[1], [0], [0], [1], [0, 0, 1, 1], [], []>} : vector<4x128xbf16>, vector<128x256xbf16>, vector<4x256xf32> -> vector<4x256xf32>
    %317 = arith.addf %309, %316 : vector<4x256xf32>
    %c3_298 = arith.constant 3 : index
    %c0_299 = arith.constant 0 : index
    %c0_300 = arith.constant 0 : index
    %318 = vector.load %arg20[%c3_298, %c0_299, %c0_300] : memref<4x4x1xbf16, #tpu.memory_space<vmem>>, vector<1x4x1xbf16>
    %319 = vector.shape_cast %318 : vector<1x4x1xbf16> to vector<4x1xbf16>
    %cst_301 = arith.constant dense<0.000000e+00> : vector<4x128xf32>
    %320 = tpu.matmul %319, %294, %cst_301 {dimension_numbers = #tpu.dot_dimension_numbers<[1], [0], [0], [1], [0, 0, 1, 1], [], []>} : vector<4x1xbf16>, vector<1x128xbf16>, vector<4x128xf32> -> vector<4x128xf32>
    %321 = arith.truncf %320 : vector<4x128xf32> to vector<4x128xbf16>
    %c3_302 = arith.constant 3 : index
    %c0_303 = arith.constant 0 : index
    %c0_304 = arith.constant 0 : index
    %322 = vector.load %arg21[%c3_302, %c0_303, %c0_304] : memref<4x128x256xbf16, #tpu.memory_space<vmem>>, vector<1x128x256xbf16>
    %323 = vector.shape_cast %322 : vector<1x128x256xbf16> to vector<128x256xbf16>
    %cst_305 = arith.constant dense<0.000000e+00> : vector<4x256xf32>
    %324 = tpu.matmul %321, %323, %cst_305 {dimension_numbers = #tpu.dot_dimension_numbers<[1], [0], [0], [1], [0, 0, 1, 1], [], []>} : vector<4x128xbf16>, vector<128x256xbf16>, vector<4x256xf32> -> vector<4x256xf32>
    %325 = arith.addf %317, %324 : vector<4x256xf32>
    %c0_306 = arith.constant 0 : index
    %c0_307 = arith.constant 0 : index
    %326 = vector.load %arg22[%c0_306, %c0_307] : memref<1x256xf32, #tpu.memory_space<vmem>>, vector<1x256xf32>
    %327 = vector.broadcast %326 : vector<1x256xf32> to vector<4x256xf32>
    %328 = arith.addf %325, %327 : vector<4x256xf32>
    %cst_308 = arith.constant 0.000000e+00 : f32
    %329 = vector.broadcast %cst_308 : f32 to vector<4x256xf32>
    %330 = arith.maximumf %328, %329 : vector<4x256xf32>
    %331 = arith.truncf %330 : vector<4x256xf32> to vector<4x256xbf16>
    %c0_309 = arith.constant 0 : index
    %c0_310 = arith.constant 0 : index
    %c0_311 = arith.constant 0 : index
    %332 = vector.load %arg23[%c0_309, %c0_310, %c0_311] : memref<1x256x512xbf16, #tpu.memory_space<vmem>>, vector<1x256x512xbf16>
    %333 = vector.shape_cast %332 : vector<1x256x512xbf16> to vector<256x512xbf16>
    %cst_312 = arith.constant dense<0.000000e+00> : vector<4x512xf32>
    %334 = tpu.matmul %331, %333, %cst_312 {dimension_numbers = #tpu.dot_dimension_numbers<[1], [0], [0], [1], [0, 0, 1, 1], [], []>} : vector<4x256xbf16>, vector<256x512xbf16>, vector<4x512xf32> -> vector<4x512xf32>
    %c0_313 = arith.constant 0 : index
    %c0_314 = arith.constant 0 : index
    %335 = vector.load %arg24[%c0_313, %c0_314] : memref<1x512xf32, #tpu.memory_space<vmem>>, vector<1x512xf32>
    %336 = vector.broadcast %335 : vector<1x512xf32> to vector<4x512xf32>
    %337 = arith.addf %334, %336 : vector<4x512xf32>
    %cst_315 = arith.constant 0.000000e+00 : f32
    %338 = vector.broadcast %cst_315 : f32 to vector<4x512xf32>
    %339 = arith.maximumf %337, %338 : vector<4x512xf32>
    %340 = arith.truncf %339 : vector<4x512xf32> to vector<4x512xbf16>
    %c0_316 = arith.constant 0 : index
    %c0_317 = arith.constant 0 : index
    %c0_318 = arith.constant 0 : index
    %341 = vector.load %arg25[%c0_316, %c0_317, %c0_318] : memref<1x512x128xbf16, #tpu.memory_space<vmem>>, vector<1x512x128xbf16>
    %342 = vector.shape_cast %341 : vector<1x512x128xbf16> to vector<512x128xbf16>
    %cst_319 = arith.constant dense<0.000000e+00> : vector<4x128xf32>
    %343 = tpu.matmul %340, %342, %cst_319 {dimension_numbers = #tpu.dot_dimension_numbers<[1], [0], [0], [1], [0, 0, 1, 1], [], []>} : vector<4x512xbf16>, vector<512x128xbf16>, vector<4x128xf32> -> vector<4x128xf32>
    %c0_320 = arith.constant 0 : index
    %c0_321 = arith.constant 0 : index
    %344 = vector.load %arg26[%c0_320, %c0_321] : memref<1x128xf32, #tpu.memory_space<vmem>>, vector<1x128xf32>
    %345 = vector.broadcast %344 : vector<1x128xf32> to vector<4x128xf32>
    %346 = arith.addf %343, %345 : vector<4x128xf32>
    %347 = arith.negf %346 : vector<4x128xf32>
    %348 = math.exp %347 : vector<4x128xf32>
    %cst_322 = arith.constant 1.000000e+00 : f32
    %349 = vector.broadcast %cst_322 : f32 to vector<4x128xf32>
    %350 = arith.addf %349, %348 : vector<4x128xf32>
    %351 = arith.divf %349, %350 : vector<4x128xf32>
    %c0_323 = arith.constant 0 : index
    %c0_324 = arith.constant 0 : index
    %c0_325 = arith.constant 0 : index
    %352 = vector.load %arg27[%c0_323, %c0_324, %c0_325] : memref<1x4x128xf32, #tpu.memory_space<vmem>>, vector<1x4x128xf32>
    %353 = vector.shape_cast %352 : vector<1x4x128xf32> to vector<4x128xf32>
    %354 = vector.shape_cast %351 : vector<4x128xf32> to vector<1x4x128xf32>
    tpu.vector_store %arg27[%c0_323, %c0_324, %c0_325], %354 {strides = array<i32>} : memref<1x4x128xf32, #tpu.memory_space<vmem>>, vector<1x4x128xf32>,
    return
  }
  func.func @transform_0(%arg0: i32) -> (i32, i32, i32) {
    %c0_i32 = arith.constant 0 : i32
    %c0_i32_0 = arith.constant 0 : i32
    %c0_i32_1 = arith.constant 0 : i32
    return %arg0, %c0_i32, %c0_i32_0 : i32, i32, i32
  }
  func.func @transform_1(%arg0: i32) -> (i32, i32, i32) {
    %c0_i32 = arith.constant 0 : i32
    %c0_i32_0 = arith.constant 0 : i32
    %c0_i32_1 = arith.constant 0 : i32
    %c0_i32_2 = arith.constant 0 : i32
    return %c0_i32, %c0_i32_0, %c0_i32_1 : i32, i32, i32
  }
  func.func @transform_2(%arg0: i32) -> (i32, i32) {
    %c0_i32 = arith.constant 0 : i32
    %c0_i32_0 = arith.constant 0 : i32
    %c0_i32_1 = arith.constant 0 : i32
    return %c0_i32, %c0_i32_0 : i32, i32
  }
  func.func @transform_3(%arg0: i32) -> (i32, i32, i32) {
    %c0_i32 = arith.constant 0 : i32
    %c0_i32_0 = arith.constant 0 : i32
    %c0_i32_1 = arith.constant 0 : i32
    %c0_i32_2 = arith.constant 0 : i32
    return %c0_i32, %c0_i32_0, %c0_i32_1 : i32, i32, i32
  }
  func.func @transform_4(%arg0: i32) -> (i32, i32, i32) {
    %c0_i32 = arith.constant 0 : i32
    %c0_i32_0 = arith.constant 0 : i32
    %c0_i32_1 = arith.constant 0 : i32
    %c0_i32_2 = arith.constant 0 : i32
    return %c0_i32, %c0_i32_0, %c0_i32_1 : i32, i32, i32
  }
  func.func @transform_5(%arg0: i32) -> (i32, i32) {
    %c0_i32 = arith.constant 0 : i32
    %c0_i32_0 = arith.constant 0 : i32
    %c0_i32_1 = arith.constant 0 : i32
    return %c0_i32, %c0_i32_0 : i32, i32
  }
  func.func @transform_6(%arg0: i32) -> (i32, i32, i32) {
    %c0_i32 = arith.constant 0 : i32
    %c0_i32_0 = arith.constant 0 : i32
    %c0_i32_1 = arith.constant 0 : i32
    %c0_i32_2 = arith.constant 0 : i32
    return %c0_i32, %c0_i32_0, %c0_i32_1 : i32, i32, i32
  }
  func.func @transform_7(%arg0: i32) -> (i32, i32, i32) {
    %c0_i32 = arith.constant 0 : i32
    %c0_i32_0 = arith.constant 0 : i32
    %c0_i32_1 = arith.constant 0 : i32
    %c0_i32_2 = arith.constant 0 : i32
    return %c0_i32, %c0_i32_0, %c0_i32_1 : i32, i32, i32
  }
  func.func @transform_8(%arg0: i32) -> (i32, i32) {
    %c0_i32 = arith.constant 0 : i32
    %c0_i32_0 = arith.constant 0 : i32
    %c0_i32_1 = arith.constant 0 : i32
    return %c0_i32, %c0_i32_0 : i32, i32
  }
  func.func @transform_9(%arg0: i32) -> (i32, i32, i32) {
    %c0_i32 = arith.constant 0 : i32
    %c0_i32_0 = arith.constant 0 : i32
    %c0_i32_1 = arith.constant 0 : i32
    %c0_i32_2 = arith.constant 0 : i32
    return %c0_i32, %c0_i32_0, %c0_i32_1 : i32, i32, i32
  }
  func.func @transform_10(%arg0: i32) -> (i32, i32, i32) {
    %c0_i32 = arith.constant 0 : i32
    %c0_i32_0 = arith.constant 0 : i32
    %c0_i32_1 = arith.constant 0 : i32
    %c0_i32_2 = arith.constant 0 : i32
    return %c0_i32, %c0_i32_0, %c0_i32_1 : i32, i32, i32
  }
  func.func @transform_11(%arg0: i32) -> (i32, i32) {
    %c0_i32 = arith.constant 0 : i32
    %c0_i32_0 = arith.constant 0 : i32
    %c0_i32_1 = arith.constant 0 : i32
    return %c0_i32, %c0_i32_0 : i32, i32
  }
  func.func @transform_12(%arg0: i32) -> (i32, i32, i32) {
    %c0_i32 = arith.constant 0 : i32
    %c0_i32_0 = arith.constant 0 : i32
    %c0_i32_1 = arith.constant 0 : i32
    %c0_i32_2 = arith.constant 0 : i32
    return %c0_i32, %c0_i32_0, %c0_i32_1 : i32, i32, i32
  }
  func.func @transform_13(%arg0: i32) -> (i32, i32, i32) {
    %c0_i32 = arith.constant 0 : i32
    %c0_i32_0 = arith.constant 0 : i32
    %c0_i32_1 = arith.constant 0 : i32
    %c0_i32_2 = arith.constant 0 : i32
    return %c0_i32, %c0_i32_0, %c0_i32_1 : i32, i32, i32
  }
  func.func @transform_14(%arg0: i32) -> (i32, i32) {
    %c0_i32 = arith.constant 0 : i32
    %c0_i32_0 = arith.constant 0 : i32
    %c0_i32_1 = arith.constant 0 : i32
    return %c0_i32, %c0_i32_0 : i32, i32
  }
  func.func @transform_15(%arg0: i32) -> (i32, i32, i32) {
    %c0_i32 = arith.constant 0 : i32
    %c0_i32_0 = arith.constant 0 : i32
    %c0_i32_1 = arith.constant 0 : i32
    %c0_i32_2 = arith.constant 0 : i32
    return %c0_i32, %c0_i32_0, %c0_i32_1 : i32, i32, i32
  }
  func.func @transform_16(%arg0: i32) -> (i32, i32) {
    %c0_i32 = arith.constant 0 : i32
    %c0_i32_0 = arith.constant 0 : i32
    %c0_i32_1 = arith.constant 0 : i32
    return %c0_i32, %c0_i32_0 : i32, i32
  }
  func.func @transform_17(%arg0: i32) -> (i32, i32, i32) {
    %c0_i32 = arith.constant 0 : i32
    %c0_i32_0 = arith.constant 0 : i32
    %c0_i32_1 = arith.constant 0 : i32
    %c0_i32_2 = arith.constant 0 : i32
    return %c0_i32, %c0_i32_0, %c0_i32_1 : i32, i32, i32
  }
  func.func @transform_18(%arg0: i32) -> (i32, i32) {
    %c0_i32 = arith.constant 0 : i32
    %c0_i32_0 = arith.constant 0 : i32
    %c0_i32_1 = arith.constant 0 : i32
    return %c0_i32, %c0_i32_0 : i32, i32
  }
  func.func @transform_19(%arg0: i32) -> (i32, i32, i32) {
    %c0_i32 = arith.constant 0 : i32
    %c0_i32_0 = arith.constant 0 : i32
    %c0_i32_1 = arith.constant 0 : i32
    %c0_i32_2 = arith.constant 0 : i32
    return %c0_i32, %c0_i32_0, %c0_i32_1 : i32, i32, i32
  }
  func.func @transform_20(%arg0: i32) -> (i32, i32, i32) {
    %c0_i32 = arith.constant 0 : i32
    %c0_i32_0 = arith.constant 0 : i32
    %c0_i32_1 = arith.constant 0 : i32
    %c0_i32_2 = arith.constant 0 : i32
    return %c0_i32, %c0_i32_0, %c0_i32_1 : i32, i32, i32
  }
  func.func @transform_21(%arg0: i32) -> (i32, i32) {
    %c0_i32 = arith.constant 0 : i32
    %c0_i32_0 = arith.constant 0 : i32
    %c0_i32_1 = arith.constant 0 : i32
    return %c0_i32, %c0_i32_0 : i32, i32
  }
  func.func @transform_22(%arg0: i32) -> (i32, i32, i32) {
    %c0_i32 = arith.constant 0 : i32
    %c0_i32_0 = arith.constant 0 : i32
    %c0_i32_1 = arith.constant 0 : i32
    %c0_i32_2 = arith.constant 0 : i32
    return %c0_i32, %c0_i32_0, %c0_i32_1 : i32, i32, i32
  }
  func.func @transform_23(%arg0: i32) -> (i32, i32) {
    %c0_i32 = arith.constant 0 : i32
    %c0_i32_0 = arith.constant 0 : i32
    %c0_i32_1 = arith.constant 0 : i32
    return %c0_i32, %c0_i32_0 : i32, i32
  }
  func.func @transform_24(%arg0: i32) -> (i32, i32, i32) {
    %c0_i32 = arith.constant 0 : i32
    %c0_i32_0 = arith.constant 0 : i32
    %c0_i32_1 = arith.constant 0 : i32
    %c0_i32_2 = arith.constant 0 : i32
    return %c0_i32, %c0_i32_0, %c0_i32_1 : i32, i32, i32
  }
  func.func @transform_25(%arg0: i32) -> (i32, i32) {
    %c0_i32 = arith.constant 0 : i32
    %c0_i32_0 = arith.constant 0 : i32
    %c0_i32_1 = arith.constant 0 : i32
    return %c0_i32, %c0_i32_0 : i32, i32
  }
  func.func @transform_26(%arg0: i32) -> (i32, i32, i32) {
    %c0_i32 = arith.constant 0 : i32
    %c0_i32_0 = arith.constant 0 : i32
    %c0_i32_1 = arith.constant 0 : i32
    return %arg0, %c0_i32, %c0_i32_0 : i32, i32, i32
  }
}

</mosaic_0001>

<llo_original>
// kernel: pallas_forward.1
$region0: #{pallas_forward.1}
  #allocation0 [shape = 'u32[]', space=smem, size = 0x4, offset = 0x4, fixed_abs, tag = 'smem constant byte address 0x4 - core index']
  #allocation1 [shape = 'u32[144,128]{1,0:T(1,128)}', space=vmem, size = 0x12000, scoped, tag = 'internal scratch']
  %s0 = inlined_call_operand.vmem [shape: f32[2,256,27], index: 0, kind: input, shape index: {}]
  %s1 = inlined_call_operand.vmem [shape: bf16[1,27,16], index: 1, kind: input, shape index: {}]
  %s2 = inlined_call_operand.vmem [shape: f32[1,16], index: 2, kind: input, shape index: {}]
  %s3 = inlined_call_operand.vmem [shape: bf16[9,64,256], index: 3, kind: input, shape index: {}]
  %s4 = inlined_call_operand.vmem [shape: bf16[9,16,32], index: 4, kind: input, shape index: {}]
  %s5 = inlined_call_operand.vmem [shape: f32[1,32], index: 5, kind: input, shape index: {}]
  %s6 = inlined_call_operand.vmem [shape: bf16[9,16,64], index: 6, kind: input, shape index: {}]
  %s7 = inlined_call_operand.vmem [shape: bf16[9,32,64], index: 7, kind: input, shape index: {}]
  %s8 = inlined_call_operand.vmem [shape: f32[1,64], index: 8, kind: input, shape index: {}]
  %s9 = inlined_call_operand.vmem [shape: bf16[9,4,16], index: 9, kind: input, shape index: {}]
  %s10 = inlined_call_operand.vmem [shape: bf16[9,64,64], index: 10, kind: input, shape index: {}]
  %s11 = inlined_call_operand.vmem [shape: f32[1,64], index: 11, kind: input, shape index: {}]
  %s12 = inlined_call_operand.vmem [shape: bf16[4,1,4], index: 12, kind: input, shape index: {}]
  %s13 = inlined_call_operand.vmem [shape: bf16[4,64,128], index: 13, kind: input, shape index: {}]
  %s14 = inlined_call_operand.vmem [shape: f32[1,128], index: 14, kind: input, shape index: {}]
  %s15 = inlined_call_operand.vmem [shape: bf16[1,128,128], index: 15, kind: input, shape index: {}]
  %s16 = inlined_call_operand.vmem [shape: f32[1,128], index: 16, kind: input, shape index: {}]
  %s17 = inlined_call_operand.vmem [shape: bf16[1,128,128], index: 17, kind: input, shape index: {}]
  %s18 = inlined_call_operand.vmem [shape: f32[1,128], index: 18, kind: input, shape index: {}]
  %s19 = inlined_call_operand.vmem [shape: bf16[4,4,1], index: 19, kind: input, shape index: {}]
  %s20 = inlined_call_operand.vmem [shape: bf16[4,128,256], index: 20, kind: input, shape index: {}]
  %s21 = inlined_call_operand.vmem [shape: f32[1,256], index: 21, kind: input, shape index: {}]
  %s22 = inlined_call_operand.vmem [shape: bf16[1,256,512], index: 22, kind: input, shape index: {}]
  %s23 = inlined_call_operand.vmem [shape: f32[1,512], index: 23, kind: input, shape index: {}]
  %s24 = inlined_call_operand.vmem [shape: bf16[1,512,128], index: 24, kind: input, shape index: {}]
  %s25 = inlined_call_operand.vmem [shape: f32[1,128], index: 25, kind: input, shape index: {}]
  %s26 = inlined_call_operand.hbm [shape: f32[2,4,128], index: 26, kind: output, shape index: {}]
  %s27 = sld [smem:[#allocation0]]
  $region137: #{pallas_forward.1} parent=0
    _
  %s29 = ssub.s32 1, %s27
  %s30 = scalar_select 0, %s29, %s27
  $region1: #{pallas_forward.1} parent=0
    #allocation2 [shape = 'u8[4096]{0}', space=vmem, size = 0x1000, scoped, tag = 'output window, operand 0']
    #allocation3 [shape = 's32[2]{0}', space=sflag, size = 0x8, scoped, tag = 'scoped memory for pallas_forward.1']
    %31 = vsyncpa [#allocation3], 0
    %s32 = scalar_lea.sflag [#allocation3], 1
    %33 = vsyncpa %s32, 0
    loop: start=0, step=1, limit=4
    $region2: #{pallas_forward.1} parent=1 // loop_pre_header
      _
    $region3: #{pallas_forward.1} parent=1 // loop_header
      %s35 = sphi 0, %s39
      %p36 = scmp.ge.s32.totalorder %s35, 4
      %s45 = sphi 0, %s47
      %s48 = sphi 0, %s45
      %s49 = sphi 0, %s48
      %s65 = sphi 0, %s49
      %s69 = sphi 0, %s69
      %s71 = sphi 0, %s69
      %s72 = sphi 0, %s71
      %s86 = sphi 0, %s72
      %s90 = sphi 0, %s90
      %s92 = sphi 0, %s90
      %s93 = sphi 0, %s92
      %s107 = sphi 0, %s93
      %s111 = sphi 0, %s111
      %s113 = sphi 0, %s111
      %s114 = sphi 0, %s113
      %s128 = sphi 0, %s114
      %s132 = sphi 0, %s132
      %s134 = sphi 0, %s132
      %s135 = sphi 0, %s134
      %s149 = sphi 0, %s135
      %s153 = sphi 0, %s153
      %s155 = sphi 0, %s153
      %s156 = sphi 0, %s155
      %s170 = sphi 0, %s156
      %s174 = sphi 0, %s174
      %s176 = sphi 0, %s174
      %s177 = sphi 0, %s176
      %s191 = sphi 0, %s177
      %s195 = sphi 0, %s195
      %s197 = sphi 0, %s195
      %s198 = sphi 0, %s197
      %s212 = sphi 0, %s198
      %s216 = sphi 0, %s216
      %s218 = sphi 0, %s216
      %s219 = sphi 0, %s218
      %s233 = sphi 0, %s219
      %s237 = sphi 0, %s237
      %s239 = sphi 0, %s237
      %s240 = sphi 0, %s239
      %s254 = sphi 0, %s240
      %s258 = sphi 0, %s258
      %s260 = sphi 0, %s258
      %s261 = sphi 0, %s260
      %s275 = sphi 0, %s261
      %s279 = sphi 0, %s279
      %s281 = sphi 0, %s279
      %s282 = sphi 0, %s281
      %s296 = sphi 0, %s282
      %s300 = sphi 0, %s300
      %s302 = sphi 0, %s300
      %s303 = sphi 0, %s302
      %s317 = sphi 0, %s303
      %s321 = sphi 0, %s321
      %s323 = sphi 0, %s321
      %s324 = sphi 0, %s323
      %s338 = sphi 0, %s324
      %s342 = sphi 0, %s342
      %s344 = sphi 0, %s342
      %s345 = sphi 0, %s344
      %s359 = sphi 0, %s345
      %s363 = sphi 0, %s363
      %s365 = sphi 0, %s363
      %s366 = sphi 0, %s365
      %s380 = sphi 0, %s366
      %s384 = sphi 0, %s384
      %s386 = sphi 0, %s384
      %s387 = sphi 0, %s386
      %s401 = sphi 0, %s387
      %s405 = sphi 0, %s405
      %s407 = sphi 0, %s405
      %s408 = sphi 0, %s407
      %s422 = sphi 0, %s408
      %s426 = sphi 0, %s426
      %s428 = sphi 0, %s426
      %s429 = sphi 0, %s428
      %s443 = sphi 0, %s429
      %s447 = sphi 0, %s447
      %s449 = sphi 0, %s447
      %s450 = sphi 0, %s449
      %s464 = sphi 0, %s450
      %s468 = sphi 0, %s468
      %s470 = sphi 0, %s468
      %s471 = sphi 0, %s470
      %s485 = sphi 0, %s471
      %s489 = sphi 0, %s489
      %s491 = sphi 0, %s489
      %s492 = sphi 0, %s491
      %s506 = sphi 0, %s492
      %s510 = sphi 0, %s510
      %s512 = sphi 0, %s510
      %s513 = sphi 0, %s512
      %s527 = sphi 0, %s513
      %s531 = sphi 0, %s531
      %s533 = sphi 0, %s531
      %s534 = sphi 0, %s533
      %s548 = sphi 0, %s534
      %s552 = sphi 0, %s552
      %s554 = sphi 0, %s552
      %s555 = sphi 0, %s554
      %s569 = sphi 0, %s555
      %s573 = sphi 0, %s573
      %s575 = sphi 0, %s573
      %s576 = sphi 0, %s575
      %s590 = sphi 0, %s576
      %s596 = sphi 0, %s598
      %s599 = sphi 0, %s596
      %s600 = sphi 0, %s599
      %s616 = sphi 0, %s600
    $region4: #{pallas_forward.1} parent=1 // loop_header_branch
      %38 = sbr.rel (%p36) target = $region8
    $region5: #{pallas_forward.1} parent=1 // loop_body
      %s40 = ssub.s32 %s35, 1
      %s41 = ssub.s32 %s35, 2
      %s42 = sadd.s32 %s35, 1
      %s43 = ssub.s32 %s35, %s42
      %p44 = scmp.eq.s32.totalorder %s43, 0
      %s46 = sadd.s32 %s45, 1
      %s47 = scalar_select %p44, %s45, %s46
      %p50 = pneg %p44
      %p51 = scmp.eq.s32.totalorder %s35, 1
      %p52 = por %p50, %p51
      %p53 = scmp.ne.s32.totalorder %s45, %s48
      %p54 = scmp.eq.s32.totalorder %s35, 0
      %p55 = por %p53, %p54
      %p56 = scmp.ne.s32.totalorder %s45, %s48
      %p57 = scmp.eq.s32.totalorder %s40, 1
      %p58 = por %p56, %p57
      %p59 = scmp.ne.s32.totalorder %s48, %s49
      %p60 = scmp.eq.s32.totalorder %s40, 0
      %p61 = por %p59, %p60
      %p62 = scmp.ne.s32.totalorder %s48, %s49
      %p63 = scmp.eq.s32.totalorder %s41, 1
      %p64 = por %p62, %p63
      %p66 = scmp.ne.s32.totalorder %s49, %s65
      %p67 = scmp.eq.s32.totalorder %s41, 0
      %p68 = por %p66, %p67
      %s70 = sadd.s32 %s69, 1
      %p73 = scmp.eq.s32.totalorder %s35, 1
      %p74 = scmp.ne.s32.totalorder %s69, %s71
      %p75 = scmp.eq.s32.totalorder %s35, 0
      %p76 = por %p74, %p75
      %p77 = scmp.ne.s32.totalorder %s69, %s71
      %p78 = scmp.eq.s32.totalorder %s40, 1
      %p79 = por %p77, %p78
      %p80 = scmp.ne.s32.totalorder %s71, %s72
      %p81 = scmp.eq.s32.totalorder %s40, 0
      %p82 = por %p80, %p81
      %p83 = scmp.ne.s32.totalorder %s71, %s72
      %p84 = scmp.eq.s32.totalorder %s41, 1
      %p85 = por %p83, %p84
      %p87 = scmp.ne.s32.totalorder %s72, %s86
      %p88 = scmp.eq.s32.totalorder %s41, 0
      %p89 = por %p87, %p88
      %s91 = sadd.s32 %s90, 1
      %p94 = scmp.eq.s32.totalorder %s35, 1
      %p95 = scmp.ne.s32.totalorder %s90, %s92
      %p96 = scmp.eq.s32.totalorder %s35, 0
      %p97 = por %p95, %p96
      %p98 = scmp.ne.s32.totalorder %s90, %s92
      %p99 = scmp.eq.s32.totalorder %s40, 1
      %p100 = por %p98, %p99
      %p101 = scmp.ne.s32.totalorder %s92, %s93
      %p102 = scmp.eq.s32.totalorder %s40, 0
      %p103 = por %p101, %p102
      %p104 = scmp.ne.s32.totalorder %s92, %s93
      %p105 = scmp.eq.s32.totalorder %s41, 1
      %p106 = por %p104, %p105
      %p108 = scmp.ne.s32.totalorder %s93, %s107
      %p109 = scmp.eq.s32.totalorder %s41, 0
      %p110 = por %p108, %p109
      %s112 = sadd.s32 %s111, 1
      %p115 = scmp.eq.s32.totalorder %s35, 1
      %p116 = scmp.ne.s32.totalorder %s111, %s113
      %p117 = scmp.eq.s32.totalorder %s35, 0
      %p118 = por %p116, %p117
      %p119 = scmp.ne.s32.totalorder %s111, %s113
      %p120 = scmp.eq.s32.totalorder %s40, 1
      %p121 = por %p119, %p120
      %p122 = scmp.ne.s32.totalorder %s113, %s114
      %p123 = scmp.eq.s32.totalorder %s40, 0
      %p124 = por %p122, %p123
      %p125 = scmp.ne.s32.totalorder %s113, %s114
      %p126 = scmp.eq.s32.totalorder %s41, 1
      %p127 = por %p125, %p126
      %p129 = scmp.ne.s32.totalorder %s114, %s128
      %p130 = scmp.eq.s32.totalorder %s41, 0
      %p131 = por %p129, %p130
      %s133 = sadd.s32 %s132, 1
      %p136 = scmp.eq.s32.totalorder %s35, 1
      %p137 = scmp.ne.s32.totalorder %s132, %s134
      %p138 = scmp.eq.s32.totalorder %s35, 0
      %p139 = por %p137, %p138
      %p140 = scmp.ne.s32.totalorder %s132, %s134
      %p141 = scmp.eq.s32.totalorder %s40, 1
      %p142 = por %p140, %p141
      %p143 = scmp.ne.s32.totalorder %s134, %s135
      %p144 = scmp.eq.s32.totalorder %s40, 0
      %p145 = por %p143, %p144
      %p146 = scmp.ne.s32.totalorder %s134, %s135
      %p147 = scmp.eq.s32.totalorder %s41, 1
      %p148 = por %p146, %p147
      %p150 = scmp.ne.s32.totalorder %s135, %s149
      %p151 = scmp.eq.s32.totalorder %s41, 0
      %p152 = por %p150, %p151
      %s154 = sadd.s32 %s153, 1
      %p157 = scmp.eq.s32.totalorder %s35, 1
      %p158 = scmp.ne.s32.totalorder %s153, %s155
      %p159 = scmp.eq.s32.totalorder %s35, 0
      %p160 = por %p158, %p159
      %p161 = scmp.ne.s32.totalorder %s153, %s155
      %p162 = scmp.eq.s32.totalorder %s40, 1
      %p163 = por %p161, %p162
      %p164 = scmp.ne.s32.totalorder %s155, %s156
      %p165 = scmp.eq.s32.totalorder %s40, 0
      %p166 = por %p164, %p165
      %p167 = scmp.ne.s32.totalorder %s155, %s156
      %p168 = scmp.eq.s32.totalorder %s41, 1
      %p169 = por %p167, %p168
      %p171 = scmp.ne.s32.totalorder %s156, %s170
      %p172 = scmp.eq.s32.totalorder %s41, 0
      %p173 = por %p171, %p172
      %s175 = sadd.s32 %s174, 1
      %p178 = scmp.eq.s32.totalorder %s35, 1
      %p179 = scmp.ne.s32.totalorder %s174, %s176
      %p180 = scmp.eq.s32.totalorder %s35, 0
      %p181 = por %p179, %p180
      %p182 = scmp.ne.s32.totalorder %s174, %s176
      %p183 = scmp.eq.s32.totalorder %s40, 1
      %p184 = por %p182, %p183
      %p185 = scmp.ne.s32.totalorder %s176, %s177
      %p186 = scmp.eq.s32.totalorder %s40, 0
      %p187 = por %p185, %p186
      %p188 = scmp.ne.s32.totalorder %s176, %s177
      %p189 = scmp.eq.s32.totalorder %s41, 1
      %p190 = por %p188, %p189
      %p192 = scmp.ne.s32.totalorder %s177, %s191
      %p193 = scmp.eq.s32.totalorder %s41, 0
      %p194 = por %p192, %p193
      %s196 = sadd.s32 %s195, 1
      %p199 = scmp.eq.s32.totalorder %s35, 1
      %p200 = scmp.ne.s32.totalorder %s195, %s197
      %p201 = scmp.eq.s32.totalorder %s35, 0
      %p202 = por %p200, %p201
      %p203 = scmp.ne.s32.totalorder %s195, %s197
      %p204 = scmp.eq.s32.totalorder %s40, 1
      %p205 = por %p203, %p204
      %p206 = scmp.ne.s32.totalorder %s197, %s198
      %p207 = scmp.eq.s32.totalorder %s40, 0
      %p208 = por %p206, %p207
      %p209 = scmp.ne.s32.totalorder %s197, %s198
      %p210 = scmp.eq.s32.totalorder %s41, 1
      %p211 = por %p209, %p210
      %p213 = scmp.ne.s32.totalorder %s198, %s212
      %p214 = scmp.eq.s32.totalorder %s41, 0
      %p215 = por %p213, %p214
      %s217 = sadd.s32 %s216, 1
      %p220 = scmp.eq.s32.totalorder %s35, 1
      %p221 = scmp.ne.s32.totalorder %s216, %s218
      %p222 = scmp.eq.s32.totalorder %s35, 0
      %p223 = por %p221, %p222
      %p224 = scmp.ne.s32.totalorder %s216, %s218
      %p225 = scmp.eq.s32.totalorder %s40, 1
      %p226 = por %p224, %p225
      %p227 = scmp.ne.s32.totalorder %s218, %s219
      %p228 = scmp.eq.s32.totalorder %s40, 0
      %p229 = por %p227, %p228
      %p230 = scmp.ne.s32.totalorder %s218, %s219
      %p231 = scmp.eq.s32.totalorder %s41, 1
      %p232 = por %p230, %p231
      %p234 = scmp.ne.s32.totalorder %s219, %s233
      %p235 = scmp.eq.s32.totalorder %s41, 0
      %p236 = por %p234, %p235
      %s238 = sadd.s32 %s237, 1
      %p241 = scmp.eq.s32.totalorder %s35, 1
      %p242 = scmp.ne.s32.totalorder %s237, %s239
      %p243 = scmp.eq.s32.totalorder %s35, 0
      %p244 = por %p242, %p243
      %p245 = scmp.ne.s32.totalorder %s237, %s239
      %p246 = scmp.eq.s32.totalorder %s40, 1
      %p247 = por %p245, %p246
      %p248 = scmp.ne.s32.totalorder %s239, %s240
      %p249 = scmp.eq.s32.totalorder %s40, 0
      %p250 = por %p248, %p249
      %p251 = scmp.ne.s32.totalorder %s239, %s240
      %p252 = scmp.eq.s32.totalorder %s41, 1
      %p253 = por %p251, %p252
      %p255 = scmp.ne.s32.totalorder %s240, %s254
      %p256 = scmp.eq.s32.totalorder %s41, 0
      %p257 = por %p255, %p256
      %s259 = sadd.s32 %s258, 1
      %p262 = scmp.eq.s32.totalorder %s35, 1
      %p263 = scmp.ne.s32.totalorder %s258, %s260
      %p264 = scmp.eq.s32.totalorder %s35, 0
      %p265 = por %p263, %p264
      %p266 = scmp.ne.s32.totalorder %s258, %s260
      %p267 = scmp.eq.s32.totalorder %s40, 1
      %p268 = por %p266, %p267
      %p269 = scmp.ne.s32.totalorder %s260, %s261
      %p270 = scmp.eq.s32.totalorder %s40, 0
      %p271 = por %p269, %p270
      %p272 = scmp.ne.s32.totalorder %s260, %s261
      %p273 = scmp.eq.s32.totalorder %s41, 1
      %p274 = por %p272, %p273
      %p276 = scmp.ne.s32.totalorder %s261, %s275
      %p277 = scmp.eq.s32.totalorder %s41, 0
      %p278 = por %p276, %p277
      %s280 = sadd.s32 %s279, 1
      %p283 = scmp.eq.s32.totalorder %s35, 1
      %p284 = scmp.ne.s32.totalorder %s279, %s281
      %p285 = scmp.eq.s32.totalorder %s35, 0
      %p286 = por %p284, %p285
      %p287 = scmp.ne.s32.totalorder %s279, %s281
      %p288 = scmp.eq.s32.totalorder %s40, 1
      %p289 = por %p287, %p288
      %p290 = scmp.ne.s32.totalorder %s281, %s282
      %p291 = scmp.eq.s32.totalorder %s40, 0
      %p292 = por %p290, %p291
      %p293 = scmp.ne.s32.totalorder %s281, %s282
      %p294 = scmp.eq.s32.totalorder %s41, 1
      %p295 = por %p293, %p294
      %p297 = scmp.ne.s32.totalorder %s282, %s296
      %p298 = scmp.eq.s32.totalorder %s41, 0
      %p299 = por %p297, %p298
      %s301 = sadd.s32 %s300, 1
      %p304 = scmp.eq.s32.totalorder %s35, 1
      %p305 = scmp.ne.s32.totalorder %s300, %s302
      %p306 = scmp.eq.s32.totalorder %s35, 0
      %p307 = por %p305, %p306
      %p308 = scmp.ne.s32.totalorder %s300, %s302
      %p309 = scmp.eq.s32.totalorder %s40, 1
      %p310 = por %p308, %p309
      %p311 = scmp.ne.s32.totalorder %s302, %s303
      %p312 = scmp.eq.s32.totalorder %s40, 0
      %p313 = por %p311, %p312
      %p314 = scmp.ne.s32.totalorder %s302, %s303
      %p315 = scmp.eq.s32.totalorder %s41, 1
      %p316 = por %p314, %p315
      %p318 = scmp.ne.s32.totalorder %s303, %s317
      %p319 = scmp.eq.s32.totalorder %s41, 0
      %p320 = por %p318, %p319
      %s322 = sadd.s32 %s321, 1
      %p325 = scmp.eq.s32.totalorder %s35, 1
      %p326 = scmp.ne.s32.totalorder %s321, %s323
      %p327 = scmp.eq.s32.totalorder %s35, 0
      %p328 = por %p326, %p327
      %p329 = scmp.ne.s32.totalorder %s321, %s323
      %p330 = scmp.eq.s32.totalorder %s40, 1
      %p331 = por %p329, %p330
      %p332 = scmp.ne.s32.totalorder %s323, %s324
      %p333 = scmp.eq.s32.totalorder %s40, 0
      %p334 = por %p332, %p333
      %p335 = scmp.ne.s32.totalorder %s323, %s324
      %p336 = scmp.eq.s32.totalorder %s41, 1
      %p337 = por %p335, %p336
      %p339 = scmp.ne.s32.totalorder %s324, %s338
      %p340 = scmp.eq.s32.totalorder %s41, 0
      %p341 = por %p339, %p340
      %s343 = sadd.s32 %s342, 1
      %p346 = scmp.eq.s32.totalorder %s35, 1
      %p347 = scmp.ne.s32.totalorder %s342, %s344
      %p348 = scmp.eq.s32.totalorder %s35, 0
      %p349 = por %p347, %p348
      %p350 = scmp.ne.s32.totalorder %s342, %s344
      %p351 = scmp.eq.s32.totalorder %s40, 1
      %p352 = por %p350, %p351
      %p353 = scmp.ne.s32.totalorder %s344, %s345
      %p354 = scmp.eq.s32.totalorder %s40, 0
      %p355 = por %p353, %p354
      %p356 = scmp.ne.s32.totalorder %s344, %s345
      %p357 = scmp.eq.s32.totalorder %s41, 1
      %p358 = por %p356, %p357
      %p360 = scmp.ne.s32.totalorder %s345, %s359
      %p361 = scmp.eq.s32.totalorder %s41, 0
      %p362 = por %p360, %p361
      %s364 = sadd.s32 %s363, 1
      %p367 = scmp.eq.s32.totalorder %s35, 1
      %p368 = scmp.ne.s32.totalorder %s363, %s365
      %p369 = scmp.eq.s32.totalorder %s35, 0
      %p370 = por %p368, %p369
      %p371 = scmp.ne.s32.totalorder %s363, %s365
      %p372 = scmp.eq.s32.totalorder %s40, 1
      %p373 = por %p371, %p372
      %p374 = scmp.ne.s32.totalorder %s365, %s366
      %p375 = scmp.eq.s32.totalorder %s40, 0
      %p376 = por %p374, %p375
      %p377 = scmp.ne.s32.totalorder %s365, %s366
      %p378 = scmp.eq.s32.totalorder %s41, 1
      %p379 = por %p377, %p378
      %p381 = scmp.ne.s32.totalorder %s366, %s380
      %p382 = scmp.eq.s32.totalorder %s41, 0
      %p383 = por %p381, %p382
      %s385 = sadd.s32 %s384, 1
      %p388 = scmp.eq.s32.totalorder %s35, 1
      %p389 = scmp.ne.s32.totalorder %s384, %s386
      %p390 = scmp.eq.s32.totalorder %s35, 0
      %p391 = por %p389, %p390
      %p392 = scmp.ne.s32.totalorder %s384, %s386
      %p393 = scmp.eq.s32.totalorder %s40, 1
      %p394 = por %p392, %p393
      %p395 = scmp.ne.s32.totalorder %s386, %s387
      %p396 = scmp.eq.s32.totalorder %s40, 0
      %p397 = por %p395, %p396
      %p398 = scmp.ne.s32.totalorder %s386, %s387
      %p399 = scmp.eq.s32.totalorder %s41, 1
      %p400 = por %p398, %p399
      %p402 = scmp.ne.s32.totalorder %s387, %s401
      %p403 = scmp.eq.s32.totalorder %s41, 0
      %p404 = por %p402, %p403
      %s406 = sadd.s32 %s405, 1
      %p409 = scmp.eq.s32.totalorder %s35, 1
      %p410 = scmp.ne.s32.totalorder %s405, %s407
      %p411 = scmp.eq.s32.totalorder %s35, 0
      %p412 = por %p410, %p411
      %p413 = scmp.ne.s32.totalorder %s405, %s407
      %p414 = scmp.eq.s32.totalorder %s40, 1
      %p415 = por %p413, %p414
      %p416 = scmp.ne.s32.totalorder %s407, %s408
      %p417 = scmp.eq.s32.totalorder %s40, 0
      %p418 = por %p416, %p417
      %p419 = scmp.ne.s32.totalorder %s407, %s408
      %p420 = scmp.eq.s32.totalorder %s41, 1
      %p421 = por %p419, %p420
      %p423 = scmp.ne.s32.totalorder %s408, %s422
      %p424 = scmp.eq.s32.totalorder %s41, 0
      %p425 = por %p423, %p424
      %s427 = sadd.s32 %s426, 1
      %p430 = scmp.eq.s32.totalorder %s35, 1
      %p431 = scmp.ne.s32.totalorder %s426, %s428
      %p432 = scmp.eq.s32.totalorder %s35, 0
      %p433 = por %p431, %p432
      %p434 = scmp.ne.s32.totalorder %s426, %s428
      %p435 = scmp.eq.s32.totalorder %s40, 1
      %p436 = por %p434, %p435
      %p437 = scmp.ne.s32.totalorder %s428, %s429
      %p438 = scmp.eq.s32.totalorder %s40, 0
      %p439 = por %p437, %p438
      %p440 = scmp.ne.s32.totalorder %s428, %s429
      %p441 = scmp.eq.s32.totalorder %s41, 1
      %p442 = por %p440, %p441
      %p444 = scmp.ne.s32.totalorder %s429, %s443
      %p445 = scmp.eq.s32.totalorder %s41, 0
      %p446 = por %p444, %p445
      %s448 = sadd.s32 %s447, 1
      %p451 = scmp.eq.s32.totalorder %s35, 1
      %p452 = scmp.ne.s32.totalorder %s447, %s449
      %p453 = scmp.eq.s32.totalorder %s35, 0
      %p454 = por %p452, %p453
      %p455 = scmp.ne.s32.totalorder %s447, %s449
      %p456 = scmp.eq.s32.totalorder %s40, 1
      %p457 = por %p455, %p456
      %p458 = scmp.ne.s32.totalorder %s449, %s450
      %p459 = scmp.eq.s32.totalorder %s40, 0
      %p460 = por %p458, %p459
      %p461 = scmp.ne.s32.totalorder %s449, %s450
      %p462 = scmp.eq.s32.totalorder %s41, 1
      %p463 = por %p461, %p462
      %p465 = scmp.ne.s32.totalorder %s450, %s464
      %p466 = scmp.eq.s32.totalorder %s41, 0
      %p467 = por %p465, %p466
      %s469 = sadd.s32 %s468, 1
      %p472 = scmp.eq.s32.totalorder %s35, 1
      %p473 = scmp.ne.s32.totalorder %s468, %s470
      %p474 = scmp.eq.s32.totalorder %s35, 0
      %p475 = por %p473, %p474
      %p476 = scmp.ne.s32.totalorder %s468, %s470
      %p477 = scmp.eq.s32.totalorder %s40, 1
      %p478 = por %p476, %p477
      %p479 = scmp.ne.s32.totalorder %s470, %s471
      %p480 = scmp.eq.s32.totalorder %s40, 0
      %p481 = por %p479, %p480
      %p482 = scmp.ne.s32.totalorder %s470, %s471
      %p483 = scmp.eq.s32.totalorder %s41, 1
      %p484 = por %p482, %p483
      %p486 = scmp.ne.s32.totalorder %s471, %s485
      %p487 = scmp.eq.s32.totalorder %s41, 0
      %p488 = por %p486, %p487
      %s490 = sadd.s32 %s489, 1
      %p493 = scmp.eq.s32.totalorder %s35, 1
      %p494 = scmp.ne.s32.totalorder %s489, %s491
      %p495 = scmp.eq.s32.totalorder %s35, 0
      %p496 = por %p494, %p495
      %p497 = scmp.ne.s32.totalorder %s489, %s491
      %p498 = scmp.eq.s32.totalorder %s40, 1
      %p499 = por %p497, %p498
      %p500 = scmp.ne.s32.totalorder %s491, %s492
      %p501 = scmp.eq.s32.totalorder %s40, 0
      %p502 = por %p500, %p501
      %p503 = scmp.ne.s32.totalorder %s491, %s492
      %p504 = scmp.eq.s32.totalorder %s41, 1
      %p505 = por %p503, %p504
      %p507 = scmp.ne.s32.totalorder %s492, %s506
      %p508 = scmp.eq.s32.totalorder %s41, 0
      %p509 = por %p507, %p508
      %s511 = sadd.s32 %s510, 1
      %p514 = scmp.eq.s32.totalorder %s35, 1
      %p515 = scmp.ne.s32.totalorder %s510, %s512
      %p516 = scmp.eq.s32.totalorder %s35, 0
      %p517 = por %p515, %p516
      %p518 = scmp.ne.s32.totalorder %s510, %s512
      %p519 = scmp.eq.s32.totalorder %s40, 1
      %p520 = por %p518, %p519
      %p521 = scmp.ne.s32.totalorder %s512, %s513
      %p522 = scmp.eq.s32.totalorder %s40, 0
      %p523 = por %p521, %p522
      %p524 = scmp.ne.s32.totalorder %s512, %s513
      %p525 = scmp.eq.s32.totalorder %s41, 1
      %p526 = por %p524, %p525
      %p528 = scmp.ne.s32.totalorder %s513, %s527
      %p529 = scmp.eq.s32.totalorder %s41, 0
      %p530 = por %p528, %p529
      %s532 = sadd.s32 %s531, 1
      %p535 = scmp.eq.s32.totalorder %s35, 1
      %p536 = scmp.ne.s32.totalorder %s531, %s533
      %p537 = scmp.eq.s32.totalorder %s35, 0
      %p538 = por %p536, %p537
      %p539 = scmp.ne.s32.totalorder %s531, %s533
      %p540 = scmp.eq.s32.totalorder %s40, 1
      %p541 = por %p539, %p540
      %p542 = scmp.ne.s32.totalorder %s533, %s534
      %p543 = scmp.eq.s32.totalorder %s40, 0
      %p544 = por %p542, %p543
      %p545 = scmp.ne.s32.totalorder %s533, %s534
      %p546 = scmp.eq.s32.totalorder %s41, 1
      %p547 = por %p545, %p546
      %p549 = scmp.ne.s32.totalorder %s534, %s548
      %p550 = scmp.eq.s32.totalorder %s41, 0
      %p551 = por %p549, %p550
      %s553 = sadd.s32 %s552, 1
      %p556 = scmp.eq.s32.totalorder %s35, 1
      %p557 = scmp.ne.s32.totalorder %s552, %s554
      %p558 = scmp.eq.s32.totalorder %s35, 0
      %p559 = por %p557, %p558
      %p560 = scmp.ne.s32.totalorder %s552, %s554
      %p561 = scmp.eq.s32.totalorder %s40, 1
      %p562 = por %p560, %p561
      %p563 = scmp.ne.s32.totalorder %s554, %s555
      %p564 = scmp.eq.s32.totalorder %s40, 0
      %p565 = por %p563, %p564
      %p566 = scmp.ne.s32.totalorder %s554, %s555
      %p567 = scmp.eq.s32.totalorder %s41, 1
      %p568 = por %p566, %p567
      %p570 = scmp.ne.s32.totalorder %s555, %s569
      %p571 = scmp.eq.s32.totalorder %s41, 0
      %p572 = por %p570, %p571
      %s574 = sadd.s32 %s573, 1
      %p577 = scmp.eq.s32.totalorder %s35, 1
      %p578 = scmp.ne.s32.totalorder %s573, %s575
      %p579 = scmp.eq.s32.totalorder %s35, 0
      %p580 = por %p578, %p579
      %p581 = scmp.ne.s32.totalorder %s573, %s575
      %p582 = scmp.eq.s32.totalorder %s40, 1
      %p583 = por %p581, %p582
      %p584 = scmp.ne.s32.totalorder %s575, %s576
      %p585 = scmp.eq.s32.totalorder %s40, 0
      %p586 = por %p584, %p585
      %p587 = scmp.ne.s32.totalorder %s575, %s576
      %p588 = scmp.eq.s32.totalorder %s41, 1
      %p589 = por %p587, %p588
      %p591 = scmp.ne.s32.totalorder %s576, %s590
      %p592 = scmp.eq.s32.totalorder %s41, 0
      %p593 = por %p591, %p592
      %s594 = ssub.s32 %s35, %s42
      %p595 = scmp.eq.s32.totalorder %s594, 0
      %s597 = sadd.s32 %s596, 1
      %s598 = scalar_select %p595, %s596, %s597
      %p601 = pneg %p595
      %p602 = scmp.eq.s32.totalorder %s35, 1
      %p603 = por %p601, %p602
      %p604 = scmp.ne.s32.totalorder %s596, %s599
      %p605 = scmp.eq.s32.totalorder %s35, 0
      %p606 = por %p604, %p605
      %p607 = scmp.ne.s32.totalorder %s596, %s599
      %p608 = scmp.eq.s32.totalorder %s40, 1
      %p609 = por %p607, %p608
      %p610 = scmp.ne.s32.totalorder %s599, %s600
      %p611 = scmp.eq.s32.totalorder %s40, 0
      %p612 = por %p610, %p611
      %p613 = scmp.ne.s32.totalorder %s599, %s600
      %p614 = scmp.eq.s32.totalorder %s41, 1
      %p615 = por %p613, %p614
      %p617 = scmp.ne.s32.totalorder %s600, %s616
      %p618 = scmp.eq.s32.totalorder %s41, 0
      %p619 = por %p617, %p618
      %p620 = scmp.le.s32.totalorder 1, %s35
      %p621 = scmp.lt.s32.totalorder %s35, 3
      %p622 = pnand %p620, %p621
      %p623 = pneg %p622
      // Predicated region
      $region9: #{pallas_forward.1} parent=5 // pred_check
        _
      $region10: #{pallas_forward.1} parent=5 // pred_check_branch
        %625 = sbr.rel (%p622) target = $region12
      $region11: #{pallas_forward.1} parent=5 // pred_region
        %s626 = ssub.s32 %s35, 1
        // Predicated region
        $region13: #{pallas_forward.1} parent=11 // pred_check
          %p627 = pneg %p82
        $region14: #{pallas_forward.1} parent=11 // pred_check_branch
          %629 = sbr.rel (%p627) target = $region16
        $region15: #{pallas_forward.1} parent=11 // pred_region
          _
        $region16: #{pallas_forward.1} parent=11 // pred_fallthru
          _
        // Predicated region
        $region17: #{pallas_forward.1} parent=11 // pred_check
          %p630 = pneg %p103
        $region18: #{pallas_forward.1} parent=11 // pred_check_branch
          %632 = sbr.rel (%p630) target = $region20
        $region19: #{pallas_forward.1} parent=11 // pred_region
          _
        $region20: #{pallas_forward.1} parent=11 // pred_fallthru
          _
        // Predicated region
        $region21: #{pallas_forward.1} parent=11 // pred_check
          %p633 = pneg %p124
        $region22: #{pallas_forward.1} parent=11 // pred_check_branch
          %635 = sbr.rel (%p633) target = $region24
        $region23: #{pallas_forward.1} parent=11 // pred_region
          _
        $region24: #{pallas_forward.1} parent=11 // pred_fallthru
          _
        // Predicated region
        $region25: #{pallas_forward.1} parent=11 // pred_check
          %p636 = pneg %p145
        $region26: #{pallas_forward.1} parent=11 // pred_check_branch
          %638 = sbr.rel (%p636) target = $region28
        $region27: #{pallas_forward.1} parent=11 // pred_region
          _
        $region28: #{pallas_forward.1} parent=11 // pred_fallthru
          _
        // Predicated region
        $region29: #{pallas_forward.1} parent=11 // pred_check
          %p639 = pneg %p166
        $region30: #{pallas_forward.1} parent=11 // pred_check_branch
          %641 = sbr.rel (%p639) target = $region32
        $region31: #{pallas_forward.1} parent=11 // pred_region
          _
        $region32: #{pallas_forward.1} parent=11 // pred_fallthru
          _
        // Predicated region
        $region33: #{pallas_forward.1} parent=11 // pred_check
          %p642 = pneg %p187
        $region34: #{pallas_forward.1} parent=11 // pred_check_branch
          %644 = sbr.rel (%p642) target = $region36
        $region35: #{pallas_forward.1} parent=11 // pred_region
          _
        $region36: #{pallas_forward.1} parent=11 // pred_fallthru
          _
        // Predicated region
        $region37: #{pallas_forward.1} parent=11 // pred_check
          %p645 = pneg %p208
        $region38: #{pallas_forward.1} parent=11 // pred_check_branch
          %647 = sbr.rel (%p645) target = $region40
        $region39: #{pallas_forward.1} parent=11 // pred_region
          _
        $region40: #{pallas_forward.1} parent=11 // pred_fallthru
          _
        // Predicated region
        $region41: #{pallas_forward.1} parent=11 // pred_check
          %p648 = pneg %p229
        $region42: #{pallas_forward.1} parent=11 // pred_check_branch
          %650 = sbr.rel (%p648) target = $region44
        $region43: #{pallas_forward.1} parent=11 // pred_region
          _
        $region44: #{pallas_forward.1} parent=11 // pred_fallthru
          _
        // Predicated region
        $region45: #{pallas_forward.1} parent=11 // pred_check
          %p651 = pneg %p250
        $region46: #{pallas_forward.1} parent=11 // pred_check_branch
          %653 = sbr.rel (%p651) target = $region48
        $region47: #{pallas_forward.1} parent=11 // pred_region
          _
        $region48: #{pallas_forward.1} parent=11 // pred_fallthru
          _
        // Predicated region
        $region49: #{pallas_forward.1} parent=11 // pred_check
          %p654 = pneg %p271
        $region50: #{pallas_forward.1} parent=11 // pred_check_branch
          %656 = sbr.rel (%p654) target = $region52
        $region51: #{pallas_forward.1} parent=11 // pred_region
          _
        $region52: #{pallas_forward.1} parent=11 // pred_fallthru
          _
        // Predicated region
        $region53: #{pallas_forward.1} parent=11 // pred_check
          %p657 = pneg %p292
        $region54: #{pallas_forward.1} parent=11 // pred_check_branch
          %659 = sbr.rel (%p657) target = $region56
        $region55: #{pallas_forward.1} parent=11 // pred_region
          _
        $region56: #{pallas_forward.1} parent=11 // pred_fallthru
          _
        // Predicated region
        $region57: #{pallas_forward.1} parent=11 // pred_check
          %p660 = pneg %p313
        $region58: #{pallas_forward.1} parent=11 // pred_check_branch
          %662 = sbr.rel (%p660) target = $region60
        $region59: #{pallas_forward.1} parent=11 // pred_region
          _
        $region60: #{pallas_forward.1} parent=11 // pred_fallthru
          _
        // Predicated region
        $region61: #{pallas_forward.1} parent=11 // pred_check
          %p663 = pneg %p334
        $region62: #{pallas_forward.1} parent=11 // pred_check_branch
          %665 = sbr.rel (%p663) target = $region64
        $region63: #{pallas_forward.1} parent=11 // pred_region
          _
        $region64: #{pallas_forward.1} parent=11 // pred_fallthru
          _
        // Predicated region
        $region65: #{pallas_forward.1} parent=11 // pred_check
          %p666 = pneg %p355
        $region66: #{pallas_forward.1} parent=11 // pred_check_branch
          %668 = sbr.rel (%p666) target = $region68
        $region67: #{pallas_forward.1} parent=11 // pred_region
          _
        $region68: #{pallas_forward.1} parent=11 // pred_fallthru
          _
        // Predicated region
        $region69: #{pallas_forward.1} parent=11 // pred_check
          %p669 = pneg %p376
        $region70: #{pallas_forward.1} parent=11 // pred_check_branch
          %671 = sbr.rel (%p669) target = $region72
        $region71: #{pallas_forward.1} parent=11 // pred_region
          _
        $region72: #{pallas_forward.1} parent=11 // pred_fallthru
          _
        // Predicated region
        $region73: #{pallas_forward.1} parent=11 // pred_check
          %p672 = pneg %p397
        $region74: #{pallas_forward.1} parent=11 // pred_check_branch
          %674 = sbr.rel (%p672) target = $region76
        $region75: #{pallas_forward.1} parent=11 // pred_region
          _
        $region76: #{pallas_forward.1} parent=11 // pred_fallthru
          _
        // Predicated region
        $region77: #{pallas_forward.1} parent=11 // pred_check
          %p675 = pneg %p418
        $region78: #{pallas_forward.1} parent=11 // pred_check_branch
          %677 = sbr.rel (%p675) target = $region80
        $region79: #{pallas_forward.1} parent=11 // pred_region
          _
        $region80: #{pallas_forward.1} parent=11 // pred_fallthru
          _
        // Predicated region
        $region81: #{pallas_forward.1} parent=11 // pred_check
          %p678 = pneg %p439
        $region82: #{pallas_forward.1} parent=11 // pred_check_branch
          %680 = sbr.rel (%p678) target = $region84
        $region83: #{pallas_forward.1} parent=11 // pred_region
          _
        $region84: #{pallas_forward.1} parent=11 // pred_fallthru
          _
        // Predicated region
        $region85: #{pallas_forward.1} parent=11 // pred_check
          %p681 = pneg %p460
        $region86: #{pallas_forward.1} parent=11 // pred_check_branch
          %683 = sbr.rel (%p681) target = $region88
        $region87: #{pallas_forward.1} parent=11 // pred_region
          _
        $region88: #{pallas_forward.1} parent=11 // pred_fallthru
          _
        // Predicated region
        $region89: #{pallas_forward.1} parent=11 // pred_check
          %p684 = pneg %p481
        $region90: #{pallas_forward.1} parent=11 // pred_check_branch
          %686 = sbr.rel (%p684) target = $region92
        $region91: #{pallas_forward.1} parent=11 // pred_region
          _
        $region92: #{pallas_forward.1} parent=11 // pred_fallthru
          _
        // Predicated region
        $region93: #{pallas_forward.1} parent=11 // pred_check
          %p687 = pneg %p502
        $region94: #{pallas_forward.1} parent=11 // pred_check_branch
          %689 = sbr.rel (%p687) target = $region96
        $region95: #{pallas_forward.1} parent=11 // pred_region
          _
        $region96: #{pallas_forward.1} parent=11 // pred_fallthru
          _
        // Predicated region
        $region97: #{pallas_forward.1} parent=11 // pred_check
          %p690 = pneg %p523
        $region98: #{pallas_forward.1} parent=11 // pred_check_branch
          %692 = sbr.rel (%p690) target = $region100
        $region99: #{pallas_forward.1} parent=11 // pred_region
          _
        $region100: #{pallas_forward.1} parent=11 // pred_fallthru
          _
        // Predicated region
        $region101: #{pallas_forward.1} parent=11 // pred_check
          %p693 = pneg %p544
        $region102: #{pallas_forward.1} parent=11 // pred_check_branch
          %695 = sbr.rel (%p693) target = $region104
        $region103: #{pallas_forward.1} parent=11 // pred_region
          _
        $region104: #{pallas_forward.1} parent=11 // pred_fallthru
          _
        // Predicated region
        $region105: #{pallas_forward.1} parent=11 // pred_check
          %p696 = pneg %p565
        $region106: #{pallas_forward.1} parent=11 // pred_check_branch
          %698 = sbr.rel (%p696) target = $region108
        $region107: #{pallas_forward.1} parent=11 // pred_region
          _
        $region108: #{pallas_forward.1} parent=11 // pred_fallthru
          _
        // Predicated region
        $region109: #{pallas_forward.1} parent=11 // pred_check
          %p699 = pneg %p586
        $region110: #{pallas_forward.1} parent=11 // pred_check_branch
          %701 = sbr.rel (%p699) target = $region112
        $region111: #{pallas_forward.1} parent=11 // pred_region
          _
        $region112: #{pallas_forward.1} parent=11 // pred_fallthru
          _
      $region12: #{pallas_forward.1} parent=5 // pred_fallthru
        _
      %p702 = scmp.lt.s32.totalorder %s35, 2
      // Predicated region
      $region113: #{pallas_forward.1} parent=5 // pred_check
        %p703 = pneg %p702
      $region114: #{pallas_forward.1} parent=5 // pred_check_branch
        %705 = sbr.rel (%p703) target = $region116
      $region115: #{pallas_forward.1} parent=5 // pred_region
        // Predicated region
        $region117: #{pallas_forward.1} parent=115 // pred_check
          %p706 = pneg %p55
        $region118: #{pallas_forward.1} parent=115 // pred_check_branch
          %708 = sbr.rel (%p706) target = $region120
        $region119: #{pallas_forward.1} parent=115 // pred_region
          %p709 = scmp.lt.s32.totalorder %s35, 1
          %s710 = scalar_select %p709, %s35, 1
          %s711 = smul.addr %s710, 32
          %s712 = smul.addr %s711, 8
          %s713 = scalar_lea.vmem %s0, %s712
        $region120: #{pallas_forward.1} parent=115 // pred_fallthru
          _
      $region116: #{pallas_forward.1} parent=5 // pred_fallthru
        _
      %p714 = scmp.le.s32.totalorder 1, %s35
      %p715 = scmp.lt.s32.totalorder %s35, 3
      %p716 = pnand %p714, %p715
      %p717 = pneg %p716
      // Predicated region
      $region121: #{pallas_forward.1} parent=5 // pred_check
        _
      $region122: #{pallas_forward.1} parent=5 // pred_check_branch
        %719 = sbr.rel (%p716) target = $region124
      $region123: #{pallas_forward.1} parent=5 // pred_region
        %s720 = ssub.s32 %s35, 1
        %p721 = scmp.lt.s32.totalorder %s40, 1
        %s722 = scalar_select %p721, %s40, 1
        %s723 = smul.addr %s722, 32
        %s724 = smul.addr %s723, 8
        %s725 = scalar_lea.vmem %s0, %s724
        %p726 = pneg %p61
        %p727 = pneg %p58
        %p728 = pneg %p82
        %p729 = pneg %p79
        %p730 = pneg %p103
        %p731 = pneg %p100
        %p732 = pneg %p124
        %p733 = pneg %p121
        %p734 = pneg %p145
        %p735 = pneg %p142
        %p736 = pneg %p166
        %p737 = pneg %p163
        %p738 = pneg %p187
        %p739 = pneg %p184
        %p740 = pneg %p208
        %p741 = pneg %p205
        %p742 = pneg %p229
        %p743 = pneg %p226
        %p744 = pneg %p250
        %p745 = pneg %p247
        %p746 = pneg %p271
        %p747 = pneg %p268
        %p748 = pneg %p292
        %p749 = pneg %p289
        %p750 = pneg %p313
        %p751 = pneg %p310
        %p752 = pneg %p334
        %p753 = pneg %p331
        %p754 = pneg %p355
        %p755 = pneg %p352
        %p756 = pneg %p376
        %p757 = pneg %p373
        %p758 = pneg %p397
        %p759 = pneg %p394
        %p760 = pneg %p418
        %p761 = pneg %p415
        %p762 = pneg %p439
        %p763 = pneg %p436
        %p764 = pneg %p460
        %p765 = pneg %p457
        %p766 = pneg %p481
        %p767 = pneg %p478
        %p768 = pneg %p502
        %p769 = pneg %p499
        %p770 = pneg %p523
        %p771 = pneg %p520
        %p772 = pneg %p544
        %p773 = pneg %p541
        %p774 = pneg %p565
        %p775 = pneg %p562
        %p776 = pneg %p586
        %p777 = pneg %p583
        %p778 = pneg %p612
        %p779 = pneg %p609
        %s780 = sand.u32 %s599, 1
        %s781 = scalar_lea.sflag [#allocation3], %s780
        %s782 = sand.u32 %s599, 1
        %s783 = smul.addr %s782, 4
        %s784 = scalar_lea.vmem [#allocation2], %s783
        %p785 = scmp.lt.s32.totalorder %s40, 1
        %s786 = scalar_select %p785, %s40, 1
        %s787 = smul.addr %s786, 32
        %s788 = smul.addr %s787, 8
        %s789 = scalar_lea.vmem %s0, %s788
        %v791 = vld [vmem:[%s789] sm:$0xff]
        %v792 = vld [vmem:[%s789 + $0x8] sm:$0xff]
        %v793 = vld [vmem:[%s789 + $0x10] sm:$0xff]
        %v794 = vld [vmem:[%s789 + $0x18] sm:$0xff]
        %v795 = vld [vmem:[%s789 + $0x20] sm:$0xff]
        %v796 = vld [vmem:[%s789 + $0x28] sm:$0xff]
        %v797 = vld [vmem:[%s789 + $0x30] sm:$0xff]
        %v798 = vld [vmem:[%s789 + $0x38] sm:$0xff]
        %v799 = vld [vmem:[%s789 + $0x40] sm:$0xff]
        %v800 = vld [vmem:[%s789 + $0x48] sm:$0xff]
        %v801 = vld [vmem:[%s789 + $0x50] sm:$0xff]
        %v802 = vld [vmem:[%s789 + $0x58] sm:$0xff]
        %v803 = vld [vmem:[%s789 + $0x60] sm:$0xff]
        %v804 = vld [vmem:[%s789 + $0x68] sm:$0xff]
        %v805 = vld [vmem:[%s789 + $0x70] sm:$0xff]
        %v806 = vld [vmem:[%s789 + $0x78] sm:$0xff]
        %v807 = vld [vmem:[%s789 + $0x80] sm:$0xff]
        %v808 = vld [vmem:[%s789 + $0x88] sm:$0xff]
        %v809 = vld [vmem:[%s789 + $0x90] sm:$0xff]
        %v810 = vld [vmem:[%s789 + $0x98] sm:$0xff]
        %v811 = vld [vmem:[%s789 + $0xa0] sm:$0xff]
        %v812 = vld [vmem:[%s789 + $0xa8] sm:$0xff]
        %v813 = vld [vmem:[%s789 + $0xb0] sm:$0xff]
        %v814 = vld [vmem:[%s789 + $0xb8] sm:$0xff]
        %v815 = vld [vmem:[%s789 + $0xc0] sm:$0xff]
        %v816 = vld [vmem:[%s789 + $0xc8] sm:$0xff]
        %v817 = vld [vmem:[%s789 + $0xd0] sm:$0xff]
        %v818 = vld [vmem:[%s789 + $0xd8] sm:$0xff]
        %v819 = vld [vmem:[%s789 + $0xe0] sm:$0xff]
        %v820 = vld [vmem:[%s789 + $0xe8] sm:$0xff]
        %v821 = vld [vmem:[%s789 + $0xf0] sm:$0xff]
        %v822 = vld [vmem:[%s789 + $0xf8] sm:$0xff]
        %v823 = vpack.c.bf16 %v792, %v791
        %v824 = vpack.c.bf16 %v794, %v793
        %v825 = vpack.c.bf16 %v796, %v795
        %v826 = vpack.c.bf16 %v798, %v797
        %v827 = vpack.c.bf16 %v800, %v799
        %v828 = vpack.c.bf16 %v802, %v801
        %v829 = vpack.c.bf16 %v804, %v803
        %v830 = vpack.c.bf16 %v806, %v805
        %v831 = vpack.c.bf16 %v808, %v807
        %v832 = vpack.c.bf16 %v810, %v809
        %v833 = vpack.c.bf16 %v812, %v811
        %v834 = vpack.c.bf16 %v814, %v813
        %v835 = vpack.c.bf16 %v816, %v815
        %v836 = vpack.c.bf16 %v818, %v817
        %v837 = vpack.c.bf16 %v820, %v819
        %v838 = vpack.c.bf16 %v822, %v821
        %v839 = vld [vmem:[%s1] sm:$0xf]
        %v840 = vld [vmem:[%s1 + $0x4] sm:$0xf]
        %v841 = vld [vmem:[%s1 + $0x8] sm:$0xf]
        %v842 = vld [vmem:[%s1 + $0xc] sm:$0x3]
        %v843 = vld [vmem:[%s2] sm:$0x1]
        %v845 = vlaneseq
        %v846 = vshrl.u32 %v845, 7
        %v847 = vsub.s32 0, %v846
        %v848 = vrot.slane %v843, %v847
        %v854 = vunpack.c.l.b16 %v839
        %v855 = vunpack.c.l.b16 %v840
        %v856 = vunpack.c.l.b16 %v841
        %v857 = vunpack.c.l.b16 %v842
        %v858 = vpack.c.b16 %v855, %v854
        %v859 = vpack.c.b16 %v857, %v856
        %vm861 = vcmask 220160
        %v863 = vsel %vm861, %v823, 0
        %v866 = vsel %vm861, %v824, 0
        %v869 = vsel %vm861, %v825, 0
        %v872 = vsel %vm861, %v826, 0
        %v875 = vsel %vm861, %v827, 0
        %v878 = vsel %vm861, %v828, 0
        %v881 = vsel %vm861, %v829, 0
        %v884 = vsel %vm861, %v830, 0
        %v887 = vsel %vm861, %v831, 0
        %v890 = vsel %vm861, %v832, 0
        %v893 = vsel %vm861, %v833, 0
        %v896 = vsel %vm861, %v834, 0
        %v899 = vsel %vm861, %v835, 0
        %v902 = vsel %vm861, %v836, 0
        %v905 = vsel %vm861, %v837, 0
        %v908 = vsel %vm861, %v838, 0
        %vm910 = vcmask 1044480
        %vm911 = vcmask 1045504
        %v912 = vsel %vm910, 4294967295, 65535
        %v913 = vsel %vm911, %v912, 0
        %v915 = vand.u32 %v859, %v913
        %917 = vmatprep.subr.bf16.mxu0 0
        %918 = vmatpush1.bf16.msra.mxu0 0
        %919 = vmatprep.subr.bf16.mxu0 0
        %920 = vmatpush1.bf16.msra.mxu0 0
        %921 = vmatprep.subr.bf16.mxu0 0
        %922 = vmatpush1.bf16.msra.mxu0 0
        %923 = vmatprep.subr.bf16.mxu0 0
        %924 = vmatpush1.bf16.msra.mxu0 0
        %925 = vmatprep.subr.bf16.mxu0 0
        %926 = vmatpush1.bf16.msra.mxu0 0
        %927 = vmatprep.subr.bf16.mxu0 0
        %928 = vmatpush1.bf16.msra.mxu0 0
        %929 = vmatprep.subr.bf16.mxu0 0
        %930 = vmatpush1.bf16.msra.mxu0 %v915
        %931 = vmatprep.subr.bf16.mxu0 0
        %932 = vmatpush1.bf16.msra.mxu0 %v858
        %933 = vmatprep.subr.bf16.mxu0 0
        %934 = vmatpush2.bf16.msra.mxu0 0
        %935 = vmatprep.subr.bf16.mxu0 0
        %936 = vmatpush2.bf16.msra.mxu0 0
        %937 = vmatprep.subr.bf16.mxu0 0
        %938 = vmatpush2.bf16.msra.mxu0 0
        %939 = vmatprep.subr.bf16.mxu0 0
        %940 = vmatpush2.bf16.msra.mxu0 0
        %941 = vmatprep.subr.bf16.mxu0 0
        %942 = vmatpush2.bf16.msra.mxu0 0
        %943 = vmatprep.subr.bf16.mxu0 0
        %944 = vmatpush2.bf16.msra.mxu0 0
        %945 = vmatprep.subr.bf16.mxu0 0
        %946 = vmatpush2.bf16.msra.mxu0 0
        %947 = vmatprep.subr.bf16.mxu0 0
        %948 = vmatpush2.bf16.msra.mxu0 0
        %949 = vmatprep.mubr.bf16.mxu0 0
        %950 = vmatmul.mubr.bf16.gmra.mxu0 %v863
        %v951 = vpop.f32.mrf.mxu0
        %v952 = vadd.f32 %v848, %v951
        %v953 = vpop.f32.mrf.mxu0
        %v954 = vpop.f32.mrf.mxu0
        %v955 = vadd.f32 %v848, %v954
        %v956 = vpop.f32.mrf.mxu0
        %957 = vmatprep.mubr.bf16.mxu0 0
        %958 = vmatmul.mubr.bf16.gmra.mxu0 %v866
        %v959 = vpop.f32.mrf.mxu0
        %v960 = vadd.f32 %v848, %v959
        %v961 = vpop.f32.mrf.mxu0
        %v962 = vpop.f32.mrf.mxu0
        %v963 = vadd.f32 %v848, %v962
        %v964 = vpop.f32.mrf.mxu0
        %965 = vmatprep.mubr.bf16.mxu0 0
        %966 = vmatmul.mubr.bf16.gmra.mxu0 %v869
        %v967 = vpop.f32.mrf.mxu0
        %v968 = vadd.f32 %v848, %v967
        %v969 = vpop.f32.mrf.mxu0
        %v970 = vpop.f32.mrf.mxu0
        %v971 = vadd.f32 %v848, %v970
        %v972 = vpop.f32.mrf.mxu0
        %973 = vmatprep.mubr.bf16.mxu0 0
        %974 = vmatmul.mubr.bf16.gmra.mxu0 %v872
        %v975 = vpop.f32.mrf.mxu0
        %v976 = vadd.f32 %v848, %v975
        %v977 = vpop.f32.mrf.mxu0
        %v978 = vpop.f32.mrf.mxu0
        %v979 = vadd.f32 %v848, %v978
        %v980 = vpop.f32.mrf.mxu0
        %981 = vmatprep.mubr.bf16.mxu0 0
        %982 = vmatmul.mubr.bf16.gmra.mxu0 %v875
        %v983 = vpop.f32.mrf.mxu0
        %v984 = vadd.f32 %v848, %v983
        %v985 = vpop.f32.mrf.mxu0
        %v986 = vpop.f32.mrf.mxu0
        %v987 = vadd.f32 %v848, %v986
        %v988 = vpop.f32.mrf.mxu0
        %989 = vmatprep.mubr.bf16.mxu0 0
        %990 = vmatmul.mubr.bf16.gmra.mxu0 %v878
        %v991 = vpop.f32.mrf.mxu0
        %v992 = vadd.f32 %v848, %v991
        %v993 = vpop.f32.mrf.mxu0
        %v994 = vpop.f32.mrf.mxu0
        %v995 = vadd.f32 %v848, %v994
        %v996 = vpop.f32.mrf.mxu0
        %997 = vmatprep.mubr.bf16.mxu0 0
        %998 = vmatmul.mubr.bf16.gmra.mxu0 %v881
        %v999 = vpop.f32.mrf.mxu0
        %v1000 = vadd.f32 %v848, %v999
        %v1001 = vpop.f32.mrf.mxu0
        %v1002 = vpop.f32.mrf.mxu0
        %v1003 = vadd.f32 %v848, %v1002
        %v1004 = vpop.f32.mrf.mxu0
        %1005 = vmatprep.mubr.bf16.mxu0 0
        %1006 = vmatmul.mubr.bf16.gmra.mxu0 %v884
        %v1007 = vpop.f32.mrf.mxu0
        %v1008 = vadd.f32 %v848, %v1007
        %v1009 = vpop.f32.mrf.mxu0
        %v1010 = vpop.f32.mrf.mxu0
        %v1011 = vadd.f32 %v848, %v1010
        %v1012 = vpop.f32.mrf.mxu0
        %1013 = vmatprep.mubr.bf16.mxu0 0
        %1014 = vmatmul.mubr.bf16.gmra.mxu0 %v887
        %v1015 = vpop.f32.mrf.mxu0
        %v1016 = vadd.f32 %v848, %v1015
        %v1017 = vpop.f32.mrf.mxu0
        %v1018 = vpop.f32.mrf.mxu0
        %v1019 = vadd.f32 %v848, %v1018
        %v1020 = vpop.f32.mrf.mxu0
        %1021 = vmatprep.mubr.bf16.mxu0 0
        %1022 = vmatmul.mubr.bf16.gmra.mxu0 %v890
        %v1023 = vpop.f32.mrf.mxu0
        %v1024 = vadd.f32 %v848, %v1023
        %v1025 = vpop.f32.mrf.mxu0
        %v1026 = vpop.f32.mrf.mxu0
        %v1027 = vadd.f32 %v848, %v1026
        %v1028 = vpop.f32.mrf.mxu0
        %1029 = vmatprep.mubr.bf16.mxu0 0
        %1030 = vmatmul.mubr.bf16.gmra.mxu0 %v893
        %v1031 = vpop.f32.mrf.mxu0
        %v1032 = vadd.f32 %v848, %v1031
        %v1033 = vpop.f32.mrf.mxu0
        %v1034 = vpop.f32.mrf.mxu0
        %v1035 = vadd.f32 %v848, %v1034
        %v1036 = vpop.f32.mrf.mxu0
        %1037 = vmatprep.mubr.bf16.mxu0 0
        %1038 = vmatmul.mubr.bf16.gmra.mxu0 %v896
        %v1039 = vpop.f32.mrf.mxu0
        %v1040 = vadd.f32 %v848, %v1039
        %v1041 = vpop.f32.mrf.mxu0
        %v1042 = vpop.f32.mrf.mxu0
        %v1043 = vadd.f32 %v848, %v1042
        %v1044 = vpop.f32.mrf.mxu0
        %1045 = vmatprep.mubr.bf16.mxu0 0
        %1046 = vmatmul.mubr.bf16.gmra.mxu0 %v899
        %v1047 = vpop.f32.mrf.mxu0
        %v1048 = vadd.f32 %v848, %v1047
        %v1049 = vpop.f32.mrf.mxu0
        %v1050 = vpop.f32.mrf.mxu0
        %v1051 = vadd.f32 %v848, %v1050
        %v1052 = vpop.f32.mrf.mxu0
        %1053 = vmatprep.mubr.bf16.mxu0 0
        %1054 = vmatmul.mubr.bf16.gmra.mxu0 %v902
        %v1055 = vpop.f32.mrf.mxu0
        %v1056 = vadd.f32 %v848, %v1055
        %v1057 = vpop.f32.mrf.mxu0
        %v1058 = vpop.f32.mrf.mxu0
        %v1059 = vadd.f32 %v848, %v1058
        %v1060 = vpop.f32.mrf.mxu0
        %1061 = vmatprep.mubr.bf16.mxu0 0
        %1062 = vmatmul.mubr.bf16.gmra.mxu0 %v905
        %v1063 = vpop.f32.mrf.mxu0
        %v1064 = vadd.f32 %v848, %v1063
        %v1065 = vpop.f32.mrf.mxu0
        %v1066 = vpop.f32.mrf.mxu0
        %v1067 = vadd.f32 %v848, %v1066
        %v1068 = vpop.f32.mrf.mxu0
        %1069 = vmatprep.mubr.bf16.mxu0 0
        %1070 = vmatmul.mubr.bf16.gmra.mxu0 %v908
        %v1071 = vpop.f32.mrf.mxu0
        %v1072 = vadd.f32 %v848, %v1071
        %v1073 = vpop.f32.mrf.mxu0
        %v1074 = vpop.f32.mrf.mxu0
        %v1075 = vadd.f32 %v848, %v1074
        %v1076 = vpop.f32.mrf.mxu0
        %1077 = vdwg.mxu0
        %v1078 = vmax.f32 %v952, 0.0
        %v1079 = vmax.f32 %v955, 0.0
        %v1080 = vmax.f32 %v960, 0.0
        %v1081 = vmax.f32 %v963, 0.0
        %v1082 = vmax.f32 %v968, 0.0
        %v1083 = vmax.f32 %v971, 0.0
        %v1084 = vmax.f32 %v976, 0.0
        %v1085 = vmax.f32 %v979, 0.0
        %v1086 = vmax.f32 %v984, 0.0
        %v1087 = vmax.f32 %v987, 0.0
        %v1088 = vmax.f32 %v992, 0.0
        %v1089 = vmax.f32 %v995, 0.0
        %v1090 = vmax.f32 %v1000, 0.0
        %v1091 = vmax.f32 %v1003, 0.0
        %v1092 = vmax.f32 %v1008, 0.0
        %v1093 = vmax.f32 %v1011, 0.0
        %v1094 = vmax.f32 %v1016, 0.0
        %v1095 = vmax.f32 %v1019, 0.0
        %v1096 = vmax.f32 %v1024, 0.0
        %v1097 = vmax.f32 %v1027, 0.0
        %v1098 = vmax.f32 %v1032, 0.0
        %v1099 = vmax.f32 %v1035, 0.0
        %v1100 = vmax.f32 %v1040, 0.0
        %v1101 = vmax.f32 %v1043, 0.0
        %v1102 = vmax.f32 %v1048, 0.0
        %v1103 = vmax.f32 %v1051, 0.0
        %v1104 = vmax.f32 %v1056, 0.0
        %v1105 = vmax.f32 %v1059, 0.0
        %v1106 = vmax.f32 %v1064, 0.0
        %v1107 = vmax.f32 %v1067, 0.0
        %v1108 = vmax.f32 %v1072, 0.0
        %v1109 = vmax.f32 %v1075, 0.0
        %v1110 = vpack.c.bf16 %v1079, %v1078
        %v1111 = vpack.c.bf16 %v1081, %v1080
        %v1112 = vpack.c.bf16 %v1083, %v1082
        %v1113 = vpack.c.bf16 %v1085, %v1084
        %v1114 = vpack.c.bf16 %v1087, %v1086
        %v1115 = vpack.c.bf16 %v1089, %v1088
        %v1116 = vpack.c.bf16 %v1091, %v1090
        %v1117 = vpack.c.bf16 %v1093, %v1092
        %v1118 = vpack.c.bf16 %v1095, %v1094
        %v1119 = vpack.c.bf16 %v1097, %v1096
        %v1120 = vpack.c.bf16 %v1099, %v1098
        %v1121 = vpack.c.bf16 %v1101, %v1100
        %v1122 = vpack.c.bf16 %v1103, %v1102
        %v1123 = vpack.c.bf16 %v1105, %v1104
        %v1124 = vpack.c.bf16 %v1107, %v1106
        %v1125 = vpack.c.bf16 %v1109, %v1108
        %v1126 = vld [vmem:[%s3] sm:$0xff]
        %v1127 = vld [vmem:[%s3 + $0x8] sm:$0xff]
        %v1128 = vld [vmem:[%s3 + $0x10] sm:$0xff]
        %v1129 = vld [vmem:[%s3 + $0x18] sm:$0xff]
        %v1130 = vld [vmem:[%s3 + $0x20] sm:$0xff]
        %v1131 = vld [vmem:[%s3 + $0x28] sm:$0xff]
        %v1132 = vld [vmem:[%s3 + $0x30] sm:$0xff]
        %v1133 = vld [vmem:[%s3 + $0x38] sm:$0xff]
        %v1142 = vunpack.c.l.b16 %v1126
        %v1143 = vunpack.c.h.b16 %v1126
        %v1144 = vunpack.c.l.b16 %v1127
        %v1145 = vunpack.c.h.b16 %v1127
        %v1146 = vunpack.c.l.b16 %v1128
        %v1147 = vunpack.c.h.b16 %v1128
        %v1148 = vunpack.c.l.b16 %v1129
        %v1149 = vunpack.c.h.b16 %v1129
        %v1150 = vunpack.c.l.b16 %v1130
        %v1151 = vunpack.c.h.b16 %v1130
        %v1152 = vunpack.c.l.b16 %v1131
        %v1153 = vunpack.c.h.b16 %v1131
        %v1154 = vunpack.c.l.b16 %v1132
        %v1155 = vunpack.c.h.b16 %v1132
        %v1156 = vunpack.c.l.b16 %v1133
        %v1157 = vunpack.c.h.b16 %v1133
        %v1158 = vpack.c.b16 %v1144, %v1142
        %v1159 = vpack.c.b16 %v1145, %v1143
        %v1160 = vpack.c.b16 %v1148, %v1146
        %v1161 = vpack.c.b16 %v1149, %v1147
        %v1162 = vpack.c.b16 %v1152, %v1150
        %v1163 = vpack.c.b16 %v1153, %v1151
        %v1164 = vpack.c.b16 %v1156, %v1154
        %v1165 = vpack.c.b16 %v1157, %v1155
        %1174 = vmatprep.subr.bf16.mxu0 0
        %1175 = vmatpush1.bf16.msra.mxu0 %v1117
        %1176 = vmatprep.subr.bf16.mxu0 0
        %1177 = vmatpush1.bf16.msra.mxu0 %v1116
        %1178 = vmatprep.subr.bf16.mxu0 0
        %1179 = vmatpush1.bf16.msra.mxu0 %v1115
        %1180 = vmatprep.subr.bf16.mxu0 0
        %1181 = vmatpush1.bf16.msra.mxu0 %v1114
        %1182 = vmatprep.subr.bf16.mxu0 0
        %1183 = vmatpush1.bf16.msra.mxu0 %v1113
        %1184 = vmatprep.subr.bf16.mxu0 0
        %1185 = vmatpush1.bf16.msra.mxu0 %v1112
        %1186 = vmatprep.subr.bf16.mxu0 0
        %1187 = vmatpush1.bf16.msra.mxu0 %v1111
        %1188 = vmatprep.subr.bf16.mxu0 0
        %1189 = vmatpush1.bf16.msra.mxu0 %v1110
        %1190 = vmatprep.subr.bf16.mxu0 0
        %1191 = vmatpush2.bf16.msra.mxu0 %v1125
        %1192 = vmatprep.subr.bf16.mxu0 0
        %1193 = vmatpush2.bf16.msra.mxu0 %v1124
        %1194 = vmatprep.subr.bf16.mxu0 0
        %1195 = vmatpush2.bf16.msra.mxu0 %v1123
        %1196 = vmatprep.subr.bf16.mxu0 0
        %1197 = vmatpush2.bf16.msra.mxu0 %v1122
        %1198 = vmatprep.subr.bf16.mxu0 0
        %1199 = vmatpush2.bf16.msra.mxu0 %v1121
        %1200 = vmatprep.subr.bf16.mxu0 0
        %1201 = vmatpush2.bf16.msra.mxu0 %v1120
        %1202 = vmatprep.subr.bf16.mxu0 0
        %1203 = vmatpush2.bf16.msra.mxu0 %v1119
        %1204 = vmatprep.subr.bf16.mxu0 0
        %1205 = vmatpush2.bf16.msra.mxu0 %v1118
        %1206 = vmatprep.mubr.bf16.mxu0 %v1159
        %1207 = vmatmul.mubr.bf16.gmra.mxu0 %v1158
        %v1208 = vpop.f32.mrf.mxu0
        %v1209 = vadd.f32 0.0, %v1208
        %v1210 = vpop.f32.mrf.mxu0
        %v1211 = vpop.f32.mrf.mxu0
        %v1212 = vadd.f32 0.0, %v1211
        %v1213 = vpop.f32.mrf.mxu0
        %1214 = vmatprep.mubr.bf16.mxu0 %v1161
        %1215 = vmatmul.mubr.bf16.gmra.mxu0 %v1160
        %v1216 = vpop.f32.mrf.mxu0
        %v1217 = vadd.f32 0.0, %v1216
        %v1218 = vpop.f32.mrf.mxu0
        %v1219 = vpop.f32.mrf.mxu0
        %v1220 = vadd.f32 0.0, %v1219
        %v1221 = vpop.f32.mrf.mxu0
        %1222 = vmatprep.mubr.bf16.mxu0 %v1163
        %1223 = vmatmul.mubr.bf16.gmra.mxu0 %v1162
        %v1224 = vpop.f32.mrf.mxu0
        %v1225 = vadd.f32 0.0, %v1224
        %v1226 = vpop.f32.mrf.mxu0
        %v1227 = vpop.f32.mrf.mxu0
        %v1228 = vadd.f32 0.0, %v1227
        %v1229 = vpop.f32.mrf.mxu0
        %1230 = vmatprep.mubr.bf16.mxu0 %v1165
        %1231 = vmatmul.mubr.bf16.gmra.mxu0 %v1164
        %v1232 = vpop.f32.mrf.mxu0
        %v1233 = vadd.f32 0.0, %v1232
        %v1234 = vpop.f32.mrf.mxu0
        %v1235 = vpop.f32.mrf.mxu0
        %v1236 = vadd.f32 0.0, %v1235
        %v1237 = vpop.f32.mrf.mxu0
        %1238 = vdwg.mxu0
        %v1239 = vpack.c.bf16 %v1212, %v1209
        %v1240 = vpack.c.bf16 %v1220, %v1217
        %v1241 = vpack.c.bf16 %v1228, %v1225
        %v1242 = vpack.c.bf16 %v1236, %v1233
        %v1243 = vld [vmem:[%s4] sm:$0xf]
        %v1244 = vld [vmem:[%s4 + $0x4] sm:$0xf]
        %s1245 = scalar_lea.vmem %s3, 64
        %v1246 = vld [vmem:[%s1245] sm:$0xff]
        %v1247 = vld [vmem:[%s1245 + $0x8] sm:$0xff]
        %v1248 = vld [vmem:[%s1245 + $0x10] sm:$0xff]
        %v1249 = vld [vmem:[%s1245 + $0x18] sm:$0xff]
        %v1250 = vld [vmem:[%s1245 + $0x20] sm:$0xff]
        %v1251 = vld [vmem:[%s1245 + $0x28] sm:$0xff]
        %v1252 = vld [vmem:[%s1245 + $0x30] sm:$0xff]
        %v1253 = vld [vmem:[%s1245 + $0x38] sm:$0xff]
        %v1262 = vunpack.c.l.b16 %v1246
        %v1263 = vunpack.c.h.b16 %v1246
        %v1264 = vunpack.c.l.b16 %v1247
        %v1265 = vunpack.c.h.b16 %v1247
        %v1266 = vunpack.c.l.b16 %v1248
        %v1267 = vunpack.c.h.b16 %v1248
        %v1268 = vunpack.c.l.b16 %v1249
        %v1269 = vunpack.c.h.b16 %v1249
        %v1270 = vunpack.c.l.b16 %v1250
        %v1271 = vunpack.c.h.b16 %v1250
        %v1272 = vunpack.c.l.b16 %v1251
        %v1273 = vunpack.c.h.b16 %v1251
        %v1274 = vunpack.c.l.b16 %v1252
        %v1275 = vunpack.c.h.b16 %v1252
        %v1276 = vunpack.c.l.b16 %v1253
        %v1277 = vunpack.c.h.b16 %v1253
        %v1278 = vpack.c.b16 %v1264, %v1262
        %v1279 = vpack.c.b16 %v1265, %v1263
        %v1280 = vpack.c.b16 %v1268, %v1266
        %v1281 = vpack.c.b16 %v1269, %v1267
        %v1282 = vpack.c.b16 %v1272, %v1270
        %v1283 = vpack.c.b16 %v1273, %v1271
        %v1284 = vpack.c.b16 %v1276, %v1274
        %v1285 = vpack.c.b16 %v1277, %v1275
        %1294 = vmatprep.subr.bf16.mxu0 0
        %1295 = vmatpush1.bf16.msra.mxu0 %v1117
        %1296 = vmatprep.subr.bf16.mxu0 0
        %1297 = vmatpush1.bf16.msra.mxu0 %v1116
        %1298 = vmatprep.subr.bf16.mxu0 0
        %1299 = vmatpush1.bf16.msra.mxu0 %v1115
        %1300 = vmatprep.subr.bf16.mxu0 0
        %1301 = vmatpush1.bf16.msra.mxu0 %v1114
        %1302 = vmatprep.subr.bf16.mxu0 0
        %1303 = vmatpush1.bf16.msra.mxu0 %v1113
        %1304 = vmatprep.subr.bf16.mxu0 0
        %1305 = vmatpush1.bf16.msra.mxu0 %v1112
        %1306 = vmatprep.subr.bf16.mxu0 0
        %1307 = vmatpush1.bf16.msra.mxu0 %v1111
        %1308 = vmatprep.subr.bf16.mxu0 0
        %1309 = vmatpush1.bf16.msra.mxu0 %v1110
        %1310 = vmatprep.subr.bf16.mxu0 0
        %1311 = vmatpush2.bf16.msra.mxu0 %v1125
        %1312 = vmatprep.subr.bf16.mxu0 0
        %1313 = vmatpush2.bf16.msra.mxu0 %v1124
        %1314 = vmatprep.subr.bf16.mxu0 0
        %1315 = vmatpush2.bf16.msra.mxu0 %v1123
        %1316 = vmatprep.subr.bf16.mxu0 0
        %1317 = vmatpush2.bf16.msra.mxu0 %v1122
        %1318 = vmatprep.subr.bf16.mxu0 0
        %1319 = vmatpush2.bf16.msra.mxu0 %v1121
        %1320 = vmatprep.subr.bf16.mxu0 0
        %1321 = vmatpush2.bf16.msra.mxu0 %v1120
        %1322 = vmatprep.subr.bf16.mxu0 0
        %1323 = vmatpush2.bf16.msra.mxu0 %v1119
        %1324 = vmatprep.subr.bf16.mxu0 0
        %1325 = vmatpush2.bf16.msra.mxu0 %v1118
        %1326 = vmatprep.mubr.bf16.mxu0 %v1279
        %1327 = vmatmul.mubr.bf16.gmra.mxu0 %v1278
        %v1328 = vpop.f32.mrf.mxu0
        %v1329 = vadd.f32 0.0, %v1328
        %v1330 = vpop.f32.mrf.mxu0
        %v1331 = vpop.f32.mrf.mxu0
        %v1332 = vadd.f32 0.0, %v1331
        %v1333 = vpop.f32.mrf.mxu0
        %1334 = vmatprep.mubr.bf16.mxu0 %v1281
        %1335 = vmatmul.mubr.bf16.gmra.mxu0 %v1280
        %v1336 = vpop.f32.mrf.mxu0
        %v1337 = vadd.f32 0.0, %v1336
        %v1338 = vpop.f32.mrf.mxu0
        %v1339 = vpop.f32.mrf.mxu0
        %v1340 = vadd.f32 0.0, %v1339
        %v1341 = vpop.f32.mrf.mxu0
        %1342 = vmatprep.mubr.bf16.mxu0 %v1283
        %1343 = vmatmul.mubr.bf16.gmra.mxu0 %v1282
        %v1344 = vpop.f32.mrf.mxu0
        %v1345 = vadd.f32 0.0, %v1344
        %v1346 = vpop.f32.mrf.mxu0
        %v1347 = vpop.f32.mrf.mxu0
        %v1348 = vadd.f32 0.0, %v1347
        %v1349 = vpop.f32.mrf.mxu0
        %1350 = vmatprep.mubr.bf16.mxu0 %v1285
        %1351 = vmatmul.mubr.bf16.gmra.mxu0 %v1284
        %v1352 = vpop.f32.mrf.mxu0
        %v1353 = vadd.f32 0.0, %v1352
        %v1354 = vpop.f32.mrf.mxu0
        %v1355 = vpop.f32.mrf.mxu0
        %v1356 = vadd.f32 0.0, %v1355
        %v1357 = vpop.f32.mrf.mxu0
        %1358 = vdwg.mxu0
        %v1359 = vpack.c.bf16 %v1332, %v1329
        %v1360 = vpack.c.bf16 %v1340, %v1337
        %v1361 = vpack.c.bf16 %v1348, %v1345
        %v1362 = vpack.c.bf16 %v1356, %v1353
        %s1363 = scalar_lea.vmem %s4, 8
        %v1364 = vld [vmem:[%s1363] sm:$0xf]
        %v1365 = vld [vmem:[%s1363 + $0x4] sm:$0xf]
        %v1368 = vunpack.c.l.b16 %v1364
        %v1369 = vunpack.c.l.b16 %v1365
        %v1370 = vpack.c.b16 %v1369, %v1368
        %vm1372 = vcmask 130048
        %v1374 = vsel %vm1372, %v1359, 0
        %v1377 = vsel %vm1372, %v1360, 0
        %v1380 = vsel %vm1372, %v1361, 0
        %v1383 = vsel %vm1372, %v1362, 0
        %1385 = vmatprep.subr.bf16.mxu0 0
        %1386 = vmatpush1.bf16.msra.mxu0 0
        %1387 = vmatprep.subr.bf16.mxu0 0
        %1388 = vmatpush1.bf16.msra.mxu0 0
        %1389 = vmatprep.subr.bf16.mxu0 0
        %1390 = vmatpush1.bf16.msra.mxu0 0
        %1391 = vmatprep.subr.bf16.mxu0 0
        %1392 = vmatpush1.bf16.msra.mxu0 0
        %1393 = vmatprep.subr.bf16.mxu0 0
        %1394 = vmatpush1.bf16.msra.mxu0 0
        %1395 = vmatprep.subr.bf16.mxu0 0
        %1396 = vmatpush1.bf16.msra.mxu0 0
        %1397 = vmatprep.subr.bf16.mxu0 0
        %1398 = vmatpush1.bf16.msra.mxu0 0
        %1399 = vmatprep.subr.bf16.mxu0 0
        %1400 = vmatpush1.bf16.msra.mxu0 %v1370
        %1401 = vmatprep.subr.bf16.mxu0 0
        %1402 = vmatpush2.bf16.msra.mxu0 0
        %1403 = vmatprep.subr.bf16.mxu0 0
        %1404 = vmatpush2.bf16.msra.mxu0 0
        %1405 = vmatprep.subr.bf16.mxu0 0
        %1406 = vmatpush2.bf16.msra.mxu0 0
        %1407 = vmatprep.subr.bf16.mxu0 0
        %1408 = vmatpush2.bf16.msra.mxu0 0
        %1409 = vmatprep.subr.bf16.mxu0 0
        %1410 = vmatpush2.bf16.msra.mxu0 0
        %1411 = vmatprep.subr.bf16.mxu0 0
        %1412 = vmatpush2.bf16.msra.mxu0 0
        %1413 = vmatprep.subr.bf16.mxu0 0
        %1414 = vmatpush2.bf16.msra.mxu0 0
        %1415 = vmatprep.subr.bf16.mxu0 0
        %1416 = vmatpush2.bf16.msra.mxu0 0
        %1417 = vmatprep.mubr.bf16.mxu0 0
        %1418 = vmatmul.mubr.bf16.gmra.mxu0 %v1374
        %v1419 = vpop.f32.mrf.mxu0
        %v1420 = vadd.f32 0.0, %v1419
        %v1421 = vpop.f32.mrf.mxu0
        %v1422 = vpop.f32.mrf.mxu0
        %v1423 = vadd.f32 0.0, %v1422
        %v1424 = vpop.f32.mrf.mxu0
        %1425 = vmatprep.mubr.bf16.mxu0 0
        %1426 = vmatmul.mubr.bf16.gmra.mxu0 %v1377
        %v1427 = vpop.f32.mrf.mxu0
        %v1428 = vadd.f32 0.0, %v1427
        %v1429 = vpop.f32.mrf.mxu0
        %v1430 = vpop.f32.mrf.mxu0
        %v1431 = vadd.f32 0.0, %v1430
        %v1432 = vpop.f32.mrf.mxu0
        %1433 = vmatprep.mubr.bf16.mxu0 0
        %1434 = vmatmul.mubr.bf16.gmra.mxu0 %v1380
        %v1435 = vpop.f32.mrf.mxu0
        %v1436 = vadd.f32 0.0, %v1435
        %v1437 = vpop.f32.mrf.mxu0
        %v1438 = vpop.f32.mrf.mxu0
        %v1439 = vadd.f32 0.0, %v1438
        %v1440 = vpop.f32.mrf.mxu0
        %1441 = vmatprep.mubr.bf16.mxu0 0
        %1442 = vmatmul.mubr.bf16.gmra.mxu0 %v1383
        %v1443 = vpop.f32.mrf.mxu0
        %v1444 = vadd.f32 0.0, %v1443
        %v1445 = vpop.f32.mrf.mxu0
        %v1446 = vpop.f32.mrf.mxu0
        %v1447 = vadd.f32 0.0, %v1446
        %v1448 = vpop.f32.mrf.mxu0
        %1449 = vdwg.mxu0
        %v1452 = vunpack.c.l.b16 %v1243
        %v1453 = vunpack.c.l.b16 %v1244
        %v1454 = vpack.c.b16 %v1453, %v1452
        %v1457 = vsel %vm1372, %v1239, 0
        %v1460 = vsel %vm1372, %v1240, 0
        %v1463 = vsel %vm1372, %v1241, 0
        %v1466 = vsel %vm1372, %v1242, 0
        %1468 = vmatprep.subr.bf16.mxu0 0
        %1469 = vmatpush1.bf16.msra.mxu0 0
        %1470 = vmatprep.subr.bf16.mxu0 0
        %1471 = vmatpush1.bf16.msra.mxu0 0
        %1472 = vmatprep.subr.bf16.mxu0 0
        %1473 = vmatpush1.bf16.msra.mxu0 0
        %1474 = vmatprep.subr.bf16.mxu0 0
        %1475 = vmatpush1.bf16.msra.mxu0 0
        %1476 = vmatprep.subr.bf16.mxu0 0
        %1477 = vmatpush1.bf16.msra.mxu0 0
        %1478 = vmatprep.subr.bf16.mxu0 0
        %1479 = vmatpush1.bf16.msra.mxu0 0
        %1480 = vmatprep.subr.bf16.mxu0 0
        %1481 = vmatpush1.bf16.msra.mxu0 0
        %1482 = vmatprep.subr.bf16.mxu0 0
        %1483 = vmatpush1.bf16.msra.mxu0 %v1454
        %1484 = vmatprep.subr.bf16.mxu0 0
        %1485 = vmatpush2.bf16.msra.mxu0 0
        %1486 = vmatprep.subr.bf16.mxu0 0
        %1487 = vmatpush2.bf16.msra.mxu0 0
        %1488 = vmatprep.subr.bf16.mxu0 0
        %1489 = vmatpush2.bf16.msra.mxu0 0
        %1490 = vmatprep.subr.bf16.mxu0 0
        %1491 = vmatpush2.bf16.msra.mxu0 0
        %1492 = vmatprep.subr.bf16.mxu0 0
        %1493 = vmatpush2.bf16.msra.mxu0 0
        %1494 = vmatprep.subr.bf16.mxu0 0
        %1495 = vmatpush2.bf16.msra.mxu0 0
        %1496 = vmatprep.subr.bf16.mxu0 0
        %1497 = vmatpush2.bf16.msra.mxu0 0
        %1498 = vmatprep.subr.bf16.mxu0 0
        %1499 = vmatpush2.bf16.msra.mxu0 0
        %1500 = vmatprep.mubr.bf16.mxu0 0
        %1501 = vmatmul.mubr.bf16.gmra.mxu0 %v1457
        %v1502 = vpop.f32.mrf.mxu0
        %v1503 = vadd.f32 %v1420, %v1502
        %v1504 = vpop.f32.mrf.mxu0
        %v1505 = vpop.f32.mrf.mxu0
        %v1506 = vadd.f32 %v1423, %v1505
        %v1507 = vpop.f32.mrf.mxu0
        %1508 = vmatprep.mubr.bf16.mxu0 0
        %1509 = vmatmul.mubr.bf16.gmra.mxu0 %v1460
        %v1510 = vpop.f32.mrf.mxu0
        %v1511 = vadd.f32 %v1428, %v1510
        %v1512 = vpop.f32.mrf.mxu0
        %v1513 = vpop.f32.mrf.mxu0
        %v1514 = vadd.f32 %v1431, %v1513
        %v1515 = vpop.f32.mrf.mxu0
        %1516 = vmatprep.mubr.bf16.mxu0 0
        %1517 = vmatmul.mubr.bf16.gmra.mxu0 %v1463
        %v1518 = vpop.f32.mrf.mxu0
        %v1519 = vadd.f32 %v1436, %v1518
        %v1520 = vpop.f32.mrf.mxu0
        %v1521 = vpop.f32.mrf.mxu0
        %v1522 = vadd.f32 %v1439, %v1521
        %v1523 = vpop.f32.mrf.mxu0
        %1524 = vmatprep.mubr.bf16.mxu0 0
        %1525 = vmatmul.mubr.bf16.gmra.mxu0 %v1466
        %v1526 = vpop.f32.mrf.mxu0
        %v1527 = vadd.f32 %v1444, %v1526
        %v1528 = vpop.f32.mrf.mxu0
        %v1529 = vpop.f32.mrf.mxu0
        %v1530 = vadd.f32 %v1447, %v1529
        %v1531 = vpop.f32.mrf.mxu0
        %1532 = vdwg.mxu0
        %s1533 = scalar_lea.vmem %s3, 128
        %v1534 = vld [vmem:[%s1533] sm:$0xff]
        %v1535 = vld [vmem:[%s1533 + $0x8] sm:$0xff]
        %v1536 = vld [vmem:[%s1533 + $0x10] sm:$0xff]
        %v1537 = vld [vmem:[%s1533 + $0x18] sm:$0xff]
        %v1538 = vld [vmem:[%s1533 + $0x20] sm:$0xff]
        %v1539 = vld [vmem:[%s1533 + $0x28] sm:$0xff]
        %v1540 = vld [vmem:[%s1533 + $0x30] sm:$0xff]
        %v1541 = vld [vmem:[%s1533 + $0x38] sm:$0xff]
        %v1550 = vunpack.c.l.b16 %v1534
        %v1551 = vunpack.c.h.b16 %v1534
        %v1552 = vunpack.c.l.b16 %v1535
        %v1553 = vunpack.c.h.b16 %v1535
        %v1554 = vunpack.c.l.b16 %v1536
        %v1555 = vunpack.c.h.b16 %v1536
        %v1556 = vunpack.c.l.b16 %v1537
        %v1557 = vunpack.c.h.b16 %v1537
        %v1558 = vunpack.c.l.b16 %v1538
        %v1559 = vunpack.c.h.b16 %v1538
        %v1560 = vunpack.c.l.b16 %v1539
        %v1561 = vunpack.c.h.b16 %v1539
        %v1562 = vunpack.c.l.b16 %v1540
        %v1563 = vunpack.c.h.b16 %v1540
        %v1564 = vunpack.c.l.b16 %v1541
        %v1565 = vunpack.c.h.b16 %v1541
        %v1566 = vpack.c.b16 %v1552, %v1550
        %v1567 = vpack.c.b16 %v1553, %v1551
        %v1568 = vpack.c.b16 %v1556, %v1554
        %v1569 = vpack.c.b16 %v1557, %v1555
        %v1570 = vpack.c.b16 %v1560, %v1558
        %v1571 = vpack.c.b16 %v1561, %v1559
        %v1572 = vpack.c.b16 %v1564, %v1562
        %v1573 = vpack.c.b16 %v1565, %v1563
        %1582 = vmatprep.subr.bf16.mxu0 0
        %1583 = vmatpush1.bf16.msra.mxu0 %v1117
        %1584 = vmatprep.subr.bf16.mxu0 0
        %1585 = vmatpush1.bf16.msra.mxu0 %v1116
        %1586 = vmatprep.subr.bf16.mxu0 0
        %1587 = vmatpush1.bf16.msra.mxu0 %v1115
        %1588 = vmatprep.subr.bf16.mxu0 0
        %1589 = vmatpush1.bf16.msra.mxu0 %v1114
        %1590 = vmatprep.subr.bf16.mxu0 0
        %1591 = vmatpush1.bf16.msra.mxu0 %v1113
        %1592 = vmatprep.subr.bf16.mxu0 0
        %1593 = vmatpush1.bf16.msra.mxu0 %v1112
        %1594 = vmatprep.subr.bf16.mxu0 0
        %1595 = vmatpush1.bf16.msra.mxu0 %v1111
        %1596 = vmatprep.subr.bf16.mxu0 0
        %1597 = vmatpush1.bf16.msra.mxu0 %v1110
        %1598 = vmatprep.subr.bf16.mxu0 0
        %1599 = vmatpush2.bf16.msra.mxu0 %v1125
        %1600 = vmatprep.subr.bf16.mxu0 0
        %1601 = vmatpush2.bf16.msra.mxu0 %v1124
        %1602 = vmatprep.subr.bf16.mxu0 0
        %1603 = vmatpush2.bf16.msra.mxu0 %v1123
        %1604 = vmatprep.subr.bf16.mxu0 0
        %1605 = vmatpush2.bf16.msra.mxu0 %v1122
        %1606 = vmatprep.subr.bf16.mxu0 0
        %1607 = vmatpush2.bf16.msra.mxu0 %v1121
        %1608 = vmatprep.subr.bf16.mxu0 0
        %1609 = vmatpush2.bf16.msra.mxu0 %v1120
        %1610 = vmatprep.subr.bf16.mxu0 0
        %1611 = vmatpush2.bf16.msra.mxu0 %v1119
        %1612 = vmatprep.subr.bf16.mxu0 0
        %1613 = vmatpush2.bf16.msra.mxu0 %v1118
        %1614 = vmatprep.mubr.bf16.mxu0 %v1567
        %1615 = vmatmul.mubr.bf16.gmra.mxu0 %v1566
        %v1616 = vpop.f32.mrf.mxu0
        %v1617 = vadd.f32 0.0, %v1616
        %v1618 = vpop.f32.mrf.mxu0
        %v1619 = vpop.f32.mrf.mxu0
        %v1620 = vadd.f32 0.0, %v1619
        %v1621 = vpop.f32.mrf.mxu0
        %1622 = vmatprep.mubr.bf16.mxu0 %v1569
        %1623 = vmatmul.mubr.bf16.gmra.mxu0 %v1568
        %v1624 = vpop.f32.mrf.mxu0
        %v1625 = vadd.f32 0.0, %v1624
        %v1626 = vpop.f32.mrf.mxu0
        %v1627 = vpop.f32.mrf.mxu0
        %v1628 = vadd.f32 0.0, %v1627
        %v1629 = vpop.f32.mrf.mxu0
        %1630 = vmatprep.mubr.bf16.mxu0 %v1571
        %1631 = vmatmul.mubr.bf16.gmra.mxu0 %v1570
        %v1632 = vpop.f32.mrf.mxu0
        %v1633 = vadd.f32 0.0, %v1632
        %v1634 = vpop.f32.mrf.mxu0
        %v1635 = vpop.f32.mrf.mxu0
        %v1636 = vadd.f32 0.0, %v1635
        %v1637 = vpop.f32.mrf.mxu0
        %1638 = vmatprep.mubr.bf16.mxu0 %v1573
        %1639 = vmatmul.mubr.bf16.gmra.mxu0 %v1572
        %v1640 = vpop.f32.mrf.mxu0
        %v1641 = vadd.f32 0.0, %v1640
        %v1642 = vpop.f32.mrf.mxu0
        %v1643 = vpop.f32.mrf.mxu0
        %v1644 = vadd.f32 0.0, %v1643
        %v1645 = vpop.f32.mrf.mxu0
        %1646 = vdwg.mxu0
        %v1647 = vpack.c.bf16 %v1620, %v1617
        %v1648 = vpack.c.bf16 %v1628, %v1625
        %v1649 = vpack.c.bf16 %v1636, %v1633
        %v1650 = vpack.c.bf16 %v1644, %v1641
        %s1651 = scalar_lea.vmem %s4, 16
        %v1652 = vld [vmem:[%s1651] sm:$0xf]
        %v1653 = vld [vmem:[%s1651 + $0x4] sm:$0xf]
        %v1656 = vunpack.c.l.b16 %v1652
        %v1657 = vunpack.c.l.b16 %v1653
        %v1658 = vpack.c.b16 %v1657, %v1656
        %v1661 = vsel %vm1372, %v1647, 0
        %v1664 = vsel %vm1372, %v1648, 0
        %v1667 = vsel %vm1372, %v1649, 0
        %v1670 = vsel %vm1372, %v1650, 0
        %1672 = vmatprep.subr.bf16.mxu0 0
        %1673 = vmatpush1.bf16.msra.mxu0 0
        %1674 = vmatprep.subr.bf16.mxu0 0
        %1675 = vmatpush1.bf16.msra.mxu0 0
        %1676 = vmatprep.subr.bf16.mxu0 0
        %1677 = vmatpush1.bf16.msra.mxu0 0
        %1678 = vmatprep.subr.bf16.mxu0 0
        %1679 = vmatpush1.bf16.msra.mxu0 0
        %1680 = vmatprep.subr.bf16.mxu0 0
        %1681 = vmatpush1.bf16.msra.mxu0 0
        %1682 = vmatprep.subr.bf16.mxu0 0
        %1683 = vmatpush1.bf16.msra.mxu0 0
        %1684 = vmatprep.subr.bf16.mxu0 0
        %1685 = vmatpush1.bf16.msra.mxu0 0
        %1686 = vmatprep.subr.bf16.mxu0 0
        %1687 = vmatpush1.bf16.msra.mxu0 %v1658
        %1688 = vmatprep.subr.bf16.mxu0 0
        %1689 = vmatpush2.bf16.msra.mxu0 0
        %1690 = vmatprep.subr.bf16.mxu0 0
        %1691 = vmatpush2.bf16.msra.mxu0 0
        %1692 = vmatprep.subr.bf16.mxu0 0
        %1693 = vmatpush2.bf16.msra.mxu0 0
        %1694 = vmatprep.subr.bf16.mxu0 0
        %1695 = vmatpush2.bf16.msra.mxu0 0
        %1696 = vmatprep.subr.bf16.mxu0 0
        %1697 = vmatpush2.bf16.msra.mxu0 0
        %1698 = vmatprep.subr.bf16.mxu0 0
        %1699 = vmatpush2.bf16.msra.mxu0 0
        %1700 = vmatprep.subr.bf16.mxu0 0
        %1701 = vmatpush2.bf16.msra.mxu0 0
        %1702 = vmatprep.subr.bf16.mxu0 0
        %1703 = vmatpush2.bf16.msra.mxu0 0
        %1704 = vmatprep.mubr.bf16.mxu0 0
        %1705 = vmatmul.mubr.bf16.gmra.mxu0 %v1661
        %v1706 = vpop.f32.mrf.mxu0
        %v1707 = vadd.f32 0.0, %v1706
        %v1708 = vpop.f32.mrf.mxu0
        %v1709 = vpop.f32.mrf.mxu0
        %v1710 = vadd.f32 0.0, %v1709
        %v1711 = vpop.f32.mrf.mxu0
        %1712 = vmatprep.mubr.bf16.mxu0 0
        %1713 = vmatmul.mubr.bf16.gmra.mxu0 %v1664
        %v1714 = vpop.f32.mrf.mxu0
        %v1715 = vadd.f32 0.0, %v1714
        %v1716 = vpop.f32.mrf.mxu0
        %v1717 = vpop.f32.mrf.mxu0
        %v1718 = vadd.f32 0.0, %v1717
        %v1719 = vpop.f32.mrf.mxu0
        %1720 = vmatprep.mubr.bf16.mxu0 0
        %1721 = vmatmul.mubr.bf16.gmra.mxu0 %v1667
        %v1722 = vpop.f32.mrf.mxu0
        %v1723 = vadd.f32 0.0, %v1722
        %v1724 = vpop.f32.mrf.mxu0
        %v1725 = vpop.f32.mrf.mxu0
        %v1726 = vadd.f32 0.0, %v1725
        %v1727 = vpop.f32.mrf.mxu0
        %1728 = vmatprep.mubr.bf16.mxu0 0
        %1729 = vmatmul.mubr.bf16.gmra.mxu0 %v1670
        %v1730 = vpop.f32.mrf.mxu0
        %v1731 = vadd.f32 0.0, %v1730
        %v1732 = vpop.f32.mrf.mxu0
        %v1733 = vpop.f32.mrf.mxu0
        %v1734 = vadd.f32 0.0, %v1733
        %v1735 = vpop.f32.mrf.mxu0
        %1736 = vdwg.mxu0
        %v1737 = vadd.f32 %v1503, %v1707
        %v1738 = vadd.f32 %v1506, %v1710
        %v1739 = vadd.f32 %v1511, %v1715
        %v1740 = vadd.f32 %v1514, %v1718
        %v1741 = vadd.f32 %v1519, %v1723
        %v1742 = vadd.f32 %v1522, %v1726
        %v1743 = vadd.f32 %v1527, %v1731
        %v1744 = vadd.f32 %v1530, %v1734
        %s1745 = scalar_lea.vmem %s3, 192
        %v1746 = vld [vmem:[%s1745] sm:$0xff]
        %v1747 = vld [vmem:[%s1745 + $0x8] sm:$0xff]
        %v1748 = vld [vmem:[%s1745 + $0x10] sm:$0xff]
        %v1749 = vld [vmem:[%s1745 + $0x18] sm:$0xff]
        %v1750 = vld [vmem:[%s1745 + $0x20] sm:$0xff]
        %v1751 = vld [vmem:[%s1745 + $0x28] sm:$0xff]
        %v1752 = vld [vmem:[%s1745 + $0x30] sm:$0xff]
        %v1753 = vld [vmem:[%s1745 + $0x38] sm:$0xff]
        %v1762 = vunpack.c.l.b16 %v1746
        %v1763 = vunpack.c.h.b16 %v1746
        %v1764 = vunpack.c.l.b16 %v1747
        %v1765 = vunpack.c.h.b16 %v1747
        %v1766 = vunpack.c.l.b16 %v1748
        %v1767 = vunpack.c.h.b16 %v1748
        %v1768 = vunpack.c.l.b16 %v1749
        %v1769 = vunpack.c.h.b16 %v1749
        %v1770 = vunpack.c.l.b16 %v1750
        %v1771 = vunpack.c.h.b16 %v1750
        %v1772 = vunpack.c.l.b16 %v1751
        %v1773 = vunpack.c.h.b16 %v1751
        %v1774 = vunpack.c.l.b16 %v1752
        %v1775 = vunpack.c.h.b16 %v1752
        %v1776 = vunpack.c.l.b16 %v1753
        %v1777 = vunpack.c.h.b16 %v1753
        %v1778 = vpack.c.b16 %v1764, %v1762
        %v1779 = vpack.c.b16 %v1765, %v1763
        %v1780 = vpack.c.b16 %v1768, %v1766
        %v1781 = vpack.c.b16 %v1769, %v1767
        %v1782 = vpack.c.b16 %v1772, %v1770
        %v1783 = vpack.c.b16 %v1773, %v1771
        %v1784 = vpack.c.b16 %v1776, %v1774
        %v1785 = vpack.c.b16 %v1777, %v1775
        %1794 = vmatprep.subr.bf16.mxu0 0
        %1795 = vmatpush1.bf16.msra.mxu0 %v1117
        %1796 = vmatprep.subr.bf16.mxu0 0
        %1797 = vmatpush1.bf16.msra.mxu0 %v1116
        %1798 = vmatprep.subr.bf16.mxu0 0
        %1799 = vmatpush1.bf16.msra.mxu0 %v1115
        %1800 = vmatprep.subr.bf16.mxu0 0
        %1801 = vmatpush1.bf16.msra.mxu0 %v1114
        %1802 = vmatprep.subr.bf16.mxu0 0
        %1803 = vmatpush1.bf16.msra.mxu0 %v1113
        %1804 = vmatprep.subr.bf16.mxu0 0
        %1805 = vmatpush1.bf16.msra.mxu0 %v1112
        %1806 = vmatprep.subr.bf16.mxu0 0
        %1807 = vmatpush1.bf16.msra.mxu0 %v1111
        %1808 = vmatprep.subr.bf16.mxu0 0
        %1809 = vmatpush1.bf16.msra.mxu0 %v1110
        %1810 = vmatprep.subr.bf16.mxu0 0
        %1811 = vmatpush2.bf16.msra.mxu0 %v1125
        %1812 = vmatprep.subr.bf16.mxu0 0
        %1813 = vmatpush2.bf16.msra.mxu0 %v1124
        %1814 = vmatprep.subr.bf16.mxu0 0
        %1815 = vmatpush2.bf16.msra.mxu0 %v1123
        %1816 = vmatprep.subr.bf16.mxu0 0
        %1817 = vmatpush2.bf16.msra.mxu0 %v1122
        %1818 = vmatprep.subr.bf16.mxu0 0
        %1819 = vmatpush2.bf16.msra.mxu0 %v1121
        %1820 = vmatprep.subr.bf16.mxu0 0
        %1821 = vmatpush2.bf16.msra.mxu0 %v1120
        %1822 = vmatprep.subr.bf16.mxu0 0
        %1823 = vmatpush2.bf16.msra.mxu0 %v1119
        %1824 = vmatprep.subr.bf16.mxu0 0
        %1825 = vmatpush2.bf16.msra.mxu0 %v1118
        %1826 = vmatprep.mubr.bf16.mxu0 %v1779
        %1827 = vmatmul.mubr.bf16.gmra.mxu0 %v1778
        %v1828 = vpop.f32.mrf.mxu0
        %v1829 = vadd.f32 0.0, %v1828
        %v1830 = vpop.f32.mrf.mxu0
        %v1831 = vpop.f32.mrf.mxu0
        %v1832 = vadd.f32 0.0, %v1831
        %v1833 = vpop.f32.mrf.mxu0
        %1834 = vmatprep.mubr.bf16.mxu0 %v1781
        %1835 = vmatmul.mubr.bf16.gmra.mxu0 %v1780
        %v1836 = vpop.f32.mrf.mxu0
        %v1837 = vadd.f32 0.0, %v1836
        %v1838 = vpop.f32.mrf.mxu0
        %v1839 = vpop.f32.mrf.mxu0
        %v1840 = vadd.f32 0.0, %v1839
        %v1841 = vpop.f32.mrf.mxu0
        %1842 = vmatprep.mubr.bf16.mxu0 %v1783
        %1843 = vmatmul.mubr.bf16.gmra.mxu0 %v1782
        %v1844 = vpop.f32.mrf.mxu0
        %v1845 = vadd.f32 0.0, %v1844
        %v1846 = vpop.f32.mrf.mxu0
        %v1847 = vpop.f32.mrf.mxu0
        %v1848 = vadd.f32 0.0, %v1847
        %v1849 = vpop.f32.mrf.mxu0
        %1850 = vmatprep.mubr.bf16.mxu0 %v1785
        %1851 = vmatmul.mubr.bf16.gmra.mxu0 %v1784
        %v1852 = vpop.f32.mrf.mxu0
        %v1853 = vadd.f32 0.0, %v1852
        %v1854 = vpop.f32.mrf.mxu0
        %v1855 = vpop.f32.mrf.mxu0
        %v1856 = vadd.f32 0.0, %v1855
        %v1857 = vpop.f32.mrf.mxu0
        %1858 = vdwg.mxu0
        %v1859 = vpack.c.bf16 %v1832, %v1829
        %v1860 = vpack.c.bf16 %v1840, %v1837
        %v1861 = vpack.c.bf16 %v1848, %v1845
        %v1862 = vpack.c.bf16 %v1856, %v1853
        %s1863 = scalar_lea.vmem %s4, 24
        %v1864 = vld [vmem:[%s1863] sm:$0xf]
        %v1865 = vld [vmem:[%s1863 + $0x4] sm:$0xf]
        %v1868 = vunpack.c.l.b16 %v1864
        %v1869 = vunpack.c.l.b16 %v1865
        %v1870 = vpack.c.b16 %v1869, %v1868
        %v1873 = vsel %vm1372, %v1859, 0
        %v1876 = vsel %vm1372, %v1860, 0
        %v1879 = vsel %vm1372, %v1861, 0
        %v1882 = vsel %vm1372, %v1862, 0
        %1884 = vmatprep.subr.bf16.mxu0 0
        %1885 = vmatpush1.bf16.msra.mxu0 0
        %1886 = vmatprep.subr.bf16.mxu0 0
        %1887 = vmatpush1.bf16.msra.mxu0 0
        %1888 = vmatprep.subr.bf16.mxu0 0
        %1889 = vmatpush1.bf16.msra.mxu0 0
        %1890 = vmatprep.subr.bf16.mxu0 0
        %1891 = vmatpush1.bf16.msra.mxu0 0
        %1892 = vmatprep.subr.bf16.mxu0 0
        %1893 = vmatpush1.bf16.msra.mxu0 0
        %1894 = vmatprep.subr.bf16.mxu0 0
        %1895 = vmatpush1.bf16.msra.mxu0 0
        %1896 = vmatprep.subr.bf16.mxu0 0
        %1897 = vmatpush1.bf16.msra.mxu0 0
        %1898 = vmatprep.subr.bf16.mxu0 0
        %1899 = vmatpush1.bf16.msra.mxu0 %v1870
        %1900 = vmatprep.subr.bf16.mxu0 0
        %1901 = vmatpush2.bf16.msra.mxu0 0
        %1902 = vmatprep.subr.bf16.mxu0 0
        %1903 = vmatpush2.bf16.msra.mxu0 0
        %1904 = vmatprep.subr.bf16.mxu0 0
        %1905 = vmatpush2.bf16.msra.mxu0 0
        %1906 = vmatprep.subr.bf16.mxu0 0
        %1907 = vmatpush2.bf16.msra.mxu0 0
        %1908 = vmatprep.subr.bf16.mxu0 0
        %1909 = vmatpush2.bf16.msra.mxu0 0
        %1910 = vmatprep.subr.bf16.mxu0 0
        %1911 = vmatpush2.bf16.msra.mxu0 0
        %1912 = vmatprep.subr.bf16.mxu0 0
        %1913 = vmatpush2.bf16.msra.mxu0 0
        %1914 = vmatprep.subr.bf16.mxu0 0
        %1915 = vmatpush2.bf16.msra.mxu0 0
        %1916 = vmatprep.mubr.bf16.mxu0 0
        %1917 = vmatmul.mubr.bf16.gmra.mxu0 %v1873
        %v1918 = vpop.f32.mrf.mxu0
        %v1919 = vadd.f32 0.0, %v1918
        %v1920 = vpop.f32.mrf.mxu0
        %v1921 = vpop.f32.mrf.mxu0
        %v1922 = vadd.f32 0.0, %v1921
        %v1923 = vpop.f32.mrf.mxu0
        %1924 = vmatprep.mubr.bf16.mxu0 0
        %1925 = vmatmul.mubr.bf16.gmra.mxu0 %v1876
        %v1926 = vpop.f32.mrf.mxu0
        %v1927 = vadd.f32 0.0, %v1926
        %v1928 = vpop.f32.mrf.mxu0
        %v1929 = vpop.f32.mrf.mxu0
        %v1930 = vadd.f32 0.0, %v1929
        %v1931 = vpop.f32.mrf.mxu0
        %1932 = vmatprep.mubr.bf16.mxu0 0
        %1933 = vmatmul.mubr.bf16.gmra.mxu0 %v1879
        %v1934 = vpop.f32.mrf.mxu0
        %v1935 = vadd.f32 0.0, %v1934
        %v1936 = vpop.f32.mrf.mxu0
        %v1937 = vpop.f32.mrf.mxu0
        %v1938 = vadd.f32 0.0, %v1937
        %v1939 = vpop.f32.mrf.mxu0
        %1940 = vmatprep.mubr.bf16.mxu0 0
        %1941 = vmatmul.mubr.bf16.gmra.mxu0 %v1882
        %v1942 = vpop.f32.mrf.mxu0
        %v1943 = vadd.f32 0.0, %v1942
        %v1944 = vpop.f32.mrf.mxu0
        %v1945 = vpop.f32.mrf.mxu0
        %v1946 = vadd.f32 0.0, %v1945
        %v1947 = vpop.f32.mrf.mxu0
        %1948 = vdwg.mxu0
        %v1949 = vadd.f32 %v1737, %v1919
        %v1950 = vadd.f32 %v1738, %v1922
        %v1951 = vadd.f32 %v1739, %v1927
        %v1952 = vadd.f32 %v1740, %v1930
        %v1953 = vadd.f32 %v1741, %v1935
        %v1954 = vadd.f32 %v1742, %v1938
        %v1955 = vadd.f32 %v1743, %v1943
        %v1956 = vadd.f32 %v1744, %v1946
        %s1957 = scalar_lea.vmem %s3, 256
        %v1958 = vld [vmem:[%s1957] sm:$0xff]
        %v1959 = vld [vmem:[%s1957 + $0x8] sm:$0xff]
        %v1960 = vld [vmem:[%s1957 + $0x10] sm:$0xff]
        %v1961 = vld [vmem:[%s1957 + $0x18] sm:$0xff]
        %v1962 = vld [vmem:[%s1957 + $0x20] sm:$0xff]
        %v1963 = vld [vmem:[%s1957 + $0x28] sm:$0xff]
        %v1964 = vld [vmem:[%s1957 + $0x30] sm:$0xff]
        %v1965 = vld [vmem:[%s1957 + $0x38] sm:$0xff]
        %v1974 = vunpack.c.l.b16 %v1958
        %v1975 = vunpack.c.h.b16 %v1958
        %v1976 = vunpack.c.l.b16 %v1959
        %v1977 = vunpack.c.h.b16 %v1959
        %v1978 = vunpack.c.l.b16 %v1960
        %v1979 = vunpack.c.h.b16 %v1960
        %v1980 = vunpack.c.l.b16 %v1961
        %v1981 = vunpack.c.h.b16 %v1961
        %v1982 = vunpack.c.l.b16 %v1962
        %v1983 = vunpack.c.h.b16 %v1962
        %v1984 = vunpack.c.l.b16 %v1963
        %v1985 = vunpack.c.h.b16 %v1963
        %v1986 = vunpack.c.l.b16 %v1964
        %v1987 = vunpack.c.h.b16 %v1964
        %v1988 = vunpack.c.l.b16 %v1965
        %v1989 = vunpack.c.h.b16 %v1965
        %v1990 = vpack.c.b16 %v1976, %v1974
        %v1991 = vpack.c.b16 %v1977, %v1975
        %v1992 = vpack.c.b16 %v1980, %v1978
        %v1993 = vpack.c.b16 %v1981, %v1979
        %v1994 = vpack.c.b16 %v1984, %v1982
        %v1995 = vpack.c.b16 %v1985, %v1983
        %v1996 = vpack.c.b16 %v1988, %v1986
        %v1997 = vpack.c.b16 %v1989, %v1987
        %2006 = vmatprep.subr.bf16.mxu0 0
        %2007 = vmatpush1.bf16.msra.mxu0 %v1117
        %2008 = vmatprep.subr.bf16.mxu0 0
        %2009 = vmatpush1.bf16.msra.mxu0 %v1116
        %2010 = vmatprep.subr.bf16.mxu0 0
        %2011 = vmatpush1.bf16.msra.mxu0 %v1115
        %2012 = vmatprep.subr.bf16.mxu0 0
        %2013 = vmatpush1.bf16.msra.mxu0 %v1114
        %2014 = vmatprep.subr.bf16.mxu0 0
        %2015 = vmatpush1.bf16.msra.mxu0 %v1113
        %2016 = vmatprep.subr.bf16.mxu0 0
        %2017 = vmatpush1.bf16.msra.mxu0 %v1112
        %2018 = vmatprep.subr.bf16.mxu0 0
        %2019 = vmatpush1.bf16.msra.mxu0 %v1111
        %2020 = vmatprep.subr.bf16.mxu0 0
        %2021 = vmatpush1.bf16.msra.mxu0 %v1110
        %2022 = vmatprep.subr.bf16.mxu0 0
        %2023 = vmatpush2.bf16.msra.mxu0 %v1125
        %2024 = vmatprep.subr.bf16.mxu0 0
        %2025 = vmatpush2.bf16.msra.mxu0 %v1124
        %2026 = vmatprep.subr.bf16.mxu0 0
        %2027 = vmatpush2.bf16.msra.mxu0 %v1123
        %2028 = vmatprep.subr.bf16.mxu0 0
        %2029 = vmatpush2.bf16.msra.mxu0 %v1122
        %2030 = vmatprep.subr.bf16.mxu0 0
        %2031 = vmatpush2.bf16.msra.mxu0 %v1121
        %2032 = vmatprep.subr.bf16.mxu0 0
        %2033 = vmatpush2.bf16.msra.mxu0 %v1120
        %2034 = vmatprep.subr.bf16.mxu0 0
        %2035 = vmatpush2.bf16.msra.mxu0 %v1119
        %2036 = vmatprep.subr.bf16.mxu0 0
        %2037 = vmatpush2.bf16.msra.mxu0 %v1118
        %2038 = vmatprep.mubr.bf16.mxu0 %v1991
        %2039 = vmatmul.mubr.bf16.gmra.mxu0 %v1990
        %v2040 = vpop.f32.mrf.mxu0
        %v2041 = vadd.f32 0.0, %v2040
        %v2042 = vpop.f32.mrf.mxu0
        %v2043 = vpop.f32.mrf.mxu0
        %v2044 = vadd.f32 0.0, %v2043
        %v2045 = vpop.f32.mrf.mxu0
        %2046 = vmatprep.mubr.bf16.mxu0 %v1993
        %2047 = vmatmul.mubr.bf16.gmra.mxu0 %v1992
        %v2048 = vpop.f32.mrf.mxu0
        %v2049 = vadd.f32 0.0, %v2048
        %v2050 = vpop.f32.mrf.mxu0
        %v2051 = vpop.f32.mrf.mxu0
        %v2052 = vadd.f32 0.0, %v2051
        %v2053 = vpop.f32.mrf.mxu0
        %2054 = vmatprep.mubr.bf16.mxu0 %v1995
        %2055 = vmatmul.mubr.bf16.gmra.mxu0 %v1994
        %v2056 = vpop.f32.mrf.mxu0
        %v2057 = vadd.f32 0.0, %v2056
        %v2058 = vpop.f32.mrf.mxu0
        %v2059 = vpop.f32.mrf.mxu0
        %v2060 = vadd.f32 0.0, %v2059
        %v2061 = vpop.f32.mrf.mxu0
        %2062 = vmatprep.mubr.bf16.mxu0 %v1997
        %2063 = vmatmul.mubr.bf16.gmra.mxu0 %v1996
        %v2064 = vpop.f32.mrf.mxu0
        %v2065 = vadd.f32 0.0, %v2064
        %v2066 = vpop.f32.mrf.mxu0
        %v2067 = vpop.f32.mrf.mxu0
        %v2068 = vadd.f32 0.0, %v2067
        %v2069 = vpop.f32.mrf.mxu0
        %2070 = vdwg.mxu0
        %v2071 = vpack.c.bf16 %v2044, %v2041
        %v2072 = vpack.c.bf16 %v2052, %v2049
        %v2073 = vpack.c.bf16 %v2060, %v2057
        %v2074 = vpack.c.bf16 %v2068, %v2065
        %s2075 = scalar_lea.vmem %s4, 32
        %v2076 = vld [vmem:[%s2075] sm:$0xf]
        %v2077 = vld [vmem:[%s2075 + $0x4] sm:$0xf]
        %v2080 = vunpack.c.l.b16 %v2076
        %v2081 = vunpack.c.l.b16 %v2077
        %v2082 = vpack.c.b16 %v2081, %v2080
        %v2085 = vsel %vm1372, %v2071, 0
        %v2088 = vsel %vm1372, %v2072, 0
        %v2091 = vsel %vm1372, %v2073, 0
        %v2094 = vsel %vm1372, %v2074, 0
        %2096 = vmatprep.subr.bf16.mxu0 0
        %2097 = vmatpush1.bf16.msra.mxu0 0
        %2098 = vmatprep.subr.bf16.mxu0 0
        %2099 = vmatpush1.bf16.msra.mxu0 0
        %2100 = vmatprep.subr.bf16.mxu0 0
        %2101 = vmatpush1.bf16.msra.mxu0 0
        %2102 = vmatprep.subr.bf16.mxu0 0
        %2103 = vmatpush1.bf16.msra.mxu0 0
        %2104 = vmatprep.subr.bf16.mxu0 0
        %2105 = vmatpush1.bf16.msra.mxu0 0
        %2106 = vmatprep.subr.bf16.mxu0 0
        %2107 = vmatpush1.bf16.msra.mxu0 0
        %2108 = vmatprep.subr.bf16.mxu0 0
        %2109 = vmatpush1.bf16.msra.mxu0 0
        %2110 = vmatprep.subr.bf16.mxu0 0
        %2111 = vmatpush1.bf16.msra.mxu0 %v2082
        %2112 = vmatprep.subr.bf16.mxu0 0
        %2113 = vmatpush2.bf16.msra.mxu0 0
        %2114 = vmatprep.subr.bf16.mxu0 0
        %2115 = vmatpush2.bf16.msra.mxu0 0
        %2116 = vmatprep.subr.bf16.mxu0 0
        %2117 = vmatpush2.bf16.msra.mxu0 0
        %2118 = vmatprep.subr.bf16.mxu0 0
        %2119 = vmatpush2.bf16.msra.mxu0 0
        %2120 = vmatprep.subr.bf16.mxu0 0
        %2121 = vmatpush2.bf16.msra.mxu0 0
        %2122 = vmatprep.subr.bf16.mxu0 0
        %2123 = vmatpush2.bf16.msra.mxu0 0
        %2124 = vmatprep.subr.bf16.mxu0 0
        %2125 = vmatpush2.bf16.msra.mxu0 0
        %2126 = vmatprep.subr.bf16.mxu0 0
        %2127 = vmatpush2.bf16.msra.mxu0 0
        %2128 = vmatprep.mubr.bf16.mxu0 0
        %2129 = vmatmul.mubr.bf16.gmra.mxu0 %v2085
        %v2130 = vpop.f32.mrf.mxu0
        %v2131 = vadd.f32 0.0, %v2130
        %v2132 = vpop.f32.mrf.mxu0
        %v2133 = vpop.f32.mrf.mxu0
        %v2134 = vadd.f32 0.0, %v2133
        %v2135 = vpop.f32.mrf.mxu0
        %2136 = vmatprep.mubr.bf16.mxu0 0
        %2137 = vmatmul.mubr.bf16.gmra.mxu0 %v2088
        %v2138 = vpop.f32.mrf.mxu0
        %v2139 = vadd.f32 0.0, %v2138
        %v2140 = vpop.f32.mrf.mxu0
        %v2141 = vpop.f32.mrf.mxu0
        %v2142 = vadd.f32 0.0, %v2141
        %v2143 = vpop.f32.mrf.mxu0
        %2144 = vmatprep.mubr.bf16.mxu0 0
        %2145 = vmatmul.mubr.bf16.gmra.mxu0 %v2091
        %v2146 = vpop.f32.mrf.mxu0
        %v2147 = vadd.f32 0.0, %v2146
        %v2148 = vpop.f32.mrf.mxu0
        %v2149 = vpop.f32.mrf.mxu0
        %v2150 = vadd.f32 0.0, %v2149
        %v2151 = vpop.f32.mrf.mxu0
        %2152 = vmatprep.mubr.bf16.mxu0 0
        %2153 = vmatmul.mubr.bf16.gmra.mxu0 %v2094
        %v2154 = vpop.f32.mrf.mxu0
        %v2155 = vadd.f32 0.0, %v2154
        %v2156 = vpop.f32.mrf.mxu0
        %v2157 = vpop.f32.mrf.mxu0
        %v2158 = vadd.f32 0.0, %v2157
        %v2159 = vpop.f32.mrf.mxu0
        %2160 = vdwg.mxu0
        %v2161 = vadd.f32 %v1949, %v2131
        %v2162 = vadd.f32 %v1950, %v2134
        %v2163 = vadd.f32 %v1951, %v2139
        %v2164 = vadd.f32 %v1952, %v2142
        %v2165 = vadd.f32 %v1953, %v2147
        %v2166 = vadd.f32 %v1954, %v2150
        %v2167 = vadd.f32 %v1955, %v2155
        %v2168 = vadd.f32 %v1956, %v2158
        %s2169 = scalar_lea.vmem %s3, 320
        %v2170 = vld [vmem:[%s2169] sm:$0xff]
        %v2171 = vld [vmem:[%s2169 + $0x8] sm:$0xff]
        %v2172 = vld [vmem:[%s2169 + $0x10] sm:$0xff]
        %v2173 = vld [vmem:[%s2169 + $0x18] sm:$0xff]
        %v2174 = vld [vmem:[%s2169 + $0x20] sm:$0xff]
        %v2175 = vld [vmem:[%s2169 + $0x28] sm:$0xff]
        %v2176 = vld [vmem:[%s2169 + $0x30] sm:$0xff]
        %v2177 = vld [vmem:[%s2169 + $0x38] sm:$0xff]
        %v2186 = vunpack.c.l.b16 %v2170
        %v2187 = vunpack.c.h.b16 %v2170
        %v2188 = vunpack.c.l.b16 %v2171
        %v2189 = vunpack.c.h.b16 %v2171
        %v2190 = vunpack.c.l.b16 %v2172
        %v2191 = vunpack.c.h.b16 %v2172
        %v2192 = vunpack.c.l.b16 %v2173
        %v2193 = vunpack.c.h.b16 %v2173
        %v2194 = vunpack.c.l.b16 %v2174
        %v2195 = vunpack.c.h.b16 %v2174
        %v2196 = vunpack.c.l.b16 %v2175
        %v2197 = vunpack.c.h.b16 %v2175
        %v2198 = vunpack.c.l.b16 %v2176
        %v2199 = vunpack.c.h.b16 %v2176
        %v2200 = vunpack.c.l.b16 %v2177
        %v2201 = vunpack.c.h.b16 %v2177
        %v2202 = vpack.c.b16 %v2188, %v2186
        %v2203 = vpack.c.b16 %v2189, %v2187
        %v2204 = vpack.c.b16 %v2192, %v2190
        %v2205 = vpack.c.b16 %v2193, %v2191
        %v2206 = vpack.c.b16 %v2196, %v2194
        %v2207 = vpack.c.b16 %v2197, %v2195
        %v2208 = vpack.c.b16 %v2200, %v2198
        %v2209 = vpack.c.b16 %v2201, %v2199
        %2218 = vmatprep.subr.bf16.mxu0 0
        %2219 = vmatpush1.bf16.msra.mxu0 %v1117
        %2220 = vmatprep.subr.bf16.mxu0 0
        %2221 = vmatpush1.bf16.msra.mxu0 %v1116
        %2222 = vmatprep.subr.bf16.mxu0 0
        %2223 = vmatpush1.bf16.msra.mxu0 %v1115
        %2224 = vmatprep.subr.bf16.mxu0 0
        %2225 = vmatpush1.bf16.msra.mxu0 %v1114
        %2226 = vmatprep.subr.bf16.mxu0 0
        %2227 = vmatpush1.bf16.msra.mxu0 %v1113
        %2228 = vmatprep.subr.bf16.mxu0 0
        %2229 = vmatpush1.bf16.msra.mxu0 %v1112
        %2230 = vmatprep.subr.bf16.mxu0 0
        %2231 = vmatpush1.bf16.msra.mxu0 %v1111
        %2232 = vmatprep.subr.bf16.mxu0 0
        %2233 = vmatpush1.bf16.msra.mxu0 %v1110
        %2234 = vmatprep.subr.bf16.mxu0 0
        %2235 = vmatpush2.bf16.msra.mxu0 %v1125
        %2236 = vmatprep.subr.bf16.mxu0 0
        %2237 = vmatpush2.bf16.msra.mxu0 %v1124
        %2238 = vmatprep.subr.bf16.mxu0 0
        %2239 = vmatpush2.bf16.msra.mxu0 %v1123
        %2240 = vmatprep.subr.bf16.mxu0 0
        %2241 = vmatpush2.bf16.msra.mxu0 %v1122
        %2242 = vmatprep.subr.bf16.mxu0 0
        %2243 = vmatpush2.bf16.msra.mxu0 %v1121
        %2244 = vmatprep.subr.bf16.mxu0 0
        %2245 = vmatpush2.bf16.msra.mxu0 %v1120
        %2246 = vmatprep.subr.bf16.mxu0 0
        %2247 = vmatpush2.bf16.msra.mxu0 %v1119
        %2248 = vmatprep.subr.bf16.mxu0 0
        %2249 = vmatpush2.bf16.msra.mxu0 %v1118
        %2250 = vmatprep.mubr.bf16.mxu0 %v2203
        %2251 = vmatmul.mubr.bf16.gmra.mxu0 %v2202
        %v2252 = vpop.f32.mrf.mxu0
        %v2253 = vadd.f32 0.0, %v2252
        %v2254 = vpop.f32.mrf.mxu0
        %v2255 = vpop.f32.mrf.mxu0
        %v2256 = vadd.f32 0.0, %v2255
        %v2257 = vpop.f32.mrf.mxu0
        %2258 = vmatprep.mubr.bf16.mxu0 %v2205
        %2259 = vmatmul.mubr.bf16.gmra.mxu0 %v2204
        %v2260 = vpop.f32.mrf.mxu0
        %v2261 = vadd.f32 0.0, %v2260
        %v2262 = vpop.f32.mrf.mxu0
        %v2263 = vpop.f32.mrf.mxu0
        %v2264 = vadd.f32 0.0, %v2263
        %v2265 = vpop.f32.mrf.mxu0
        %2266 = vmatprep.mubr.bf16.mxu0 %v2207
        %2267 = vmatmul.mubr.bf16.gmra.mxu0 %v2206
        %v2268 = vpop.f32.mrf.mxu0
        %v2269 = vadd.f32 0.0, %v2268
        %v2270 = vpop.f32.mrf.mxu0
        %v2271 = vpop.f32.mrf.mxu0
        %v2272 = vadd.f32 0.0, %v2271
        %v2273 = vpop.f32.mrf.mxu0
        %2274 = vmatprep.mubr.bf16.mxu0 %v2209
        %2275 = vmatmul.mubr.bf16.gmra.mxu0 %v2208
        %v2276 = vpop.f32.mrf.mxu0
        %v2277 = vadd.f32 0.0, %v2276
        %v2278 = vpop.f32.mrf.mxu0
        %v2279 = vpop.f32.mrf.mxu0
        %v2280 = vadd.f32 0.0, %v2279
        %v2281 = vpop.f32.mrf.mxu0
        %2282 = vdwg.mxu0
        %v2283 = vpack.c.bf16 %v2256, %v2253
        %v2284 = vpack.c.bf16 %v2264, %v2261
        %v2285 = vpack.c.bf16 %v2272, %v2269
        %v2286 = vpack.c.bf16 %v2280, %v2277
        %s2287 = scalar_lea.vmem %s4, 40
        %v2288 = vld [vmem:[%s2287] sm:$0xf]
        %v2289 = vld [vmem:[%s2287 + $0x4] sm:$0xf]
        %v2292 = vunpack.c.l.b16 %v2288
        %v2293 = vunpack.c.l.b16 %v2289
        %v2294 = vpack.c.b16 %v2293, %v2292
        %v2297 = vsel %vm1372, %v2283, 0
        %v2300 = vsel %vm1372, %v2284, 0
        %v2303 = vsel %vm1372, %v2285, 0
        %v2306 = vsel %vm1372, %v2286, 0
        %2308 = vmatprep.subr.bf16.mxu0 0
        %2309 = vmatpush1.bf16.msra.mxu0 0
        %2310 = vmatprep.subr.bf16.mxu0 0
        %2311 = vmatpush1.bf16.msra.mxu0 0
        %2312 = vmatprep.subr.bf16.mxu0 0
        %2313 = vmatpush1.bf16.msra.mxu0 0
        %2314 = vmatprep.subr.bf16.mxu0 0
        %2315 = vmatpush1.bf16.msra.mxu0 0
        %2316 = vmatprep.subr.bf16.mxu0 0
        %2317 = vmatpush1.bf16.msra.mxu0 0
        %2318 = vmatprep.subr.bf16.mxu0 0
        %2319 = vmatpush1.bf16.msra.mxu0 0
        %2320 = vmatprep.subr.bf16.mxu0 0
        %2321 = vmatpush1.bf16.msra.mxu0 0
        %2322 = vmatprep.subr.bf16.mxu0 0
        %2323 = vmatpush1.bf16.msra.mxu0 %v2294
        %2324 = vmatprep.subr.bf16.mxu0 0
        %2325 = vmatpush2.bf16.msra.mxu0 0
        %2326 = vmatprep.subr.bf16.mxu0 0
        %2327 = vmatpush2.bf16.msra.mxu0 0
        %2328 = vmatprep.subr.bf16.mxu0 0
        %2329 = vmatpush2.bf16.msra.mxu0 0
        %2330 = vmatprep.subr.bf16.mxu0 0
        %2331 = vmatpush2.bf16.msra.mxu0 0
        %2332 = vmatprep.subr.bf16.mxu0 0
        %2333 = vmatpush2.bf16.msra.mxu0 0
        %2334 = vmatprep.subr.bf16.mxu0 0
        %2335 = vmatpush2.bf16.msra.mxu0 0
        %2336 = vmatprep.subr.bf16.mxu0 0
        %2337 = vmatpush2.bf16.msra.mxu0 0
        %2338 = vmatprep.subr.bf16.mxu0 0
        %2339 = vmatpush2.bf16.msra.mxu0 0
        %2340 = vmatprep.mubr.bf16.mxu0 0
        %2341 = vmatmul.mubr.bf16.gmra.mxu0 %v2297
        %v2342 = vpop.f32.mrf.mxu0
        %v2343 = vadd.f32 0.0, %v2342
        %v2344 = vpop.f32.mrf.mxu0
        %v2345 = vpop.f32.mrf.mxu0
        %v2346 = vadd.f32 0.0, %v2345
        %v2347 = vpop.f32.mrf.mxu0
        %2348 = vmatprep.mubr.bf16.mxu0 0
        %2349 = vmatmul.mubr.bf16.gmra.mxu0 %v2300
        %v2350 = vpop.f32.mrf.mxu0
        %v2351 = vadd.f32 0.0, %v2350
        %v2352 = vpop.f32.mrf.mxu0
        %v2353 = vpop.f32.mrf.mxu0
        %v2354 = vadd.f32 0.0, %v2353
        %v2355 = vpop.f32.mrf.mxu0
        %2356 = vmatprep.mubr.bf16.mxu0 0
        %2357 = vmatmul.mubr.bf16.gmra.mxu0 %v2303
        %v2358 = vpop.f32.mrf.mxu0
        %v2359 = vadd.f32 0.0, %v2358
        %v2360 = vpop.f32.mrf.mxu0
        %v2361 = vpop.f32.mrf.mxu0
        %v2362 = vadd.f32 0.0, %v2361
        %v2363 = vpop.f32.mrf.mxu0
        %2364 = vmatprep.mubr.bf16.mxu0 0
        %2365 = vmatmul.mubr.bf16.gmra.mxu0 %v2306
        %v2366 = vpop.f32.mrf.mxu0
        %v2367 = vadd.f32 0.0, %v2366
        %v2368 = vpop.f32.mrf.mxu0
        %v2369 = vpop.f32.mrf.mxu0
        %v2370 = vadd.f32 0.0, %v2369
        %v2371 = vpop.f32.mrf.mxu0
        %2372 = vdwg.mxu0
        %v2373 = vadd.f32 %v2161, %v2343
        %v2374 = vadd.f32 %v2162, %v2346
        %v2375 = vadd.f32 %v2163, %v2351
        %v2376 = vadd.f32 %v2164, %v2354
        %v2377 = vadd.f32 %v2165, %v2359
        %v2378 = vadd.f32 %v2166, %v2362
        %v2379 = vadd.f32 %v2167, %v2367
        %v2380 = vadd.f32 %v2168, %v2370
        %s2381 = scalar_lea.vmem %s3, 384
        %v2382 = vld [vmem:[%s2381] sm:$0xff]
        %v2383 = vld [vmem:[%s2381 + $0x8] sm:$0xff]
        %v2384 = vld [vmem:[%s2381 + $0x10] sm:$0xff]
        %v2385 = vld [vmem:[%s2381 + $0x18] sm:$0xff]
        %v2386 = vld [vmem:[%s2381 + $0x20] sm:$0xff]
        %v2387 = vld [vmem:[%s2381 + $0x28] sm:$0xff]
        %v2388 = vld [vmem:[%s2381 + $0x30] sm:$0xff]
        %v2389 = vld [vmem:[%s2381 + $0x38] sm:$0xff]
        %v2398 = vunpack.c.l.b16 %v2382
        %v2399 = vunpack.c.h.b16 %v2382
        %v2400 = vunpack.c.l.b16 %v2383
        %v2401 = vunpack.c.h.b16 %v2383
        %v2402 = vunpack.c.l.b16 %v2384
        %v2403 = vunpack.c.h.b16 %v2384
        %v2404 = vunpack.c.l.b16 %v2385
        %v2405 = vunpack.c.h.b16 %v2385
        %v2406 = vunpack.c.l.b16 %v2386
        %v2407 = vunpack.c.h.b16 %v2386
        %v2408 = vunpack.c.l.b16 %v2387
        %v2409 = vunpack.c.h.b16 %v2387
        %v2410 = vunpack.c.l.b16 %v2388
        %v2411 = vunpack.c.h.b16 %v2388
        %v2412 = vunpack.c.l.b16 %v2389
        %v2413 = vunpack.c.h.b16 %v2389
        %v2414 = vpack.c.b16 %v2400, %v2398
        %v2415 = vpack.c.b16 %v2401, %v2399
        %v2416 = vpack.c.b16 %v2404, %v2402
        %v2417 = vpack.c.b16 %v2405, %v2403
        %v2418 = vpack.c.b16 %v2408, %v2406
        %v2419 = vpack.c.b16 %v2409, %v2407
        %v2420 = vpack.c.b16 %v2412, %v2410
        %v2421 = vpack.c.b16 %v2413, %v2411
        %2430 = vmatprep.subr.bf16.mxu0 0
        %2431 = vmatpush1.bf16.msra.mxu0 %v1117
        %2432 = vmatprep.subr.bf16.mxu0 0
        %2433 = vmatpush1.bf16.msra.mxu0 %v1116
        %2434 = vmatprep.subr.bf16.mxu0 0
        %2435 = vmatpush1.bf16.msra.mxu0 %v1115
        %2436 = vmatprep.subr.bf16.mxu0 0
        %2437 = vmatpush1.bf16.msra.mxu0 %v1114
        %2438 = vmatprep.subr.bf16.mxu0 0
        %2439 = vmatpush1.bf16.msra.mxu0 %v1113
        %2440 = vmatprep.subr.bf16.mxu0 0
        %2441 = vmatpush1.bf16.msra.mxu0 %v1112
        %2442 = vmatprep.subr.bf16.mxu0 0
        %2443 = vmatpush1.bf16.msra.mxu0 %v1111
        %2444 = vmatprep.subr.bf16.mxu0 0
        %2445 = vmatpush1.bf16.msra.mxu0 %v1110
        %2446 = vmatprep.subr.bf16.mxu0 0
        %2447 = vmatpush2.bf16.msra.mxu0 %v1125
        %2448 = vmatprep.subr.bf16.mxu0 0
        %2449 = vmatpush2.bf16.msra.mxu0 %v1124
        %2450 = vmatprep.subr.bf16.mxu0 0
        %2451 = vmatpush2.bf16.msra.mxu0 %v1123
        %2452 = vmatprep.subr.bf16.mxu0 0
        %2453 = vmatpush2.bf16.msra.mxu0 %v1122
        %2454 = vmatprep.subr.bf16.mxu0 0
        %2455 = vmatpush2.bf16.msra.mxu0 %v1121
        %2456 = vmatprep.subr.bf16.mxu0 0
        %2457 = vmatpush2.bf16.msra.mxu0 %v1120
        %2458 = vmatprep.subr.bf16.mxu0 0
        %2459 = vmatpush2.bf16.msra.mxu0 %v1119
        %2460 = vmatprep.subr.bf16.mxu0 0
        %2461 = vmatpush2.bf16.msra.mxu0 %v1118
        %2462 = vmatprep.mubr.bf16.mxu0 %v2415
        %2463 = vmatmul.mubr.bf16.gmra.mxu0 %v2414
        %v2464 = vpop.f32.mrf.mxu0
        %v2465 = vadd.f32 0.0, %v2464
        %v2466 = vpop.f32.mrf.mxu0
        %v2467 = vpop.f32.mrf.mxu0
        %v2468 = vadd.f32 0.0, %v2467
        %v2469 = vpop.f32.mrf.mxu0
        %2470 = vmatprep.mubr.bf16.mxu0 %v2417
        %2471 = vmatmul.mubr.bf16.gmra.mxu0 %v2416
        %v2472 = vpop.f32.mrf.mxu0
        %v2473 = vadd.f32 0.0, %v2472
        %v2474 = vpop.f32.mrf.mxu0
        %v2475 = vpop.f32.mrf.mxu0
        %v2476 = vadd.f32 0.0, %v2475
        %v2477 = vpop.f32.mrf.mxu0
        %2478 = vmatprep.mubr.bf16.mxu0 %v2419
        %2479 = vmatmul.mubr.bf16.gmra.mxu0 %v2418
        %v2480 = vpop.f32.mrf.mxu0
        %v2481 = vadd.f32 0.0, %v2480
        %v2482 = vpop.f32.mrf.mxu0
        %v2483 = vpop.f32.mrf.mxu0
        %v2484 = vadd.f32 0.0, %v2483
        %v2485 = vpop.f32.mrf.mxu0
        %2486 = vmatprep.mubr.bf16.mxu0 %v2421
        %2487 = vmatmul.mubr.bf16.gmra.mxu0 %v2420
        %v2488 = vpop.f32.mrf.mxu0
        %v2489 = vadd.f32 0.0, %v2488
        %v2490 = vpop.f32.mrf.mxu0
        %v2491 = vpop.f32.mrf.mxu0
        %v2492 = vadd.f32 0.0, %v2491
        %v2493 = vpop.f32.mrf.mxu0
        %2494 = vdwg.mxu0
        %v2495 = vpack.c.bf16 %v2468, %v2465
        %v2496 = vpack.c.bf16 %v2476, %v2473
        %v2497 = vpack.c.bf16 %v2484, %v2481
        %v2498 = vpack.c.bf16 %v2492, %v2489
        %s2499 = scalar_lea.vmem %s4, 48
        %v2500 = vld [vmem:[%s2499] sm:$0xf]
        %v2501 = vld [vmem:[%s2499 + $0x4] sm:$0xf]
        %v2504 = vunpack.c.l.b16 %v2500
        %v2505 = vunpack.c.l.b16 %v2501
        %v2506 = vpack.c.b16 %v2505, %v2504
        %v2509 = vsel %vm1372, %v2495, 0
        %v2512 = vsel %vm1372, %v2496, 0
        %v2515 = vsel %vm1372, %v2497, 0
        %v2518 = vsel %vm1372, %v2498, 0
        %2520 = vmatprep.subr.bf16.mxu0 0
        %2521 = vmatpush1.bf16.msra.mxu0 0
        %2522 = vmatprep.subr.bf16.mxu0 0
        %2523 = vmatpush1.bf16.msra.mxu0 0
        %2524 = vmatprep.subr.bf16.mxu0 0
        %2525 = vmatpush1.bf16.msra.mxu0 0
        %2526 = vmatprep.subr.bf16.mxu0 0
        %2527 = vmatpush1.bf16.msra.mxu0 0
        %2528 = vmatprep.subr.bf16.mxu0 0
        %2529 = vmatpush1.bf16.msra.mxu0 0
        %2530 = vmatprep.subr.bf16.mxu0 0
        %2531 = vmatpush1.bf16.msra.mxu0 0
        %2532 = vmatprep.subr.bf16.mxu0 0
        %2533 = vmatpush1.bf16.msra.mxu0 0
        %2534 = vmatprep.subr.bf16.mxu0 0
        %2535 = vmatpush1.bf16.msra.mxu0 %v2506
        %2536 = vmatprep.subr.bf16.mxu0 0
        %2537 = vmatpush2.bf16.msra.mxu0 0
        %2538 = vmatprep.subr.bf16.mxu0 0
        %2539 = vmatpush2.bf16.msra.mxu0 0
        %2540 = vmatprep.subr.bf16.mxu0 0
        %2541 = vmatpush2.bf16.msra.mxu0 0
        %2542 = vmatprep.subr.bf16.mxu0 0
        %2543 = vmatpush2.bf16.msra.mxu0 0
        %2544 = vmatprep.subr.bf16.mxu0 0
        %2545 = vmatpush2.bf16.msra.mxu0 0
        %2546 = vmatprep.subr.bf16.mxu0 0
        %2547 = vmatpush2.bf16.msra.mxu0 0
        %2548 = vmatprep.subr.bf16.mxu0 0
        %2549 = vmatpush2.bf16.msra.mxu0 0
        %2550 = vmatprep.subr.bf16.mxu0 0
        %2551 = vmatpush2.bf16.msra.mxu0 0
        %2552 = vmatprep.mubr.bf16.mxu0 0
        %2553 = vmatmul.mubr.bf16.gmra.mxu0 %v2509
        %v2554 = vpop.f32.mrf.mxu0
        %v2555 = vadd.f32 0.0, %v2554
        %v2556 = vpop.f32.mrf.mxu0
        %v2557 = vpop.f32.mrf.mxu0
        %v2558 = vadd.f32 0.0, %v2557
        %v2559 = vpop.f32.mrf.mxu0
        %2560 = vmatprep.mubr.bf16.mxu0 0
        %2561 = vmatmul.mubr.bf16.gmra.mxu0 %v2512
        %v2562 = vpop.f32.mrf.mxu0
        %v2563 = vadd.f32 0.0, %v2562
        %v2564 = vpop.f32.mrf.mxu0
        %v2565 = vpop.f32.mrf.mxu0
        %v2566 = vadd.f32 0.0, %v2565
        %v2567 = vpop.f32.mrf.mxu0
        %2568 = vmatprep.mubr.bf16.mxu0 0
        %2569 = vmatmul.mubr.bf16.gmra.mxu0 %v2515
        %v2570 = vpop.f32.mrf.mxu0
        %v2571 = vadd.f32 0.0, %v2570
        %v2572 = vpop.f32.mrf.mxu0
        %v2573 = vpop.f32.mrf.mxu0
        %v2574 = vadd.f32 0.0, %v2573
        %v2575 = vpop.f32.mrf.mxu0
        %2576 = vmatprep.mubr.bf16.mxu0 0
        %2577 = vmatmul.mubr.bf16.gmra.mxu0 %v2518
        %v2578 = vpop.f32.mrf.mxu0
        %v2579 = vadd.f32 0.0, %v2578
        %v2580 = vpop.f32.mrf.mxu0
        %v2581 = vpop.f32.mrf.mxu0
        %v2582 = vadd.f32 0.0, %v2581
        %v2583 = vpop.f32.mrf.mxu0
        %2584 = vdwg.mxu0
        %v2585 = vadd.f32 %v2373, %v2555
        %v2586 = vadd.f32 %v2374, %v2558
        %v2587 = vadd.f32 %v2375, %v2563
        %v2588 = vadd.f32 %v2376, %v2566
        %v2589 = vadd.f32 %v2377, %v2571
        %v2590 = vadd.f32 %v2378, %v2574
        %v2591 = vadd.f32 %v2379, %v2579
        %v2592 = vadd.f32 %v2380, %v2582
        %s2593 = scalar_lea.vmem %s3, 448
        %v2594 = vld [vmem:[%s2593] sm:$0xff]
        %v2595 = vld [vmem:[%s2593 + $0x8] sm:$0xff]
        %v2596 = vld [vmem:[%s2593 + $0x10] sm:$0xff]
        %v2597 = vld [vmem:[%s2593 + $0x18] sm:$0xff]
        %v2598 = vld [vmem:[%s2593 + $0x20] sm:$0xff]
        %v2599 = vld [vmem:[%s2593 + $0x28] sm:$0xff]
        %v2600 = vld [vmem:[%s2593 + $0x30] sm:$0xff]
        %v2601 = vld [vmem:[%s2593 + $0x38] sm:$0xff]
        %v2610 = vunpack.c.l.b16 %v2594
        %v2611 = vunpack.c.h.b16 %v2594
        %v2612 = vunpack.c.l.b16 %v2595
        %v2613 = vunpack.c.h.b16 %v2595
        %v2614 = vunpack.c.l.b16 %v2596
        %v2615 = vunpack.c.h.b16 %v2596
        %v2616 = vunpack.c.l.b16 %v2597
        %v2617 = vunpack.c.h.b16 %v2597
        %v2618 = vunpack.c.l.b16 %v2598
        %v2619 = vunpack.c.h.b16 %v2598
        %v2620 = vunpack.c.l.b16 %v2599
        %v2621 = vunpack.c.h.b16 %v2599
        %v2622 = vunpack.c.l.b16 %v2600
        %v2623 = vunpack.c.h.b16 %v2600
        %v2624 = vunpack.c.l.b16 %v2601
        %v2625 = vunpack.c.h.b16 %v2601
        %v2626 = vpack.c.b16 %v2612, %v2610
        %v2627 = vpack.c.b16 %v2613, %v2611
        %v2628 = vpack.c.b16 %v2616, %v2614
        %v2629 = vpack.c.b16 %v2617, %v2615
        %v2630 = vpack.c.b16 %v2620, %v2618
        %v2631 = vpack.c.b16 %v2621, %v2619
        %v2632 = vpack.c.b16 %v2624, %v2622
        %v2633 = vpack.c.b16 %v2625, %v2623
        %2642 = vmatprep.subr.bf16.mxu0 0
        %2643 = vmatpush1.bf16.msra.mxu0 %v1117
        %2644 = vmatprep.subr.bf16.mxu0 0
        %2645 = vmatpush1.bf16.msra.mxu0 %v1116
        %2646 = vmatprep.subr.bf16.mxu0 0
        %2647 = vmatpush1.bf16.msra.mxu0 %v1115
        %2648 = vmatprep.subr.bf16.mxu0 0
        %2649 = vmatpush1.bf16.msra.mxu0 %v1114
        %2650 = vmatprep.subr.bf16.mxu0 0
        %2651 = vmatpush1.bf16.msra.mxu0 %v1113
        %2652 = vmatprep.subr.bf16.mxu0 0
        %2653 = vmatpush1.bf16.msra.mxu0 %v1112
        %2654 = vmatprep.subr.bf16.mxu0 0
        %2655 = vmatpush1.bf16.msra.mxu0 %v1111
        %2656 = vmatprep.subr.bf16.mxu0 0
        %2657 = vmatpush1.bf16.msra.mxu0 %v1110
        %2658 = vmatprep.subr.bf16.mxu0 0
        %2659 = vmatpush2.bf16.msra.mxu0 %v1125
        %2660 = vmatprep.subr.bf16.mxu0 0
        %2661 = vmatpush2.bf16.msra.mxu0 %v1124
        %2662 = vmatprep.subr.bf16.mxu0 0
        %2663 = vmatpush2.bf16.msra.mxu0 %v1123
        %2664 = vmatprep.subr.bf16.mxu0 0
        %2665 = vmatpush2.bf16.msra.mxu0 %v1122
        %2666 = vmatprep.subr.bf16.mxu0 0
        %2667 = vmatpush2.bf16.msra.mxu0 %v1121
        %2668 = vmatprep.subr.bf16.mxu0 0
        %2669 = vmatpush2.bf16.msra.mxu0 %v1120
        %2670 = vmatprep.subr.bf16.mxu0 0
        %2671 = vmatpush2.bf16.msra.mxu0 %v1119
        %2672 = vmatprep.subr.bf16.mxu0 0
        %2673 = vmatpush2.bf16.msra.mxu0 %v1118
        %2674 = vmatprep.mubr.bf16.mxu0 %v2627
        %2675 = vmatmul.mubr.bf16.gmra.mxu0 %v2626
        %v2676 = vpop.f32.mrf.mxu0
        %v2677 = vadd.f32 0.0, %v2676
        %v2678 = vpop.f32.mrf.mxu0
        %v2679 = vpop.f32.mrf.mxu0
        %v2680 = vadd.f32 0.0, %v2679
        %v2681 = vpop.f32.mrf.mxu0
        %2682 = vmatprep.mubr.bf16.mxu0 %v2629
        %2683 = vmatmul.mubr.bf16.gmra.mxu0 %v2628
        %v2684 = vpop.f32.mrf.mxu0
        %v2685 = vadd.f32 0.0, %v2684
        %v2686 = vpop.f32.mrf.mxu0
        %v2687 = vpop.f32.mrf.mxu0
        %v2688 = vadd.f32 0.0, %v2687
        %v2689 = vpop.f32.mrf.mxu0
        %2690 = vmatprep.mubr.bf16.mxu0 %v2631
        %2691 = vmatmul.mubr.bf16.gmra.mxu0 %v2630
        %v2692 = vpop.f32.mrf.mxu0
        %v2693 = vadd.f32 0.0, %v2692
        %v2694 = vpop.f32.mrf.mxu0
        %v2695 = vpop.f32.mrf.mxu0
        %v2696 = vadd.f32 0.0, %v2695
        %v2697 = vpop.f32.mrf.mxu0
        %2698 = vmatprep.mubr.bf16.mxu0 %v2633
        %2699 = vmatmul.mubr.bf16.gmra.mxu0 %v2632
        %v2700 = vpop.f32.mrf.mxu0
        %v2701 = vadd.f32 0.0, %v2700
        %v2702 = vpop.f32.mrf.mxu0
        %v2703 = vpop.f32.mrf.mxu0
        %v2704 = vadd.f32 0.0, %v2703
        %v2705 = vpop.f32.mrf.mxu0
        %2706 = vdwg.mxu0
        %v2707 = vpack.c.bf16 %v2680, %v2677
        %v2708 = vpack.c.bf16 %v2688, %v2685
        %v2709 = vpack.c.bf16 %v2696, %v2693
        %v2710 = vpack.c.bf16 %v2704, %v2701
        %s2711 = scalar_lea.vmem %s4, 56
        %v2712 = vld [vmem:[%s2711] sm:$0xf]
        %v2713 = vld [vmem:[%s2711 + $0x4] sm:$0xf]
        %v2716 = vunpack.c.l.b16 %v2712
        %v2717 = vunpack.c.l.b16 %v2713
        %v2718 = vpack.c.b16 %v2717, %v2716
        %v2721 = vsel %vm1372, %v2707, 0
        %v2724 = vsel %vm1372, %v2708, 0
        %v2727 = vsel %vm1372, %v2709, 0
        %v2730 = vsel %vm1372, %v2710, 0
        %2732 = vmatprep.subr.bf16.mxu0 0
        %2733 = vmatpush1.bf16.msra.mxu0 0
        %2734 = vmatprep.subr.bf16.mxu0 0
        %2735 = vmatpush1.bf16.msra.mxu0 0
        %2736 = vmatprep.subr.bf16.mxu0 0
        %2737 = vmatpush1.bf16.msra.mxu0 0
        %2738 = vmatprep.subr.bf16.mxu0 0
        %2739 = vmatpush1.bf16.msra.mxu0 0
        %2740 = vmatprep.subr.bf16.mxu0 0
        %2741 = vmatpush1.bf16.msra.mxu0 0
        %2742 = vmatprep.subr.bf16.mxu0 0
        %2743 = vmatpush1.bf16.msra.mxu0 0
        %2744 = vmatprep.subr.bf16.mxu0 0
        %2745 = vmatpush1.bf16.msra.mxu0 0
        %2746 = vmatprep.subr.bf16.mxu0 0
        %2747 = vmatpush1.bf16.msra.mxu0 %v2718
        %2748 = vmatprep.subr.bf16.mxu0 0
        %2749 = vmatpush2.bf16.msra.mxu0 0
        %2750 = vmatprep.subr.bf16.mxu0 0
        %2751 = vmatpush2.bf16.msra.mxu0 0
        %2752 = vmatprep.subr.bf16.mxu0 0
        %2753 = vmatpush2.bf16.msra.mxu0 0
        %2754 = vmatprep.subr.bf16.mxu0 0
        %2755 = vmatpush2.bf16.msra.mxu0 0
        %2756 = vmatprep.subr.bf16.mxu0 0
        %2757 = vmatpush2.bf16.msra.mxu0 0
        %2758 = vmatprep.subr.bf16.mxu0 0
        %2759 = vmatpush2.bf16.msra.mxu0 0
        %2760 = vmatprep.subr.bf16.mxu0 0
        %2761 = vmatpush2.bf16.msra.mxu0 0
        %2762 = vmatprep.subr.bf16.mxu0 0
        %2763 = vmatpush2.bf16.msra.mxu0 0
        %2764 = vmatprep.mubr.bf16.mxu0 0
        %2765 = vmatmul.mubr.bf16.gmra.mxu0 %v2721
        %v2766 = vpop.f32.mrf.mxu0
        %v2767 = vadd.f32 0.0, %v2766
        %v2768 = vpop.f32.mrf.mxu0
        %v2769 = vpop.f32.mrf.mxu0
        %v2770 = vadd.f32 0.0, %v2769
        %v2771 = vpop.f32.mrf.mxu0
        %2772 = vmatprep.mubr.bf16.mxu0 0
        %2773 = vmatmul.mubr.bf16.gmra.mxu0 %v2724
        %v2774 = vpop.f32.mrf.mxu0
        %v2775 = vadd.f32 0.0, %v2774
        %v2776 = vpop.f32.mrf.mxu0
        %v2777 = vpop.f32.mrf.mxu0
        %v2778 = vadd.f32 0.0, %v2777
        %v2779 = vpop.f32.mrf.mxu0
        %2780 = vmatprep.mubr.bf16.mxu0 0
        %2781 = vmatmul.mubr.bf16.gmra.mxu0 %v2727
        %v2782 = vpop.f32.mrf.mxu0
        %v2783 = vadd.f32 0.0, %v2782
        %v2784 = vpop.f32.mrf.mxu0
        %v2785 = vpop.f32.mrf.mxu0
        %v2786 = vadd.f32 0.0, %v2785
        %v2787 = vpop.f32.mrf.mxu0
        %2788 = vmatprep.mubr.bf16.mxu0 0
        %2789 = vmatmul.mubr.bf16.gmra.mxu0 %v2730
        %v2790 = vpop.f32.mrf.mxu0
        %v2791 = vadd.f32 0.0, %v2790
        %v2792 = vpop.f32.mrf.mxu0
        %v2793 = vpop.f32.mrf.mxu0
        %v2794 = vadd.f32 0.0, %v2793
        %v2795 = vpop.f32.mrf.mxu0
        %2796 = vdwg.mxu0
        %v2797 = vadd.f32 %v2585, %v2767
        %v2798 = vadd.f32 %v2586, %v2770
        %v2799 = vadd.f32 %v2587, %v2775
        %v2800 = vadd.f32 %v2588, %v2778
        %v2801 = vadd.f32 %v2589, %v2783
        %v2802 = vadd.f32 %v2590, %v2786
        %v2803 = vadd.f32 %v2591, %v2791
        %v2804 = vadd.f32 %v2592, %v2794
        %s2805 = scalar_lea.vmem %s3, 512
        %v2806 = vld [vmem:[%s2805] sm:$0xff]
        %v2807 = vld [vmem:[%s2805 + $0x8] sm:$0xff]
        %v2808 = vld [vmem:[%s2805 + $0x10] sm:$0xff]
        %v2809 = vld [vmem:[%s2805 + $0x18] sm:$0xff]
        %v2810 = vld [vmem:[%s2805 + $0x20] sm:$0xff]
        %v2811 = vld [vmem:[%s2805 + $0x28] sm:$0xff]
        %v2812 = vld [vmem:[%s2805 + $0x30] sm:$0xff]
        %v2813 = vld [vmem:[%s2805 + $0x38] sm:$0xff]
        %v2822 = vunpack.c.l.b16 %v2806
        %v2823 = vunpack.c.h.b16 %v2806
        %v2824 = vunpack.c.l.b16 %v2807
        %v2825 = vunpack.c.h.b16 %v2807
        %v2826 = vunpack.c.l.b16 %v2808
        %v2827 = vunpack.c.h.b16 %v2808
        %v2828 = vunpack.c.l.b16 %v2809
        %v2829 = vunpack.c.h.b16 %v2809
        %v2830 = vunpack.c.l.b16 %v2810
        %v2831 = vunpack.c.h.b16 %v2810
        %v2832 = vunpack.c.l.b16 %v2811
        %v2833 = vunpack.c.h.b16 %v2811
        %v2834 = vunpack.c.l.b16 %v2812
        %v2835 = vunpack.c.h.b16 %v2812
        %v2836 = vunpack.c.l.b16 %v2813
        %v2837 = vunpack.c.h.b16 %v2813
        %v2838 = vpack.c.b16 %v2824, %v2822
        %v2839 = vpack.c.b16 %v2825, %v2823
        %v2840 = vpack.c.b16 %v2828, %v2826
        %v2841 = vpack.c.b16 %v2829, %v2827
        %v2842 = vpack.c.b16 %v2832, %v2830
        %v2843 = vpack.c.b16 %v2833, %v2831
        %v2844 = vpack.c.b16 %v2836, %v2834
        %v2845 = vpack.c.b16 %v2837, %v2835
        %2854 = vmatprep.subr.bf16.mxu0 0
        %2855 = vmatpush1.bf16.msra.mxu0 %v1117
        %2856 = vmatprep.subr.bf16.mxu0 0
        %2857 = vmatpush1.bf16.msra.mxu0 %v1116
        %2858 = vmatprep.subr.bf16.mxu0 0
        %2859 = vmatpush1.bf16.msra.mxu0 %v1115
        %2860 = vmatprep.subr.bf16.mxu0 0
        %2861 = vmatpush1.bf16.msra.mxu0 %v1114
        %2862 = vmatprep.subr.bf16.mxu0 0
        %2863 = vmatpush1.bf16.msra.mxu0 %v1113
        %2864 = vmatprep.subr.bf16.mxu0 0
        %2865 = vmatpush1.bf16.msra.mxu0 %v1112
        %2866 = vmatprep.subr.bf16.mxu0 0
        %2867 = vmatpush1.bf16.msra.mxu0 %v1111
        %2868 = vmatprep.subr.bf16.mxu0 0
        %2869 = vmatpush1.bf16.msra.mxu0 %v1110
        %2870 = vmatprep.subr.bf16.mxu0 0
        %2871 = vmatpush2.bf16.msra.mxu0 %v1125
        %2872 = vmatprep.subr.bf16.mxu0 0
        %2873 = vmatpush2.bf16.msra.mxu0 %v1124
        %2874 = vmatprep.subr.bf16.mxu0 0
        %2875 = vmatpush2.bf16.msra.mxu0 %v1123
        %2876 = vmatprep.subr.bf16.mxu0 0
        %2877 = vmatpush2.bf16.msra.mxu0 %v1122
        %2878 = vmatprep.subr.bf16.mxu0 0
        %2879 = vmatpush2.bf16.msra.mxu0 %v1121
        %2880 = vmatprep.subr.bf16.mxu0 0
        %2881 = vmatpush2.bf16.msra.mxu0 %v1120
        %2882 = vmatprep.subr.bf16.mxu0 0
        %2883 = vmatpush2.bf16.msra.mxu0 %v1119
        %2884 = vmatprep.subr.bf16.mxu0 0
        %2885 = vmatpush2.bf16.msra.mxu0 %v1118
        %2886 = vmatprep.mubr.bf16.mxu0 %v2839
        %2887 = vmatmul.mubr.bf16.gmra.mxu0 %v2838
        %v2888 = vpop.f32.mrf.mxu0
        %v2889 = vadd.f32 0.0, %v2888
        %v2890 = vpop.f32.mrf.mxu0
        %v2891 = vpop.f32.mrf.mxu0
        %v2892 = vadd.f32 0.0, %v2891
        %v2893 = vpop.f32.mrf.mxu0
        %2894 = vmatprep.mubr.bf16.mxu0 %v2841
        %2895 = vmatmul.mubr.bf16.gmra.mxu0 %v2840
        %v2896 = vpop.f32.mrf.mxu0
        %v2897 = vadd.f32 0.0, %v2896
        %v2898 = vpop.f32.mrf.mxu0
        %v2899 = vpop.f32.mrf.mxu0
        %v2900 = vadd.f32 0.0, %v2899
        %v2901 = vpop.f32.mrf.mxu0
        %2902 = vmatprep.mubr.bf16.mxu0 %v2843
        %2903 = vmatmul.mubr.bf16.gmra.mxu0 %v2842
        %v2904 = vpop.f32.mrf.mxu0
        %v2905 = vadd.f32 0.0, %v2904
        %v2906 = vpop.f32.mrf.mxu0
        %v2907 = vpop.f32.mrf.mxu0
        %v2908 = vadd.f32 0.0, %v2907
        %v2909 = vpop.f32.mrf.mxu0
        %2910 = vmatprep.mubr.bf16.mxu0 %v2845
        %2911 = vmatmul.mubr.bf16.gmra.mxu0 %v2844
        %v2912 = vpop.f32.mrf.mxu0
        %v2913 = vadd.f32 0.0, %v2912
        %v2914 = vpop.f32.mrf.mxu0
        %v2915 = vpop.f32.mrf.mxu0
        %v2916 = vadd.f32 0.0, %v2915
        %v2917 = vpop.f32.mrf.mxu0
        %2918 = vdwg.mxu0
        %v2919 = vpack.c.bf16 %v2892, %v2889
        %v2920 = vpack.c.bf16 %v2900, %v2897
        %v2921 = vpack.c.bf16 %v2908, %v2905
        %v2922 = vpack.c.bf16 %v2916, %v2913
        %s2923 = scalar_lea.vmem %s4, 64
        %v2924 = vld [vmem:[%s2923] sm:$0xf]
        %v2925 = vld [vmem:[%s2923 + $0x4] sm:$0xf]
        %v2928 = vunpack.c.l.b16 %v2924
        %v2929 = vunpack.c.l.b16 %v2925
        %v2930 = vpack.c.b16 %v2929, %v2928
        %v2933 = vsel %vm1372, %v2919, 0
        %v2936 = vsel %vm1372, %v2920, 0
        %v2939 = vsel %vm1372, %v2921, 0
        %v2942 = vsel %vm1372, %v2922, 0
        %2944 = vmatprep.subr.bf16.mxu0 0
        %2945 = vmatpush1.bf16.msra.mxu0 0
        %2946 = vmatprep.subr.bf16.mxu0 0
        %2947 = vmatpush1.bf16.msra.mxu0 0
        %2948 = vmatprep.subr.bf16.mxu0 0
        %2949 = vmatpush1.bf16.msra.mxu0 0
        %2950 = vmatprep.subr.bf16.mxu0 0
        %2951 = vmatpush1.bf16.msra.mxu0 0
        %2952 = vmatprep.subr.bf16.mxu0 0
        %2953 = vmatpush1.bf16.msra.mxu0 0
        %2954 = vmatprep.subr.bf16.mxu0 0
        %2955 = vmatpush1.bf16.msra.mxu0 0
        %2956 = vmatprep.subr.bf16.mxu0 0
        %2957 = vmatpush1.bf16.msra.mxu0 0
        %2958 = vmatprep.subr.bf16.mxu0 0
        %2959 = vmatpush1.bf16.msra.mxu0 %v2930
        %2960 = vmatprep.subr.bf16.mxu0 0
        %2961 = vmatpush2.bf16.msra.mxu0 0
        %2962 = vmatprep.subr.bf16.mxu0 0
        %2963 = vmatpush2.bf16.msra.mxu0 0
        %2964 = vmatprep.subr.bf16.mxu0 0
        %2965 = vmatpush2.bf16.msra.mxu0 0
        %2966 = vmatprep.subr.bf16.mxu0 0
        %2967 = vmatpush2.bf16.msra.mxu0 0
        %2968 = vmatprep.subr.bf16.mxu0 0
        %2969 = vmatpush2.bf16.msra.mxu0 0
        %2970 = vmatprep.subr.bf16.mxu0 0
        %2971 = vmatpush2.bf16.msra.mxu0 0
        %2972 = vmatprep.subr.bf16.mxu0 0
        %2973 = vmatpush2.bf16.msra.mxu0 0
        %2974 = vmatprep.subr.bf16.mxu0 0
        %2975 = vmatpush2.bf16.msra.mxu0 0
        %2976 = vmatprep.mubr.bf16.mxu0 0
        %2977 = vmatmul.mubr.bf16.gmra.mxu0 %v2933
        %v2978 = vpop.f32.mrf.mxu0
        %v2979 = vadd.f32 0.0, %v2978
        %v2980 = vpop.f32.mrf.mxu0
        %v2981 = vpop.f32.mrf.mxu0
        %v2982 = vadd.f32 0.0, %v2981
        %v2983 = vpop.f32.mrf.mxu0
        %2984 = vmatprep.mubr.bf16.mxu0 0
        %2985 = vmatmul.mubr.bf16.gmra.mxu0 %v2936
        %v2986 = vpop.f32.mrf.mxu0
        %v2987 = vadd.f32 0.0, %v2986
        %v2988 = vpop.f32.mrf.mxu0
        %v2989 = vpop.f32.mrf.mxu0
        %v2990 = vadd.f32 0.0, %v2989
        %v2991 = vpop.f32.mrf.mxu0
        %2992 = vmatprep.mubr.bf16.mxu0 0
        %2993 = vmatmul.mubr.bf16.gmra.mxu0 %v2939
        %v2994 = vpop.f32.mrf.mxu0
        %v2995 = vadd.f32 0.0, %v2994
        %v2996 = vpop.f32.mrf.mxu0
        %v2997 = vpop.f32.mrf.mxu0
        %v2998 = vadd.f32 0.0, %v2997
        %v2999 = vpop.f32.mrf.mxu0
        %3000 = vmatprep.mubr.bf16.mxu0 0
        %3001 = vmatmul.mubr.bf16.gmra.mxu0 %v2942
        %v3002 = vpop.f32.mrf.mxu0
        %v3003 = vadd.f32 0.0, %v3002
        %v3004 = vpop.f32.mrf.mxu0
        %v3005 = vpop.f32.mrf.mxu0
        %v3006 = vadd.f32 0.0, %v3005
        %v3007 = vpop.f32.mrf.mxu0
        %3008 = vdwg.mxu0
        %v3009 = vadd.f32 %v2797, %v2979
        %v3010 = vadd.f32 %v2798, %v2982
        %v3011 = vadd.f32 %v2799, %v2987
        %v3012 = vadd.f32 %v2800, %v2990
        %v3013 = vadd.f32 %v2801, %v2995
        %v3014 = vadd.f32 %v2802, %v2998
        %v3015 = vadd.f32 %v2803, %v3003
        %v3016 = vadd.f32 %v2804, %v3006
        %v3017 = vld [vmem:[%s5] sm:$0x1]
        %v3019 = vlaneseq
        %v3020 = vshrl.u32 %v3019, 7
        %v3021 = vsub.s32 0, %v3020
        %v3022 = vrot.slane %v3017, %v3021
        %v3024 = vadd.f32 %v3009, %v3022
        %v3025 = vadd.f32 %v3010, %v3022
        %v3026 = vadd.f32 %v3011, %v3022
        %v3027 = vadd.f32 %v3012, %v3022
        %v3028 = vadd.f32 %v3013, %v3022
        %v3029 = vadd.f32 %v3014, %v3022
        %v3030 = vadd.f32 %v3015, %v3022
        %v3031 = vadd.f32 %v3016, %v3022
        %v3032 = vmax.f32 %v3024, 0.0
        %v3033 = vmax.f32 %v3025, 0.0
        %v3034 = vmax.f32 %v3026, 0.0
        %v3035 = vmax.f32 %v3027, 0.0
        %v3036 = vmax.f32 %v3028, 0.0
        %v3037 = vmax.f32 %v3029, 0.0
        %v3038 = vmax.f32 %v3030, 0.0
        %v3039 = vmax.f32 %v3031, 0.0
        %v3040 = vpack.c.bf16 %v3033, %v3032
        %v3041 = vpack.c.bf16 %v3035, %v3034
        %v3042 = vpack.c.bf16 %v3037, %v3036
        %v3043 = vpack.c.bf16 %v3039, %v3038
        %v3044 = vld [vmem:[%s6] sm:$0xf]
        %v3045 = vld [vmem:[%s6 + $0x4] sm:$0xf]
        %v3048 = vunpack.c.l.b16 %v3044
        %v3049 = vunpack.c.l.b16 %v3045
        %v3050 = vpack.c.b16 %v3049, %v3048
        %vm3051 = vcmask 523264
        %v3053 = vsel %vm3051, %v3050, 0
        %3055 = vmatprep.subr.bf16.mxu0 0
        %3056 = vmatpush1.bf16.msra.mxu0 0
        %3057 = vmatprep.subr.bf16.mxu0 0
        %3058 = vmatpush1.bf16.msra.mxu0 0
        %3059 = vmatprep.subr.bf16.mxu0 0
        %3060 = vmatpush1.bf16.msra.mxu0 0
        %3061 = vmatprep.subr.bf16.mxu0 0
        %3062 = vmatpush1.bf16.msra.mxu0 0
        %3063 = vmatprep.subr.bf16.mxu0 0
        %3064 = vmatpush1.bf16.msra.mxu0 %v3043
        %3065 = vmatprep.subr.bf16.mxu0 0
        %3066 = vmatpush1.bf16.msra.mxu0 %v3042
        %3067 = vmatprep.subr.bf16.mxu0 0
        %3068 = vmatpush1.bf16.msra.mxu0 %v3041
        %3069 = vmatprep.subr.bf16.mxu0 0
        %3070 = vmatpush1.bf16.msra.mxu0 %v3040
        %3071 = vmatprep.subr.bf16.mxu0 0
        %3072 = vmatpush2.bf16.msra.mxu0 0
        %3073 = vmatprep.subr.bf16.mxu0 0
        %3074 = vmatpush2.bf16.msra.mxu0 0
        %3075 = vmatprep.subr.bf16.mxu0 0
        %3076 = vmatpush2.bf16.msra.mxu0 0
        %3077 = vmatprep.subr.bf16.mxu0 0
        %3078 = vmatpush2.bf16.msra.mxu0 0
        %3079 = vmatprep.subr.bf16.mxu0 0
        %3080 = vmatpush2.bf16.msra.mxu0 0
        %3081 = vmatprep.subr.bf16.mxu0 0
        %3082 = vmatpush2.bf16.msra.mxu0 0
        %3083 = vmatprep.subr.bf16.mxu0 0
        %3084 = vmatpush2.bf16.msra.mxu0 0
        %3085 = vmatprep.subr.bf16.mxu0 0
        %3086 = vmatpush2.bf16.msra.mxu0 0
        %3087 = vmatprep.mubr.bf16.mxu0 0
        %3088 = vmatmul.mubr.bf16.gmra.mxu0 %v3053
        %v3089 = vpop.f32.mrf.mxu0
        %v3090 = vadd.f32 0.0, %v3089
        %v3091 = vpop.f32.mrf.mxu0
        %v3092 = vpop.f32.mrf.mxu0
        %v3093 = vadd.f32 0.0, %v3092
        %v3094 = vpop.f32.mrf.mxu0
        %3095 = vdwg.mxu0
        %v3096 = vpack.c.bf16 %v3093, %v3090
        %v3097 = vld [vmem:[%s7] sm:$0xf]
        %v3098 = vld [vmem:[%s7 + $0x4] sm:$0xf]
        %v3099 = vld [vmem:[%s7 + $0x8] sm:$0xf]
        %v3100 = vld [vmem:[%s7 + $0xc] sm:$0xf]
        %s3101 = scalar_lea.vmem %s6, 8
        %v3102 = vld [vmem:[%s3101] sm:$0xf]
        %v3103 = vld [vmem:[%s3101 + $0x4] sm:$0xf]
        %v3106 = vunpack.c.l.b16 %v3102
        %v3107 = vunpack.c.l.b16 %v3103
        %v3108 = vpack.c.b16 %v3107, %v3106
        %v3110 = vsel %vm3051, %v3108, 0
        %3112 = vmatprep.subr.bf16.mxu0 0
        %3113 = vmatpush1.bf16.msra.mxu0 0
        %3114 = vmatprep.subr.bf16.mxu0 0
        %3115 = vmatpush1.bf16.msra.mxu0 0
        %3116 = vmatprep.subr.bf16.mxu0 0
        %3117 = vmatpush1.bf16.msra.mxu0 0
        %3118 = vmatprep.subr.bf16.mxu0 0
        %3119 = vmatpush1.bf16.msra.mxu0 0
        %3120 = vmatprep.subr.bf16.mxu0 0
        %3121 = vmatpush1.bf16.msra.mxu0 %v3043
        %3122 = vmatprep.subr.bf16.mxu0 0
        %3123 = vmatpush1.bf16.msra.mxu0 %v3042
        %3124 = vmatprep.subr.bf16.mxu0 0
        %3125 = vmatpush1.bf16.msra.mxu0 %v3041
        %3126 = vmatprep.subr.bf16.mxu0 0
        %3127 = vmatpush1.bf16.msra.mxu0 %v3040
        %3128 = vmatprep.subr.bf16.mxu0 0
        %3129 = vmatpush2.bf16.msra.mxu0 0
        %3130 = vmatprep.subr.bf16.mxu0 0
        %3131 = vmatpush2.bf16.msra.mxu0 0
        %3132 = vmatprep.subr.bf16.mxu0 0
        %3133 = vmatpush2.bf16.msra.mxu0 0
        %3134 = vmatprep.subr.bf16.mxu0 0
        %3135 = vmatpush2.bf16.msra.mxu0 0
        %3136 = vmatprep.subr.bf16.mxu0 0
        %3137 = vmatpush2.bf16.msra.mxu0 0
        %3138 = vmatprep.subr.bf16.mxu0 0
        %3139 = vmatpush2.bf16.msra.mxu0 0
        %3140 = vmatprep.subr.bf16.mxu0 0
        %3141 = vmatpush2.bf16.msra.mxu0 0
        %3142 = vmatprep.subr.bf16.mxu0 0
        %3143 = vmatpush2.bf16.msra.mxu0 0
        %3144 = vmatprep.mubr.bf16.mxu0 0
        %3145 = vmatmul.mubr.bf16.gmra.mxu0 %v3110
        %v3146 = vpop.f32.mrf.mxu0
        %v3147 = vadd.f32 0.0, %v3146
        %v3148 = vpop.f32.mrf.mxu0
        %v3149 = vpop.f32.mrf.mxu0
        %v3150 = vadd.f32 0.0, %v3149
        %v3151 = vpop.f32.mrf.mxu0
        %3152 = vdwg.mxu0
        %v3153 = vpack.c.bf16 %v3150, %v3147
        %s3154 = scalar_lea.vmem %s7, 16
        %v3155 = vld [vmem:[%s3154] sm:$0xf]
        %v3156 = vld [vmem:[%s3154 + $0x4] sm:$0xf]
        %v3157 = vld [vmem:[%s3154 + $0x8] sm:$0xf]
        %v3158 = vld [vmem:[%s3154 + $0xc] sm:$0xf]
        %v3163 = vunpack.c.l.b16 %v3155
        %v3164 = vunpack.c.l.b16 %v3156
        %v3165 = vunpack.c.l.b16 %v3157
        %v3166 = vunpack.c.l.b16 %v3158
        %v3167 = vpack.c.b16 %v3164, %v3163
        %v3168 = vpack.c.b16 %v3166, %v3165
        %vm3171 = vcmask 261120
        %v3173 = vsel %vm3171, %v3153, 0
        %3175 = vmatprep.subr.bf16.mxu0 0
        %3176 = vmatpush1.bf16.msra.mxu0 0
        %3177 = vmatprep.subr.bf16.mxu0 0
        %3178 = vmatpush1.bf16.msra.mxu0 0
        %3179 = vmatprep.subr.bf16.mxu0 0
        %3180 = vmatpush1.bf16.msra.mxu0 0
        %3181 = vmatprep.subr.bf16.mxu0 0
        %3182 = vmatpush1.bf16.msra.mxu0 0
        %3183 = vmatprep.subr.bf16.mxu0 0
        %3184 = vmatpush1.bf16.msra.mxu0 0
        %3185 = vmatprep.subr.bf16.mxu0 0
        %3186 = vmatpush1.bf16.msra.mxu0 0
        %3187 = vmatprep.subr.bf16.mxu0 0
        %3188 = vmatpush1.bf16.msra.mxu0 %v3168
        %3189 = vmatprep.subr.bf16.mxu0 0
        %3190 = vmatpush1.bf16.msra.mxu0 %v3167
        %3191 = vmatprep.subr.bf16.mxu0 0
        %3192 = vmatpush2.bf16.msra.mxu0 0
        %3193 = vmatprep.subr.bf16.mxu0 0
        %3194 = vmatpush2.bf16.msra.mxu0 0
        %3195 = vmatprep.subr.bf16.mxu0 0
        %3196 = vmatpush2.bf16.msra.mxu0 0
        %3197 = vmatprep.subr.bf16.mxu0 0
        %3198 = vmatpush2.bf16.msra.mxu0 0
        %3199 = vmatprep.subr.bf16.mxu0 0
        %3200 = vmatpush2.bf16.msra.mxu0 0
        %3201 = vmatprep.subr.bf16.mxu0 0
        %3202 = vmatpush2.bf16.msra.mxu0 0
        %3203 = vmatprep.subr.bf16.mxu0 0
        %3204 = vmatpush2.bf16.msra.mxu0 0
        %3205 = vmatprep.subr.bf16.mxu0 0
        %3206 = vmatpush2.bf16.msra.mxu0 0
        %3207 = vmatprep.mubr.bf16.mxu0 0
        %3208 = vmatmul.mubr.bf16.gmra.mxu0 %v3173
        %v3209 = vpop.f32.mrf.mxu0
        %v3210 = vadd.f32 0.0, %v3209
        %v3211 = vpop.f32.mrf.mxu0
        %v3212 = vpop.f32.mrf.mxu0
        %v3213 = vadd.f32 0.0, %v3212
        %v3214 = vpop.f32.mrf.mxu0
        %3215 = vdwg.mxu0
        %v3220 = vunpack.c.l.b16 %v3097
        %v3221 = vunpack.c.l.b16 %v3098
        %v3222 = vunpack.c.l.b16 %v3099
        %v3223 = vunpack.c.l.b16 %v3100
        %v3224 = vpack.c.b16 %v3221, %v3220
        %v3225 = vpack.c.b16 %v3223, %v3222
        %v3229 = vsel %vm3171, %v3096, 0
        %3231 = vmatprep.subr.bf16.mxu0 0
        %3232 = vmatpush1.bf16.msra.mxu0 0
        %3233 = vmatprep.subr.bf16.mxu0 0
        %3234 = vmatpush1.bf16.msra.mxu0 0
        %3235 = vmatprep.subr.bf16.mxu0 0
        %3236 = vmatpush1.bf16.msra.mxu0 0
        %3237 = vmatprep.subr.bf16.mxu0 0
        %3238 = vmatpush1.bf16.msra.mxu0 0
        %3239 = vmatprep.subr.bf16.mxu0 0
        %3240 = vmatpush1.bf16.msra.mxu0 0
        %3241 = vmatprep.subr.bf16.mxu0 0
        %3242 = vmatpush1.bf16.msra.mxu0 0
        %3243 = vmatprep.subr.bf16.mxu0 0
        %3244 = vmatpush1.bf16.msra.mxu0 %v3225
        %3245 = vmatprep.subr.bf16.mxu0 0
        %3246 = vmatpush1.bf16.msra.mxu0 %v3224
        %3247 = vmatprep.subr.bf16.mxu0 0
        %3248 = vmatpush2.bf16.msra.mxu0 0
        %3249 = vmatprep.subr.bf16.mxu0 0
        %3250 = vmatpush2.bf16.msra.mxu0 0
        %3251 = vmatprep.subr.bf16.mxu0 0
        %3252 = vmatpush2.bf16.msra.mxu0 0
        %3253 = vmatprep.subr.bf16.mxu0 0
        %3254 = vmatpush2.bf16.msra.mxu0 0
        %3255 = vmatprep.subr.bf16.mxu0 0
        %3256 = vmatpush2.bf16.msra.mxu0 0
        %3257 = vmatprep.subr.bf16.mxu0 0
        %3258 = vmatpush2.bf16.msra.mxu0 0
        %3259 = vmatprep.subr.bf16.mxu0 0
        %3260 = vmatpush2.bf16.msra.mxu0 0
        %3261 = vmatprep.subr.bf16.mxu0 0
        %3262 = vmatpush2.bf16.msra.mxu0 0
        %3263 = vmatprep.mubr.bf16.mxu0 0
        %3264 = vmatmul.mubr.bf16.gmra.mxu0 %v3229
        %v3265 = vpop.f32.mrf.mxu0
        %v3266 = vadd.f32 %v3210, %v3265
        %v3267 = vpop.f32.mrf.mxu0
        %v3268 = vpop.f32.mrf.mxu0
        %v3269 = vadd.f32 %v3213, %v3268
        %v3270 = vpop.f32.mrf.mxu0
        %3271 = vdwg.mxu0
        %s3272 = scalar_lea.vmem %s6, 16
        %v3273 = vld [vmem:[%s3272] sm:$0xf]
        %v3274 = vld [vmem:[%s3272 + $0x4] sm:$0xf]
        %v3277 = vunpack.c.l.b16 %v3273
        %v3278 = vunpack.c.l.b16 %v3274
        %v3279 = vpack.c.b16 %v3278, %v3277
        %v3281 = vsel %vm3051, %v3279, 0
        %3283 = vmatprep.subr.bf16.mxu0 0
        %3284 = vmatpush1.bf16.msra.mxu0 0
        %3285 = vmatprep.subr.bf16.mxu0 0
        %3286 = vmatpush1.bf16.msra.mxu0 0
        %3287 = vmatprep.subr.bf16.mxu0 0
        %3288 = vmatpush1.bf16.msra.mxu0 0
        %3289 = vmatprep.subr.bf16.mxu0 0
        %3290 = vmatpush1.bf16.msra.mxu0 0
        %3291 = vmatprep.subr.bf16.mxu0 0
        %3292 = vmatpush1.bf16.msra.mxu0 %v3043
        %3293 = vmatprep.subr.bf16.mxu0 0
        %3294 = vmatpush1.bf16.msra.mxu0 %v3042
        %3295 = vmatprep.subr.bf16.mxu0 0
        %3296 = vmatpush1.bf16.msra.mxu0 %v3041
        %3297 = vmatprep.subr.bf16.mxu0 0
        %3298 = vmatpush1.bf16.msra.mxu0 %v3040
        %3299 = vmatprep.subr.bf16.mxu0 0
        %3300 = vmatpush2.bf16.msra.mxu0 0
        %3301 = vmatprep.subr.bf16.mxu0 0
        %3302 = vmatpush2.bf16.msra.mxu0 0
        %3303 = vmatprep.subr.bf16.mxu0 0
        %3304 = vmatpush2.bf16.msra.mxu0 0
        %3305 = vmatprep.subr.bf16.mxu0 0
        %3306 = vmatpush2.bf16.msra.mxu0 0
        %3307 = vmatprep.subr.bf16.mxu0 0
        %3308 = vmatpush2.bf16.msra.mxu0 0
        %3309 = vmatprep.subr.bf16.mxu0 0
        %3310 = vmatpush2.bf16.msra.mxu0 0
        %3311 = vmatprep.subr.bf16.mxu0 0
        %3312 = vmatpush2.bf16.msra.mxu0 0
        %3313 = vmatprep.subr.bf16.mxu0 0
        %3314 = vmatpush2.bf16.msra.mxu0 0
        %3315 = vmatprep.mubr.bf16.mxu0 0
        %3316 = vmatmul.mubr.bf16.gmra.mxu0 %v3281
        %v3317 = vpop.f32.mrf.mxu0
        %v3318 = vadd.f32 0.0, %v3317
        %v3319 = vpop.f32.mrf.mxu0
        %v3320 = vpop.f32.mrf.mxu0
        %v3321 = vadd.f32 0.0, %v3320
        %v3322 = vpop.f32.mrf.mxu0
        %3323 = vdwg.mxu0
        %v3324 = vpack.c.bf16 %v3321, %v3318
        %s3325 = scalar_lea.vmem %s7, 32
        %v3326 = vld [vmem:[%s3325] sm:$0xf]
        %v3327 = vld [vmem:[%s3325 + $0x4] sm:$0xf]
        %v3328 = vld [vmem:[%s3325 + $0x8] sm:$0xf]
        %v3329 = vld [vmem:[%s3325 + $0xc] sm:$0xf]
        %v3334 = vunpack.c.l.b16 %v3326
        %v3335 = vunpack.c.l.b16 %v3327
        %v3336 = vunpack.c.l.b16 %v3328
        %v3337 = vunpack.c.l.b16 %v3329
        %v3338 = vpack.c.b16 %v3335, %v3334
        %v3339 = vpack.c.b16 %v3337, %v3336
        %v3343 = vsel %vm3171, %v3324, 0
        %3345 = vmatprep.subr.bf16.mxu0 0
        %3346 = vmatpush1.bf16.msra.mxu0 0
        %3347 = vmatprep.subr.bf16.mxu0 0
        %3348 = vmatpush1.bf16.msra.mxu0 0
        %3349 = vmatprep.subr.bf16.mxu0 0
        %3350 = vmatpush1.bf16.msra.mxu0 0
        %3351 = vmatprep.subr.bf16.mxu0 0
        %3352 = vmatpush1.bf16.msra.mxu0 0
        %3353 = vmatprep.subr.bf16.mxu0 0
        %3354 = vmatpush1.bf16.msra.mxu0 0
        %3355 = vmatprep.subr.bf16.mxu0 0
        %3356 = vmatpush1.bf16.msra.mxu0 0
        %3357 = vmatprep.subr.bf16.mxu0 0
        %3358 = vmatpush1.bf16.msra.mxu0 %v3339
        %3359 = vmatprep.subr.bf16.mxu0 0
        %3360 = vmatpush1.bf16.msra.mxu0 %v3338
        %3361 = vmatprep.subr.bf16.mxu0 0
        %3362 = vmatpush2.bf16.msra.mxu0 0
        %3363 = vmatprep.subr.bf16.mxu0 0
        %3364 = vmatpush2.bf16.msra.mxu0 0
        %3365 = vmatprep.subr.bf16.mxu0 0
        %3366 = vmatpush2.bf16.msra.mxu0 0
        %3367 = vmatprep.subr.bf16.mxu0 0
        %3368 = vmatpush2.bf16.msra.mxu0 0
        %3369 = vmatprep.subr.bf16.mxu0 0
        %3370 = vmatpush2.bf16.msra.mxu0 0
        %3371 = vmatprep.subr.bf16.mxu0 0
        %3372 = vmatpush2.bf16.msra.mxu0 0
        %3373 = vmatprep.subr.bf16.mxu0 0
        %3374 = vmatpush2.bf16.msra.mxu0 0
        %3375 = vmatprep.subr.bf16.mxu0 0
        %3376 = vmatpush2.bf16.msra.mxu0 0
        %3377 = vmatprep.mubr.bf16.mxu0 0
        %3378 = vmatmul.mubr.bf16.gmra.mxu0 %v3343
        %v3379 = vpop.f32.mrf.mxu0
        %v3380 = vadd.f32 0.0, %v3379
        %v3381 = vpop.f32.mrf.mxu0
        %v3382 = vpop.f32.mrf.mxu0
        %v3383 = vadd.f32 0.0, %v3382
        %v3384 = vpop.f32.mrf.mxu0
        %3385 = vdwg.mxu0
        %v3386 = vadd.f32 %v3266, %v3380
        %v3387 = vadd.f32 %v3269, %v3383
        %s3388 = scalar_lea.vmem %s6, 24
        %v3389 = vld [vmem:[%s3388] sm:$0xf]
        %v3390 = vld [vmem:[%s3388 + $0x4] sm:$0xf]
        %v3393 = vunpack.c.l.b16 %v3389
        %v3394 = vunpack.c.l.b16 %v3390
        %v3395 = vpack.c.b16 %v3394, %v3393
        %v3397 = vsel %vm3051, %v3395, 0
        %3399 = vmatprep.subr.bf16.mxu0 0
        %3400 = vmatpush1.bf16.msra.mxu0 0
        %3401 = vmatprep.subr.bf16.mxu0 0
        %3402 = vmatpush1.bf16.msra.mxu0 0
        %3403 = vmatprep.subr.bf16.mxu0 0
        %3404 = vmatpush1.bf16.msra.mxu0 0
        %3405 = vmatprep.subr.bf16.mxu0 0
        %3406 = vmatpush1.bf16.msra.mxu0 0
        %3407 = vmatprep.subr.bf16.mxu0 0
        %3408 = vmatpush1.bf16.msra.mxu0 %v3043
        %3409 = vmatprep.subr.bf16.mxu0 0
        %3410 = vmatpush1.bf16.msra.mxu0 %v3042
        %3411 = vmatprep.subr.bf16.mxu0 0
        %3412 = vmatpush1.bf16.msra.mxu0 %v3041
        %3413 = vmatprep.subr.bf16.mxu0 0
        %3414 = vmatpush1.bf16.msra.mxu0 %v3040
        %3415 = vmatprep.subr.bf16.mxu0 0
        %3416 = vmatpush2.bf16.msra.mxu0 0
        %3417 = vmatprep.subr.bf16.mxu0 0
        %3418 = vmatpush2.bf16.msra.mxu0 0
        %3419 = vmatprep.subr.bf16.mxu0 0
        %3420 = vmatpush2.bf16.msra.mxu0 0
        %3421 = vmatprep.subr.bf16.mxu0 0
        %3422 = vmatpush2.bf16.msra.mxu0 0
        %3423 = vmatprep.subr.bf16.mxu0 0
        %3424 = vmatpush2.bf16.msra.mxu0 0
        %3425 = vmatprep.subr.bf16.mxu0 0
        %3426 = vmatpush2.bf16.msra.mxu0 0
        %3427 = vmatprep.subr.bf16.mxu0 0
        %3428 = vmatpush2.bf16.msra.mxu0 0
        %3429 = vmatprep.subr.bf16.mxu0 0
        %3430 = vmatpush2.bf16.msra.mxu0 0
        %3431 = vmatprep.mubr.bf16.mxu0 0
        %3432 = vmatmul.mubr.bf16.gmra.mxu0 %v3397
        %v3433 = vpop.f32.mrf.mxu0
        %v3434 = vadd.f32 0.0, %v3433
        %v3435 = vpop.f32.mrf.mxu0
        %v3436 = vpop.f32.mrf.mxu0
        %v3437 = vadd.f32 0.0, %v3436
        %v3438 = vpop.f32.mrf.mxu0
        %3439 = vdwg.mxu0
        %v3440 = vpack.c.bf16 %v3437, %v3434
        %s3441 = scalar_lea.vmem %s7, 48
        %v3442 = vld [vmem:[%s3441] sm:$0xf]
        %v3443 = vld [vmem:[%s3441 + $0x4] sm:$0xf]
        %v3444 = vld [vmem:[%s3441 + $0x8] sm:$0xf]
        %v3445 = vld [vmem:[%s3441 + $0xc] sm:$0xf]
        %v3450 = vunpack.c.l.b16 %v3442
        %v3451 = vunpack.c.l.b16 %v3443
        %v3452 = vunpack.c.l.b16 %v3444
        %v3453 = vunpack.c.l.b16 %v3445
        %v3454 = vpack.c.b16 %v3451, %v3450
        %v3455 = vpack.c.b16 %v3453, %v3452
        %v3459 = vsel %vm3171, %v3440, 0
        %3461 = vmatprep.subr.bf16.mxu0 0
        %3462 = vmatpush1.bf16.msra.mxu0 0
        %3463 = vmatprep.subr.bf16.mxu0 0
        %3464 = vmatpush1.bf16.msra.mxu0 0
        %3465 = vmatprep.subr.bf16.mxu0 0
        %3466 = vmatpush1.bf16.msra.mxu0 0
        %3467 = vmatprep.subr.bf16.mxu0 0
        %3468 = vmatpush1.bf16.msra.mxu0 0
        %3469 = vmatprep.subr.bf16.mxu0 0
        %3470 = vmatpush1.bf16.msra.mxu0 0
        %3471 = vmatprep.subr.bf16.mxu0 0
        %3472 = vmatpush1.bf16.msra.mxu0 0
        %3473 = vmatprep.subr.bf16.mxu0 0
        %3474 = vmatpush1.bf16.msra.mxu0 %v3455
        %3475 = vmatprep.subr.bf16.mxu0 0
        %3476 = vmatpush1.bf16.msra.mxu0 %v3454
        %3477 = vmatprep.subr.bf16.mxu0 0
        %3478 = vmatpush2.bf16.msra.mxu0 0
        %3479 = vmatprep.subr.bf16.mxu0 0
        %3480 = vmatpush2.bf16.msra.mxu0 0
        %3481 = vmatprep.subr.bf16.mxu0 0
        %3482 = vmatpush2.bf16.msra.mxu0 0
        %3483 = vmatprep.subr.bf16.mxu0 0
        %3484 = vmatpush2.bf16.msra.mxu0 0
        %3485 = vmatprep.subr.bf16.mxu0 0
        %3486 = vmatpush2.bf16.msra.mxu0 0
        %3487 = vmatprep.subr.bf16.mxu0 0
        %3488 = vmatpush2.bf16.msra.mxu0 0
        %3489 = vmatprep.subr.bf16.mxu0 0
        %3490 = vmatpush2.bf16.msra.mxu0 0
        %3491 = vmatprep.subr.bf16.mxu0 0
        %3492 = vmatpush2.bf16.msra.mxu0 0
        %3493 = vmatprep.mubr.bf16.mxu0 0
        %3494 = vmatmul.mubr.bf16.gmra.mxu0 %v3459
        %v3495 = vpop.f32.mrf.mxu0
        %v3496 = vadd.f32 0.0, %v3495
        %v3497 = vpop.f32.mrf.mxu0
        %v3498 = vpop.f32.mrf.mxu0
        %v3499 = vadd.f32 0.0, %v3498
        %v3500 = vpop.f32.mrf.mxu0
        %3501 = vdwg.mxu0
        %v3502 = vadd.f32 %v3386, %v3496
        %v3503 = vadd.f32 %v3387, %v3499
        %s3504 = scalar_lea.vmem %s6, 32
        %v3505 = vld [vmem:[%s3504] sm:$0xf]
        %v3506 = vld [vmem:[%s3504 + $0x4] sm:$0xf]
        %v3509 = vunpack.c.l.b16 %v3505
        %v3510 = vunpack.c.l.b16 %v3506
        %v3511 = vpack.c.b16 %v3510, %v3509
        %v3513 = vsel %vm3051, %v3511, 0
        %3515 = vmatprep.subr.bf16.mxu0 0
        %3516 = vmatpush1.bf16.msra.mxu0 0
        %3517 = vmatprep.subr.bf16.mxu0 0
        %3518 = vmatpush1.bf16.msra.mxu0 0
        %3519 = vmatprep.subr.bf16.mxu0 0
        %3520 = vmatpush1.bf16.msra.mxu0 0
        %3521 = vmatprep.subr.bf16.mxu0 0
        %3522 = vmatpush1.bf16.msra.mxu0 0
        %3523 = vmatprep.subr.bf16.mxu0 0
        %3524 = vmatpush1.bf16.msra.mxu0 %v3043
        %3525 = vmatprep.subr.bf16.mxu0 0
        %3526 = vmatpush1.bf16.msra.mxu0 %v3042
        %3527 = vmatprep.subr.bf16.mxu0 0
        %3528 = vmatpush1.bf16.msra.mxu0 %v3041
        %3529 = vmatprep.subr.bf16.mxu0 0
        %3530 = vmatpush1.bf16.msra.mxu0 %v3040
        %3531 = vmatprep.subr.bf16.mxu0 0
        %3532 = vmatpush2.bf16.msra.mxu0 0
        %3533 = vmatprep.subr.bf16.mxu0 0
        %3534 = vmatpush2.bf16.msra.mxu0 0
        %3535 = vmatprep.subr.bf16.mxu0 0
        %3536 = vmatpush2.bf16.msra.mxu0 0
        %3537 = vmatprep.subr.bf16.mxu0 0
        %3538 = vmatpush2.bf16.msra.mxu0 0
        %3539 = vmatprep.subr.bf16.mxu0 0
        %3540 = vmatpush2.bf16.msra.mxu0 0
        %3541 = vmatprep.subr.bf16.mxu0 0
        %3542 = vmatpush2.bf16.msra.mxu0 0
        %3543 = vmatprep.subr.bf16.mxu0 0
        %3544 = vmatpush2.bf16.msra.mxu0 0
        %3545 = vmatprep.subr.bf16.mxu0 0
        %3546 = vmatpush2.bf16.msra.mxu0 0
        %3547 = vmatprep.mubr.bf16.mxu0 0
        %3548 = vmatmul.mubr.bf16.gmra.mxu0 %v3513
        %v3549 = vpop.f32.mrf.mxu0
        %v3550 = vadd.f32 0.0, %v3549
        %v3551 = vpop.f32.mrf.mxu0
        %v3552 = vpop.f32.mrf.mxu0
        %v3553 = vadd.f32 0.0, %v3552
        %v3554 = vpop.f32.mrf.mxu0
        %3555 = vdwg.mxu0
        %v3556 = vpack.c.bf16 %v3553, %v3550
        %s3557 = scalar_lea.vmem %s7, 64
        %v3558 = vld [vmem:[%s3557] sm:$0xf]
        %v3559 = vld [vmem:[%s3557 + $0x4] sm:$0xf]
        %v3560 = vld [vmem:[%s3557 + $0x8] sm:$0xf]
        %v3561 = vld [vmem:[%s3557 + $0xc] sm:$0xf]
        %v3566 = vunpack.c.l.b16 %v3558
        %v3567 = vunpack.c.l.b16 %v3559
        %v3568 = vunpack.c.l.b16 %v3560
        %v3569 = vunpack.c.l.b16 %v3561
        %v3570 = vpack.c.b16 %v3567, %v3566
        %v3571 = vpack.c.b16 %v3569, %v3568
        %v3575 = vsel %vm3171, %v3556, 0
        %3577 = vmatprep.subr.bf16.mxu0 0
        %3578 = vmatpush1.bf16.msra.mxu0 0
        %3579 = vmatprep.subr.bf16.mxu0 0
        %3580 = vmatpush1.bf16.msra.mxu0 0
        %3581 = vmatprep.subr.bf16.mxu0 0
        %3582 = vmatpush1.bf16.msra.mxu0 0
        %3583 = vmatprep.subr.bf16.mxu0 0
        %3584 = vmatpush1.bf16.msra.mxu0 0
        %3585 = vmatprep.subr.bf16.mxu0 0
        %3586 = vmatpush1.bf16.msra.mxu0 0
        %3587 = vmatprep.subr.bf16.mxu0 0
        %3588 = vmatpush1.bf16.msra.mxu0 0
        %3589 = vmatprep.subr.bf16.mxu0 0
        %3590 = vmatpush1.bf16.msra.mxu0 %v3571
        %3591 = vmatprep.subr.bf16.mxu0 0
        %3592 = vmatpush1.bf16.msra.mxu0 %v3570
        %3593 = vmatprep.subr.bf16.mxu0 0
        %3594 = vmatpush2.bf16.msra.mxu0 0
        %3595 = vmatprep.subr.bf16.mxu0 0
        %3596 = vmatpush2.bf16.msra.mxu0 0
        %3597 = vmatprep.subr.bf16.mxu0 0
        %3598 = vmatpush2.bf16.msra.mxu0 0
        %3599 = vmatprep.subr.bf16.mxu0 0
        %3600 = vmatpush2.bf16.msra.mxu0 0
        %3601 = vmatprep.subr.bf16.mxu0 0
        %3602 = vmatpush2.bf16.msra.mxu0 0
        %3603 = vmatprep.subr.bf16.mxu0 0
        %3604 = vmatpush2.bf16.msra.mxu0 0
        %3605 = vmatprep.subr.bf16.mxu0 0
        %3606 = vmatpush2.bf16.msra.mxu0 0
        %3607 = vmatprep.subr.bf16.mxu0 0
        %3608 = vmatpush2.bf16.msra.mxu0 0
        %3609 = vmatprep.mubr.bf16.mxu0 0
        %3610 = vmatmul.mubr.bf16.gmra.mxu0 %v3575
        %v3611 = vpop.f32.mrf.mxu0
        %v3612 = vadd.f32 0.0, %v3611
        %v3613 = vpop.f32.mrf.mxu0
        %v3614 = vpop.f32.mrf.mxu0
        %v3615 = vadd.f32 0.0, %v3614
        %v3616 = vpop.f32.mrf.mxu0
        %3617 = vdwg.mxu0
        %v3618 = vadd.f32 %v3502, %v3612
        %v3619 = vadd.f32 %v3503, %v3615
        %s3620 = scalar_lea.vmem %s6, 40
        %v3621 = vld [vmem:[%s3620] sm:$0xf]
        %v3622 = vld [vmem:[%s3620 + $0x4] sm:$0xf]
        %v3625 = vunpack.c.l.b16 %v3621
        %v3626 = vunpack.c.l.b16 %v3622
        %v3627 = vpack.c.b16 %v3626, %v3625
        %v3629 = vsel %vm3051, %v3627, 0
        %3631 = vmatprep.subr.bf16.mxu0 0
        %3632 = vmatpush1.bf16.msra.mxu0 0
        %3633 = vmatprep.subr.bf16.mxu0 0
        %3634 = vmatpush1.bf16.msra.mxu0 0
        %3635 = vmatprep.subr.bf16.mxu0 0
        %3636 = vmatpush1.bf16.msra.mxu0 0
        %3637 = vmatprep.subr.bf16.mxu0 0
        %3638 = vmatpush1.bf16.msra.mxu0 0
        %3639 = vmatprep.subr.bf16.mxu0 0
        %3640 = vmatpush1.bf16.msra.mxu0 %v3043
        %3641 = vmatprep.subr.bf16.mxu0 0
        %3642 = vmatpush1.bf16.msra.mxu0 %v3042
        %3643 = vmatprep.subr.bf16.mxu0 0
        %3644 = vmatpush1.bf16.msra.mxu0 %v3041
        %3645 = vmatprep.subr.bf16.mxu0 0
        %3646 = vmatpush1.bf16.msra.mxu0 %v3040
        %3647 = vmatprep.subr.bf16.mxu0 0
        %3648 = vmatpush2.bf16.msra.mxu0 0
        %3649 = vmatprep.subr.bf16.mxu0 0
        %3650 = vmatpush2.bf16.msra.mxu0 0
        %3651 = vmatprep.subr.bf16.mxu0 0
        %3652 = vmatpush2.bf16.msra.mxu0 0
        %3653 = vmatprep.subr.bf16.mxu0 0
        %3654 = vmatpush2.bf16.msra.mxu0 0
        %3655 = vmatprep.subr.bf16.mxu0 0
        %3656 = vmatpush2.bf16.msra.mxu0 0
        %3657 = vmatprep.subr.bf16.mxu0 0
        %3658 = vmatpush2.bf16.msra.mxu0 0
        %3659 = vmatprep.subr.bf16.mxu0 0
        %3660 = vmatpush2.bf16.msra.mxu0 0
        %3661 = vmatprep.subr.bf16.mxu0 0
        %3662 = vmatpush2.bf16.msra.mxu0 0
        %3663 = vmatprep.mubr.bf16.mxu0 0
        %3664 = vmatmul.mubr.bf16.gmra.mxu0 %v3629
        %v3665 = vpop.f32.mrf.mxu0
        %v3666 = vadd.f32 0.0, %v3665
        %v3667 = vpop.f32.mrf.mxu0
        %v3668 = vpop.f32.mrf.mxu0
        %v3669 = vadd.f32 0.0, %v3668
        %v3670 = vpop.f32.mrf.mxu0
        %3671 = vdwg.mxu0
        %v3672 = vpack.c.bf16 %v3669, %v3666
        %s3673 = scalar_lea.vmem %s7, 80
        %v3674 = vld [vmem:[%s3673] sm:$0xf]
        %v3675 = vld [vmem:[%s3673 + $0x4] sm:$0xf]
        %v3676 = vld [vmem:[%s3673 + $0x8] sm:$0xf]
        %v3677 = vld [vmem:[%s3673 + $0xc] sm:$0xf]
        %v3682 = vunpack.c.l.b16 %v3674
        %v3683 = vunpack.c.l.b16 %v3675
        %v3684 = vunpack.c.l.b16 %v3676
        %v3685 = vunpack.c.l.b16 %v3677
        %v3686 = vpack.c.b16 %v3683, %v3682
        %v3687 = vpack.c.b16 %v3685, %v3684
        %v3691 = vsel %vm3171, %v3672, 0
        %3693 = vmatprep.subr.bf16.mxu0 0
        %3694 = vmatpush1.bf16.msra.mxu0 0
        %3695 = vmatprep.subr.bf16.mxu0 0
        %3696 = vmatpush1.bf16.msra.mxu0 0
        %3697 = vmatprep.subr.bf16.mxu0 0
        %3698 = vmatpush1.bf16.msra.mxu0 0
        %3699 = vmatprep.subr.bf16.mxu0 0
        %3700 = vmatpush1.bf16.msra.mxu0 0
        %3701 = vmatprep.subr.bf16.mxu0 0
        %3702 = vmatpush1.bf16.msra.mxu0 0
        %3703 = vmatprep.subr.bf16.mxu0 0
        %3704 = vmatpush1.bf16.msra.mxu0 0
        %3705 = vmatprep.subr.bf16.mxu0 0
        %3706 = vmatpush1.bf16.msra.mxu0 %v3687
        %3707 = vmatprep.subr.bf16.mxu0 0
        %3708 = vmatpush1.bf16.msra.mxu0 %v3686
        %3709 = vmatprep.subr.bf16.mxu0 0
        %3710 = vmatpush2.bf16.msra.mxu0 0
        %3711 = vmatprep.subr.bf16.mxu0 0
        %3712 = vmatpush2.bf16.msra.mxu0 0
        %3713 = vmatprep.subr.bf16.mxu0 0
        %3714 = vmatpush2.bf16.msra.mxu0 0
        %3715 = vmatprep.subr.bf16.mxu0 0
        %3716 = vmatpush2.bf16.msra.mxu0 0
        %3717 = vmatprep.subr.bf16.mxu0 0
        %3718 = vmatpush2.bf16.msra.mxu0 0
        %3719 = vmatprep.subr.bf16.mxu0 0
        %3720 = vmatpush2.bf16.msra.mxu0 0
        %3721 = vmatprep.subr.bf16.mxu0 0
        %3722 = vmatpush2.bf16.msra.mxu0 0
        %3723 = vmatprep.subr.bf16.mxu0 0
        %3724 = vmatpush2.bf16.msra.mxu0 0
        %3725 = vmatprep.mubr.bf16.mxu0 0
        %3726 = vmatmul.mubr.bf16.gmra.mxu0 %v3691
        %v3727 = vpop.f32.mrf.mxu0
        %v3728 = vadd.f32 0.0, %v3727
        %v3729 = vpop.f32.mrf.mxu0
        %v3730 = vpop.f32.mrf.mxu0
        %v3731 = vadd.f32 0.0, %v3730
        %v3732 = vpop.f32.mrf.mxu0
        %3733 = vdwg.mxu0
        %v3734 = vadd.f32 %v3618, %v3728
        %v3735 = vadd.f32 %v3619, %v3731
        %s3736 = scalar_lea.vmem %s6, 48
        %v3737 = vld [vmem:[%s3736] sm:$0xf]
        %v3738 = vld [vmem:[%s3736 + $0x4] sm:$0xf]
        %v3741 = vunpack.c.l.b16 %v3737
        %v3742 = vunpack.c.l.b16 %v3738
        %v3743 = vpack.c.b16 %v3742, %v3741
        %v3745 = vsel %vm3051, %v3743, 0
        %3747 = vmatprep.subr.bf16.mxu0 0
        %3748 = vmatpush1.bf16.msra.mxu0 0
        %3749 = vmatprep.subr.bf16.mxu0 0
        %3750 = vmatpush1.bf16.msra.mxu0 0
        %3751 = vmatprep.subr.bf16.mxu0 0
        %3752 = vmatpush1.bf16.msra.mxu0 0
        %3753 = vmatprep.subr.bf16.mxu0 0
        %3754 = vmatpush1.bf16.msra.mxu0 0
        %3755 = vmatprep.subr.bf16.mxu0 0
        %3756 = vmatpush1.bf16.msra.mxu0 %v3043
        %3757 = vmatprep.subr.bf16.mxu0 0
        %3758 = vmatpush1.bf16.msra.mxu0 %v3042
        %3759 = vmatprep.subr.bf16.mxu0 0
        %3760 = vmatpush1.bf16.msra.mxu0 %v3041
        %3761 = vmatprep.subr.bf16.mxu0 0
        %3762 = vmatpush1.bf16.msra.mxu0 %v3040
        %3763 = vmatprep.subr.bf16.mxu0 0
        %3764 = vmatpush2.bf16.msra.mxu0 0
        %3765 = vmatprep.subr.bf16.mxu0 0
        %3766 = vmatpush2.bf16.msra.mxu0 0
        %3767 = vmatprep.subr.bf16.mxu0 0
        %3768 = vmatpush2.bf16.msra.mxu0 0
        %3769 = vmatprep.subr.bf16.mxu0 0
        %3770 = vmatpush2.bf16.msra.mxu0 0
        %3771 = vmatprep.subr.bf16.mxu0 0
        %3772 = vmatpush2.bf16.msra.mxu0 0
        %3773 = vmatprep.subr.bf16.mxu0 0
        %3774 = vmatpush2.bf16.msra.mxu0 0
        %3775 = vmatprep.subr.bf16.mxu0 0
        %3776 = vmatpush2.bf16.msra.mxu0 0
        %3777 = vmatprep.subr.bf16.mxu0 0
        %3778 = vmatpush2.bf16.msra.mxu0 0
        %3779 = vmatprep.mubr.bf16.mxu0 0
        %3780 = vmatmul.mubr.bf16.gmra.mxu0 %v3745
        %v3781 = vpop.f32.mrf.mxu0
        %v3782 = vadd.f32 0.0, %v3781
        %v3783 = vpop.f32.mrf.mxu0
        %v3784 = vpop.f32.mrf.mxu0
        %v3785 = vadd.f32 0.0, %v3784
        %v3786 = vpop.f32.mrf.mxu0
        %3787 = vdwg.mxu0
        %v3788 = vpack.c.bf16 %v3785, %v3782
        %s3789 = scalar_lea.vmem %s7, 96
        %v3790 = vld [vmem:[%s3789] sm:$0xf]
        %v3791 = vld [vmem:[%s3789 + $0x4] sm:$0xf]
        %v3792 = vld [vmem:[%s3789 + $0x8] sm:$0xf]
        %v3793 = vld [vmem:[%s3789 + $0xc] sm:$0xf]
        %v3798 = vunpack.c.l.b16 %v3790
        %v3799 = vunpack.c.l.b16 %v3791
        %v3800 = vunpack.c.l.b16 %v3792
        %v3801 = vunpack.c.l.b16 %v3793
        %v3802 = vpack.c.b16 %v3799, %v3798
        %v3803 = vpack.c.b16 %v3801, %v3800
        %v3807 = vsel %vm3171, %v3788, 0
        %3809 = vmatprep.subr.bf16.mxu0 0
        %3810 = vmatpush1.bf16.msra.mxu0 0
        %3811 = vmatprep.subr.bf16.mxu0 0
        %3812 = vmatpush1.bf16.msra.mxu0 0
        %3813 = vmatprep.subr.bf16.mxu0 0
        %3814 = vmatpush1.bf16.msra.mxu0 0
        %3815 = vmatprep.subr.bf16.mxu0 0
        %3816 = vmatpush1.bf16.msra.mxu0 0
        %3817 = vmatprep.subr.bf16.mxu0 0
        %3818 = vmatpush1.bf16.msra.mxu0 0
        %3819 = vmatprep.subr.bf16.mxu0 0
        %3820 = vmatpush1.bf16.msra.mxu0 0
        %3821 = vmatprep.subr.bf16.mxu0 0
        %3822 = vmatpush1.bf16.msra.mxu0 %v3803
        %3823 = vmatprep.subr.bf16.mxu0 0
        %3824 = vmatpush1.bf16.msra.mxu0 %v3802
        %3825 = vmatprep.subr.bf16.mxu0 0
        %3826 = vmatpush2.bf16.msra.mxu0 0
        %3827 = vmatprep.subr.bf16.mxu0 0
        %3828 = vmatpush2.bf16.msra.mxu0 0
        %3829 = vmatprep.subr.bf16.mxu0 0
        %3830 = vmatpush2.bf16.msra.mxu0 0
        %3831 = vmatprep.subr.bf16.mxu0 0
        %3832 = vmatpush2.bf16.msra.mxu0 0
        %3833 = vmatprep.subr.bf16.mxu0 0
        %3834 = vmatpush2.bf16.msra.mxu0 0
        %3835 = vmatprep.subr.bf16.mxu0 0
        %3836 = vmatpush2.bf16.msra.mxu0 0
        %3837 = vmatprep.subr.bf16.mxu0 0
        %3838 = vmatpush2.bf16.msra.mxu0 0
        %3839 = vmatprep.subr.bf16.mxu0 0
        %3840 = vmatpush2.bf16.msra.mxu0 0
        %3841 = vmatprep.mubr.bf16.mxu0 0
        %3842 = vmatmul.mubr.bf16.gmra.mxu0 %v3807
        %v3843 = vpop.f32.mrf.mxu0
        %v3844 = vadd.f32 0.0, %v3843
        %v3845 = vpop.f32.mrf.mxu0
        %v3846 = vpop.f32.mrf.mxu0
        %v3847 = vadd.f32 0.0, %v3846
        %v3848 = vpop.f32.mrf.mxu0
        %3849 = vdwg.mxu0
        %v3850 = vadd.f32 %v3734, %v3844
        %v3851 = vadd.f32 %v3735, %v3847
        %s3852 = scalar_lea.vmem %s6, 56
        %v3853 = vld [vmem:[%s3852] sm:$0xf]
        %v3854 = vld [vmem:[%s3852 + $0x4] sm:$0xf]
        %v3857 = vunpack.c.l.b16 %v3853
        %v3858 = vunpack.c.l.b16 %v3854
        %v3859 = vpack.c.b16 %v3858, %v3857
        %v3861 = vsel %vm3051, %v3859, 0
        %3863 = vmatprep.subr.bf16.mxu0 0
        %3864 = vmatpush1.bf16.msra.mxu0 0
        %3865 = vmatprep.subr.bf16.mxu0 0
        %3866 = vmatpush1.bf16.msra.mxu0 0
        %3867 = vmatprep.subr.bf16.mxu0 0
        %3868 = vmatpush1.bf16.msra.mxu0 0
        %3869 = vmatprep.subr.bf16.mxu0 0
        %3870 = vmatpush1.bf16.msra.mxu0 0
        %3871 = vmatprep.subr.bf16.mxu0 0
        %3872 = vmatpush1.bf16.msra.mxu0 %v3043
        %3873 = vmatprep.subr.bf16.mxu0 0
        %3874 = vmatpush1.bf16.msra.mxu0 %v3042
        %3875 = vmatprep.subr.bf16.mxu0 0
        %3876 = vmatpush1.bf16.msra.mxu0 %v3041
        %3877 = vmatprep.subr.bf16.mxu0 0
        %3878 = vmatpush1.bf16.msra.mxu0 %v3040
        %3879 = vmatprep.subr.bf16.mxu0 0
        %3880 = vmatpush2.bf16.msra.mxu0 0
        %3881 = vmatprep.subr.bf16.mxu0 0
        %3882 = vmatpush2.bf16.msra.mxu0 0
        %3883 = vmatprep.subr.bf16.mxu0 0
        %3884 = vmatpush2.bf16.msra.mxu0 0
        %3885 = vmatprep.subr.bf16.mxu0 0
        %3886 = vmatpush2.bf16.msra.mxu0 0
        %3887 = vmatprep.subr.bf16.mxu0 0
        %3888 = vmatpush2.bf16.msra.mxu0 0
        %3889 = vmatprep.subr.bf16.mxu0 0
        %3890 = vmatpush2.bf16.msra.mxu0 0
        %3891 = vmatprep.subr.bf16.mxu0 0
        %3892 = vmatpush2.bf16.msra.mxu0 0
        %3893 = vmatprep.subr.bf16.mxu0 0
        %3894 = vmatpush2.bf16.msra.mxu0 0
        %3895 = vmatprep.mubr.bf16.mxu0 0
        %3896 = vmatmul.mubr.bf16.gmra.mxu0 %v3861
        %v3897 = vpop.f32.mrf.mxu0
        %v3898 = vadd.f32 0.0, %v3897
        %v3899 = vpop.f32.mrf.mxu0
        %v3900 = vpop.f32.mrf.mxu0
        %v3901 = vadd.f32 0.0, %v3900
        %v3902 = vpop.f32.mrf.mxu0
        %3903 = vdwg.mxu0
        %v3904 = vpack.c.bf16 %v3901, %v3898
        %s3905 = scalar_lea.vmem %s7, 112
        %v3906 = vld [vmem:[%s3905] sm:$0xf]
        %v3907 = vld [vmem:[%s3905 + $0x4] sm:$0xf]
        %v3908 = vld [vmem:[%s3905 + $0x8] sm:$0xf]
        %v3909 = vld [vmem:[%s3905 + $0xc] sm:$0xf]
        %v3914 = vunpack.c.l.b16 %v3906
        %v3915 = vunpack.c.l.b16 %v3907
        %v3916 = vunpack.c.l.b16 %v3908
        %v3917 = vunpack.c.l.b16 %v3909
        %v3918 = vpack.c.b16 %v3915, %v3914
        %v3919 = vpack.c.b16 %v3917, %v3916
        %v3923 = vsel %vm3171, %v3904, 0
        %3925 = vmatprep.subr.bf16.mxu0 0
        %3926 = vmatpush1.bf16.msra.mxu0 0
        %3927 = vmatprep.subr.bf16.mxu0 0
        %3928 = vmatpush1.bf16.msra.mxu0 0
        %3929 = vmatprep.subr.bf16.mxu0 0
        %3930 = vmatpush1.bf16.msra.mxu0 0
        %3931 = vmatprep.subr.bf16.mxu0 0
        %3932 = vmatpush1.bf16.msra.mxu0 0
        %3933 = vmatprep.subr.bf16.mxu0 0
        %3934 = vmatpush1.bf16.msra.mxu0 0
        %3935 = vmatprep.subr.bf16.mxu0 0
        %3936 = vmatpush1.bf16.msra.mxu0 0
        %3937 = vmatprep.subr.bf16.mxu0 0
        %3938 = vmatpush1.bf16.msra.mxu0 %v3919
        %3939 = vmatprep.subr.bf16.mxu0 0
        %3940 = vmatpush1.bf16.msra.mxu0 %v3918
        %3941 = vmatprep.subr.bf16.mxu0 0
        %3942 = vmatpush2.bf16.msra.mxu0 0
        %3943 = vmatprep.subr.bf16.mxu0 0
        %3944 = vmatpush2.bf16.msra.mxu0 0
        %3945 = vmatprep.subr.bf16.mxu0 0
        %3946 = vmatpush2.bf16.msra.mxu0 0
        %3947 = vmatprep.subr.bf16.mxu0 0
        %3948 = vmatpush2.bf16.msra.mxu0 0
        %3949 = vmatprep.subr.bf16.mxu0 0
        %3950 = vmatpush2.bf16.msra.mxu0 0
        %3951 = vmatprep.subr.bf16.mxu0 0
        %3952 = vmatpush2.bf16.msra.mxu0 0
        %3953 = vmatprep.subr.bf16.mxu0 0
        %3954 = vmatpush2.bf16.msra.mxu0 0
        %3955 = vmatprep.subr.bf16.mxu0 0
        %3956 = vmatpush2.bf16.msra.mxu0 0
        %3957 = vmatprep.mubr.bf16.mxu0 0
        %3958 = vmatmul.mubr.bf16.gmra.mxu0 %v3923
        %v3959 = vpop.f32.mrf.mxu0
        %v3960 = vadd.f32 0.0, %v3959
        %v3961 = vpop.f32.mrf.mxu0
        %v3962 = vpop.f32.mrf.mxu0
        %v3963 = vadd.f32 0.0, %v3962
        %v3964 = vpop.f32.mrf.mxu0
        %3965 = vdwg.mxu0
        %v3966 = vadd.f32 %v3850, %v3960
        %v3967 = vadd.f32 %v3851, %v3963
        %s3968 = scalar_lea.vmem %s6, 64
        %v3969 = vld [vmem:[%s3968] sm:$0xf]
        %v3970 = vld [vmem:[%s3968 + $0x4] sm:$0xf]
        %v3973 = vunpack.c.l.b16 %v3969
        %v3974 = vunpack.c.l.b16 %v3970
        %v3975 = vpack.c.b16 %v3974, %v3973
        %v3977 = vsel %vm3051, %v3975, 0
        %3979 = vmatprep.subr.bf16.mxu0 0
        %3980 = vmatpush1.bf16.msra.mxu0 0
        %3981 = vmatprep.subr.bf16.mxu0 0
        %3982 = vmatpush1.bf16.msra.mxu0 0
        %3983 = vmatprep.subr.bf16.mxu0 0
        %3984 = vmatpush1.bf16.msra.mxu0 0
        %3985 = vmatprep.subr.bf16.mxu0 0
        %3986 = vmatpush1.bf16.msra.mxu0 0
        %3987 = vmatprep.subr.bf16.mxu0 0
        %3988 = vmatpush1.bf16.msra.mxu0 %v3043
        %3989 = vmatprep.subr.bf16.mxu0 0
        %3990 = vmatpush1.bf16.msra.mxu0 %v3042
        %3991 = vmatprep.subr.bf16.mxu0 0
        %3992 = vmatpush1.bf16.msra.mxu0 %v3041
        %3993 = vmatprep.subr.bf16.mxu0 0
        %3994 = vmatpush1.bf16.msra.mxu0 %v3040
        %3995 = vmatprep.subr.bf16.mxu0 0
        %3996 = vmatpush2.bf16.msra.mxu0 0
        %3997 = vmatprep.subr.bf16.mxu0 0
        %3998 = vmatpush2.bf16.msra.mxu0 0
        %3999 = vmatprep.subr.bf16.mxu0 0
        %4000 = vmatpush2.bf16.msra.mxu0 0
        %4001 = vmatprep.subr.bf16.mxu0 0
        %4002 = vmatpush2.bf16.msra.mxu0 0
        %4003 = vmatprep.subr.bf16.mxu0 0
        %4004 = vmatpush2.bf16.msra.mxu0 0
        %4005 = vmatprep.subr.bf16.mxu0 0
        %4006 = vmatpush2.bf16.msra.mxu0 0
        %4007 = vmatprep.subr.bf16.mxu0 0
        %4008 = vmatpush2.bf16.msra.mxu0 0
        %4009 = vmatprep.subr.bf16.mxu0 0
        %4010 = vmatpush2.bf16.msra.mxu0 0
        %4011 = vmatprep.mubr.bf16.mxu0 0
        %4012 = vmatmul.mubr.bf16.gmra.mxu0 %v3977
        %v4013 = vpop.f32.mrf.mxu0
        %v4014 = vadd.f32 0.0, %v4013
        %v4015 = vpop.f32.mrf.mxu0
        %v4016 = vpop.f32.mrf.mxu0
        %v4017 = vadd.f32 0.0, %v4016
        %v4018 = vpop.f32.mrf.mxu0
        %4019 = vdwg.mxu0
        %v4020 = vpack.c.bf16 %v4017, %v4014
        %s4021 = scalar_lea.vmem %s7, 128
        %v4022 = vld [vmem:[%s4021] sm:$0xf]
        %v4023 = vld [vmem:[%s4021 + $0x4] sm:$0xf]
        %v4024 = vld [vmem:[%s4021 + $0x8] sm:$0xf]
        %v4025 = vld [vmem:[%s4021 + $0xc] sm:$0xf]
        %v4030 = vunpack.c.l.b16 %v4022
        %v4031 = vunpack.c.l.b16 %v4023
        %v4032 = vunpack.c.l.b16 %v4024
        %v4033 = vunpack.c.l.b16 %v4025
        %v4034 = vpack.c.b16 %v4031, %v4030
        %v4035 = vpack.c.b16 %v4033, %v4032
        %v4039 = vsel %vm3171, %v4020, 0
        %4041 = vmatprep.subr.bf16.mxu0 0
        %4042 = vmatpush1.bf16.msra.mxu0 0
        %4043 = vmatprep.subr.bf16.mxu0 0
        %4044 = vmatpush1.bf16.msra.mxu0 0
        %4045 = vmatprep.subr.bf16.mxu0 0
        %4046 = vmatpush1.bf16.msra.mxu0 0
        %4047 = vmatprep.subr.bf16.mxu0 0
        %4048 = vmatpush1.bf16.msra.mxu0 0
        %4049 = vmatprep.subr.bf16.mxu0 0
        %4050 = vmatpush1.bf16.msra.mxu0 0
        %4051 = vmatprep.subr.bf16.mxu0 0
        %4052 = vmatpush1.bf16.msra.mxu0 0
        %4053 = vmatprep.subr.bf16.mxu0 0
        %4054 = vmatpush1.bf16.msra.mxu0 %v4035
        %4055 = vmatprep.subr.bf16.mxu0 0
        %4056 = vmatpush1.bf16.msra.mxu0 %v4034
        %4057 = vmatprep.subr.bf16.mxu0 0
        %4058 = vmatpush2.bf16.msra.mxu0 0
        %4059 = vmatprep.subr.bf16.mxu0 0
        %4060 = vmatpush2.bf16.msra.mxu0 0
        %4061 = vmatprep.subr.bf16.mxu0 0
        %4062 = vmatpush2.bf16.msra.mxu0 0
        %4063 = vmatprep.subr.bf16.mxu0 0
        %4064 = vmatpush2.bf16.msra.mxu0 0
        %4065 = vmatprep.subr.bf16.mxu0 0
        %4066 = vmatpush2.bf16.msra.mxu0 0
        %4067 = vmatprep.subr.bf16.mxu0 0
        %4068 = vmatpush2.bf16.msra.mxu0 0
        %4069 = vmatprep.subr.bf16.mxu0 0
        %4070 = vmatpush2.bf16.msra.mxu0 0
        %4071 = vmatprep.subr.bf16.mxu0 0
        %4072 = vmatpush2.bf16.msra.mxu0 0
        %4073 = vmatprep.mubr.bf16.mxu0 0
        %4074 = vmatmul.mubr.bf16.gmra.mxu0 %v4039
        %v4075 = vpop.f32.mrf.mxu0
        %v4076 = vadd.f32 0.0, %v4075
        %v4077 = vpop.f32.mrf.mxu0
        %v4078 = vpop.f32.mrf.mxu0
        %v4079 = vadd.f32 0.0, %v4078
        %v4080 = vpop.f32.mrf.mxu0
        %4081 = vdwg.mxu0
        %v4082 = vadd.f32 %v3966, %v4076
        %v4083 = vadd.f32 %v3967, %v4079
        %v4084 = vld [vmem:[%s8] sm:$0x1]
        %v4086 = vlaneseq
        %v4087 = vshrl.u32 %v4086, 7
        %v4088 = vsub.s32 0, %v4087
        %v4089 = vrot.slane %v4084, %v4088
        %v4091 = vadd.f32 %v4082, %v4089
        %v4092 = vadd.f32 %v4083, %v4089
        %v4093 = vmax.f32 %v4091, 0.0
        %v4094 = vmax.f32 %v4092, 0.0
        %v4095 = vpack.c.bf16 %v4094, %v4093
        %v4096 = vld [vmem:[%s9] sm:$0x3]
        %v4098 = vsel %vm1372, %v4096, 0
        %4100 = vmatprep.subr.bf16.mxu0 0
        %4101 = vmatpush1.bf16.msra.mxu0 0
        %4102 = vmatprep.subr.bf16.mxu0 0
        %4103 = vmatpush1.bf16.msra.mxu0 0
        %4104 = vmatprep.subr.bf16.mxu0 0
        %4105 = vmatpush1.bf16.msra.mxu0 0
        %4106 = vmatprep.subr.bf16.mxu0 0
        %4107 = vmatpush1.bf16.msra.mxu0 0
        %4108 = vmatprep.subr.bf16.mxu0 0
        %4109 = vmatpush1.bf16.msra.mxu0 0
        %4110 = vmatprep.subr.bf16.mxu0 0
        %4111 = vmatpush1.bf16.msra.mxu0 0
        %4112 = vmatprep.subr.bf16.mxu0 0
        %4113 = vmatpush1.bf16.msra.mxu0 0
        %4114 = vmatprep.subr.bf16.mxu0 0
        %4115 = vmatpush1.bf16.msra.mxu0 %v4095
        %4116 = vmatprep.subr.bf16.mxu0 0
        %4117 = vmatpush2.bf16.msra.mxu0 0
        %4118 = vmatprep.subr.bf16.mxu0 0
        %4119 = vmatpush2.bf16.msra.mxu0 0
        %4120 = vmatprep.subr.bf16.mxu0 0
        %4121 = vmatpush2.bf16.msra.mxu0 0
        %4122 = vmatprep.subr.bf16.mxu0 0
        %4123 = vmatpush2.bf16.msra.mxu0 0
        %4124 = vmatprep.subr.bf16.mxu0 0
        %4125 = vmatpush2.bf16.msra.mxu0 0
        %4126 = vmatprep.subr.bf16.mxu0 0
        %4127 = vmatpush2.bf16.msra.mxu0 0
        %4128 = vmatprep.subr.bf16.mxu0 0
        %4129 = vmatpush2.bf16.msra.mxu0 0
        %4130 = vmatprep.subr.bf16.mxu0 0
        %4131 = vmatpush2.bf16.msra.mxu0 0
        %4132 = vmatprep.mubr.bf16.mxu0 0
        %4133 = vmatmul.mubr.bf16.gmra.mxu0 %v4098
        %v4134 = vpop.f32.mrf.mxu0
        %v4135 = vadd.f32 0.0, %v4134
        %v4136 = vpop.f32.mrf.mxu0
        %v4137 = vpop.f32.mrf.mxu0
        %v4138 = vpop.f32.mrf.mxu0
        %4139 = vdwg.mxu0
        %v4140 = vpack.c.bf16 %v4135, %v4135
        %v4141 = vld [vmem:[%s10] sm:$0xf]
        %v4142 = vld [vmem:[%s10 + $0x4] sm:$0xf]
        %v4143 = vld [vmem:[%s10 + $0x8] sm:$0xf]
        %v4144 = vld [vmem:[%s10 + $0xc] sm:$0xf]
        %v4145 = vld [vmem:[%s10 + $0x10] sm:$0xf]
        %v4146 = vld [vmem:[%s10 + $0x14] sm:$0xf]
        %v4147 = vld [vmem:[%s10 + $0x18] sm:$0xf]
        %v4148 = vld [vmem:[%s10 + $0x1c] sm:$0xf]
        %s4149 = scalar_lea.vmem %s9, 2
        %v4150 = vld [vmem:[%s4149] sm:$0x3]
        %v4152 = vsel %vm1372, %v4150, 0
        %4154 = vmatprep.subr.bf16.mxu0 0
        %4155 = vmatpush1.bf16.msra.mxu0 0
        %4156 = vmatprep.subr.bf16.mxu0 0
        %4157 = vmatpush1.bf16.msra.mxu0 0
        %4158 = vmatprep.subr.bf16.mxu0 0
        %4159 = vmatpush1.bf16.msra.mxu0 0
        %4160 = vmatprep.subr.bf16.mxu0 0
        %4161 = vmatpush1.bf16.msra.mxu0 0
        %4162 = vmatprep.subr.bf16.mxu0 0
        %4163 = vmatpush1.bf16.msra.mxu0 0
        %4164 = vmatprep.subr.bf16.mxu0 0
        %4165 = vmatpush1.bf16.msra.mxu0 0
        %4166 = vmatprep.subr.bf16.mxu0 0
        %4167 = vmatpush1.bf16.msra.mxu0 0
        %4168 = vmatprep.subr.bf16.mxu0 0
        %4169 = vmatpush1.bf16.msra.mxu0 %v4095
        %4170 = vmatprep.subr.bf16.mxu0 0
        %4171 = vmatpush2.bf16.msra.mxu0 0
        %4172 = vmatprep.subr.bf16.mxu0 0
        %4173 = vmatpush2.bf16.msra.mxu0 0
        %4174 = vmatprep.subr.bf16.mxu0 0
        %4175 = vmatpush2.bf16.msra.mxu0 0
        %4176 = vmatprep.subr.bf16.mxu0 0
        %4177 = vmatpush2.bf16.msra.mxu0 0
        %4178 = vmatprep.subr.bf16.mxu0 0
        %4179 = vmatpush2.bf16.msra.mxu0 0
        %4180 = vmatprep.subr.bf16.mxu0 0
        %4181 = vmatpush2.bf16.msra.mxu0 0
        %4182 = vmatprep.subr.bf16.mxu0 0
        %4183 = vmatpush2.bf16.msra.mxu0 0
        %4184 = vmatprep.subr.bf16.mxu0 0
        %4185 = vmatpush2.bf16.msra.mxu0 0
        %4186 = vmatprep.mubr.bf16.mxu0 0
        %4187 = vmatmul.mubr.bf16.gmra.mxu0 %v4152
        %v4188 = vpop.f32.mrf.mxu0
        %v4189 = vadd.f32 0.0, %v4188
        %v4190 = vpop.f32.mrf.mxu0
        %v4191 = vpop.f32.mrf.mxu0
        %v4192 = vpop.f32.mrf.mxu0
        %4193 = vdwg.mxu0
        %v4194 = vpack.c.bf16 %v4189, %v4189
        %s4195 = scalar_lea.vmem %s10, 32
        %v4196 = vld [vmem:[%s4195] sm:$0xf]
        %v4197 = vld [vmem:[%s4195 + $0x4] sm:$0xf]
        %v4198 = vld [vmem:[%s4195 + $0x8] sm:$0xf]
        %v4199 = vld [vmem:[%s4195 + $0xc] sm:$0xf]
        %v4200 = vld [vmem:[%s4195 + $0x10] sm:$0xf]
        %v4201 = vld [vmem:[%s4195 + $0x14] sm:$0xf]
        %v4202 = vld [vmem:[%s4195 + $0x18] sm:$0xf]
        %v4203 = vld [vmem:[%s4195 + $0x1c] sm:$0xf]
        %v4212 = vunpack.c.l.b16 %v4196
        %v4213 = vunpack.c.l.b16 %v4197
        %v4214 = vunpack.c.l.b16 %v4198
        %v4215 = vunpack.c.l.b16 %v4199
        %v4216 = vunpack.c.l.b16 %v4200
        %v4217 = vunpack.c.l.b16 %v4201
        %v4218 = vunpack.c.l.b16 %v4202
        %v4219 = vunpack.c.l.b16 %v4203
        %v4220 = vpack.c.b16 %v4213, %v4212
        %v4221 = vpack.c.b16 %v4215, %v4214
        %v4222 = vpack.c.b16 %v4217, %v4216
        %v4223 = vpack.c.b16 %v4219, %v4218
        %v4229 = vsel %vm3051, %v4194, 0
        %4231 = vmatprep.subr.bf16.mxu0 0
        %4232 = vmatpush1.bf16.msra.mxu0 0
        %4233 = vmatprep.subr.bf16.mxu0 0
        %4234 = vmatpush1.bf16.msra.mxu0 0
        %4235 = vmatprep.subr.bf16.mxu0 0
        %4236 = vmatpush1.bf16.msra.mxu0 0
        %4237 = vmatprep.subr.bf16.mxu0 0
        %4238 = vmatpush1.bf16.msra.mxu0 0
        %4239 = vmatprep.subr.bf16.mxu0 0
        %4240 = vmatpush1.bf16.msra.mxu0 %v4223
        %4241 = vmatprep.subr.bf16.mxu0 0
        %4242 = vmatpush1.bf16.msra.mxu0 %v4222
        %4243 = vmatprep.subr.bf16.mxu0 0
        %4244 = vmatpush1.bf16.msra.mxu0 %v4221
        %4245 = vmatprep.subr.bf16.mxu0 0
        %4246 = vmatpush1.bf16.msra.mxu0 %v4220
        %4247 = vmatprep.subr.bf16.mxu0 0
        %4248 = vmatpush2.bf16.msra.mxu0 0
        %4249 = vmatprep.subr.bf16.mxu0 0
        %4250 = vmatpush2.bf16.msra.mxu0 0
        %4251 = vmatprep.subr.bf16.mxu0 0
        %4252 = vmatpush2.bf16.msra.mxu0 0
        %4253 = vmatprep.subr.bf16.mxu0 0
        %4254 = vmatpush2.bf16.msra.mxu0 0
        %4255 = vmatprep.subr.bf16.mxu0 0
        %4256 = vmatpush2.bf16.msra.mxu0 0
        %4257 = vmatprep.subr.bf16.mxu0 0
        %4258 = vmatpush2.bf16.msra.mxu0 0
        %4259 = vmatprep.subr.bf16.mxu0 0
        %4260 = vmatpush2.bf16.msra.mxu0 0
        %4261 = vmatprep.subr.bf16.mxu0 0
        %4262 = vmatpush2.bf16.msra.mxu0 0
        %4263 = vmatprep.mubr.bf16.mxu0 0
        %4264 = vmatmul.mubr.bf16.gmra.mxu0 %v4229
        %v4265 = vpop.f32.mrf.mxu0
        %v4266 = vadd.f32 0.0, %v4265
        %v4267 = vpop.f32.mrf.mxu0
        %v4268 = vpop.f32.mrf.mxu0
        %v4269 = vpop.f32.mrf.mxu0
        %4270 = vdwg.mxu0
        %v4279 = vunpack.c.l.b16 %v4141
        %v4280 = vunpack.c.l.b16 %v4142
        %v4281 = vunpack.c.l.b16 %v4143
        %v4282 = vunpack.c.l.b16 %v4144
        %v4283 = vunpack.c.l.b16 %v4145
        %v4284 = vunpack.c.l.b16 %v4146
        %v4285 = vunpack.c.l.b16 %v4147
        %v4286 = vunpack.c.l.b16 %v4148
        %v4287 = vpack.c.b16 %v4280, %v4279
        %v4288 = vpack.c.b16 %v4282, %v4281
        %v4289 = vpack.c.b16 %v4284, %v4283
        %v4290 = vpack.c.b16 %v4286, %v4285
        %v4296 = vsel %vm3051, %v4140, 0
        %4298 = vmatprep.subr.bf16.mxu0 0
        %4299 = vmatpush1.bf16.msra.mxu0 0
        %4300 = vmatprep.subr.bf16.mxu0 0
        %4301 = vmatpush1.bf16.msra.mxu0 0
        %4302 = vmatprep.subr.bf16.mxu0 0
        %4303 = vmatpush1.bf16.msra.mxu0 0
        %4304 = vmatprep.subr.bf16.mxu0 0
        %4305 = vmatpush1.bf16.msra.mxu0 0
        %4306 = vmatprep.subr.bf16.mxu0 0
        %4307 = vmatpush1.bf16.msra.mxu0 %v4290
        %4308 = vmatprep.subr.bf16.mxu0 0
        %4309 = vmatpush1.bf16.msra.mxu0 %v4289
        %4310 = vmatprep.subr.bf16.mxu0 0
        %4311 = vmatpush1.bf16.msra.mxu0 %v4288
        %4312 = vmatprep.subr.bf16.mxu0 0
        %4313 = vmatpush1.bf16.msra.mxu0 %v4287
        %4314 = vmatprep.subr.bf16.mxu0 0
        %4315 = vmatpush2.bf16.msra.mxu0 0
        %4316 = vmatprep.subr.bf16.mxu0 0
        %4317 = vmatpush2.bf16.msra.mxu0 0
        %4318 = vmatprep.subr.bf16.mxu0 0
        %4319 = vmatpush2.bf16.msra.mxu0 0
        %4320 = vmatprep.subr.bf16.mxu0 0
        %4321 = vmatpush2.bf16.msra.mxu0 0
        %4322 = vmatprep.subr.bf16.mxu0 0
        %4323 = vmatpush2.bf16.msra.mxu0 0
        %4324 = vmatprep.subr.bf16.mxu0 0
        %4325 = vmatpush2.bf16.msra.mxu0 0
        %4326 = vmatprep.subr.bf16.mxu0 0
        %4327 = vmatpush2.bf16.msra.mxu0 0
        %4328 = vmatprep.subr.bf16.mxu0 0
        %4329 = vmatpush2.bf16.msra.mxu0 0
        %4330 = vmatprep.mubr.bf16.mxu0 0
        %4331 = vmatmul.mubr.bf16.gmra.mxu0 %v4296
        %v4332 = vpop.f32.mrf.mxu0
        %v4333 = vadd.f32 %v4266, %v4332
        %v4334 = vpop.f32.mrf.mxu0
        %v4335 = vpop.f32.mrf.mxu0
        %v4336 = vpop.f32.mrf.mxu0
        %4337 = vdwg.mxu0
        %s4338 = scalar_lea.vmem %s9, 4
        %v4339 = vld [vmem:[%s4338] sm:$0x3]
        %v4341 = vsel %vm1372, %v4339, 0
        %4343 = vmatprep.subr.bf16.mxu0 0
        %4344 = vmatpush1.bf16.msra.mxu0 0
        %4345 = vmatprep.subr.bf16.mxu0 0
        %4346 = vmatpush1.bf16.msra.mxu0 0
        %4347 = vmatprep.subr.bf16.mxu0 0
        %4348 = vmatpush1.bf16.msra.mxu0 0
        %4349 = vmatprep.subr.bf16.mxu0 0
        %4350 = vmatpush1.bf16.msra.mxu0 0
        %4351 = vmatprep.subr.bf16.mxu0 0
        %4352 = vmatpush1.bf16.msra.mxu0 0
        %4353 = vmatprep.subr.bf16.mxu0 0
        %4354 = vmatpush1.bf16.msra.mxu0 0
        %4355 = vmatprep.subr.bf16.mxu0 0
        %4356 = vmatpush1.bf16.msra.mxu0 0
        %4357 = vmatprep.subr.bf16.mxu0 0
        %4358 = vmatpush1.bf16.msra.mxu0 %v4095
        %4359 = vmatprep.subr.bf16.mxu0 0
        %4360 = vmatpush2.bf16.msra.mxu0 0
        %4361 = vmatprep.subr.bf16.mxu0 0
        %4362 = vmatpush2.bf16.msra.mxu0 0
        %4363 = vmatprep.subr.bf16.mxu0 0
        %4364 = vmatpush2.bf16.msra.mxu0 0
        %4365 = vmatprep.subr.bf16.mxu0 0
        %4366 = vmatpush2.bf16.msra.mxu0 0
        %4367 = vmatprep.subr.bf16.mxu0 0
        %4368 = vmatpush2.bf16.msra.mxu0 0
        %4369 = vmatprep.subr.bf16.mxu0 0
        %4370 = vmatpush2.bf16.msra.mxu0 0
        %4371 = vmatprep.subr.bf16.mxu0 0
        %4372 = vmatpush2.bf16.msra.mxu0 0
        %4373 = vmatprep.subr.bf16.mxu0 0
        %4374 = vmatpush2.bf16.msra.mxu0 0
        %4375 = vmatprep.mubr.bf16.mxu0 0
        %4376 = vmatmul.mubr.bf16.gmra.mxu0 %v4341
        %v4377 = vpop.f32.mrf.mxu0
        %v4378 = vadd.f32 0.0, %v4377
        %v4379 = vpop.f32.mrf.mxu0
        %v4380 = vpop.f32.mrf.mxu0
        %v4381 = vpop.f32.mrf.mxu0
        %4382 = vdwg.mxu0
        %v4383 = vpack.c.bf16 %v4378, %v4378
        %s4384 = scalar_lea.vmem %s10, 64
        %v4385 = vld [vmem:[%s4384] sm:$0xf]
        %v4386 = vld [vmem:[%s4384 + $0x4] sm:$0xf]
        %v4387 = vld [vmem:[%s4384 + $0x8] sm:$0xf]
        %v4388 = vld [vmem:[%s4384 + $0xc] sm:$0xf]
        %v4389 = vld [vmem:[%s4384 + $0x10] sm:$0xf]
        %v4390 = vld [vmem:[%s4384 + $0x14] sm:$0xf]
        %v4391 = vld [vmem:[%s4384 + $0x18] sm:$0xf]
        %v4392 = vld [vmem:[%s4384 + $0x1c] sm:$0xf]
        %v4401 = vunpack.c.l.b16 %v4385
        %v4402 = vunpack.c.l.b16 %v4386
        %v4403 = vunpack.c.l.b16 %v4387
        %v4404 = vunpack.c.l.b16 %v4388
        %v4405 = vunpack.c.l.b16 %v4389
        %v4406 = vunpack.c.l.b16 %v4390
        %v4407 = vunpack.c.l.b16 %v4391
        %v4408 = vunpack.c.l.b16 %v4392
        %v4409 = vpack.c.b16 %v4402, %v4401
        %v4410 = vpack.c.b16 %v4404, %v4403
        %v4411 = vpack.c.b16 %v4406, %v4405
        %v4412 = vpack.c.b16 %v4408, %v4407
        %v4418 = vsel %vm3051, %v4383, 0
        %4420 = vmatprep.subr.bf16.mxu0 0
        %4421 = vmatpush1.bf16.msra.mxu0 0
        %4422 = vmatprep.subr.bf16.mxu0 0
        %4423 = vmatpush1.bf16.msra.mxu0 0
        %4424 = vmatprep.subr.bf16.mxu0 0
        %4425 = vmatpush1.bf16.msra.mxu0 0
        %4426 = vmatprep.subr.bf16.mxu0 0
        %4427 = vmatpush1.bf16.msra.mxu0 0
        %4428 = vmatprep.subr.bf16.mxu0 0
        %4429 = vmatpush1.bf16.msra.mxu0 %v4412
        %4430 = vmatprep.subr.bf16.mxu0 0
        %4431 = vmatpush1.bf16.msra.mxu0 %v4411
        %4432 = vmatprep.subr.bf16.mxu0 0
        %4433 = vmatpush1.bf16.msra.mxu0 %v4410
        %4434 = vmatprep.subr.bf16.mxu0 0
        %4435 = vmatpush1.bf16.msra.mxu0 %v4409
        %4436 = vmatprep.subr.bf16.mxu0 0
        %4437 = vmatpush2.bf16.msra.mxu0 0
        %4438 = vmatprep.subr.bf16.mxu0 0
        %4439 = vmatpush2.bf16.msra.mxu0 0
        %4440 = vmatprep.subr.bf16.mxu0 0
        %4441 = vmatpush2.bf16.msra.mxu0 0
        %4442 = vmatprep.subr.bf16.mxu0 0
        %4443 = vmatpush2.bf16.msra.mxu0 0
        %4444 = vmatprep.subr.bf16.mxu0 0
        %4445 = vmatpush2.bf16.msra.mxu0 0
        %4446 = vmatprep.subr.bf16.mxu0 0
        %4447 = vmatpush2.bf16.msra.mxu0 0
        %4448 = vmatprep.subr.bf16.mxu0 0
        %4449 = vmatpush2.bf16.msra.mxu0 0
        %4450 = vmatprep.subr.bf16.mxu0 0
        %4451 = vmatpush2.bf16.msra.mxu0 0
        %4452 = vmatprep.mubr.bf16.mxu0 0
        %4453 = vmatmul.mubr.bf16.gmra.mxu0 %v4418
        %v4454 = vpop.f32.mrf.mxu0
        %v4455 = vadd.f32 0.0, %v4454
        %v4456 = vpop.f32.mrf.mxu0
        %v4457 = vpop.f32.mrf.mxu0
        %v4458 = vpop.f32.mrf.mxu0
        %4459 = vdwg.mxu0
        %v4460 = vadd.f32 %v4333, %v4455
        %s4461 = scalar_lea.vmem %s9, 6
        %v4462 = vld [vmem:[%s4461] sm:$0x3]
        %v4464 = vsel %vm1372, %v4462, 0
        %4466 = vmatprep.subr.bf16.mxu0 0
        %4467 = vmatpush1.bf16.msra.mxu0 0
        %4468 = vmatprep.subr.bf16.mxu0 0
        %4469 = vmatpush1.bf16.msra.mxu0 0
        %4470 = vmatprep.subr.bf16.mxu0 0
        %4471 = vmatpush1.bf16.msra.mxu0 0
        %4472 = vmatprep.subr.bf16.mxu0 0
        %4473 = vmatpush1.bf16.msra.mxu0 0
        %4474 = vmatprep.subr.bf16.mxu0 0
        %4475 = vmatpush1.bf16.msra.mxu0 0
        %4476 = vmatprep.subr.bf16.mxu0 0
        %4477 = vmatpush1.bf16.msra.mxu0 0
        %4478 = vmatprep.subr.bf16.mxu0 0
        %4479 = vmatpush1.bf16.msra.mxu0 0
        %4480 = vmatprep.subr.bf16.mxu0 0
        %4481 = vmatpush1.bf16.msra.mxu0 %v4095
        %4482 = vmatprep.subr.bf16.mxu0 0
        %4483 = vmatpush2.bf16.msra.mxu0 0
        %4484 = vmatprep.subr.bf16.mxu0 0
        %4485 = vmatpush2.bf16.msra.mxu0 0
        %4486 = vmatprep.subr.bf16.mxu0 0
        %4487 = vmatpush2.bf16.msra.mxu0 0
        %4488 = vmatprep.subr.bf16.mxu0 0
        %4489 = vmatpush2.bf16.msra.mxu0 0
        %4490 = vmatprep.subr.bf16.mxu0 0
        %4491 = vmatpush2.bf16.msra.mxu0 0
        %4492 = vmatprep.subr.bf16.mxu0 0
        %4493 = vmatpush2.bf16.msra.mxu0 0
        %4494 = vmatprep.subr.bf16.mxu0 0
        %4495 = vmatpush2.bf16.msra.mxu0 0
        %4496 = vmatprep.subr.bf16.mxu0 0
        %4497 = vmatpush2.bf16.msra.mxu0 0
        %4498 = vmatprep.mubr.bf16.mxu0 0
        %4499 = vmatmul.mubr.bf16.gmra.mxu0 %v4464
        %v4500 = vpop.f32.mrf.mxu0
        %v4501 = vadd.f32 0.0, %v4500
        %v4502 = vpop.f32.mrf.mxu0
        %v4503 = vpop.f32.mrf.mxu0
        %v4504 = vpop.f32.mrf.mxu0
        %4505 = vdwg.mxu0
        %v4506 = vpack.c.bf16 %v4501, %v4501
        %s4507 = scalar_lea.vmem %s10, 96
        %v4508 = vld [vmem:[%s4507] sm:$0xf]
        %v4509 = vld [vmem:[%s4507 + $0x4] sm:$0xf]
        %v4510 = vld [vmem:[%s4507 + $0x8] sm:$0xf]
        %v4511 = vld [vmem:[%s4507 + $0xc] sm:$0xf]
        %v4512 = vld [vmem:[%s4507 + $0x10] sm:$0xf]
        %v4513 = vld [vmem:[%s4507 + $0x14] sm:$0xf]
        %v4514 = vld [vmem:[%s4507 + $0x18] sm:$0xf]
        %v4515 = vld [vmem:[%s4507 + $0x1c] sm:$0xf]
        %v4524 = vunpack.c.l.b16 %v4508
        %v4525 = vunpack.c.l.b16 %v4509
        %v4526 = vunpack.c.l.b16 %v4510
        %v4527 = vunpack.c.l.b16 %v4511
        %v4528 = vunpack.c.l.b16 %v4512
        %v4529 = vunpack.c.l.b16 %v4513
        %v4530 = vunpack.c.l.b16 %v4514
        %v4531 = vunpack.c.l.b16 %v4515
        %v4532 = vpack.c.b16 %v4525, %v4524
        %v4533 = vpack.c.b16 %v4527, %v4526
        %v4534 = vpack.c.b16 %v4529, %v4528
        %v4535 = vpack.c.b16 %v4531, %v4530
        %v4541 = vsel %vm3051, %v4506, 0
        %4543 = vmatprep.subr.bf16.mxu0 0
        %4544 = vmatpush1.bf16.msra.mxu0 0
        %4545 = vmatprep.subr.bf16.mxu0 0
        %4546 = vmatpush1.bf16.msra.mxu0 0
        %4547 = vmatprep.subr.bf16.mxu0 0
        %4548 = vmatpush1.bf16.msra.mxu0 0
        %4549 = vmatprep.subr.bf16.mxu0 0
        %4550 = vmatpush1.bf16.msra.mxu0 0
        %4551 = vmatprep.subr.bf16.mxu0 0
        %4552 = vmatpush1.bf16.msra.mxu0 %v4535
        %4553 = vmatprep.subr.bf16.mxu0 0
        %4554 = vmatpush1.bf16.msra.mxu0 %v4534
        %4555 = vmatprep.subr.bf16.mxu0 0
        %4556 = vmatpush1.bf16.msra.mxu0 %v4533
        %4557 = vmatprep.subr.bf16.mxu0 0
        %4558 = vmatpush1.bf16.msra.mxu0 %v4532
        %4559 = vmatprep.subr.bf16.mxu0 0
        %4560 = vmatpush2.bf16.msra.mxu0 0
        %4561 = vmatprep.subr.bf16.mxu0 0
        %4562 = vmatpush2.bf16.msra.mxu0 0
        %4563 = vmatprep.subr.bf16.mxu0 0
        %4564 = vmatpush2.bf16.msra.mxu0 0
        %4565 = vmatprep.subr.bf16.mxu0 0
        %4566 = vmatpush2.bf16.msra.mxu0 0
        %4567 = vmatprep.subr.bf16.mxu0 0
        %4568 = vmatpush2.bf16.msra.mxu0 0
        %4569 = vmatprep.subr.bf16.mxu0 0
        %4570 = vmatpush2.bf16.msra.mxu0 0
        %4571 = vmatprep.subr.bf16.mxu0 0
        %4572 = vmatpush2.bf16.msra.mxu0 0
        %4573 = vmatprep.subr.bf16.mxu0 0
        %4574 = vmatpush2.bf16.msra.mxu0 0
        %4575 = vmatprep.mubr.bf16.mxu0 0
        %4576 = vmatmul.mubr.bf16.gmra.mxu0 %v4541
        %v4577 = vpop.f32.mrf.mxu0
        %v4578 = vadd.f32 0.0, %v4577
        %v4579 = vpop.f32.mrf.mxu0
        %v4580 = vpop.f32.mrf.mxu0
        %v4581 = vpop.f32.mrf.mxu0
        %4582 = vdwg.mxu0
        %v4583 = vadd.f32 %v4460, %v4578
        %s4584 = scalar_lea.vmem %s9, 8
        %v4585 = vld [vmem:[%s4584] sm:$0x3]
        %v4587 = vsel %vm1372, %v4585, 0
        %4589 = vmatprep.subr.bf16.mxu0 0
        %4590 = vmatpush1.bf16.msra.mxu0 0
        %4591 = vmatprep.subr.bf16.mxu0 0
        %4592 = vmatpush1.bf16.msra.mxu0 0
        %4593 = vmatprep.subr.bf16.mxu0 0
        %4594 = vmatpush1.bf16.msra.mxu0 0
        %4595 = vmatprep.subr.bf16.mxu0 0
        %4596 = vmatpush1.bf16.msra.mxu0 0
        %4597 = vmatprep.subr.bf16.mxu0 0
        %4598 = vmatpush1.bf16.msra.mxu0 0
        %4599 = vmatprep.subr.bf16.mxu0 0
        %4600 = vmatpush1.bf16.msra.mxu0 0
        %4601 = vmatprep.subr.bf16.mxu0 0
        %4602 = vmatpush1.bf16.msra.mxu0 0
        %4603 = vmatprep.subr.bf16.mxu0 0
        %4604 = vmatpush1.bf16.msra.mxu0 %v4095
        %4605 = vmatprep.subr.bf16.mxu0 0
        %4606 = vmatpush2.bf16.msra.mxu0 0
        %4607 = vmatprep.subr.bf16.mxu0 0
        %4608 = vmatpush2.bf16.msra.mxu0 0
        %4609 = vmatprep.subr.bf16.mxu0 0
        %4610 = vmatpush2.bf16.msra.mxu0 0
        %4611 = vmatprep.subr.bf16.mxu0 0
        %4612 = vmatpush2.bf16.msra.mxu0 0
        %4613 = vmatprep.subr.bf16.mxu0 0
        %4614 = vmatpush2.bf16.msra.mxu0 0
        %4615 = vmatprep.subr.bf16.mxu0 0
        %4616 = vmatpush2.bf16.msra.mxu0 0
        %4617 = vmatprep.subr.bf16.mxu0 0
        %4618 = vmatpush2.bf16.msra.mxu0 0
        %4619 = vmatprep.subr.bf16.mxu0 0
        %4620 = vmatpush2.bf16.msra.mxu0 0
        %4621 = vmatprep.mubr.bf16.mxu0 0
        %4622 = vmatmul.mubr.bf16.gmra.mxu0 %v4587
        %v4623 = vpop.f32.mrf.mxu0
        %v4624 = vadd.f32 0.0, %v4623
        %v4625 = vpop.f32.mrf.mxu0
        %v4626 = vpop.f32.mrf.mxu0
        %v4627 = vpop.f32.mrf.mxu0
        %4628 = vdwg.mxu0
        %v4629 = vpack.c.bf16 %v4624, %v4624
        %s4630 = scalar_lea.vmem %s10, 128
        %v4631 = vld [vmem:[%s4630] sm:$0xf]
        %v4632 = vld [vmem:[%s4630 + $0x4] sm:$0xf]
        %v4633 = vld [vmem:[%s4630 + $0x8] sm:$0xf]
        %v4634 = vld [vmem:[%s4630 + $0xc] sm:$0xf]
        %v4635 = vld [vmem:[%s4630 + $0x10] sm:$0xf]
        %v4636 = vld [vmem:[%s4630 + $0x14] sm:$0xf]
        %v4637 = vld [vmem:[%s4630 + $0x18] sm:$0xf]
        %v4638 = vld [vmem:[%s4630 + $0x1c] sm:$0xf]
        %v4647 = vunpack.c.l.b16 %v4631
        %v4648 = vunpack.c.l.b16 %v4632
        %v4649 = vunpack.c.l.b16 %v4633
        %v4650 = vunpack.c.l.b16 %v4634
        %v4651 = vunpack.c.l.b16 %v4635
        %v4652 = vunpack.c.l.b16 %v4636
        %v4653 = vunpack.c.l.b16 %v4637
        %v4654 = vunpack.c.l.b16 %v4638
        %v4655 = vpack.c.b16 %v4648, %v4647
        %v4656 = vpack.c.b16 %v4650, %v4649
        %v4657 = vpack.c.b16 %v4652, %v4651
        %v4658 = vpack.c.b16 %v4654, %v4653
        %v4664 = vsel %vm3051, %v4629, 0
        %4666 = vmatprep.subr.bf16.mxu0 0
        %4667 = vmatpush1.bf16.msra.mxu0 0
        %4668 = vmatprep.subr.bf16.mxu0 0
        %4669 = vmatpush1.bf16.msra.mxu0 0
        %4670 = vmatprep.subr.bf16.mxu0 0
        %4671 = vmatpush1.bf16.msra.mxu0 0
        %4672 = vmatprep.subr.bf16.mxu0 0
        %4673 = vmatpush1.bf16.msra.mxu0 0
        %4674 = vmatprep.subr.bf16.mxu0 0
        %4675 = vmatpush1.bf16.msra.mxu0 %v4658
        %4676 = vmatprep.subr.bf16.mxu0 0
        %4677 = vmatpush1.bf16.msra.mxu0 %v4657
        %4678 = vmatprep.subr.bf16.mxu0 0
        %4679 = vmatpush1.bf16.msra.mxu0 %v4656
        %4680 = vmatprep.subr.bf16.mxu0 0
        %4681 = vmatpush1.bf16.msra.mxu0 %v4655
        %4682 = vmatprep.subr.bf16.mxu0 0
        %4683 = vmatpush2.bf16.msra.mxu0 0
        %4684 = vmatprep.subr.bf16.mxu0 0
        %4685 = vmatpush2.bf16.msra.mxu0 0
        %4686 = vmatprep.subr.bf16.mxu0 0
        %4687 = vmatpush2.bf16.msra.mxu0 0
        %4688 = vmatprep.subr.bf16.mxu0 0
        %4689 = vmatpush2.bf16.msra.mxu0 0
        %4690 = vmatprep.subr.bf16.mxu0 0
        %4691 = vmatpush2.bf16.msra.mxu0 0
        %4692 = vmatprep.subr.bf16.mxu0 0
        %4693 = vmatpush2.bf16.msra.mxu0 0
        %4694 = vmatprep.subr.bf16.mxu0 0
        %4695 = vmatpush2.bf16.msra.mxu0 0
        %4696 = vmatprep.subr.bf16.mxu0 0
        %4697 = vmatpush2.bf16.msra.mxu0 0
        %4698 = vmatprep.mubr.bf16.mxu0 0
        %4699 = vmatmul.mubr.bf16.gmra.mxu0 %v4664
        %v4700 = vpop.f32.mrf.mxu0
        %v4701 = vadd.f32 0.0, %v4700
        %v4702 = vpop.f32.mrf.mxu0
        %v4703 = vpop.f32.mrf.mxu0
        %v4704 = vpop.f32.mrf.mxu0
        %4705 = vdwg.mxu0
        %v4706 = vadd.f32 %v4583, %v4701
        %s4707 = scalar_lea.vmem %s9, 10
        %v4708 = vld [vmem:[%s4707] sm:$0x3]
        %v4710 = vsel %vm1372, %v4708, 0
        %4712 = vmatprep.subr.bf16.mxu0 0
        %4713 = vmatpush1.bf16.msra.mxu0 0
        %4714 = vmatprep.subr.bf16.mxu0 0
        %4715 = vmatpush1.bf16.msra.mxu0 0
        %4716 = vmatprep.subr.bf16.mxu0 0
        %4717 = vmatpush1.bf16.msra.mxu0 0
        %4718 = vmatprep.subr.bf16.mxu0 0
        %4719 = vmatpush1.bf16.msra.mxu0 0
        %4720 = vmatprep.subr.bf16.mxu0 0
        %4721 = vmatpush1.bf16.msra.mxu0 0
        %4722 = vmatprep.subr.bf16.mxu0 0
        %4723 = vmatpush1.bf16.msra.mxu0 0
        %4724 = vmatprep.subr.bf16.mxu0 0
        %4725 = vmatpush1.bf16.msra.mxu0 0
        %4726 = vmatprep.subr.bf16.mxu0 0
        %4727 = vmatpush1.bf16.msra.mxu0 %v4095
        %4728 = vmatprep.subr.bf16.mxu0 0
        %4729 = vmatpush2.bf16.msra.mxu0 0
        %4730 = vmatprep.subr.bf16.mxu0 0
        %4731 = vmatpush2.bf16.msra.mxu0 0
        %4732 = vmatprep.subr.bf16.mxu0 0
        %4733 = vmatpush2.bf16.msra.mxu0 0
        %4734 = vmatprep.subr.bf16.mxu0 0
        %4735 = vmatpush2.bf16.msra.mxu0 0
        %4736 = vmatprep.subr.bf16.mxu0 0
        %4737 = vmatpush2.bf16.msra.mxu0 0
        %4738 = vmatprep.subr.bf16.mxu0 0
        %4739 = vmatpush2.bf16.msra.mxu0 0
        %4740 = vmatprep.subr.bf16.mxu0 0
        %4741 = vmatpush2.bf16.msra.mxu0 0
        %4742 = vmatprep.subr.bf16.mxu0 0
        %4743 = vmatpush2.bf16.msra.mxu0 0
        %4744 = vmatprep.mubr.bf16.mxu0 0
        %4745 = vmatmul.mubr.bf16.gmra.mxu0 %v4710
        %v4746 = vpop.f32.mrf.mxu0
        %v4747 = vadd.f32 0.0, %v4746
        %v4748 = vpop.f32.mrf.mxu0
        %v4749 = vpop.f32.mrf.mxu0
        %v4750 = vpop.f32.mrf.mxu0
        %4751 = vdwg.mxu0
        %v4752 = vpack.c.bf16 %v4747, %v4747
        %s4753 = scalar_lea.vmem %s10, 160
        %v4754 = vld [vmem:[%s4753] sm:$0xf]
        %v4755 = vld [vmem:[%s4753 + $0x4] sm:$0xf]
        %v4756 = vld [vmem:[%s4753 + $0x8] sm:$0xf]
        %v4757 = vld [vmem:[%s4753 + $0xc] sm:$0xf]
        %v4758 = vld [vmem:[%s4753 + $0x10] sm:$0xf]
        %v4759 = vld [vmem:[%s4753 + $0x14] sm:$0xf]
        %v4760 = vld [vmem:[%s4753 + $0x18] sm:$0xf]
        %v4761 = vld [vmem:[%s4753 + $0x1c] sm:$0xf]
        %v4770 = vunpack.c.l.b16 %v4754
        %v4771 = vunpack.c.l.b16 %v4755
        %v4772 = vunpack.c.l.b16 %v4756
        %v4773 = vunpack.c.l.b16 %v4757
        %v4774 = vunpack.c.l.b16 %v4758
        %v4775 = vunpack.c.l.b16 %v4759
        %v4776 = vunpack.c.l.b16 %v4760
        %v4777 = vunpack.c.l.b16 %v4761
        %v4778 = vpack.c.b16 %v4771, %v4770
        %v4779 = vpack.c.b16 %v4773, %v4772
        %v4780 = vpack.c.b16 %v4775, %v4774
        %v4781 = vpack.c.b16 %v4777, %v4776
        %v4787 = vsel %vm3051, %v4752, 0
        %4789 = vmatprep.subr.bf16.mxu0 0
        %4790 = vmatpush1.bf16.msra.mxu0 0
        %4791 = vmatprep.subr.bf16.mxu0 0
        %4792 = vmatpush1.bf16.msra.mxu0 0
        %4793 = vmatprep.subr.bf16.mxu0 0
        %4794 = vmatpush1.bf16.msra.mxu0 0
        %4795 = vmatprep.subr.bf16.mxu0 0
        %4796 = vmatpush1.bf16.msra.mxu0 0
        %4797 = vmatprep.subr.bf16.mxu0 0
        %4798 = vmatpush1.bf16.msra.mxu0 %v4781
        %4799 = vmatprep.subr.bf16.mxu0 0
        %4800 = vmatpush1.bf16.msra.mxu0 %v4780
        %4801 = vmatprep.subr.bf16.mxu0 0
        %4802 = vmatpush1.bf16.msra.mxu0 %v4779
        %4803 = vmatprep.subr.bf16.mxu0 0
        %4804 = vmatpush1.bf16.msra.mxu0 %v4778
        %4805 = vmatprep.subr.bf16.mxu0 0
        %4806 = vmatpush2.bf16.msra.mxu0 0
        %4807 = vmatprep.subr.bf16.mxu0 0
        %4808 = vmatpush2.bf16.msra.mxu0 0
        %4809 = vmatprep.subr.bf16.mxu0 0
        %4810 = vmatpush2.bf16.msra.mxu0 0
        %4811 = vmatprep.subr.bf16.mxu0 0
        %4812 = vmatpush2.bf16.msra.mxu0 0
        %4813 = vmatprep.subr.bf16.mxu0 0
        %4814 = vmatpush2.bf16.msra.mxu0 0
        %4815 = vmatprep.subr.bf16.mxu0 0
        %4816 = vmatpush2.bf16.msra.mxu0 0
        %4817 = vmatprep.subr.bf16.mxu0 0
        %4818 = vmatpush2.bf16.msra.mxu0 0
        %4819 = vmatprep.subr.bf16.mxu0 0
        %4820 = vmatpush2.bf16.msra.mxu0 0
        %4821 = vmatprep.mubr.bf16.mxu0 0
        %4822 = vmatmul.mubr.bf16.gmra.mxu0 %v4787
        %v4823 = vpop.f32.mrf.mxu0
        %v4824 = vadd.f32 0.0, %v4823
        %v4825 = vpop.f32.mrf.mxu0
        %v4826 = vpop.f32.mrf.mxu0
        %v4827 = vpop.f32.mrf.mxu0
        %4828 = vdwg.mxu0
        %v4829 = vadd.f32 %v4706, %v4824
        %s4830 = scalar_lea.vmem %s9, 12
        %v4831 = vld [vmem:[%s4830] sm:$0x3]
        %v4833 = vsel %vm1372, %v4831, 0
        %4835 = vmatprep.subr.bf16.mxu0 0
        %4836 = vmatpush1.bf16.msra.mxu0 0
        %4837 = vmatprep.subr.bf16.mxu0 0
        %4838 = vmatpush1.bf16.msra.mxu0 0
        %4839 = vmatprep.subr.bf16.mxu0 0
        %4840 = vmatpush1.bf16.msra.mxu0 0
        %4841 = vmatprep.subr.bf16.mxu0 0
        %4842 = vmatpush1.bf16.msra.mxu0 0
        %4843 = vmatprep.subr.bf16.mxu0 0
        %4844 = vmatpush1.bf16.msra.mxu0 0
        %4845 = vmatprep.subr.bf16.mxu0 0
        %4846 = vmatpush1.bf16.msra.mxu0 0
        %4847 = vmatprep.subr.bf16.mxu0 0
        %4848 = vmatpush1.bf16.msra.mxu0 0
        %4849 = vmatprep.subr.bf16.mxu0 0
        %4850 = vmatpush1.bf16.msra.mxu0 %v4095
        %4851 = vmatprep.subr.bf16.mxu0 0
        %4852 = vmatpush2.bf16.msra.mxu0 0
        %4853 = vmatprep.subr.bf16.mxu0 0
        %4854 = vmatpush2.bf16.msra.mxu0 0
        %4855 = vmatprep.subr.bf16.mxu0 0
        %4856 = vmatpush2.bf16.msra.mxu0 0
        %4857 = vmatprep.subr.bf16.mxu0 0
        %4858 = vmatpush2.bf16.msra.mxu0 0
        %4859 = vmatprep.subr.bf16.mxu0 0
        %4860 = vmatpush2.bf16.msra.mxu0 0
        %4861 = vmatprep.subr.bf16.mxu0 0
        %4862 = vmatpush2.bf16.msra.mxu0 0
        %4863 = vmatprep.subr.bf16.mxu0 0
        %4864 = vmatpush2.bf16.msra.mxu0 0
        %4865 = vmatprep.subr.bf16.mxu0 0
        %4866 = vmatpush2.bf16.msra.mxu0 0
        %4867 = vmatprep.mubr.bf16.mxu0 0
        %4868 = vmatmul.mubr.bf16.gmra.mxu0 %v4833
        %v4869 = vpop.f32.mrf.mxu0
        %v4870 = vadd.f32 0.0, %v4869
        %v4871 = vpop.f32.mrf.mxu0
        %v4872 = vpop.f32.mrf.mxu0
        %v4873 = vpop.f32.mrf.mxu0
        %4874 = vdwg.mxu0
        %v4875 = vpack.c.bf16 %v4870, %v4870
        %s4876 = scalar_lea.vmem %s10, 192
        %v4877 = vld [vmem:[%s4876] sm:$0xf]
        %v4878 = vld [vmem:[%s4876 + $0x4] sm:$0xf]
        %v4879 = vld [vmem:[%s4876 + $0x8] sm:$0xf]
        %v4880 = vld [vmem:[%s4876 + $0xc] sm:$0xf]
        %v4881 = vld [vmem:[%s4876 + $0x10] sm:$0xf]
        %v4882 = vld [vmem:[%s4876 + $0x14] sm:$0xf]
        %v4883 = vld [vmem:[%s4876 + $0x18] sm:$0xf]
        %v4884 = vld [vmem:[%s4876 + $0x1c] sm:$0xf]
        %v4893 = vunpack.c.l.b16 %v4877
        %v4894 = vunpack.c.l.b16 %v4878
        %v4895 = vunpack.c.l.b16 %v4879
        %v4896 = vunpack.c.l.b16 %v4880
        %v4897 = vunpack.c.l.b16 %v4881
        %v4898 = vunpack.c.l.b16 %v4882
        %v4899 = vunpack.c.l.b16 %v4883
        %v4900 = vunpack.c.l.b16 %v4884
        %v4901 = vpack.c.b16 %v4894, %v4893
        %v4902 = vpack.c.b16 %v4896, %v4895
        %v4903 = vpack.c.b16 %v4898, %v4897
        %v4904 = vpack.c.b16 %v4900, %v4899
        %v4910 = vsel %vm3051, %v4875, 0
        %4912 = vmatprep.subr.bf16.mxu0 0
        %4913 = vmatpush1.bf16.msra.mxu0 0
        %4914 = vmatprep.subr.bf16.mxu0 0
        %4915 = vmatpush1.bf16.msra.mxu0 0
        %4916 = vmatprep.subr.bf16.mxu0 0
        %4917 = vmatpush1.bf16.msra.mxu0 0
        %4918 = vmatprep.subr.bf16.mxu0 0
        %4919 = vmatpush1.bf16.msra.mxu0 0
        %4920 = vmatprep.subr.bf16.mxu0 0
        %4921 = vmatpush1.bf16.msra.mxu0 %v4904
        %4922 = vmatprep.subr.bf16.mxu0 0
        %4923 = vmatpush1.bf16.msra.mxu0 %v4903
        %4924 = vmatprep.subr.bf16.mxu0 0
        %4925 = vmatpush1.bf16.msra.mxu0 %v4902
        %4926 = vmatprep.subr.bf16.mxu0 0
        %4927 = vmatpush1.bf16.msra.mxu0 %v4901
        %4928 = vmatprep.subr.bf16.mxu0 0
        %4929 = vmatpush2.bf16.msra.mxu0 0
        %4930 = vmatprep.subr.bf16.mxu0 0
        %4931 = vmatpush2.bf16.msra.mxu0 0
        %4932 = vmatprep.subr.bf16.mxu0 0
        %4933 = vmatpush2.bf16.msra.mxu0 0
        %4934 = vmatprep.subr.bf16.mxu0 0
        %4935 = vmatpush2.bf16.msra.mxu0 0
        %4936 = vmatprep.subr.bf16.mxu0 0
        %4937 = vmatpush2.bf16.msra.mxu0 0
        %4938 = vmatprep.subr.bf16.mxu0 0
        %4939 = vmatpush2.bf16.msra.mxu0 0
        %4940 = vmatprep.subr.bf16.mxu0 0
        %4941 = vmatpush2.bf16.msra.mxu0 0
        %4942 = vmatprep.subr.bf16.mxu0 0
        %4943 = vmatpush2.bf16.msra.mxu0 0
        %4944 = vmatprep.mubr.bf16.mxu0 0
        %4945 = vmatmul.mubr.bf16.gmra.mxu0 %v4910
        %v4946 = vpop.f32.mrf.mxu0
        %v4947 = vadd.f32 0.0, %v4946
        %v4948 = vpop.f32.mrf.mxu0
        %v4949 = vpop.f32.mrf.mxu0
        %v4950 = vpop.f32.mrf.mxu0
        %4951 = vdwg.mxu0
        %v4952 = vadd.f32 %v4829, %v4947
        %s4953 = scalar_lea.vmem %s9, 14
        %v4954 = vld [vmem:[%s4953] sm:$0x3]
        %v4956 = vsel %vm1372, %v4954, 0
        %4958 = vmatprep.subr.bf16.mxu0 0
        %4959 = vmatpush1.bf16.msra.mxu0 0
        %4960 = vmatprep.subr.bf16.mxu0 0
        %4961 = vmatpush1.bf16.msra.mxu0 0
        %4962 = vmatprep.subr.bf16.mxu0 0
        %4963 = vmatpush1.bf16.msra.mxu0 0
        %4964 = vmatprep.subr.bf16.mxu0 0
        %4965 = vmatpush1.bf16.msra.mxu0 0
        %4966 = vmatprep.subr.bf16.mxu0 0
        %4967 = vmatpush1.bf16.msra.mxu0 0
        %4968 = vmatprep.subr.bf16.mxu0 0
        %4969 = vmatpush1.bf16.msra.mxu0 0
        %4970 = vmatprep.subr.bf16.mxu0 0
        %4971 = vmatpush1.bf16.msra.mxu0 0
        %4972 = vmatprep.subr.bf16.mxu0 0
        %4973 = vmatpush1.bf16.msra.mxu0 %v4095
        %4974 = vmatprep.subr.bf16.mxu0 0
        %4975 = vmatpush2.bf16.msra.mxu0 0
        %4976 = vmatprep.subr.bf16.mxu0 0
        %4977 = vmatpush2.bf16.msra.mxu0 0
        %4978 = vmatprep.subr.bf16.mxu0 0
        %4979 = vmatpush2.bf16.msra.mxu0 0
        %4980 = vmatprep.subr.bf16.mxu0 0
        %4981 = vmatpush2.bf16.msra.mxu0 0
        %4982 = vmatprep.subr.bf16.mxu0 0
        %4983 = vmatpush2.bf16.msra.mxu0 0
        %4984 = vmatprep.subr.bf16.mxu0 0
        %4985 = vmatpush2.bf16.msra.mxu0 0
        %4986 = vmatprep.subr.bf16.mxu0 0
        %4987 = vmatpush2.bf16.msra.mxu0 0
        %4988 = vmatprep.subr.bf16.mxu0 0
        %4989 = vmatpush2.bf16.msra.mxu0 0
        %4990 = vmatprep.mubr.bf16.mxu0 0
        %4991 = vmatmul.mubr.bf16.gmra.mxu0 %v4956
        %v4992 = vpop.f32.mrf.mxu0
        %v4993 = vadd.f32 0.0, %v4992
        %v4994 = vpop.f32.mrf.mxu0
        %v4995 = vpop.f32.mrf.mxu0
        %v4996 = vpop.f32.mrf.mxu0
        %4997 = vdwg.mxu0
        %v4998 = vpack.c.bf16 %v4993, %v4993
        %s4999 = scalar_lea.vmem %s10, 224
        %v5000 = vld [vmem:[%s4999] sm:$0xf]
        %v5001 = vld [vmem:[%s4999 + $0x4] sm:$0xf]
        %v5002 = vld [vmem:[%s4999 + $0x8] sm:$0xf]
        %v5003 = vld [vmem:[%s4999 + $0xc] sm:$0xf]
        %v5004 = vld [vmem:[%s4999 + $0x10] sm:$0xf]
        %v5005 = vld [vmem:[%s4999 + $0x14] sm:$0xf]
        %v5006 = vld [vmem:[%s4999 + $0x18] sm:$0xf]
        %v5007 = vld [vmem:[%s4999 + $0x1c] sm:$0xf]
        %v5016 = vunpack.c.l.b16 %v5000
        %v5017 = vunpack.c.l.b16 %v5001
        %v5018 = vunpack.c.l.b16 %v5002
        %v5019 = vunpack.c.l.b16 %v5003
        %v5020 = vunpack.c.l.b16 %v5004
        %v5021 = vunpack.c.l.b16 %v5005
        %v5022 = vunpack.c.l.b16 %v5006
        %v5023 = vunpack.c.l.b16 %v5007
        %v5024 = vpack.c.b16 %v5017, %v5016
        %v5025 = vpack.c.b16 %v5019, %v5018
        %v5026 = vpack.c.b16 %v5021, %v5020
        %v5027 = vpack.c.b16 %v5023, %v5022
        %v5033 = vsel %vm3051, %v4998, 0
        %5035 = vmatprep.subr.bf16.mxu0 0
        %5036 = vmatpush1.bf16.msra.mxu0 0
        %5037 = vmatprep.subr.bf16.mxu0 0
        %5038 = vmatpush1.bf16.msra.mxu0 0
        %5039 = vmatprep.subr.bf16.mxu0 0
        %5040 = vmatpush1.bf16.msra.mxu0 0
        %5041 = vmatprep.subr.bf16.mxu0 0
        %5042 = vmatpush1.bf16.msra.mxu0 0
        %5043 = vmatprep.subr.bf16.mxu0 0
        %5044 = vmatpush1.bf16.msra.mxu0 %v5027
        %5045 = vmatprep.subr.bf16.mxu0 0
        %5046 = vmatpush1.bf16.msra.mxu0 %v5026
        %5047 = vmatprep.subr.bf16.mxu0 0
        %5048 = vmatpush1.bf16.msra.mxu0 %v5025
        %5049 = vmatprep.subr.bf16.mxu0 0
        %5050 = vmatpush1.bf16.msra.mxu0 %v5024
        %5051 = vmatprep.subr.bf16.mxu0 0
        %5052 = vmatpush2.bf16.msra.mxu0 0
        %5053 = vmatprep.subr.bf16.mxu0 0
        %5054 = vmatpush2.bf16.msra.mxu0 0
        %5055 = vmatprep.subr.bf16.mxu0 0
        %5056 = vmatpush2.bf16.msra.mxu0 0
        %5057 = vmatprep.subr.bf16.mxu0 0
        %5058 = vmatpush2.bf16.msra.mxu0 0
        %5059 = vmatprep.subr.bf16.mxu0 0
        %5060 = vmatpush2.bf16.msra.mxu0 0
        %5061 = vmatprep.subr.bf16.mxu0 0
        %5062 = vmatpush2.bf16.msra.mxu0 0
        %5063 = vmatprep.subr.bf16.mxu0 0
        %5064 = vmatpush2.bf16.msra.mxu0 0
        %5065 = vmatprep.subr.bf16.mxu0 0
        %5066 = vmatpush2.bf16.msra.mxu0 0
        %5067 = vmatprep.mubr.bf16.mxu0 0
        %5068 = vmatmul.mubr.bf16.gmra.mxu0 %v5033
        %v5069 = vpop.f32.mrf.mxu0
        %v5070 = vadd.f32 0.0, %v5069
        %v5071 = vpop.f32.mrf.mxu0
        %v5072 = vpop.f32.mrf.mxu0
        %v5073 = vpop.f32.mrf.mxu0
        %5074 = vdwg.mxu0
        %v5075 = vadd.f32 %v4952, %v5070
        %s5076 = scalar_lea.vmem %s9, 16
        %v5077 = vld [vmem:[%s5076] sm:$0x3]
        %v5079 = vsel %vm1372, %v5077, 0
        %5081 = vmatprep.subr.bf16.mxu0 0
        %5082 = vmatpush1.bf16.msra.mxu0 0
        %5083 = vmatprep.subr.bf16.mxu0 0
        %5084 = vmatpush1.bf16.msra.mxu0 0
        %5085 = vmatprep.subr.bf16.mxu0 0
        %5086 = vmatpush1.bf16.msra.mxu0 0
        %5087 = vmatprep.subr.bf16.mxu0 0
        %5088 = vmatpush1.bf16.msra.mxu0 0
        %5089 = vmatprep.subr.bf16.mxu0 0
        %5090 = vmatpush1.bf16.msra.mxu0 0
        %5091 = vmatprep.subr.bf16.mxu0 0
        %5092 = vmatpush1.bf16.msra.mxu0 0
        %5093 = vmatprep.subr.bf16.mxu0 0
        %5094 = vmatpush1.bf16.msra.mxu0 0
        %5095 = vmatprep.subr.bf16.mxu0 0
        %5096 = vmatpush1.bf16.msra.mxu0 %v4095
        %5097 = vmatprep.subr.bf16.mxu0 0
        %5098 = vmatpush2.bf16.msra.mxu0 0
        %5099 = vmatprep.subr.bf16.mxu0 0
        %5100 = vmatpush2.bf16.msra.mxu0 0
        %5101 = vmatprep.subr.bf16.mxu0 0
        %5102 = vmatpush2.bf16.msra.mxu0 0
        %5103 = vmatprep.subr.bf16.mxu0 0
        %5104 = vmatpush2.bf16.msra.mxu0 0
        %5105 = vmatprep.subr.bf16.mxu0 0
        %5106 = vmatpush2.bf16.msra.mxu0 0
        %5107 = vmatprep.subr.bf16.mxu0 0
        %5108 = vmatpush2.bf16.msra.mxu0 0
        %5109 = vmatprep.subr.bf16.mxu0 0
        %5110 = vmatpush2.bf16.msra.mxu0 0
        %5111 = vmatprep.subr.bf16.mxu0 0
        %5112 = vmatpush2.bf16.msra.mxu0 0
        %5113 = vmatprep.mubr.bf16.mxu0 0
        %5114 = vmatmul.mubr.bf16.gmra.mxu0 %v5079
        %v5115 = vpop.f32.mrf.mxu0
        %v5116 = vadd.f32 0.0, %v5115
        %v5117 = vpop.f32.mrf.mxu0
        %v5118 = vpop.f32.mrf.mxu0
        %v5119 = vpop.f32.mrf.mxu0
        %5120 = vdwg.mxu0
        %v5121 = vpack.c.bf16 %v5116, %v5116
        %s5122 = scalar_lea.vmem %s10, 256
        %v5123 = vld [vmem:[%s5122] sm:$0xf]
        %v5124 = vld [vmem:[%s5122 + $0x4] sm:$0xf]
        %v5125 = vld [vmem:[%s5122 + $0x8] sm:$0xf]
        %v5126 = vld [vmem:[%s5122 + $0xc] sm:$0xf]
        %v5127 = vld [vmem:[%s5122 + $0x10] sm:$0xf]
        %v5128 = vld [vmem:[%s5122 + $0x14] sm:$0xf]
        %v5129 = vld [vmem:[%s5122 + $0x18] sm:$0xf]
        %v5130 = vld [vmem:[%s5122 + $0x1c] sm:$0xf]
        %v5139 = vunpack.c.l.b16 %v5123
        %v5140 = vunpack.c.l.b16 %v5124
        %v5141 = vunpack.c.l.b16 %v5125
        %v5142 = vunpack.c.l.b16 %v5126
        %v5143 = vunpack.c.l.b16 %v5127
        %v5144 = vunpack.c.l.b16 %v5128
        %v5145 = vunpack.c.l.b16 %v5129
        %v5146 = vunpack.c.l.b16 %v5130
        %v5147 = vpack.c.b16 %v5140, %v5139
        %v5148 = vpack.c.b16 %v5142, %v5141
        %v5149 = vpack.c.b16 %v5144, %v5143
        %v5150 = vpack.c.b16 %v5146, %v5145
        %v5156 = vsel %vm3051, %v5121, 0
        %5158 = vmatprep.subr.bf16.mxu0 0
        %5159 = vmatpush1.bf16.msra.mxu0 0
        %5160 = vmatprep.subr.bf16.mxu0 0
        %5161 = vmatpush1.bf16.msra.mxu0 0
        %5162 = vmatprep.subr.bf16.mxu0 0
        %5163 = vmatpush1.bf16.msra.mxu0 0
        %5164 = vmatprep.subr.bf16.mxu0 0
        %5165 = vmatpush1.bf16.msra.mxu0 0
        %5166 = vmatprep.subr.bf16.mxu0 0
        %5167 = vmatpush1.bf16.msra.mxu0 %v5150
        %5168 = vmatprep.subr.bf16.mxu0 0
        %5169 = vmatpush1.bf16.msra.mxu0 %v5149
        %5170 = vmatprep.subr.bf16.mxu0 0
        %5171 = vmatpush1.bf16.msra.mxu0 %v5148
        %5172 = vmatprep.subr.bf16.mxu0 0
        %5173 = vmatpush1.bf16.msra.mxu0 %v5147
        %5174 = vmatprep.subr.bf16.mxu0 0
        %5175 = vmatpush2.bf16.msra.mxu0 0
        %5176 = vmatprep.subr.bf16.mxu0 0
        %5177 = vmatpush2.bf16.msra.mxu0 0
        %5178 = vmatprep.subr.bf16.mxu0 0
        %5179 = vmatpush2.bf16.msra.mxu0 0
        %5180 = vmatprep.subr.bf16.mxu0 0
        %5181 = vmatpush2.bf16.msra.mxu0 0
        %5182 = vmatprep.subr.bf16.mxu0 0
        %5183 = vmatpush2.bf16.msra.mxu0 0
        %5184 = vmatprep.subr.bf16.mxu0 0
        %5185 = vmatpush2.bf16.msra.mxu0 0
        %5186 = vmatprep.subr.bf16.mxu0 0
        %5187 = vmatpush2.bf16.msra.mxu0 0
        %5188 = vmatprep.subr.bf16.mxu0 0
        %5189 = vmatpush2.bf16.msra.mxu0 0
        %5190 = vmatprep.mubr.bf16.mxu0 0
        %5191 = vmatmul.mubr.bf16.gmra.mxu0 %v5156
        %v5192 = vpop.f32.mrf.mxu0
        %v5193 = vadd.f32 0.0, %v5192
        %v5194 = vpop.f32.mrf.mxu0
        %v5195 = vpop.f32.mrf.mxu0
        %v5196 = vpop.f32.mrf.mxu0
        %5197 = vdwg.mxu0
        %v5198 = vadd.f32 %v5075, %v5193
        %v5199 = vld [vmem:[%s11] sm:$0x1]
        %v5201 = vlaneseq
        %v5202 = vshrl.u32 %v5201, 7
        %v5203 = vsub.s32 0, %v5202
        %v5204 = vrot.slane %v5199, %v5203
        %v5206 = vadd.f32 %v5198, %v5204
        %v5207 = vmax.f32 %v5206, 0.0
        %v5208 = vpack.c.bf16 %v5207, %v5207
        %v5209 = vld [vmem:[%s12] sm:$0x1]
        %vm5210 = vcmask 31744
        %v5212 = vsel %vm5210, %v5209, 0
        %vm5214 = vcmask 1041408
        %v5216 = vsel %vm5214, %v5208, 0
        %5218 = vmatprep.subr.bf16.mxu0 0
        %5219 = vmatpush1.bf16.msra.mxu0 0
        %5220 = vmatprep.subr.bf16.mxu0 0
        %5221 = vmatpush1.bf16.msra.mxu0 0
        %5222 = vmatprep.subr.bf16.mxu0 0
        %5223 = vmatpush1.bf16.msra.mxu0 0
        %5224 = vmatprep.subr.bf16.mxu0 0
        %5225 = vmatpush1.bf16.msra.mxu0 0
        %5226 = vmatprep.subr.bf16.mxu0 0
        %5227 = vmatpush1.bf16.msra.mxu0 0
        %5228 = vmatprep.subr.bf16.mxu0 0
        %5229 = vmatpush1.bf16.msra.mxu0 0
        %5230 = vmatprep.subr.bf16.mxu0 0
        %5231 = vmatpush1.bf16.msra.mxu0 0
        %5232 = vmatprep.subr.bf16.mxu0 0
        %5233 = vmatpush1.bf16.msra.mxu0 %v5216
        %5234 = vmatprep.subr.bf16.mxu0 0
        %5235 = vmatpush2.bf16.msra.mxu0 0
        %5236 = vmatprep.subr.bf16.mxu0 0
        %5237 = vmatpush2.bf16.msra.mxu0 0
        %5238 = vmatprep.subr.bf16.mxu0 0
        %5239 = vmatpush2.bf16.msra.mxu0 0
        %5240 = vmatprep.subr.bf16.mxu0 0
        %5241 = vmatpush2.bf16.msra.mxu0 0
        %5242 = vmatprep.subr.bf16.mxu0 0
        %5243 = vmatpush2.bf16.msra.mxu0 0
        %5244 = vmatprep.subr.bf16.mxu0 0
        %5245 = vmatpush2.bf16.msra.mxu0 0
        %5246 = vmatprep.subr.bf16.mxu0 0
        %5247 = vmatpush2.bf16.msra.mxu0 0
        %5248 = vmatprep.subr.bf16.mxu0 0
        %5249 = vmatpush2.bf16.msra.mxu0 0
        %5250 = vmatprep.mubr.bf16.mxu0 0
        %5251 = vmatmul.mubr.bf16.gmra.mxu0 %v5212
        %v5252 = vpop.f32.mrf.mxu0
        %v5253 = vadd.f32 0.0, %v5252
        %v5254 = vpop.f32.mrf.mxu0
        %v5255 = vpop.f32.mrf.mxu0
        %v5256 = vpop.f32.mrf.mxu0
        %5257 = vdwg.mxu0
        %v5258 = vpack.c.bf16 %v5253, %v5253
        %v5259 = vld [vmem:[%s13] sm:$0xf]
        %v5260 = vld [vmem:[%s13 + $0x4] sm:$0xf]
        %v5261 = vld [vmem:[%s13 + $0x8] sm:$0xf]
        %v5262 = vld [vmem:[%s13 + $0xc] sm:$0xf]
        %v5263 = vld [vmem:[%s13 + $0x10] sm:$0xf]
        %v5264 = vld [vmem:[%s13 + $0x14] sm:$0xf]
        %v5265 = vld [vmem:[%s13 + $0x18] sm:$0xf]
        %v5266 = vld [vmem:[%s13 + $0x1c] sm:$0xf]
        %s5267 = scalar_lea.vmem %s12, 1
        %v5268 = vld [vmem:[%s5267] sm:$0x1]
        %v5270 = vsel %vm5210, %v5268, 0
        %5272 = vmatprep.subr.bf16.mxu0 0
        %5273 = vmatpush1.bf16.msra.mxu0 0
        %5274 = vmatprep.subr.bf16.mxu0 0
        %5275 = vmatpush1.bf16.msra.mxu0 0
        %5276 = vmatprep.subr.bf16.mxu0 0
        %5277 = vmatpush1.bf16.msra.mxu0 0
        %5278 = vmatprep.subr.bf16.mxu0 0
        %5279 = vmatpush1.bf16.msra.mxu0 0
        %5280 = vmatprep.subr.bf16.mxu0 0
        %5281 = vmatpush1.bf16.msra.mxu0 0
        %5282 = vmatprep.subr.bf16.mxu0 0
        %5283 = vmatpush1.bf16.msra.mxu0 0
        %5284 = vmatprep.subr.bf16.mxu0 0
        %5285 = vmatpush1.bf16.msra.mxu0 0
        %5286 = vmatprep.subr.bf16.mxu0 0
        %5287 = vmatpush1.bf16.msra.mxu0 %v5216
        %5288 = vmatprep.subr.bf16.mxu0 0
        %5289 = vmatpush2.bf16.msra.mxu0 0
        %5290 = vmatprep.subr.bf16.mxu0 0
        %5291 = vmatpush2.bf16.msra.mxu0 0
        %5292 = vmatprep.subr.bf16.mxu0 0
        %5293 = vmatpush2.bf16.msra.mxu0 0
        %5294 = vmatprep.subr.bf16.mxu0 0
        %5295 = vmatpush2.bf16.msra.mxu0 0
        %5296 = vmatprep.subr.bf16.mxu0 0
        %5297 = vmatpush2.bf16.msra.mxu0 0
        %5298 = vmatprep.subr.bf16.mxu0 0
        %5299 = vmatpush2.bf16.msra.mxu0 0
        %5300 = vmatprep.subr.bf16.mxu0 0
        %5301 = vmatpush2.bf16.msra.mxu0 0
        %5302 = vmatprep.subr.bf16.mxu0 0
        %5303 = vmatpush2.bf16.msra.mxu0 0
        %5304 = vmatprep.mubr.bf16.mxu0 0
        %5305 = vmatmul.mubr.bf16.gmra.mxu0 %v5270
        %v5306 = vpop.f32.mrf.mxu0
        %v5307 = vadd.f32 0.0, %v5306
        %v5308 = vpop.f32.mrf.mxu0
        %v5309 = vpop.f32.mrf.mxu0
        %v5310 = vpop.f32.mrf.mxu0
        %5311 = vdwg.mxu0
        %v5312 = vpack.c.bf16 %v5307, %v5307
        %s5313 = scalar_lea.vmem %s13, 32
        %v5314 = vld [vmem:[%s5313] sm:$0xf]
        %v5315 = vld [vmem:[%s5313 + $0x4] sm:$0xf]
        %v5316 = vld [vmem:[%s5313 + $0x8] sm:$0xf]
        %v5317 = vld [vmem:[%s5313 + $0xc] sm:$0xf]
        %v5318 = vld [vmem:[%s5313 + $0x10] sm:$0xf]
        %v5319 = vld [vmem:[%s5313 + $0x14] sm:$0xf]
        %v5320 = vld [vmem:[%s5313 + $0x18] sm:$0xf]
        %v5321 = vld [vmem:[%s5313 + $0x1c] sm:$0xf]
        %v5330 = vunpack.c.l.b16 %v5314
        %v5331 = vunpack.c.l.b16 %v5315
        %v5332 = vunpack.c.l.b16 %v5316
        %v5333 = vunpack.c.l.b16 %v5317
        %v5334 = vunpack.c.l.b16 %v5318
        %v5335 = vunpack.c.l.b16 %v5319
        %v5336 = vunpack.c.l.b16 %v5320
        %v5337 = vunpack.c.l.b16 %v5321
        %v5338 = vpack.c.b16 %v5331, %v5330
        %v5339 = vpack.c.b16 %v5333, %v5332
        %v5340 = vpack.c.b16 %v5335, %v5334
        %v5341 = vpack.c.b16 %v5337, %v5336
        %v5347 = vsel %vm3051, %v5312, 0
        %5349 = vmatprep.subr.bf16.mxu0 0
        %5350 = vmatpush1.bf16.msra.mxu0 0
        %5351 = vmatprep.subr.bf16.mxu0 0
        %5352 = vmatpush1.bf16.msra.mxu0 0
        %5353 = vmatprep.subr.bf16.mxu0 0
        %5354 = vmatpush1.bf16.msra.mxu0 0
        %5355 = vmatprep.subr.bf16.mxu0 0
        %5356 = vmatpush1.bf16.msra.mxu0 0
        %5357 = vmatprep.subr.bf16.mxu0 0
        %5358 = vmatpush1.bf16.msra.mxu0 %v5341
        %5359 = vmatprep.subr.bf16.mxu0 0
        %5360 = vmatpush1.bf16.msra.mxu0 %v5340
        %5361 = vmatprep.subr.bf16.mxu0 0
        %5362 = vmatpush1.bf16.msra.mxu0 %v5339
        %5363 = vmatprep.subr.bf16.mxu0 0
        %5364 = vmatpush1.bf16.msra.mxu0 %v5338
        %5365 = vmatprep.subr.bf16.mxu0 0
        %5366 = vmatpush2.bf16.msra.mxu0 0
        %5367 = vmatprep.subr.bf16.mxu0 0
        %5368 = vmatpush2.bf16.msra.mxu0 0
        %5369 = vmatprep.subr.bf16.mxu0 0
        %5370 = vmatpush2.bf16.msra.mxu0 0
        %5371 = vmatprep.subr.bf16.mxu0 0
        %5372 = vmatpush2.bf16.msra.mxu0 0
        %5373 = vmatprep.subr.bf16.mxu0 0
        %5374 = vmatpush2.bf16.msra.mxu0 0
        %5375 = vmatprep.subr.bf16.mxu0 0
        %5376 = vmatpush2.bf16.msra.mxu0 0
        %5377 = vmatprep.subr.bf16.mxu0 0
        %5378 = vmatpush2.bf16.msra.mxu0 0
        %5379 = vmatprep.subr.bf16.mxu0 0
        %5380 = vmatpush2.bf16.msra.mxu0 0
        %5381 = vmatprep.mubr.bf16.mxu0 0
        %5382 = vmatmul.mubr.bf16.gmra.mxu0 %v5347
        %v5383 = vpop.f32.mrf.mxu0
        %v5384 = vadd.f32 0.0, %v5383
        %v5385 = vpop.f32.mrf.mxu0
        %v5386 = vpop.f32.mrf.mxu0
        %v5387 = vpop.f32.mrf.mxu0
        %5388 = vdwg.mxu0
        %v5397 = vunpack.c.l.b16 %v5259
        %v5398 = vunpack.c.l.b16 %v5260
        %v5399 = vunpack.c.l.b16 %v5261
        %v5400 = vunpack.c.l.b16 %v5262
        %v5401 = vunpack.c.l.b16 %v5263
        %v5402 = vunpack.c.l.b16 %v5264
        %v5403 = vunpack.c.l.b16 %v5265
        %v5404 = vunpack.c.l.b16 %v5266
        %v5405 = vpack.c.b16 %v5398, %v5397
        %v5406 = vpack.c.b16 %v5400, %v5399
        %v5407 = vpack.c.b16 %v5402, %v5401
        %v5408 = vpack.c.b16 %v5404, %v5403
        %v5414 = vsel %vm3051, %v5258, 0
        %5416 = vmatprep.subr.bf16.mxu0 0
        %5417 = vmatpush1.bf16.msra.mxu0 0
        %5418 = vmatprep.subr.bf16.mxu0 0
        %5419 = vmatpush1.bf16.msra.mxu0 0
        %5420 = vmatprep.subr.bf16.mxu0 0
        %5421 = vmatpush1.bf16.msra.mxu0 0
        %5422 = vmatprep.subr.bf16.mxu0 0
        %5423 = vmatpush1.bf16.msra.mxu0 0
        %5424 = vmatprep.subr.bf16.mxu0 0
        %5425 = vmatpush1.bf16.msra.mxu0 %v5408
        %5426 = vmatprep.subr.bf16.mxu0 0
        %5427 = vmatpush1.bf16.msra.mxu0 %v5407
        %5428 = vmatprep.subr.bf16.mxu0 0
        %5429 = vmatpush1.bf16.msra.mxu0 %v5406
        %5430 = vmatprep.subr.bf16.mxu0 0
        %5431 = vmatpush1.bf16.msra.mxu0 %v5405
        %5432 = vmatprep.subr.bf16.mxu0 0
        %5433 = vmatpush2.bf16.msra.mxu0 0
        %5434 = vmatprep.subr.bf16.mxu0 0
        %5435 = vmatpush2.bf16.msra.mxu0 0
        %5436 = vmatprep.subr.bf16.mxu0 0
        %5437 = vmatpush2.bf16.msra.mxu0 0
        %5438 = vmatprep.subr.bf16.mxu0 0
        %5439 = vmatpush2.bf16.msra.mxu0 0
        %5440 = vmatprep.subr.bf16.mxu0 0
        %5441 = vmatpush2.bf16.msra.mxu0 0
        %5442 = vmatprep.subr.bf16.mxu0 0
        %5443 = vmatpush2.bf16.msra.mxu0 0
        %5444 = vmatprep.subr.bf16.mxu0 0
        %5445 = vmatpush2.bf16.msra.mxu0 0
        %5446 = vmatprep.subr.bf16.mxu0 0
        %5447 = vmatpush2.bf16.msra.mxu0 0
        %5448 = vmatprep.mubr.bf16.mxu0 0
        %5449 = vmatmul.mubr.bf16.gmra.mxu0 %v5414
        %v5450 = vpop.f32.mrf.mxu0
        %v5451 = vadd.f32 %v5384, %v5450
        %v5452 = vpop.f32.mrf.mxu0
        %v5453 = vpop.f32.mrf.mxu0
        %v5454 = vpop.f32.mrf.mxu0
        %5455 = vdwg.mxu0
        %s5456 = scalar_lea.vmem %s12, 2
        %v5457 = vld [vmem:[%s5456] sm:$0x1]
        %v5459 = vsel %vm5210, %v5457, 0
        %5461 = vmatprep.subr.bf16.mxu0 0
        %5462 = vmatpush1.bf16.msra.mxu0 0
        %5463 = vmatprep.subr.bf16.mxu0 0
        %5464 = vmatpush1.bf16.msra.mxu0 0
        %5465 = vmatprep.subr.bf16.mxu0 0
        %5466 = vmatpush1.bf16.msra.mxu0 0
        %5467 = vmatprep.subr.bf16.mxu0 0
        %5468 = vmatpush1.bf16.msra.mxu0 0
        %5469 = vmatprep.subr.bf16.mxu0 0
        %5470 = vmatpush1.bf16.msra.mxu0 0
        %5471 = vmatprep.subr.bf16.mxu0 0
        %5472 = vmatpush1.bf16.msra.mxu0 0
        %5473 = vmatprep.subr.bf16.mxu0 0
        %5474 = vmatpush1.bf16.msra.mxu0 0
        %5475 = vmatprep.subr.bf16.mxu0 0
        %5476 = vmatpush1.bf16.msra.mxu0 %v5216
        %5477 = vmatprep.subr.bf16.mxu0 0
        %5478 = vmatpush2.bf16.msra.mxu0 0
        %5479 = vmatprep.subr.bf16.mxu0 0
        %5480 = vmatpush2.bf16.msra.mxu0 0
        %5481 = vmatprep.subr.bf16.mxu0 0
        %5482 = vmatpush2.bf16.msra.mxu0 0
        %5483 = vmatprep.subr.bf16.mxu0 0
        %5484 = vmatpush2.bf16.msra.mxu0 0
        %5485 = vmatprep.subr.bf16.mxu0 0
        %5486 = vmatpush2.bf16.msra.mxu0 0
        %5487 = vmatprep.subr.bf16.mxu0 0
        %5488 = vmatpush2.bf16.msra.mxu0 0
        %5489 = vmatprep.subr.bf16.mxu0 0
        %5490 = vmatpush2.bf16.msra.mxu0 0
        %5491 = vmatprep.subr.bf16.mxu0 0
        %5492 = vmatpush2.bf16.msra.mxu0 0
        %5493 = vmatprep.mubr.bf16.mxu0 0
        %5494 = vmatmul.mubr.bf16.gmra.mxu0 %v5459
        %v5495 = vpop.f32.mrf.mxu0
        %v5496 = vadd.f32 0.0, %v5495
        %v5497 = vpop.f32.mrf.mxu0
        %v5498 = vpop.f32.mrf.mxu0
        %v5499 = vpop.f32.mrf.mxu0
        %5500 = vdwg.mxu0
        %v5501 = vpack.c.bf16 %v5496, %v5496
        %s5502 = scalar_lea.vmem %s13, 64
        %v5503 = vld [vmem:[%s5502] sm:$0xf]
        %v5504 = vld [vmem:[%s5502 + $0x4] sm:$0xf]
        %v5505 = vld [vmem:[%s5502 + $0x8] sm:$0xf]
        %v5506 = vld [vmem:[%s5502 + $0xc] sm:$0xf]
        %v5507 = vld [vmem:[%s5502 + $0x10] sm:$0xf]
        %v5508 = vld [vmem:[%s5502 + $0x14] sm:$0xf]
        %v5509 = vld [vmem:[%s5502 + $0x18] sm:$0xf]
        %v5510 = vld [vmem:[%s5502 + $0x1c] sm:$0xf]
        %v5519 = vunpack.c.l.b16 %v5503
        %v5520 = vunpack.c.l.b16 %v5504
        %v5521 = vunpack.c.l.b16 %v5505
        %v5522 = vunpack.c.l.b16 %v5506
        %v5523 = vunpack.c.l.b16 %v5507
        %v5524 = vunpack.c.l.b16 %v5508
        %v5525 = vunpack.c.l.b16 %v5509
        %v5526 = vunpack.c.l.b16 %v5510
        %v5527 = vpack.c.b16 %v5520, %v5519
        %v5528 = vpack.c.b16 %v5522, %v5521
        %v5529 = vpack.c.b16 %v5524, %v5523
        %v5530 = vpack.c.b16 %v5526, %v5525
        %v5536 = vsel %vm3051, %v5501, 0
        %5538 = vmatprep.subr.bf16.mxu0 0
        %5539 = vmatpush1.bf16.msra.mxu0 0
        %5540 = vmatprep.subr.bf16.mxu0 0
        %5541 = vmatpush1.bf16.msra.mxu0 0
        %5542 = vmatprep.subr.bf16.mxu0 0
        %5543 = vmatpush1.bf16.msra.mxu0 0
        %5544 = vmatprep.subr.bf16.mxu0 0
        %5545 = vmatpush1.bf16.msra.mxu0 0
        %5546 = vmatprep.subr.bf16.mxu0 0
        %5547 = vmatpush1.bf16.msra.mxu0 %v5530
        %5548 = vmatprep.subr.bf16.mxu0 0
        %5549 = vmatpush1.bf16.msra.mxu0 %v5529
        %5550 = vmatprep.subr.bf16.mxu0 0
        %5551 = vmatpush1.bf16.msra.mxu0 %v5528
        %5552 = vmatprep.subr.bf16.mxu0 0
        %5553 = vmatpush1.bf16.msra.mxu0 %v5527
        %5554 = vmatprep.subr.bf16.mxu0 0
        %5555 = vmatpush2.bf16.msra.mxu0 0
        %5556 = vmatprep.subr.bf16.mxu0 0
        %5557 = vmatpush2.bf16.msra.mxu0 0
        %5558 = vmatprep.subr.bf16.mxu0 0
        %5559 = vmatpush2.bf16.msra.mxu0 0
        %5560 = vmatprep.subr.bf16.mxu0 0
        %5561 = vmatpush2.bf16.msra.mxu0 0
        %5562 = vmatprep.subr.bf16.mxu0 0
        %5563 = vmatpush2.bf16.msra.mxu0 0
        %5564 = vmatprep.subr.bf16.mxu0 0
        %5565 = vmatpush2.bf16.msra.mxu0 0
        %5566 = vmatprep.subr.bf16.mxu0 0
        %5567 = vmatpush2.bf16.msra.mxu0 0
        %5568 = vmatprep.subr.bf16.mxu0 0
        %5569 = vmatpush2.bf16.msra.mxu0 0
        %5570 = vmatprep.mubr.bf16.mxu0 0
        %5571 = vmatmul.mubr.bf16.gmra.mxu0 %v5536
        %v5572 = vpop.f32.mrf.mxu0
        %v5573 = vadd.f32 0.0, %v5572
        %v5574 = vpop.f32.mrf.mxu0
        %v5575 = vpop.f32.mrf.mxu0
        %v5576 = vpop.f32.mrf.mxu0
        %5577 = vdwg.mxu0
        %v5578 = vadd.f32 %v5451, %v5573
        %s5579 = scalar_lea.vmem %s12, 3
        %v5580 = vld [vmem:[%s5579] sm:$0x1]
        %v5582 = vsel %vm5210, %v5580, 0
        %5584 = vmatprep.subr.bf16.mxu0 0
        %5585 = vmatpush1.bf16.msra.mxu0 0
        %5586 = vmatprep.subr.bf16.mxu0 0
        %5587 = vmatpush1.bf16.msra.mxu0 0
        %5588 = vmatprep.subr.bf16.mxu0 0
        %5589 = vmatpush1.bf16.msra.mxu0 0
        %5590 = vmatprep.subr.bf16.mxu0 0
        %5591 = vmatpush1.bf16.msra.mxu0 0
        %5592 = vmatprep.subr.bf16.mxu0 0
        %5593 = vmatpush1.bf16.msra.mxu0 0
        %5594 = vmatprep.subr.bf16.mxu0 0
        %5595 = vmatpush1.bf16.msra.mxu0 0
        %5596 = vmatprep.subr.bf16.mxu0 0
        %5597 = vmatpush1.bf16.msra.mxu0 0
        %5598 = vmatprep.subr.bf16.mxu0 0
        %5599 = vmatpush1.bf16.msra.mxu0 %v5216
        %5600 = vmatprep.subr.bf16.mxu0 0
        %5601 = vmatpush2.bf16.msra.mxu0 0
        %5602 = vmatprep.subr.bf16.mxu0 0
        %5603 = vmatpush2.bf16.msra.mxu0 0
        %5604 = vmatprep.subr.bf16.mxu0 0
        %5605 = vmatpush2.bf16.msra.mxu0 0
        %5606 = vmatprep.subr.bf16.mxu0 0
        %5607 = vmatpush2.bf16.msra.mxu0 0
        %5608 = vmatprep.subr.bf16.mxu0 0
        %5609 = vmatpush2.bf16.msra.mxu0 0
        %5610 = vmatprep.subr.bf16.mxu0 0
        %5611 = vmatpush2.bf16.msra.mxu0 0
        %5612 = vmatprep.subr.bf16.mxu0 0
        %5613 = vmatpush2.bf16.msra.mxu0 0
        %5614 = vmatprep.subr.bf16.mxu0 0
        %5615 = vmatpush2.bf16.msra.mxu0 0
        %5616 = vmatprep.mubr.bf16.mxu0 0
        %5617 = vmatmul.mubr.bf16.gmra.mxu0 %v5582
        %v5618 = vpop.f32.mrf.mxu0
        %v5619 = vadd.f32 0.0, %v5618
        %v5620 = vpop.f32.mrf.mxu0
        %v5621 = vpop.f32.mrf.mxu0
        %v5622 = vpop.f32.mrf.mxu0
        %5623 = vdwg.mxu0
        %v5624 = vpack.c.bf16 %v5619, %v5619
        %s5625 = scalar_lea.vmem %s13, 96
        %v5626 = vld [vmem:[%s5625] sm:$0xf]
        %v5627 = vld [vmem:[%s5625 + $0x4] sm:$0xf]
        %v5628 = vld [vmem:[%s5625 + $0x8] sm:$0xf]
        %v5629 = vld [vmem:[%s5625 + $0xc] sm:$0xf]
        %v5630 = vld [vmem:[%s5625 + $0x10] sm:$0xf]
        %v5631 = vld [vmem:[%s5625 + $0x14] sm:$0xf]
        %v5632 = vld [vmem:[%s5625 + $0x18] sm:$0xf]
        %v5633 = vld [vmem:[%s5625 + $0x1c] sm:$0xf]
        %v5642 = vunpack.c.l.b16 %v5626
        %v5643 = vunpack.c.l.b16 %v5627
        %v5644 = vunpack.c.l.b16 %v5628
        %v5645 = vunpack.c.l.b16 %v5629
        %v5646 = vunpack.c.l.b16 %v5630
        %v5647 = vunpack.c.l.b16 %v5631
        %v5648 = vunpack.c.l.b16 %v5632
        %v5649 = vunpack.c.l.b16 %v5633
        %v5650 = vpack.c.b16 %v5643, %v5642
        %v5651 = vpack.c.b16 %v5645, %v5644
        %v5652 = vpack.c.b16 %v5647, %v5646
        %v5653 = vpack.c.b16 %v5649, %v5648
        %v5659 = vsel %vm3051, %v5624, 0
        %5661 = vmatprep.subr.bf16.mxu0 0
        %5662 = vmatpush1.bf16.msra.mxu0 0
        %5663 = vmatprep.subr.bf16.mxu0 0
        %5664 = vmatpush1.bf16.msra.mxu0 0
        %5665 = vmatprep.subr.bf16.mxu0 0
        %5666 = vmatpush1.bf16.msra.mxu0 0
        %5667 = vmatprep.subr.bf16.mxu0 0
        %5668 = vmatpush1.bf16.msra.mxu0 0
        %5669 = vmatprep.subr.bf16.mxu0 0
        %5670 = vmatpush1.bf16.msra.mxu0 %v5653
        %5671 = vmatprep.subr.bf16.mxu0 0
        %5672 = vmatpush1.bf16.msra.mxu0 %v5652
        %5673 = vmatprep.subr.bf16.mxu0 0
        %5674 = vmatpush1.bf16.msra.mxu0 %v5651
        %5675 = vmatprep.subr.bf16.mxu0 0
        %5676 = vmatpush1.bf16.msra.mxu0 %v5650
        %5677 = vmatprep.subr.bf16.mxu0 0
        %5678 = vmatpush2.bf16.msra.mxu0 0
        %5679 = vmatprep.subr.bf16.mxu0 0
        %5680 = vmatpush2.bf16.msra.mxu0 0
        %5681 = vmatprep.subr.bf16.mxu0 0
        %5682 = vmatpush2.bf16.msra.mxu0 0
        %5683 = vmatprep.subr.bf16.mxu0 0
        %5684 = vmatpush2.bf16.msra.mxu0 0
        %5685 = vmatprep.subr.bf16.mxu0 0
        %5686 = vmatpush2.bf16.msra.mxu0 0
        %5687 = vmatprep.subr.bf16.mxu0 0
        %5688 = vmatpush2.bf16.msra.mxu0 0
        %5689 = vmatprep.subr.bf16.mxu0 0
        %5690 = vmatpush2.bf16.msra.mxu0 0
        %5691 = vmatprep.subr.bf16.mxu0 0
        %5692 = vmatpush2.bf16.msra.mxu0 0
        %5693 = vmatprep.mubr.bf16.mxu0 0
        %5694 = vmatmul.mubr.bf16.gmra.mxu0 %v5659
        %v5695 = vpop.f32.mrf.mxu0
        %v5696 = vadd.f32 0.0, %v5695
        %v5697 = vpop.f32.mrf.mxu0
        %v5698 = vpop.f32.mrf.mxu0
        %v5699 = vpop.f32.mrf.mxu0
        %5700 = vdwg.mxu0
        %v5701 = vadd.f32 %v5578, %v5696
        %v5702 = vld [vmem:[%s14] sm:$0x1]
        %v5703 = vadd.f32 %v5701, %v5702
        %v5704 = vmax.f32 %v5703, 0.0
        %v5705 = vpack.c.bf16 %v5704, %v5704
        %v5706 = vld [vmem:[%s15] sm:$0xf]
        %v5707 = vld [vmem:[%s15 + $0x4] sm:$0xf]
        %v5708 = vld [vmem:[%s15 + $0x8] sm:$0xf]
        %v5709 = vld [vmem:[%s15 + $0xc] sm:$0xf]
        %v5710 = vld [vmem:[%s15 + $0x10] sm:$0xf]
        %v5711 = vld [vmem:[%s15 + $0x14] sm:$0xf]
        %v5712 = vld [vmem:[%s15 + $0x18] sm:$0xf]
        %v5713 = vld [vmem:[%s15 + $0x1c] sm:$0xf]
        %v5714 = vld [vmem:[%s15 + $0x20] sm:$0xf]
        %v5715 = vld [vmem:[%s15 + $0x24] sm:$0xf]
        %v5716 = vld [vmem:[%s15 + $0x28] sm:$0xf]
        %v5717 = vld [vmem:[%s15 + $0x2c] sm:$0xf]
        %v5718 = vld [vmem:[%s15 + $0x30] sm:$0xf]
        %v5719 = vld [vmem:[%s15 + $0x34] sm:$0xf]
        %v5720 = vld [vmem:[%s15 + $0x38] sm:$0xf]
        %v5721 = vld [vmem:[%s15 + $0x3c] sm:$0xf]
        %v5722 = vld [vmem:[%s16] sm:$0x1]
        %v5739 = vunpack.c.l.b16 %v5706
        %v5740 = vunpack.c.l.b16 %v5707
        %v5741 = vunpack.c.l.b16 %v5708
        %v5742 = vunpack.c.l.b16 %v5709
        %v5743 = vunpack.c.l.b16 %v5710
        %v5744 = vunpack.c.l.b16 %v5711
        %v5745 = vunpack.c.l.b16 %v5712
        %v5746 = vunpack.c.l.b16 %v5713
        %v5747 = vunpack.c.l.b16 %v5714
        %v5748 = vunpack.c.l.b16 %v5715
        %v5749 = vunpack.c.l.b16 %v5716
        %v5750 = vunpack.c.l.b16 %v5717
        %v5751 = vunpack.c.l.b16 %v5718
        %v5752 = vunpack.c.l.b16 %v5719
        %v5753 = vunpack.c.l.b16 %v5720
        %v5754 = vunpack.c.l.b16 %v5721
        %v5755 = vpack.c.b16 %v5740, %v5739
        %v5756 = vpack.c.b16 %v5742, %v5741
        %v5757 = vpack.c.b16 %v5744, %v5743
        %v5758 = vpack.c.b16 %v5746, %v5745
        %v5759 = vpack.c.b16 %v5748, %v5747
        %v5760 = vpack.c.b16 %v5750, %v5749
        %v5761 = vpack.c.b16 %v5752, %v5751
        %v5762 = vpack.c.b16 %v5754, %v5753
        %5771 = vmatprep.subr.bf16.mxu0 0
        %5772 = vmatpush1.bf16.msra.mxu0 %v5762
        %5773 = vmatprep.subr.bf16.mxu0 0
        %5774 = vmatpush1.bf16.msra.mxu0 %v5761
        %5775 = vmatprep.subr.bf16.mxu0 0
        %5776 = vmatpush1.bf16.msra.mxu0 %v5760
        %5777 = vmatprep.subr.bf16.mxu0 0
        %5778 = vmatpush1.bf16.msra.mxu0 %v5759
        %5779 = vmatprep.subr.bf16.mxu0 0
        %5780 = vmatpush1.bf16.msra.mxu0 %v5758
        %5781 = vmatprep.subr.bf16.mxu0 0
        %5782 = vmatpush1.bf16.msra.mxu0 %v5757
        %5783 = vmatprep.subr.bf16.mxu0 0
        %5784 = vmatpush1.bf16.msra.mxu0 %v5756
        %5785 = vmatprep.subr.bf16.mxu0 0
        %5786 = vmatpush1.bf16.msra.mxu0 %v5755
        %5787 = vmatprep.subr.bf16.mxu0 0
        %5788 = vmatpush2.bf16.msra.mxu0 0
        %5789 = vmatprep.subr.bf16.mxu0 0
        %5790 = vmatpush2.bf16.msra.mxu0 0
        %5791 = vmatprep.subr.bf16.mxu0 0
        %5792 = vmatpush2.bf16.msra.mxu0 0
        %5793 = vmatprep.subr.bf16.mxu0 0
        %5794 = vmatpush2.bf16.msra.mxu0 0
        %5795 = vmatprep.subr.bf16.mxu0 0
        %5796 = vmatpush2.bf16.msra.mxu0 0
        %5797 = vmatprep.subr.bf16.mxu0 0
        %5798 = vmatpush2.bf16.msra.mxu0 0
        %5799 = vmatprep.subr.bf16.mxu0 0
        %5800 = vmatpush2.bf16.msra.mxu0 0
        %5801 = vmatprep.subr.bf16.mxu0 0
        %5802 = vmatpush2.bf16.msra.mxu0 0
        %5803 = vmatprep.mubr.bf16.mxu0 0
        %5804 = vmatmul.mubr.bf16.gmra.mxu0 %v5705
        %v5805 = vpop.f32.mrf.mxu0
        %v5806 = vadd.f32 %v5722, %v5805
        %v5807 = vpop.f32.mrf.mxu0
        %v5808 = vpop.f32.mrf.mxu0
        %v5809 = vpop.f32.mrf.mxu0
        %5810 = vdwg.mxu0
        %v5811 = vmax.f32 %v5806, 0.0
        %v5812 = vpack.c.bf16 %v5811, %v5811
        %v5813 = vld [vmem:[%s17] sm:$0xf]
        %v5814 = vld [vmem:[%s17 + $0x4] sm:$0xf]
        %v5815 = vld [vmem:[%s17 + $0x8] sm:$0xf]
        %v5816 = vld [vmem:[%s17 + $0xc] sm:$0xf]
        %v5817 = vld [vmem:[%s17 + $0x10] sm:$0xf]
        %v5818 = vld [vmem:[%s17 + $0x14] sm:$0xf]
        %v5819 = vld [vmem:[%s17 + $0x18] sm:$0xf]
        %v5820 = vld [vmem:[%s17 + $0x1c] sm:$0xf]
        %v5821 = vld [vmem:[%s17 + $0x20] sm:$0xf]
        %v5822 = vld [vmem:[%s17 + $0x24] sm:$0xf]
        %v5823 = vld [vmem:[%s17 + $0x28] sm:$0xf]
        %v5824 = vld [vmem:[%s17 + $0x2c] sm:$0xf]
        %v5825 = vld [vmem:[%s17 + $0x30] sm:$0xf]
        %v5826 = vld [vmem:[%s17 + $0x34] sm:$0xf]
        %v5827 = vld [vmem:[%s17 + $0x38] sm:$0xf]
        %v5828 = vld [vmem:[%s17 + $0x3c] sm:$0xf]
        %v5829 = vld [vmem:[%s18] sm:$0x1]
        %v5846 = vunpack.c.l.b16 %v5813
        %v5847 = vunpack.c.l.b16 %v5814
        %v5848 = vunpack.c.l.b16 %v5815
        %v5849 = vunpack.c.l.b16 %v5816
        %v5850 = vunpack.c.l.b16 %v5817
        %v5851 = vunpack.c.l.b16 %v5818
        %v5852 = vunpack.c.l.b16 %v5819
        %v5853 = vunpack.c.l.b16 %v5820
        %v5854 = vunpack.c.l.b16 %v5821
        %v5855 = vunpack.c.l.b16 %v5822
        %v5856 = vunpack.c.l.b16 %v5823
        %v5857 = vunpack.c.l.b16 %v5824
        %v5858 = vunpack.c.l.b16 %v5825
        %v5859 = vunpack.c.l.b16 %v5826
        %v5860 = vunpack.c.l.b16 %v5827
        %v5861 = vunpack.c.l.b16 %v5828
        %v5862 = vpack.c.b16 %v5847, %v5846
        %v5863 = vpack.c.b16 %v5849, %v5848
        %v5864 = vpack.c.b16 %v5851, %v5850
        %v5865 = vpack.c.b16 %v5853, %v5852
        %v5866 = vpack.c.b16 %v5855, %v5854
        %v5867 = vpack.c.b16 %v5857, %v5856
        %v5868 = vpack.c.b16 %v5859, %v5858
        %v5869 = vpack.c.b16 %v5861, %v5860
        %5878 = vmatprep.subr.bf16.mxu0 0
        %5879 = vmatpush1.bf16.msra.mxu0 %v5869
        %5880 = vmatprep.subr.bf16.mxu0 0
        %5881 = vmatpush1.bf16.msra.mxu0 %v5868
        %5882 = vmatprep.subr.bf16.mxu0 0
        %5883 = vmatpush1.bf16.msra.mxu0 %v5867
        %5884 = vmatprep.subr.bf16.mxu0 0
        %5885 = vmatpush1.bf16.msra.mxu0 %v5866
        %5886 = vmatprep.subr.bf16.mxu0 0
        %5887 = vmatpush1.bf16.msra.mxu0 %v5865
        %5888 = vmatprep.subr.bf16.mxu0 0
        %5889 = vmatpush1.bf16.msra.mxu0 %v5864
        %5890 = vmatprep.subr.bf16.mxu0 0
        %5891 = vmatpush1.bf16.msra.mxu0 %v5863
        %5892 = vmatprep.subr.bf16.mxu0 0
        %5893 = vmatpush1.bf16.msra.mxu0 %v5862
        %5894 = vmatprep.subr.bf16.mxu0 0
        %5895 = vmatpush2.bf16.msra.mxu0 0
        %5896 = vmatprep.subr.bf16.mxu0 0
        %5897 = vmatpush2.bf16.msra.mxu0 0
        %5898 = vmatprep.subr.bf16.mxu0 0
        %5899 = vmatpush2.bf16.msra.mxu0 0
        %5900 = vmatprep.subr.bf16.mxu0 0
        %5901 = vmatpush2.bf16.msra.mxu0 0
        %5902 = vmatprep.subr.bf16.mxu0 0
        %5903 = vmatpush2.bf16.msra.mxu0 0
        %5904 = vmatprep.subr.bf16.mxu0 0
        %5905 = vmatpush2.bf16.msra.mxu0 0
        %5906 = vmatprep.subr.bf16.mxu0 0
        %5907 = vmatpush2.bf16.msra.mxu0 0
        %5908 = vmatprep.subr.bf16.mxu0 0
        %5909 = vmatpush2.bf16.msra.mxu0 0
        %5910 = vmatprep.mubr.bf16.mxu0 0
        %5911 = vmatmul.mubr.bf16.gmra.mxu0 %v5812
        %v5912 = vpop.f32.mrf.mxu0
        %v5913 = vadd.f32 %v5829, %v5912
        %v5914 = vpop.f32.mrf.mxu0
        %v5915 = vpop.f32.mrf.mxu0
        %v5916 = vpop.f32.mrf.mxu0
        %5917 = vdwg.mxu0
        %v5918 = vmax.f32 %v5913, 0.0
        %v5919 = vpack.c.bf16 %v5918, %v5918
        %v5920 = vld [vmem:[%s19] sm:$0x3]
        %vm5921 = vcmask 7168
        %v5923 = vsel %vm5921, %v5920, 0
        %vm5925 = vcmask 1040384
        %v5926 = vsel 0, 4294967295, 65535
        %v5927 = vsel %vm5925, %v5926, 0
        %v5929 = vand.u32 %v5919, %v5927
        %5931 = vmatprep.subr.bf16.mxu0 0
        %5932 = vmatpush1.bf16.msra.mxu0 0
        %5933 = vmatprep.subr.bf16.mxu0 0
        %5934 = vmatpush1.bf16.msra.mxu0 0
        %5935 = vmatprep.subr.bf16.mxu0 0
        %5936 = vmatpush1.bf16.msra.mxu0 0
        %5937 = vmatprep.subr.bf16.mxu0 0
        %5938 = vmatpush1.bf16.msra.mxu0 0
        %5939 = vmatprep.subr.bf16.mxu0 0
        %5940 = vmatpush1.bf16.msra.mxu0 0
        %5941 = vmatprep.subr.bf16.mxu0 0
        %5942 = vmatpush1.bf16.msra.mxu0 0
        %5943 = vmatprep.subr.bf16.mxu0 0
        %5944 = vmatpush1.bf16.msra.mxu0 0
        %5945 = vmatprep.subr.bf16.mxu0 0
        %5946 = vmatpush1.bf16.msra.mxu0 %v5929
        %5947 = vmatprep.subr.bf16.mxu0 0
        %5948 = vmatpush2.bf16.msra.mxu0 0
        %5949 = vmatprep.subr.bf16.mxu0 0
        %5950 = vmatpush2.bf16.msra.mxu0 0
        %5951 = vmatprep.subr.bf16.mxu0 0
        %5952 = vmatpush2.bf16.msra.mxu0 0
        %5953 = vmatprep.subr.bf16.mxu0 0
        %5954 = vmatpush2.bf16.msra.mxu0 0
        %5955 = vmatprep.subr.bf16.mxu0 0
        %5956 = vmatpush2.bf16.msra.mxu0 0
        %5957 = vmatprep.subr.bf16.mxu0 0
        %5958 = vmatpush2.bf16.msra.mxu0 0
        %5959 = vmatprep.subr.bf16.mxu0 0
        %5960 = vmatpush2.bf16.msra.mxu0 0
        %5961 = vmatprep.subr.bf16.mxu0 0
        %5962 = vmatpush2.bf16.msra.mxu0 0
        %5963 = vmatprep.mubr.bf16.mxu0 0
        %5964 = vmatmul.mubr.bf16.gmra.mxu0 %v5923
        %v5965 = vpop.f32.mrf.mxu0
        %v5966 = vadd.f32 0.0, %v5965
        %v5967 = vpop.f32.mrf.mxu0
        %v5968 = vpop.f32.mrf.mxu0
        %v5969 = vpop.f32.mrf.mxu0
        %5970 = vdwg.mxu0
        %v5971 = vpack.c.bf16 %v5966, %v5966
        %v5972 = vld [vmem:[%s20] sm:$0xff]
        %v5973 = vld [vmem:[%s20 + $0x8] sm:$0xff]
        %v5974 = vld [vmem:[%s20 + $0x10] sm:$0xff]
        %v5975 = vld [vmem:[%s20 + $0x18] sm:$0xff]
        %v5976 = vld [vmem:[%s20 + $0x20] sm:$0xff]
        %v5977 = vld [vmem:[%s20 + $0x28] sm:$0xff]
        %v5978 = vld [vmem:[%s20 + $0x30] sm:$0xff]
        %v5979 = vld [vmem:[%s20 + $0x38] sm:$0xff]
        %v5980 = vld [vmem:[%s20 + $0x40] sm:$0xff]
        %v5981 = vld [vmem:[%s20 + $0x48] sm:$0xff]
        %v5982 = vld [vmem:[%s20 + $0x50] sm:$0xff]
        %v5983 = vld [vmem:[%s20 + $0x58] sm:$0xff]
        %v5984 = vld [vmem:[%s20 + $0x60] sm:$0xff]
        %v5985 = vld [vmem:[%s20 + $0x68] sm:$0xff]
        %v5986 = vld [vmem:[%s20 + $0x70] sm:$0xff]
        %v5987 = vld [vmem:[%s20 + $0x78] sm:$0xff]
        %s5988 = scalar_lea.vmem %s19, 2
        %v5989 = vld [vmem:[%s5988] sm:$0x3]
        %v5991 = vsel %vm5921, %v5989, 0
        %5993 = vmatprep.subr.bf16.mxu0 0
        %5994 = vmatpush1.bf16.msra.mxu0 0
        %5995 = vmatprep.subr.bf16.mxu0 0
        %5996 = vmatpush1.bf16.msra.mxu0 0
        %5997 = vmatprep.subr.bf16.mxu0 0
        %5998 = vmatpush1.bf16.msra.mxu0 0
        %5999 = vmatprep.subr.bf16.mxu0 0
        %6000 = vmatpush1.bf16.msra.mxu0 0
        %6001 = vmatprep.subr.bf16.mxu0 0
        %6002 = vmatpush1.bf16.msra.mxu0 0
        %6003 = vmatprep.subr.bf16.mxu0 0
        %6004 = vmatpush1.bf16.msra.mxu0 0
        %6005 = vmatprep.subr.bf16.mxu0 0
        %6006 = vmatpush1.bf16.msra.mxu0 0
        %6007 = vmatprep.subr.bf16.mxu0 0
        %6008 = vmatpush1.bf16.msra.mxu0 %v5929
        %6009 = vmatprep.subr.bf16.mxu0 0
        %6010 = vmatpush2.bf16.msra.mxu0 0
        %6011 = vmatprep.subr.bf16.mxu0 0
        %6012 = vmatpush2.bf16.msra.mxu0 0
        %6013 = vmatprep.subr.bf16.mxu0 0
        %6014 = vmatpush2.bf16.msra.mxu0 0
        %6015 = vmatprep.subr.bf16.mxu0 0
        %6016 = vmatpush2.bf16.msra.mxu0 0
        %6017 = vmatprep.subr.bf16.mxu0 0
        %6018 = vmatpush2.bf16.msra.mxu0 0
        %6019 = vmatprep.subr.bf16.mxu0 0
        %6020 = vmatpush2.bf16.msra.mxu0 0
        %6021 = vmatprep.subr.bf16.mxu0 0
        %6022 = vmatpush2.bf16.msra.mxu0 0
        %6023 = vmatprep.subr.bf16.mxu0 0
        %6024 = vmatpush2.bf16.msra.mxu0 0
        %6025 = vmatprep.mubr.bf16.mxu0 0
        %6026 = vmatmul.mubr.bf16.gmra.mxu0 %v5991
        %v6027 = vpop.f32.mrf.mxu0
        %v6028 = vadd.f32 0.0, %v6027
        %v6029 = vpop.f32.mrf.mxu0
        %v6030 = vpop.f32.mrf.mxu0
        %v6031 = vpop.f32.mrf.mxu0
        %6032 = vdwg.mxu0
        %v6033 = vpack.c.bf16 %v6028, %v6028
        %s6034 = scalar_lea.vmem %s20, 128
        %v6035 = vld [vmem:[%s6034] sm:$0xff]
        %v6036 = vld [vmem:[%s6034 + $0x8] sm:$0xff]
        %v6037 = vld [vmem:[%s6034 + $0x10] sm:$0xff]
        %v6038 = vld [vmem:[%s6034 + $0x18] sm:$0xff]
        %v6039 = vld [vmem:[%s6034 + $0x20] sm:$0xff]
        %v6040 = vld [vmem:[%s6034 + $0x28] sm:$0xff]
        %v6041 = vld [vmem:[%s6034 + $0x30] sm:$0xff]
        %v6042 = vld [vmem:[%s6034 + $0x38] sm:$0xff]
        %v6043 = vld [vmem:[%s6034 + $0x40] sm:$0xff]
        %v6044 = vld [vmem:[%s6034 + $0x48] sm:$0xff]
        %v6045 = vld [vmem:[%s6034 + $0x50] sm:$0xff]
        %v6046 = vld [vmem:[%s6034 + $0x58] sm:$0xff]
        %v6047 = vld [vmem:[%s6034 + $0x60] sm:$0xff]
        %v6048 = vld [vmem:[%s6034 + $0x68] sm:$0xff]
        %v6049 = vld [vmem:[%s6034 + $0x70] sm:$0xff]
        %v6050 = vld [vmem:[%s6034 + $0x78] sm:$0xff]
        %v6067 = vunpack.c.l.b16 %v6035
        %v6068 = vunpack.c.h.b16 %v6035
        %v6069 = vunpack.c.l.b16 %v6036
        %v6070 = vunpack.c.h.b16 %v6036
        %v6071 = vunpack.c.l.b16 %v6037
        %v6072 = vunpack.c.h.b16 %v6037
        %v6073 = vunpack.c.l.b16 %v6038
        %v6074 = vunpack.c.h.b16 %v6038
        %v6075 = vunpack.c.l.b16 %v6039
        %v6076 = vunpack.c.h.b16 %v6039
        %v6077 = vunpack.c.l.b16 %v6040
        %v6078 = vunpack.c.h.b16 %v6040
        %v6079 = vunpack.c.l.b16 %v6041
        %v6080 = vunpack.c.h.b16 %v6041
        %v6081 = vunpack.c.l.b16 %v6042
        %v6082 = vunpack.c.h.b16 %v6042
        %v6083 = vunpack.c.l.b16 %v6043
        %v6084 = vunpack.c.h.b16 %v6043
        %v6085 = vunpack.c.l.b16 %v6044
        %v6086 = vunpack.c.h.b16 %v6044
        %v6087 = vunpack.c.l.b16 %v6045
        %v6088 = vunpack.c.h.b16 %v6045
        %v6089 = vunpack.c.l.b16 %v6046
        %v6090 = vunpack.c.h.b16 %v6046
        %v6091 = vunpack.c.l.b16 %v6047
        %v6092 = vunpack.c.h.b16 %v6047
        %v6093 = vunpack.c.l.b16 %v6048
        %v6094 = vunpack.c.h.b16 %v6048
        %v6095 = vunpack.c.l.b16 %v6049
        %v6096 = vunpack.c.h.b16 %v6049
        %v6097 = vunpack.c.l.b16 %v6050
        %v6098 = vunpack.c.h.b16 %v6050
        %v6099 = vpack.c.b16 %v6069, %v6067
        %v6100 = vpack.c.b16 %v6070, %v6068
        %v6101 = vpack.c.b16 %v6073, %v6071
        %v6102 = vpack.c.b16 %v6074, %v6072
        %v6103 = vpack.c.b16 %v6077, %v6075
        %v6104 = vpack.c.b16 %v6078, %v6076
        %v6105 = vpack.c.b16 %v6081, %v6079
        %v6106 = vpack.c.b16 %v6082, %v6080
        %v6107 = vpack.c.b16 %v6085, %v6083
        %v6108 = vpack.c.b16 %v6086, %v6084
        %v6109 = vpack.c.b16 %v6089, %v6087
        %v6110 = vpack.c.b16 %v6090, %v6088
        %v6111 = vpack.c.b16 %v6093, %v6091
        %v6112 = vpack.c.b16 %v6094, %v6092
        %v6113 = vpack.c.b16 %v6097, %v6095
        %v6114 = vpack.c.b16 %v6098, %v6096
        %6131 = vmatprep.subr.bf16.mxu0 %v6114
        %6132 = vmatpush1.bf16.msra.mxu0 %v6113
        %6133 = vmatprep.subr.bf16.mxu0 %v6112
        %6134 = vmatpush1.bf16.msra.mxu0 %v6111
        %6135 = vmatprep.subr.bf16.mxu0 %v6110
        %6136 = vmatpush1.bf16.msra.mxu0 %v6109
        %6137 = vmatprep.subr.bf16.mxu0 %v6108
        %6138 = vmatpush1.bf16.msra.mxu0 %v6107
        %6139 = vmatprep.subr.bf16.mxu0 %v6106
        %6140 = vmatpush1.bf16.msra.mxu0 %v6105
        %6141 = vmatprep.subr.bf16.mxu0 %v6104
        %6142 = vmatpush1.bf16.msra.mxu0 %v6103
        %6143 = vmatprep.subr.bf16.mxu0 %v6102
        %6144 = vmatpush1.bf16.msra.mxu0 %v6101
        %6145 = vmatprep.subr.bf16.mxu0 %v6100
        %6146 = vmatpush1.bf16.msra.mxu0 %v6099
        %6147 = vmatprep.subr.bf16.mxu0 0
        %6148 = vmatpush2.bf16.msra.mxu0 0
        %6149 = vmatprep.subr.bf16.mxu0 0
        %6150 = vmatpush2.bf16.msra.mxu0 0
        %6151 = vmatprep.subr.bf16.mxu0 0
        %6152 = vmatpush2.bf16.msra.mxu0 0
        %6153 = vmatprep.subr.bf16.mxu0 0
        %6154 = vmatpush2.bf16.msra.mxu0 0
        %6155 = vmatprep.subr.bf16.mxu0 0
        %6156 = vmatpush2.bf16.msra.mxu0 0
        %6157 = vmatprep.subr.bf16.mxu0 0
        %6158 = vmatpush2.bf16.msra.mxu0 0
        %6159 = vmatprep.subr.bf16.mxu0 0
        %6160 = vmatpush2.bf16.msra.mxu0 0
        %6161 = vmatprep.subr.bf16.mxu0 0
        %6162 = vmatpush2.bf16.msra.mxu0 0
        %6163 = vmatprep.mubr.bf16.mxu0 0
        %6164 = vmatmul.mubr.bf16.gmra.mxu0 %v6033
        %v6165 = vpop.f32.mrf.mxu0
        %v6166 = vadd.f32 0.0, %v6165
        %v6167 = vpop.f32.mrf.mxu0
        %v6168 = vadd.f32 0.0, %v6167
        %v6169 = vpop.f32.mrf.mxu0
        %v6170 = vpop.f32.mrf.mxu0
        %6171 = vdwg.mxu0
        %v6188 = vunpack.c.l.b16 %v5972
        %v6189 = vunpack.c.h.b16 %v5972
        %v6190 = vunpack.c.l.b16 %v5973
        %v6191 = vunpack.c.h.b16 %v5973
        %v6192 = vunpack.c.l.b16 %v5974
        %v6193 = vunpack.c.h.b16 %v5974
        %v6194 = vunpack.c.l.b16 %v5975
        %v6195 = vunpack.c.h.b16 %v5975
        %v6196 = vunpack.c.l.b16 %v5976
        %v6197 = vunpack.c.h.b16 %v5976
        %v6198 = vunpack.c.l.b16 %v5977
        %v6199 = vunpack.c.h.b16 %v5977
        %v6200 = vunpack.c.l.b16 %v5978
        %v6201 = vunpack.c.h.b16 %v5978
        %v6202 = vunpack.c.l.b16 %v5979
        %v6203 = vunpack.c.h.b16 %v5979
        %v6204 = vunpack.c.l.b16 %v5980
        %v6205 = vunpack.c.h.b16 %v5980
        %v6206 = vunpack.c.l.b16 %v5981
        %v6207 = vunpack.c.h.b16 %v5981
        %v6208 = vunpack.c.l.b16 %v5982
        %v6209 = vunpack.c.h.b16 %v5982
        %v6210 = vunpack.c.l.b16 %v5983
        %v6211 = vunpack.c.h.b16 %v5983
        %v6212 = vunpack.c.l.b16 %v5984
        %v6213 = vunpack.c.h.b16 %v5984
        %v6214 = vunpack.c.l.b16 %v5985
        %v6215 = vunpack.c.h.b16 %v5985
        %v6216 = vunpack.c.l.b16 %v5986
        %v6217 = vunpack.c.h.b16 %v5986
        %v6218 = vunpack.c.l.b16 %v5987
        %v6219 = vunpack.c.h.b16 %v5987
        %v6220 = vpack.c.b16 %v6190, %v6188
        %v6221 = vpack.c.b16 %v6191, %v6189
        %v6222 = vpack.c.b16 %v6194, %v6192
        %v6223 = vpack.c.b16 %v6195, %v6193
        %v6224 = vpack.c.b16 %v6198, %v6196
        %v6225 = vpack.c.b16 %v6199, %v6197
        %v6226 = vpack.c.b16 %v6202, %v6200
        %v6227 = vpack.c.b16 %v6203, %v6201
        %v6228 = vpack.c.b16 %v6206, %v6204
        %v6229 = vpack.c.b16 %v6207, %v6205
        %v6230 = vpack.c.b16 %v6210, %v6208
        %v6231 = vpack.c.b16 %v6211, %v6209
        %v6232 = vpack.c.b16 %v6214, %v6212
        %v6233 = vpack.c.b16 %v6215, %v6213
        %v6234 = vpack.c.b16 %v6218, %v6216
        %v6235 = vpack.c.b16 %v6219, %v6217
        %6252 = vmatprep.subr.bf16.mxu0 %v6235
        %6253 = vmatpush1.bf16.msra.mxu0 %v6234
        %6254 = vmatprep.subr.bf16.mxu0 %v6233
        %6255 = vmatpush1.bf16.msra.mxu0 %v6232
        %6256 = vmatprep.subr.bf16.mxu0 %v6231
        %6257 = vmatpush1.bf16.msra.mxu0 %v6230
        %6258 = vmatprep.subr.bf16.mxu0 %v6229
        %6259 = vmatpush1.bf16.msra.mxu0 %v6228
        %6260 = vmatprep.subr.bf16.mxu0 %v6227
        %6261 = vmatpush1.bf16.msra.mxu0 %v6226
        %6262 = vmatprep.subr.bf16.mxu0 %v6225
        %6263 = vmatpush1.bf16.msra.mxu0 %v6224
        %6264 = vmatprep.subr.bf16.mxu0 %v6223
        %6265 = vmatpush1.bf16.msra.mxu0 %v6222
        %6266 = vmatprep.subr.bf16.mxu0 %v6221
        %6267 = vmatpush1.bf16.msra.mxu0 %v6220
        %6268 = vmatprep.subr.bf16.mxu0 0
        %6269 = vmatpush2.bf16.msra.mxu0 0
        %6270 = vmatprep.subr.bf16.mxu0 0
        %6271 = vmatpush2.bf16.msra.mxu0 0
        %6272 = vmatprep.subr.bf16.mxu0 0
        %6273 = vmatpush2.bf16.msra.mxu0 0
        %6274 = vmatprep.subr.bf16.mxu0 0
        %6275 = vmatpush2.bf16.msra.mxu0 0
        %6276 = vmatprep.subr.bf16.mxu0 0
        %6277 = vmatpush2.bf16.msra.mxu0 0
        %6278 = vmatprep.subr.bf16.mxu0 0
        %6279 = vmatpush2.bf16.msra.mxu0 0
        %6280 = vmatprep.subr.bf16.mxu0 0
        %6281 = vmatpush2.bf16.msra.mxu0 0
        %6282 = vmatprep.subr.bf16.mxu0 0
        %6283 = vmatpush2.bf16.msra.mxu0 0
        %6284 = vmatprep.mubr.bf16.mxu0 0
        %6285 = vmatmul.mubr.bf16.gmra.mxu0 %v5971
        %v6286 = vpop.f32.mrf.mxu0
        %v6287 = vadd.f32 %v6166, %v6286
        %v6288 = vpop.f32.mrf.mxu0
        %v6289 = vadd.f32 %v6168, %v6288
        %v6290 = vpop.f32.mrf.mxu0
        %v6291 = vpop.f32.mrf.mxu0
        %6292 = vdwg.mxu0
        %s6293 = scalar_lea.vmem %s19, 4
        %v6294 = vld [vmem:[%s6293] sm:$0x3]
        %v6296 = vsel %vm5921, %v6294, 0
        %6298 = vmatprep.subr.bf16.mxu0 0
        %6299 = vmatpush1.bf16.msra.mxu0 0
        %6300 = vmatprep.subr.bf16.mxu0 0
        %6301 = vmatpush1.bf16.msra.mxu0 0
        %6302 = vmatprep.subr.bf16.mxu0 0
        %6303 = vmatpush1.bf16.msra.mxu0 0
        %6304 = vmatprep.subr.bf16.mxu0 0
        %6305 = vmatpush1.bf16.msra.mxu0 0
        %6306 = vmatprep.subr.bf16.mxu0 0
        %6307 = vmatpush1.bf16.msra.mxu0 0
        %6308 = vmatprep.subr.bf16.mxu0 0
        %6309 = vmatpush1.bf16.msra.mxu0 0
        %6310 = vmatprep.subr.bf16.mxu0 0
        %6311 = vmatpush1.bf16.msra.mxu0 0
        %6312 = vmatprep.subr.bf16.mxu0 0
        %6313 = vmatpush1.bf16.msra.mxu0 %v5929
        %6314 = vmatprep.subr.bf16.mxu0 0
        %6315 = vmatpush2.bf16.msra.mxu0 0
        %6316 = vmatprep.subr.bf16.mxu0 0
        %6317 = vmatpush2.bf16.msra.mxu0 0
        %6318 = vmatprep.subr.bf16.mxu0 0
        %6319 = vmatpush2.bf16.msra.mxu0 0
        %6320 = vmatprep.subr.bf16.mxu0 0
        %6321 = vmatpush2.bf16.msra.mxu0 0
        %6322 = vmatprep.subr.bf16.mxu0 0
        %6323 = vmatpush2.bf16.msra.mxu0 0
        %6324 = vmatprep.subr.bf16.mxu0 0
        %6325 = vmatpush2.bf16.msra.mxu0 0
        %6326 = vmatprep.subr.bf16.mxu0 0
        %6327 = vmatpush2.bf16.msra.mxu0 0
        %6328 = vmatprep.subr.bf16.mxu0 0
        %6329 = vmatpush2.bf16.msra.mxu0 0
        %6330 = vmatprep.mubr.bf16.mxu0 0
        %6331 = vmatmul.mubr.bf16.gmra.mxu0 %v6296
        %v6332 = vpop.f32.mrf.mxu0
        %v6333 = vadd.f32 0.0, %v6332
        %v6334 = vpop.f32.mrf.mxu0
        %v6335 = vpop.f32.mrf.mxu0
        %v6336 = vpop.f32.mrf.mxu0
        %6337 = vdwg.mxu0
        %v6338 = vpack.c.bf16 %v6333, %v6333
        %s6339 = scalar_lea.vmem %s20, 256
        %v6340 = vld [vmem:[%s6339] sm:$0xff]
        %v6341 = vld [vmem:[%s6339 + $0x8] sm:$0xff]
        %v6342 = vld [vmem:[%s6339 + $0x10] sm:$0xff]
        %v6343 = vld [vmem:[%s6339 + $0x18] sm:$0xff]
        %v6344 = vld [vmem:[%s6339 + $0x20] sm:$0xff]
        %v6345 = vld [vmem:[%s6339 + $0x28] sm:$0xff]
        %v6346 = vld [vmem:[%s6339 + $0x30] sm:$0xff]
        %v6347 = vld [vmem:[%s6339 + $0x38] sm:$0xff]
        %v6348 = vld [vmem:[%s6339 + $0x40] sm:$0xff]
        %v6349 = vld [vmem:[%s6339 + $0x48] sm:$0xff]
        %v6350 = vld [vmem:[%s6339 + $0x50] sm:$0xff]
        %v6351 = vld [vmem:[%s6339 + $0x58] sm:$0xff]
        %v6352 = vld [vmem:[%s6339 + $0x60] sm:$0xff]
        %v6353 = vld [vmem:[%s6339 + $0x68] sm:$0xff]
        %v6354 = vld [vmem:[%s6339 + $0x70] sm:$0xff]
        %v6355 = vld [vmem:[%s6339 + $0x78] sm:$0xff]
        %v6372 = vunpack.c.l.b16 %v6340
        %v6373 = vunpack.c.h.b16 %v6340
        %v6374 = vunpack.c.l.b16 %v6341
        %v6375 = vunpack.c.h.b16 %v6341
        %v6376 = vunpack.c.l.b16 %v6342
        %v6377 = vunpack.c.h.b16 %v6342
        %v6378 = vunpack.c.l.b16 %v6343
        %v6379 = vunpack.c.h.b16 %v6343
        %v6380 = vunpack.c.l.b16 %v6344
        %v6381 = vunpack.c.h.b16 %v6344
        %v6382 = vunpack.c.l.b16 %v6345
        %v6383 = vunpack.c.h.b16 %v6345
        %v6384 = vunpack.c.l.b16 %v6346
        %v6385 = vunpack.c.h.b16 %v6346
        %v6386 = vunpack.c.l.b16 %v6347
        %v6387 = vunpack.c.h.b16 %v6347
        %v6388 = vunpack.c.l.b16 %v6348
        %v6389 = vunpack.c.h.b16 %v6348
        %v6390 = vunpack.c.l.b16 %v6349
        %v6391 = vunpack.c.h.b16 %v6349
        %v6392 = vunpack.c.l.b16 %v6350
        %v6393 = vunpack.c.h.b16 %v6350
        %v6394 = vunpack.c.l.b16 %v6351
        %v6395 = vunpack.c.h.b16 %v6351
        %v6396 = vunpack.c.l.b16 %v6352
        %v6397 = vunpack.c.h.b16 %v6352
        %v6398 = vunpack.c.l.b16 %v6353
        %v6399 = vunpack.c.h.b16 %v6353
        %v6400 = vunpack.c.l.b16 %v6354
        %v6401 = vunpack.c.h.b16 %v6354
        %v6402 = vunpack.c.l.b16 %v6355
        %v6403 = vunpack.c.h.b16 %v6355
        %v6404 = vpack.c.b16 %v6374, %v6372
        %v6405 = vpack.c.b16 %v6375, %v6373
        %v6406 = vpack.c.b16 %v6378, %v6376
        %v6407 = vpack.c.b16 %v6379, %v6377
        %v6408 = vpack.c.b16 %v6382, %v6380
        %v6409 = vpack.c.b16 %v6383, %v6381
        %v6410 = vpack.c.b16 %v6386, %v6384
        %v6411 = vpack.c.b16 %v6387, %v6385
        %v6412 = vpack.c.b16 %v6390, %v6388
        %v6413 = vpack.c.b16 %v6391, %v6389
        %v6414 = vpack.c.b16 %v6394, %v6392
        %v6415 = vpack.c.b16 %v6395, %v6393
        %v6416 = vpack.c.b16 %v6398, %v6396
        %v6417 = vpack.c.b16 %v6399, %v6397
        %v6418 = vpack.c.b16 %v6402, %v6400
        %v6419 = vpack.c.b16 %v6403, %v6401
        %6436 = vmatprep.subr.bf16.mxu0 %v6419
        %6437 = vmatpush1.bf16.msra.mxu0 %v6418
        %6438 = vmatprep.subr.bf16.mxu0 %v6417
        %6439 = vmatpush1.bf16.msra.mxu0 %v6416
        %6440 = vmatprep.subr.bf16.mxu0 %v6415
        %6441 = vmatpush1.bf16.msra.mxu0 %v6414
        %6442 = vmatprep.subr.bf16.mxu0 %v6413
        %6443 = vmatpush1.bf16.msra.mxu0 %v6412
        %6444 = vmatprep.subr.bf16.mxu0 %v6411
        %6445 = vmatpush1.bf16.msra.mxu0 %v6410
        %6446 = vmatprep.subr.bf16.mxu0 %v6409
        %6447 = vmatpush1.bf16.msra.mxu0 %v6408
        %6448 = vmatprep.subr.bf16.mxu0 %v6407
        %6449 = vmatpush1.bf16.msra.mxu0 %v6406
        %6450 = vmatprep.subr.bf16.mxu0 %v6405
        %6451 = vmatpush1.bf16.msra.mxu0 %v6404
        %6452 = vmatprep.subr.bf16.mxu0 0
        %6453 = vmatpush2.bf16.msra.mxu0 0
        %6454 = vmatprep.subr.bf16.mxu0 0
        %6455 = vmatpush2.bf16.msra.mxu0 0
        %6456 = vmatprep.subr.bf16.mxu0 0
        %6457 = vmatpush2.bf16.msra.mxu0 0
        %6458 = vmatprep.subr.bf16.mxu0 0
        %6459 = vmatpush2.bf16.msra.mxu0 0
        %6460 = vmatprep.subr.bf16.mxu0 0
        %6461 = vmatpush2.bf16.msra.mxu0 0
        %6462 = vmatprep.subr.bf16.mxu0 0
        %6463 = vmatpush2.bf16.msra.mxu0 0
        %6464 = vmatprep.subr.bf16.mxu0 0
        %6465 = vmatpush2.bf16.msra.mxu0 0
        %6466 = vmatprep.subr.bf16.mxu0 0
        %6467 = vmatpush2.bf16.msra.mxu0 0
        %6468 = vmatprep.mubr.bf16.mxu0 0
        %6469 = vmatmul.mubr.bf16.gmra.mxu0 %v6338
        %v6470 = vpop.f32.mrf.mxu0
        %v6471 = vadd.f32 0.0, %v6470
        %v6472 = vpop.f32.mrf.mxu0
        %v6473 = vadd.f32 0.0, %v6472
        %v6474 = vpop.f32.mrf.mxu0
        %v6475 = vpop.f32.mrf.mxu0
        %6476 = vdwg.mxu0
        %v6477 = vadd.f32 %v6287, %v6471
        %v6478 = vadd.f32 %v6289, %v6473
        %s6479 = scalar_lea.vmem %s19, 6
        %v6480 = vld [vmem:[%s6479] sm:$0x3]
        %v6482 = vsel %vm5921, %v6480, 0
        %6484 = vmatprep.subr.bf16.mxu0 0
        %6485 = vmatpush1.bf16.msra.mxu0 0
        %6486 = vmatprep.subr.bf16.mxu0 0
        %6487 = vmatpush1.bf16.msra.mxu0 0
        %6488 = vmatprep.subr.bf16.mxu0 0
        %6489 = vmatpush1.bf16.msra.mxu0 0
        %6490 = vmatprep.subr.bf16.mxu0 0
        %6491 = vmatpush1.bf16.msra.mxu0 0
        %6492 = vmatprep.subr.bf16.mxu0 0
        %6493 = vmatpush1.bf16.msra.mxu0 0
        %6494 = vmatprep.subr.bf16.mxu0 0
        %6495 = vmatpush1.bf16.msra.mxu0 0
        %6496 = vmatprep.subr.bf16.mxu0 0
        %6497 = vmatpush1.bf16.msra.mxu0 0
        %6498 = vmatprep.subr.bf16.mxu0 0
        %6499 = vmatpush1.bf16.msra.mxu0 %v5929
        %6500 = vmatprep.subr.bf16.mxu0 0
        %6501 = vmatpush2.bf16.msra.mxu0 0
        %6502 = vmatprep.subr.bf16.mxu0 0
        %6503 = vmatpush2.bf16.msra.mxu0 0
        %6504 = vmatprep.subr.bf16.mxu0 0
        %6505 = vmatpush2.bf16.msra.mxu0 0
        %6506 = vmatprep.subr.bf16.mxu0 0
        %6507 = vmatpush2.bf16.msra.mxu0 0
        %6508 = vmatprep.subr.bf16.mxu0 0
        %6509 = vmatpush2.bf16.msra.mxu0 0
        %6510 = vmatprep.subr.bf16.mxu0 0
        %6511 = vmatpush2.bf16.msra.mxu0 0
        %6512 = vmatprep.subr.bf16.mxu0 0
        %6513 = vmatpush2.bf16.msra.mxu0 0
        %6514 = vmatprep.subr.bf16.mxu0 0
        %6515 = vmatpush2.bf16.msra.mxu0 0
        %6516 = vmatprep.mubr.bf16.mxu0 0
        %6517 = vmatmul.mubr.bf16.gmra.mxu0 %v6482
        %v6518 = vpop.f32.mrf.mxu0
        %v6519 = vadd.f32 0.0, %v6518
        %v6520 = vpop.f32.mrf.mxu0
        %v6521 = vpop.f32.mrf.mxu0
        %v6522 = vpop.f32.mrf.mxu0
        %6523 = vdwg.mxu0
        %v6524 = vpack.c.bf16 %v6519, %v6519
        %s6525 = scalar_lea.vmem %s20, 384
        %v6526 = vld [vmem:[%s6525] sm:$0xff]
        %v6527 = vld [vmem:[%s6525 + $0x8] sm:$0xff]
        %v6528 = vld [vmem:[%s6525 + $0x10] sm:$0xff]
        %v6529 = vld [vmem:[%s6525 + $0x18] sm:$0xff]
        %v6530 = vld [vmem:[%s6525 + $0x20] sm:$0xff]
        %v6531 = vld [vmem:[%s6525 + $0x28] sm:$0xff]
        %v6532 = vld [vmem:[%s6525 + $0x30] sm:$0xff]
        %v6533 = vld [vmem:[%s6525 + $0x38] sm:$0xff]
        %v6534 = vld [vmem:[%s6525 + $0x40] sm:$0xff]
        %v6535 = vld [vmem:[%s6525 + $0x48] sm:$0xff]
        %v6536 = vld [vmem:[%s6525 + $0x50] sm:$0xff]
        %v6537 = vld [vmem:[%s6525 + $0x58] sm:$0xff]
        %v6538 = vld [vmem:[%s6525 + $0x60] sm:$0xff]
        %v6539 = vld [vmem:[%s6525 + $0x68] sm:$0xff]
        %v6540 = vld [vmem:[%s6525 + $0x70] sm:$0xff]
        %v6541 = vld [vmem:[%s6525 + $0x78] sm:$0xff]
        %v6558 = vunpack.c.l.b16 %v6526
        %v6559 = vunpack.c.h.b16 %v6526
        %v6560 = vunpack.c.l.b16 %v6527
        %v6561 = vunpack.c.h.b16 %v6527
        %v6562 = vunpack.c.l.b16 %v6528
        %v6563 = vunpack.c.h.b16 %v6528
        %v6564 = vunpack.c.l.b16 %v6529
        %v6565 = vunpack.c.h.b16 %v6529
        %v6566 = vunpack.c.l.b16 %v6530
        %v6567 = vunpack.c.h.b16 %v6530
        %v6568 = vunpack.c.l.b16 %v6531
        %v6569 = vunpack.c.h.b16 %v6531
        %v6570 = vunpack.c.l.b16 %v6532
        %v6571 = vunpack.c.h.b16 %v6532
        %v6572 = vunpack.c.l.b16 %v6533
        %v6573 = vunpack.c.h.b16 %v6533
        %v6574 = vunpack.c.l.b16 %v6534
        %v6575 = vunpack.c.h.b16 %v6534
        %v6576 = vunpack.c.l.b16 %v6535
        %v6577 = vunpack.c.h.b16 %v6535
        %v6578 = vunpack.c.l.b16 %v6536
        %v6579 = vunpack.c.h.b16 %v6536
        %v6580 = vunpack.c.l.b16 %v6537
        %v6581 = vunpack.c.h.b16 %v6537
        %v6582 = vunpack.c.l.b16 %v6538
        %v6583 = vunpack.c.h.b16 %v6538
        %v6584 = vunpack.c.l.b16 %v6539
        %v6585 = vunpack.c.h.b16 %v6539
        %v6586 = vunpack.c.l.b16 %v6540
        %v6587 = vunpack.c.h.b16 %v6540
        %v6588 = vunpack.c.l.b16 %v6541
        %v6589 = vunpack.c.h.b16 %v6541
        %v6590 = vpack.c.b16 %v6560, %v6558
        %v6591 = vpack.c.b16 %v6561, %v6559
        %v6592 = vpack.c.b16 %v6564, %v6562
        %v6593 = vpack.c.b16 %v6565, %v6563
        %v6594 = vpack.c.b16 %v6568, %v6566
        %v6595 = vpack.c.b16 %v6569, %v6567
        %v6596 = vpack.c.b16 %v6572, %v6570
        %v6597 = vpack.c.b16 %v6573, %v6571
        %v6598 = vpack.c.b16 %v6576, %v6574
        %v6599 = vpack.c.b16 %v6577, %v6575
        %v6600 = vpack.c.b16 %v6580, %v6578
        %v6601 = vpack.c.b16 %v6581, %v6579
        %v6602 = vpack.c.b16 %v6584, %v6582
        %v6603 = vpack.c.b16 %v6585, %v6583
        %v6604 = vpack.c.b16 %v6588, %v6586
        %v6605 = vpack.c.b16 %v6589, %v6587
        %6622 = vmatprep.subr.bf16.mxu0 %v6605
        %6623 = vmatpush1.bf16.msra.mxu0 %v6604
        %6624 = vmatprep.subr.bf16.mxu0 %v6603
        %6625 = vmatpush1.bf16.msra.mxu0 %v6602
        %6626 = vmatprep.subr.bf16.mxu0 %v6601
        %6627 = vmatpush1.bf16.msra.mxu0 %v6600
        %6628 = vmatprep.subr.bf16.mxu0 %v6599
        %6629 = vmatpush1.bf16.msra.mxu0 %v6598
        %6630 = vmatprep.subr.bf16.mxu0 %v6597
        %6631 = vmatpush1.bf16.msra.mxu0 %v6596
        %6632 = vmatprep.subr.bf16.mxu0 %v6595
        %6633 = vmatpush1.bf16.msra.mxu0 %v6594
        %6634 = vmatprep.subr.bf16.mxu0 %v6593
        %6635 = vmatpush1.bf16.msra.mxu0 %v6592
        %6636 = vmatprep.subr.bf16.mxu0 %v6591
        %6637 = vmatpush1.bf16.msra.mxu0 %v6590
        %6638 = vmatprep.subr.bf16.mxu0 0
        %6639 = vmatpush2.bf16.msra.mxu0 0
        %6640 = vmatprep.subr.bf16.mxu0 0
        %6641 = vmatpush2.bf16.msra.mxu0 0
        %6642 = vmatprep.subr.bf16.mxu0 0
        %6643 = vmatpush2.bf16.msra.mxu0 0
        %6644 = vmatprep.subr.bf16.mxu0 0
        %6645 = vmatpush2.bf16.msra.mxu0 0
        %6646 = vmatprep.subr.bf16.mxu0 0
        %6647 = vmatpush2.bf16.msra.mxu0 0
        %6648 = vmatprep.subr.bf16.mxu0 0
        %6649 = vmatpush2.bf16.msra.mxu0 0
        %6650 = vmatprep.subr.bf16.mxu0 0
        %6651 = vmatpush2.bf16.msra.mxu0 0
        %6652 = vmatprep.subr.bf16.mxu0 0
        %6653 = vmatpush2.bf16.msra.mxu0 0
        %6654 = vmatprep.mubr.bf16.mxu0 0
        %6655 = vmatmul.mubr.bf16.gmra.mxu0 %v6524
        %v6656 = vpop.f32.mrf.mxu0
        %v6657 = vadd.f32 0.0, %v6656
        %v6658 = vpop.f32.mrf.mxu0
        %v6659 = vadd.f32 0.0, %v6658
        %v6660 = vpop.f32.mrf.mxu0
        %v6661 = vpop.f32.mrf.mxu0
        %6662 = vdwg.mxu0
        %v6663 = vadd.f32 %v6477, %v6657
        %v6664 = vadd.f32 %v6478, %v6659
        %v6665 = vld [vmem:[%s21] sm:$0x3]
        %v6667 = vlaneseq
        %v6668 = vshrl.u32 %v6667, 7
        %v6669 = vsub.s32 0, %v6668
        %v6670 = vrot.slane %v6665, %v6669
        %v6671 = vlaneseq
        %v6672 = vshrl.u32 %v6671, 7
        %v6673 = vsub.s32 1, %v6672
        %v6674 = vrot.slane %v6665, %v6673
        %v6677 = vadd.f32 %v6663, %v6670
        %v6678 = vadd.f32 %v6664, %v6674
        %v6679 = vmax.f32 %v6677, 0.0
        %v6680 = vmax.f32 %v6678, 0.0
        %v6681 = vpack.c.bf16 %v6679, %v6679
        %v6682 = vpack.c.bf16 %v6680, %v6680
        %v6683 = vld [vmem:[%s22] sm:$0xff]
        %v6684 = vld [vmem:[%s22 + $0x8] sm:$0xff]
        %v6685 = vld [vmem:[%s22 + $0x10] sm:$0xff]
        %v6686 = vld [vmem:[%s22 + $0x18] sm:$0xff]
        %v6687 = vld [vmem:[%s22 + $0x20] sm:$0xff]
        %v6688 = vld [vmem:[%s22 + $0x28] sm:$0xff]
        %v6689 = vld [vmem:[%s22 + $0x30] sm:$0xff]
        %v6690 = vld [vmem:[%s22 + $0x38] sm:$0xff]
        %v6691 = vld [vmem:[%s22 + $0x40] sm:$0xff]
        %v6692 = vld [vmem:[%s22 + $0x48] sm:$0xff]
        %v6693 = vld [vmem:[%s22 + $0x50] sm:$0xff]
        %v6694 = vld [vmem:[%s22 + $0x58] sm:$0xff]
        %v6695 = vld [vmem:[%s22 + $0x60] sm:$0xff]
        %v6696 = vld [vmem:[%s22 + $0x68] sm:$0xff]
        %v6697 = vld [vmem:[%s22 + $0x70] sm:$0xff]
        %v6698 = vld [vmem:[%s22 + $0x78] sm:$0xff]
        %v6699 = vld [vmem:[%s22 + $0x80] sm:$0xff]
        %v6700 = vld [vmem:[%s22 + $0x88] sm:$0xff]
        %v6701 = vld [vmem:[%s22 + $0x90] sm:$0xff]
        %v6702 = vld [vmem:[%s22 + $0x98] sm:$0xff]
        %v6703 = vld [vmem:[%s22 + $0xa0] sm:$0xff]
        %v6704 = vld [vmem:[%s22 + $0xa8] sm:$0xff]
        %v6705 = vld [vmem:[%s22 + $0xb0] sm:$0xff]
        %v6706 = vld [vmem:[%s22 + $0xb8] sm:$0xff]
        %v6707 = vld [vmem:[%s22 + $0xc0] sm:$0xff]
        %v6708 = vld [vmem:[%s22 + $0xc8] sm:$0xff]
        %v6709 = vld [vmem:[%s22 + $0xd0] sm:$0xff]
        %v6710 = vld [vmem:[%s22 + $0xd8] sm:$0xff]
        %v6711 = vld [vmem:[%s22 + $0xe0] sm:$0xff]
        %v6712 = vld [vmem:[%s22 + $0xe8] sm:$0xff]
        %v6713 = vld [vmem:[%s22 + $0xf0] sm:$0xff]
        %v6714 = vld [vmem:[%s22 + $0xf8] sm:$0xff]
        %v6715 = vld [vmem:[%s22 + $0x100] sm:$0xff]
        %v6716 = vld [vmem:[%s22 + $0x108] sm:$0xff]
        %v6717 = vld [vmem:[%s22 + $0x110] sm:$0xff]
        %v6718 = vld [vmem:[%s22 + $0x118] sm:$0xff]
        %v6719 = vld [vmem:[%s22 + $0x120] sm:$0xff]
        %v6720 = vld [vmem:[%s22 + $0x128] sm:$0xff]
        %v6721 = vld [vmem:[%s22 + $0x130] sm:$0xff]
        %v6722 = vld [vmem:[%s22 + $0x138] sm:$0xff]
        %v6723 = vld [vmem:[%s22 + $0x140] sm:$0xff]
        %v6724 = vld [vmem:[%s22 + $0x148] sm:$0xff]
        %v6725 = vld [vmem:[%s22 + $0x150] sm:$0xff]
        %v6726 = vld [vmem:[%s22 + $0x158] sm:$0xff]
        %v6727 = vld [vmem:[%s22 + $0x160] sm:$0xff]
        %v6728 = vld [vmem:[%s22 + $0x168] sm:$0xff]
        %v6729 = vld [vmem:[%s22 + $0x170] sm:$0xff]
        %v6730 = vld [vmem:[%s22 + $0x178] sm:$0xff]
        %v6731 = vld [vmem:[%s22 + $0x180] sm:$0xff]
        %v6732 = vld [vmem:[%s22 + $0x188] sm:$0xff]
        %v6733 = vld [vmem:[%s22 + $0x190] sm:$0xff]
        %v6734 = vld [vmem:[%s22 + $0x198] sm:$0xff]
        %v6735 = vld [vmem:[%s22 + $0x1a0] sm:$0xff]
        %v6736 = vld [vmem:[%s22 + $0x1a8] sm:$0xff]
        %v6737 = vld [vmem:[%s22 + $0x1b0] sm:$0xff]
        %v6738 = vld [vmem:[%s22 + $0x1b8] sm:$0xff]
        %v6739 = vld [vmem:[%s22 + $0x1c0] sm:$0xff]
        %v6740 = vld [vmem:[%s22 + $0x1c8] sm:$0xff]
        %v6741 = vld [vmem:[%s22 + $0x1d0] sm:$0xff]
        %v6742 = vld [vmem:[%s22 + $0x1d8] sm:$0xff]
        %v6743 = vld [vmem:[%s22 + $0x1e0] sm:$0xff]
        %v6744 = vld [vmem:[%s22 + $0x1e8] sm:$0xff]
        %v6745 = vld [vmem:[%s22 + $0x1f0] sm:$0xff]
        %v6746 = vld [vmem:[%s22 + $0x1f8] sm:$0xff]
        %v6747 = vld [vmem:[%s23] sm:$0xf]
        %v6749 = vlaneseq
        %v6750 = vshrl.u32 %v6749, 7
        %v6751 = vsub.s32 0, %v6750
        %v6752 = vrot.slane %v6747, %v6751
        %v6753 = vlaneseq
        %v6754 = vshrl.u32 %v6753, 7
        %v6755 = vsub.s32 1, %v6754
        %v6756 = vrot.slane %v6747, %v6755
        %v6757 = vlaneseq
        %v6758 = vshrl.u32 %v6757, 7
        %v6759 = vsub.s32 2, %v6758
        %v6760 = vrot.slane %v6747, %v6759
        %v6761 = vlaneseq
        %v6762 = vshrl.u32 %v6761, 7
        %v6763 = vsub.s32 3, %v6762
        %v6764 = vrot.slane %v6747, %v6763
        %v6833 = vunpack.c.l.b16 %v6683
        %v6834 = vunpack.c.h.b16 %v6683
        %v6835 = vunpack.c.l.b16 %v6684
        %v6836 = vunpack.c.h.b16 %v6684
        %v6837 = vunpack.c.l.b16 %v6685
        %v6838 = vunpack.c.h.b16 %v6685
        %v6839 = vunpack.c.l.b16 %v6686
        %v6840 = vunpack.c.h.b16 %v6686
        %v6841 = vunpack.c.l.b16 %v6687
        %v6842 = vunpack.c.h.b16 %v6687
        %v6843 = vunpack.c.l.b16 %v6688
        %v6844 = vunpack.c.h.b16 %v6688
        %v6845 = vunpack.c.l.b16 %v6689
        %v6846 = vunpack.c.h.b16 %v6689
        %v6847 = vunpack.c.l.b16 %v6690
        %v6848 = vunpack.c.h.b16 %v6690
        %v6849 = vunpack.c.l.b16 %v6691
        %v6850 = vunpack.c.h.b16 %v6691
        %v6851 = vunpack.c.l.b16 %v6692
        %v6852 = vunpack.c.h.b16 %v6692
        %v6853 = vunpack.c.l.b16 %v6693
        %v6854 = vunpack.c.h.b16 %v6693
        %v6855 = vunpack.c.l.b16 %v6694
        %v6856 = vunpack.c.h.b16 %v6694
        %v6857 = vunpack.c.l.b16 %v6695
        %v6858 = vunpack.c.h.b16 %v6695
        %v6859 = vunpack.c.l.b16 %v6696
        %v6860 = vunpack.c.h.b16 %v6696
        %v6861 = vunpack.c.l.b16 %v6697
        %v6862 = vunpack.c.h.b16 %v6697
        %v6863 = vunpack.c.l.b16 %v6698
        %v6864 = vunpack.c.h.b16 %v6698
        %v6865 = vunpack.c.l.b16 %v6699
        %v6866 = vunpack.c.h.b16 %v6699
        %v6867 = vunpack.c.l.b16 %v6700
        %v6868 = vunpack.c.h.b16 %v6700
        %v6869 = vunpack.c.l.b16 %v6701
        %v6870 = vunpack.c.h.b16 %v6701
        %v6871 = vunpack.c.l.b16 %v6702
        %v6872 = vunpack.c.h.b16 %v6702
        %v6873 = vunpack.c.l.b16 %v6703
        %v6874 = vunpack.c.h.b16 %v6703
        %v6875 = vunpack.c.l.b16 %v6704
        %v6876 = vunpack.c.h.b16 %v6704
        %v6877 = vunpack.c.l.b16 %v6705
        %v6878 = vunpack.c.h.b16 %v6705
        %v6879 = vunpack.c.l.b16 %v6706
        %v6880 = vunpack.c.h.b16 %v6706
        %v6881 = vunpack.c.l.b16 %v6707
        %v6882 = vunpack.c.h.b16 %v6707
        %v6883 = vunpack.c.l.b16 %v6708
        %v6884 = vunpack.c.h.b16 %v6708
        %v6885 = vunpack.c.l.b16 %v6709
        %v6886 = vunpack.c.h.b16 %v6709
        %v6887 = vunpack.c.l.b16 %v6710
        %v6888 = vunpack.c.h.b16 %v6710
        %v6889 = vunpack.c.l.b16 %v6711
        %v6890 = vunpack.c.h.b16 %v6711
        %v6891 = vunpack.c.l.b16 %v6712
        %v6892 = vunpack.c.h.b16 %v6712
        %v6893 = vunpack.c.l.b16 %v6713
        %v6894 = vunpack.c.h.b16 %v6713
        %v6895 = vunpack.c.l.b16 %v6714
        %v6896 = vunpack.c.h.b16 %v6714
        %v6897 = vunpack.c.l.b16 %v6715
        %v6898 = vunpack.c.h.b16 %v6715
        %v6899 = vunpack.c.l.b16 %v6716
        %v6900 = vunpack.c.h.b16 %v6716
        %v6901 = vunpack.c.l.b16 %v6717
        %v6902 = vunpack.c.h.b16 %v6717
        %v6903 = vunpack.c.l.b16 %v6718
        %v6904 = vunpack.c.h.b16 %v6718
        %v6905 = vunpack.c.l.b16 %v6719
        %v6906 = vunpack.c.h.b16 %v6719
        %v6907 = vunpack.c.l.b16 %v6720
        %v6908 = vunpack.c.h.b16 %v6720
        %v6909 = vunpack.c.l.b16 %v6721
        %v6910 = vunpack.c.h.b16 %v6721
        %v6911 = vunpack.c.l.b16 %v6722
        %v6912 = vunpack.c.h.b16 %v6722
        %v6913 = vunpack.c.l.b16 %v6723
        %v6914 = vunpack.c.h.b16 %v6723
        %v6915 = vunpack.c.l.b16 %v6724
        %v6916 = vunpack.c.h.b16 %v6724
        %v6917 = vunpack.c.l.b16 %v6725
        %v6918 = vunpack.c.h.b16 %v6725
        %v6919 = vunpack.c.l.b16 %v6726
        %v6920 = vunpack.c.h.b16 %v6726
        %v6921 = vunpack.c.l.b16 %v6727
        %v6922 = vunpack.c.h.b16 %v6727
        %v6923 = vunpack.c.l.b16 %v6728
        %v6924 = vunpack.c.h.b16 %v6728
        %v6925 = vunpack.c.l.b16 %v6729
        %v6926 = vunpack.c.h.b16 %v6729
        %v6927 = vunpack.c.l.b16 %v6730
        %v6928 = vunpack.c.h.b16 %v6730
        %v6929 = vunpack.c.l.b16 %v6731
        %v6930 = vunpack.c.h.b16 %v6731
        %v6931 = vunpack.c.l.b16 %v6732
        %v6932 = vunpack.c.h.b16 %v6732
        %v6933 = vunpack.c.l.b16 %v6733
        %v6934 = vunpack.c.h.b16 %v6733
        %v6935 = vunpack.c.l.b16 %v6734
        %v6936 = vunpack.c.h.b16 %v6734
        %v6937 = vunpack.c.l.b16 %v6735
        %v6938 = vunpack.c.h.b16 %v6735
        %v6939 = vunpack.c.l.b16 %v6736
        %v6940 = vunpack.c.h.b16 %v6736
        %v6941 = vunpack.c.l.b16 %v6737
        %v6942 = vunpack.c.h.b16 %v6737
        %v6943 = vunpack.c.l.b16 %v6738
        %v6944 = vunpack.c.h.b16 %v6738
        %v6945 = vunpack.c.l.b16 %v6739
        %v6946 = vunpack.c.h.b16 %v6739
        %v6947 = vunpack.c.l.b16 %v6740
        %v6948 = vunpack.c.h.b16 %v6740
        %v6949 = vunpack.c.l.b16 %v6741
        %v6950 = vunpack.c.h.b16 %v6741
        %v6951 = vunpack.c.l.b16 %v6742
        %v6952 = vunpack.c.h.b16 %v6742
        %v6953 = vunpack.c.l.b16 %v6743
        %v6954 = vunpack.c.h.b16 %v6743
        %v6955 = vunpack.c.l.b16 %v6744
        %v6956 = vunpack.c.h.b16 %v6744
        %v6957 = vunpack.c.l.b16 %v6745
        %v6958 = vunpack.c.h.b16 %v6745
        %v6959 = vunpack.c.l.b16 %v6746
        %v6960 = vunpack.c.h.b16 %v6746
        %v6961 = vpack.c.b16 %v6837, %v6833
        %v6962 = vpack.c.b16 %v6838, %v6834
        %v6963 = vpack.c.b16 %v6839, %v6835
        %v6964 = vpack.c.b16 %v6840, %v6836
        %v6965 = vpack.c.b16 %v6845, %v6841
        %v6966 = vpack.c.b16 %v6846, %v6842
        %v6967 = vpack.c.b16 %v6847, %v6843
        %v6968 = vpack.c.b16 %v6848, %v6844
        %v6969 = vpack.c.b16 %v6853, %v6849
        %v6970 = vpack.c.b16 %v6854, %v6850
        %v6971 = vpack.c.b16 %v6855, %v6851
        %v6972 = vpack.c.b16 %v6856, %v6852
        %v6973 = vpack.c.b16 %v6861, %v6857
        %v6974 = vpack.c.b16 %v6862, %v6858
        %v6975 = vpack.c.b16 %v6863, %v6859
        %v6976 = vpack.c.b16 %v6864, %v6860
        %v6977 = vpack.c.b16 %v6869, %v6865
        %v6978 = vpack.c.b16 %v6870, %v6866
        %v6979 = vpack.c.b16 %v6871, %v6867
        %v6980 = vpack.c.b16 %v6872, %v6868
        %v6981 = vpack.c.b16 %v6877, %v6873
        %v6982 = vpack.c.b16 %v6878, %v6874
        %v6983 = vpack.c.b16 %v6879, %v6875
        %v6984 = vpack.c.b16 %v6880, %v6876
        %v6985 = vpack.c.b16 %v6885, %v6881
        %v6986 = vpack.c.b16 %v6886, %v6882
        %v6987 = vpack.c.b16 %v6887, %v6883
        %v6988 = vpack.c.b16 %v6888, %v6884
        %v6989 = vpack.c.b16 %v6893, %v6889
        %v6990 = vpack.c.b16 %v6894, %v6890
        %v6991 = vpack.c.b16 %v6895, %v6891
        %v6992 = vpack.c.b16 %v6896, %v6892
        %v6993 = vpack.c.b16 %v6901, %v6897
        %v6994 = vpack.c.b16 %v6902, %v6898
        %v6995 = vpack.c.b16 %v6903, %v6899
        %v6996 = vpack.c.b16 %v6904, %v6900
        %v6997 = vpack.c.b16 %v6909, %v6905
        %v6998 = vpack.c.b16 %v6910, %v6906
        %v6999 = vpack.c.b16 %v6911, %v6907
        %v7000 = vpack.c.b16 %v6912, %v6908
        %v7001 = vpack.c.b16 %v6917, %v6913
        %v7002 = vpack.c.b16 %v6918, %v6914
        %v7003 = vpack.c.b16 %v6919, %v6915
        %v7004 = vpack.c.b16 %v6920, %v6916
        %v7005 = vpack.c.b16 %v6925, %v6921
        %v7006 = vpack.c.b16 %v6926, %v6922
        %v7007 = vpack.c.b16 %v6927, %v6923
        %v7008 = vpack.c.b16 %v6928, %v6924
        %v7009 = vpack.c.b16 %v6933, %v6929
        %v7010 = vpack.c.b16 %v6934, %v6930
        %v7011 = vpack.c.b16 %v6935, %v6931
        %v7012 = vpack.c.b16 %v6936, %v6932
        %v7013 = vpack.c.b16 %v6941, %v6937
        %v7014 = vpack.c.b16 %v6942, %v6938
        %v7015 = vpack.c.b16 %v6943, %v6939
        %v7016 = vpack.c.b16 %v6944, %v6940
        %v7017 = vpack.c.b16 %v6949, %v6945
        %v7018 = vpack.c.b16 %v6950, %v6946
        %v7019 = vpack.c.b16 %v6951, %v6947
        %v7020 = vpack.c.b16 %v6952, %v6948
        %v7021 = vpack.c.b16 %v6957, %v6953
        %v7022 = vpack.c.b16 %v6958, %v6954
        %v7023 = vpack.c.b16 %v6959, %v6955
        %v7024 = vpack.c.b16 %v6960, %v6956
        %7089 = vmatprep.subr.bf16.mxu0 %v6990
        %7090 = vmatpush1.bf16.msra.mxu0 %v6989
        %7091 = vmatprep.subr.bf16.mxu0 %v6986
        %7092 = vmatpush1.bf16.msra.mxu0 %v6985
        %7093 = vmatprep.subr.bf16.mxu0 %v6982
        %7094 = vmatpush1.bf16.msra.mxu0 %v6981
        %7095 = vmatprep.subr.bf16.mxu0 %v6978
        %7096 = vmatpush1.bf16.msra.mxu0 %v6977
        %7097 = vmatprep.subr.bf16.mxu0 %v6974
        %7098 = vmatpush1.bf16.msra.mxu0 %v6973
        %7099 = vmatprep.subr.bf16.mxu0 %v6970
        %7100 = vmatpush1.bf16.msra.mxu0 %v6969
        %7101 = vmatprep.subr.bf16.mxu0 %v6966
        %7102 = vmatpush1.bf16.msra.mxu0 %v6965
        %7103 = vmatprep.subr.bf16.mxu0 %v6962
        %7104 = vmatpush1.bf16.msra.mxu0 %v6961
        %7105 = vmatprep.subr.bf16.mxu0 %v7022
        %7106 = vmatpush2.bf16.msra.mxu0 %v7021
        %7107 = vmatprep.subr.bf16.mxu0 %v7018
        %7108 = vmatpush2.bf16.msra.mxu0 %v7017
        %7109 = vmatprep.subr.bf16.mxu0 %v7014
        %7110 = vmatpush2.bf16.msra.mxu0 %v7013
        %7111 = vmatprep.subr.bf16.mxu0 %v7010
        %7112 = vmatpush2.bf16.msra.mxu0 %v7009
        %7113 = vmatprep.subr.bf16.mxu0 %v7006
        %7114 = vmatpush2.bf16.msra.mxu0 %v7005
        %7115 = vmatprep.subr.bf16.mxu0 %v7002
        %7116 = vmatpush2.bf16.msra.mxu0 %v7001
        %7117 = vmatprep.subr.bf16.mxu0 %v6998
        %7118 = vmatpush2.bf16.msra.mxu0 %v6997
        %7119 = vmatprep.subr.bf16.mxu0 %v6994
        %7120 = vmatpush2.bf16.msra.mxu0 %v6993
        %7121 = vmatprep.mubr.bf16.mxu0 %v6682
        %7122 = vmatmul.mubr.bf16.gmra.mxu0 %v6681
        %v7123 = vpop.f32.mrf.mxu0
        %v7124 = vadd.f32 %v6752, %v7123
        %v7125 = vpop.f32.mrf.mxu0
        %v7126 = vadd.f32 %v6756, %v7125
        %v7127 = vpop.f32.mrf.mxu0
        %v7128 = vpop.f32.mrf.mxu0
        %7129 = vdwg.mxu0
        %7130 = vmatprep.subr.bf16.mxu0 %v6992
        %7131 = vmatpush1.bf16.msra.mxu0 %v6991
        %7132 = vmatprep.subr.bf16.mxu0 %v6988
        %7133 = vmatpush1.bf16.msra.mxu0 %v6987
        %7134 = vmatprep.subr.bf16.mxu0 %v6984
        %7135 = vmatpush1.bf16.msra.mxu0 %v6983
        %7136 = vmatprep.subr.bf16.mxu0 %v6980
        %7137 = vmatpush1.bf16.msra.mxu0 %v6979
        %7138 = vmatprep.subr.bf16.mxu0 %v6976
        %7139 = vmatpush1.bf16.msra.mxu0 %v6975
        %7140 = vmatprep.subr.bf16.mxu0 %v6972
        %7141 = vmatpush1.bf16.msra.mxu0 %v6971
        %7142 = vmatprep.subr.bf16.mxu0 %v6968
        %7143 = vmatpush1.bf16.msra.mxu0 %v6967
        %7144 = vmatprep.subr.bf16.mxu0 %v6964
        %7145 = vmatpush1.bf16.msra.mxu0 %v6963
        %7146 = vmatprep.subr.bf16.mxu0 %v7024
        %7147 = vmatpush2.bf16.msra.mxu0 %v7023
        %7148 = vmatprep.subr.bf16.mxu0 %v7020
        %7149 = vmatpush2.bf16.msra.mxu0 %v7019
        %7150 = vmatprep.subr.bf16.mxu0 %v7016
        %7151 = vmatpush2.bf16.msra.mxu0 %v7015
        %7152 = vmatprep.subr.bf16.mxu0 %v7012
        %7153 = vmatpush2.bf16.msra.mxu0 %v7011
        %7154 = vmatprep.subr.bf16.mxu0 %v7008
        %7155 = vmatpush2.bf16.msra.mxu0 %v7007
        %7156 = vmatprep.subr.bf16.mxu0 %v7004
        %7157 = vmatpush2.bf16.msra.mxu0 %v7003
        %7158 = vmatprep.subr.bf16.mxu0 %v7000
        %7159 = vmatpush2.bf16.msra.mxu0 %v6999
        %7160 = vmatprep.subr.bf16.mxu0 %v6996
        %7161 = vmatpush2.bf16.msra.mxu0 %v6995
        %7162 = vmatprep.mubr.bf16.mxu0 %v6682
        %7163 = vmatmul.mubr.bf16.gmra.mxu0 %v6681
        %v7164 = vpop.f32.mrf.mxu0
        %v7165 = vadd.f32 %v6760, %v7164
        %v7166 = vpop.f32.mrf.mxu0
        %v7167 = vadd.f32 %v6764, %v7166
        %v7168 = vpop.f32.mrf.mxu0
        %v7169 = vpop.f32.mrf.mxu0
        %7170 = vdwg.mxu0
        %v7171 = vmax.f32 %v7124, 0.0
        %v7172 = vmax.f32 %v7126, 0.0
        %v7173 = vmax.f32 %v7165, 0.0
        %v7174 = vmax.f32 %v7167, 0.0
        %v7175 = vpack.c.bf16 %v7171, %v7171
        %v7176 = vpack.c.bf16 %v7172, %v7172
        %v7177 = vpack.c.bf16 %v7173, %v7173
        %v7178 = vpack.c.bf16 %v7174, %v7174
        %v7179 = vld [vmem:[%s24] sm:$0xf]
        %v7180 = vld [vmem:[%s24 + $0x4] sm:$0xf]
        %v7181 = vld [vmem:[%s24 + $0x8] sm:$0xf]
        %v7182 = vld [vmem:[%s24 + $0xc] sm:$0xf]
        %v7183 = vld [vmem:[%s24 + $0x10] sm:$0xf]
        %v7184 = vld [vmem:[%s24 + $0x14] sm:$0xf]
        %v7185 = vld [vmem:[%s24 + $0x18] sm:$0xf]
        %v7186 = vld [vmem:[%s24 + $0x1c] sm:$0xf]
        %v7187 = vld [vmem:[%s24 + $0x20] sm:$0xf]
        %v7188 = vld [vmem:[%s24 + $0x24] sm:$0xf]
        %v7189 = vld [vmem:[%s24 + $0x28] sm:$0xf]
        %v7190 = vld [vmem:[%s24 + $0x2c] sm:$0xf]
        %v7191 = vld [vmem:[%s24 + $0x30] sm:$0xf]
        %v7192 = vld [vmem:[%s24 + $0x34] sm:$0xf]
        %v7193 = vld [vmem:[%s24 + $0x38] sm:$0xf]
        %v7194 = vld [vmem:[%s24 + $0x3c] sm:$0xf]
        %v7195 = vld [vmem:[%s24 + $0x40] sm:$0xf]
        %v7196 = vld [vmem:[%s24 + $0x44] sm:$0xf]
        %v7197 = vld [vmem:[%s24 + $0x48] sm:$0xf]
        %v7198 = vld [vmem:[%s24 + $0x4c] sm:$0xf]
        %v7199 = vld [vmem:[%s24 + $0x50] sm:$0xf]
        %v7200 = vld [vmem:[%s24 + $0x54] sm:$0xf]
        %v7201 = vld [vmem:[%s24 + $0x58] sm:$0xf]
        %v7202 = vld [vmem:[%s24 + $0x5c] sm:$0xf]
        %v7203 = vld [vmem:[%s24 + $0x60] sm:$0xf]
        %v7204 = vld [vmem:[%s24 + $0x64] sm:$0xf]
        %v7205 = vld [vmem:[%s24 + $0x68] sm:$0xf]
        %v7206 = vld [vmem:[%s24 + $0x6c] sm:$0xf]
        %v7207 = vld [vmem:[%s24 + $0x70] sm:$0xf]
        %v7208 = vld [vmem:[%s24 + $0x74] sm:$0xf]
        %v7209 = vld [vmem:[%s24 + $0x78] sm:$0xf]
        %v7210 = vld [vmem:[%s24 + $0x7c] sm:$0xf]
        %v7211 = vld [vmem:[%s24 + $0x80] sm:$0xf]
        %v7212 = vld [vmem:[%s24 + $0x84] sm:$0xf]
        %v7213 = vld [vmem:[%s24 + $0x88] sm:$0xf]
        %v7214 = vld [vmem:[%s24 + $0x8c] sm:$0xf]
        %v7215 = vld [vmem:[%s24 + $0x90] sm:$0xf]
        %v7216 = vld [vmem:[%s24 + $0x94] sm:$0xf]
        %v7217 = vld [vmem:[%s24 + $0x98] sm:$0xf]
        %v7218 = vld [vmem:[%s24 + $0x9c] sm:$0xf]
        %v7219 = vld [vmem:[%s24 + $0xa0] sm:$0xf]
        %v7220 = vld [vmem:[%s24 + $0xa4] sm:$0xf]
        %v7221 = vld [vmem:[%s24 + $0xa8] sm:$0xf]
        %v7222 = vld [vmem:[%s24 + $0xac] sm:$0xf]
        %v7223 = vld [vmem:[%s24 + $0xb0] sm:$0xf]
        %v7224 = vld [vmem:[%s24 + $0xb4] sm:$0xf]
        %v7225 = vld [vmem:[%s24 + $0xb8] sm:$0xf]
        %v7226 = vld [vmem:[%s24 + $0xbc] sm:$0xf]
        %v7227 = vld [vmem:[%s24 + $0xc0] sm:$0xf]
        %v7228 = vld [vmem:[%s24 + $0xc4] sm:$0xf]
        %v7229 = vld [vmem:[%s24 + $0xc8] sm:$0xf]
        %v7230 = vld [vmem:[%s24 + $0xcc] sm:$0xf]
        %v7231 = vld [vmem:[%s24 + $0xd0] sm:$0xf]
        %v7232 = vld [vmem:[%s24 + $0xd4] sm:$0xf]
        %v7233 = vld [vmem:[%s24 + $0xd8] sm:$0xf]
        %v7234 = vld [vmem:[%s24 + $0xdc] sm:$0xf]
        %v7235 = vld [vmem:[%s24 + $0xe0] sm:$0xf]
        %v7236 = vld [vmem:[%s24 + $0xe4] sm:$0xf]
        %v7237 = vld [vmem:[%s24 + $0xe8] sm:$0xf]
        %v7238 = vld [vmem:[%s24 + $0xec] sm:$0xf]
        %v7239 = vld [vmem:[%s24 + $0xf0] sm:$0xf]
        %v7240 = vld [vmem:[%s24 + $0xf4] sm:$0xf]
        %v7241 = vld [vmem:[%s24 + $0xf8] sm:$0xf]
        %v7242 = vld [vmem:[%s24 + $0xfc] sm:$0xf]
        %v7243 = vld [vmem:[%s25] sm:$0x1]
        %v7245 = vlaneseq
        %v7246 = vshrl.u32 %v7245, 7
        %v7247 = vsub.s32 0, %v7246
        %v7248 = vrot.slane %v7243, %v7247
        %v7314 = vunpack.c.l.b16 %v7179
        %v7315 = vunpack.c.l.b16 %v7180
        %v7316 = vunpack.c.l.b16 %v7181
        %v7317 = vunpack.c.l.b16 %v7182
        %v7318 = vunpack.c.l.b16 %v7183
        %v7319 = vunpack.c.l.b16 %v7184
        %v7320 = vunpack.c.l.b16 %v7185
        %v7321 = vunpack.c.l.b16 %v7186
        %v7322 = vunpack.c.l.b16 %v7187
        %v7323 = vunpack.c.l.b16 %v7188
        %v7324 = vunpack.c.l.b16 %v7189
        %v7325 = vunpack.c.l.b16 %v7190
        %v7326 = vunpack.c.l.b16 %v7191
        %v7327 = vunpack.c.l.b16 %v7192
        %v7328 = vunpack.c.l.b16 %v7193
        %v7329 = vunpack.c.l.b16 %v7194
        %v7330 = vunpack.c.l.b16 %v7195
        %v7331 = vunpack.c.l.b16 %v7196
        %v7332 = vunpack.c.l.b16 %v7197
        %v7333 = vunpack.c.l.b16 %v7198
        %v7334 = vunpack.c.l.b16 %v7199
        %v7335 = vunpack.c.l.b16 %v7200
        %v7336 = vunpack.c.l.b16 %v7201
        %v7337 = vunpack.c.l.b16 %v7202
        %v7338 = vunpack.c.l.b16 %v7203
        %v7339 = vunpack.c.l.b16 %v7204
        %v7340 = vunpack.c.l.b16 %v7205
        %v7341 = vunpack.c.l.b16 %v7206
        %v7342 = vunpack.c.l.b16 %v7207
        %v7343 = vunpack.c.l.b16 %v7208
        %v7344 = vunpack.c.l.b16 %v7209
        %v7345 = vunpack.c.l.b16 %v7210
        %v7346 = vunpack.c.l.b16 %v7211
        %v7347 = vunpack.c.l.b16 %v7212
        %v7348 = vunpack.c.l.b16 %v7213
        %v7349 = vunpack.c.l.b16 %v7214
        %v7350 = vunpack.c.l.b16 %v7215
        %v7351 = vunpack.c.l.b16 %v7216
        %v7352 = vunpack.c.l.b16 %v7217
        %v7353 = vunpack.c.l.b16 %v7218
        %v7354 = vunpack.c.l.b16 %v7219
        %v7355 = vunpack.c.l.b16 %v7220
        %v7356 = vunpack.c.l.b16 %v7221
        %v7357 = vunpack.c.l.b16 %v7222
        %v7358 = vunpack.c.l.b16 %v7223
        %v7359 = vunpack.c.l.b16 %v7224
        %v7360 = vunpack.c.l.b16 %v7225
        %v7361 = vunpack.c.l.b16 %v7226
        %v7362 = vunpack.c.l.b16 %v7227
        %v7363 = vunpack.c.l.b16 %v7228
        %v7364 = vunpack.c.l.b16 %v7229
        %v7365 = vunpack.c.l.b16 %v7230
        %v7366 = vunpack.c.l.b16 %v7231
        %v7367 = vunpack.c.l.b16 %v7232
        %v7368 = vunpack.c.l.b16 %v7233
        %v7369 = vunpack.c.l.b16 %v7234
        %v7370 = vunpack.c.l.b16 %v7235
        %v7371 = vunpack.c.l.b16 %v7236
        %v7372 = vunpack.c.l.b16 %v7237
        %v7373 = vunpack.c.l.b16 %v7238
        %v7374 = vunpack.c.l.b16 %v7239
        %v7375 = vunpack.c.l.b16 %v7240
        %v7376 = vunpack.c.l.b16 %v7241
        %v7377 = vunpack.c.l.b16 %v7242
        %v7378 = vpack.c.b16 %v7315, %v7314
        %v7379 = vpack.c.b16 %v7317, %v7316
        %v7380 = vpack.c.b16 %v7319, %v7318
        %v7381 = vpack.c.b16 %v7321, %v7320
        %v7382 = vpack.c.b16 %v7323, %v7322
        %v7383 = vpack.c.b16 %v7325, %v7324
        %v7384 = vpack.c.b16 %v7327, %v7326
        %v7385 = vpack.c.b16 %v7329, %v7328
        %v7386 = vpack.c.b16 %v7331, %v7330
        %v7387 = vpack.c.b16 %v7333, %v7332
        %v7388 = vpack.c.b16 %v7335, %v7334
        %v7389 = vpack.c.b16 %v7337, %v7336
        %v7390 = vpack.c.b16 %v7339, %v7338
        %v7391 = vpack.c.b16 %v7341, %v7340
        %v7392 = vpack.c.b16 %v7343, %v7342
        %v7393 = vpack.c.b16 %v7345, %v7344
        %v7394 = vpack.c.b16 %v7347, %v7346
        %v7395 = vpack.c.b16 %v7349, %v7348
        %v7396 = vpack.c.b16 %v7351, %v7350
        %v7397 = vpack.c.b16 %v7353, %v7352
        %v7398 = vpack.c.b16 %v7355, %v7354
        %v7399 = vpack.c.b16 %v7357, %v7356
        %v7400 = vpack.c.b16 %v7359, %v7358
        %v7401 = vpack.c.b16 %v7361, %v7360
        %v7402 = vpack.c.b16 %v7363, %v7362
        %v7403 = vpack.c.b16 %v7365, %v7364
        %v7404 = vpack.c.b16 %v7367, %v7366
        %v7405 = vpack.c.b16 %v7369, %v7368
        %v7406 = vpack.c.b16 %v7371, %v7370
        %v7407 = vpack.c.b16 %v7373, %v7372
        %v7408 = vpack.c.b16 %v7375, %v7374
        %v7409 = vpack.c.b16 %v7377, %v7376
        %7442 = vmatprep.subr.bf16.mxu0 0
        %7443 = vmatpush1.bf16.msra.mxu0 %v7385
        %7444 = vmatprep.subr.bf16.mxu0 0
        %7445 = vmatpush1.bf16.msra.mxu0 %v7384
        %7446 = vmatprep.subr.bf16.mxu0 0
        %7447 = vmatpush1.bf16.msra.mxu0 %v7383
        %7448 = vmatprep.subr.bf16.mxu0 0
        %7449 = vmatpush1.bf16.msra.mxu0 %v7382
        %7450 = vmatprep.subr.bf16.mxu0 0
        %7451 = vmatpush1.bf16.msra.mxu0 %v7381
        %7452 = vmatprep.subr.bf16.mxu0 0
        %7453 = vmatpush1.bf16.msra.mxu0 %v7380
        %7454 = vmatprep.subr.bf16.mxu0 0
        %7455 = vmatpush1.bf16.msra.mxu0 %v7379
        %7456 = vmatprep.subr.bf16.mxu0 0
        %7457 = vmatpush1.bf16.msra.mxu0 %v7378
        %7458 = vmatprep.subr.bf16.mxu0 0
        %7459 = vmatpush2.bf16.msra.mxu0 %v7393
        %7460 = vmatprep.subr.bf16.mxu0 0
        %7461 = vmatpush2.bf16.msra.mxu0 %v7392
        %7462 = vmatprep.subr.bf16.mxu0 0
        %7463 = vmatpush2.bf16.msra.mxu0 %v7391
        %7464 = vmatprep.subr.bf16.mxu0 0
        %7465 = vmatpush2.bf16.msra.mxu0 %v7390
        %7466 = vmatprep.subr.bf16.mxu0 0
        %7467 = vmatpush2.bf16.msra.mxu0 %v7389
        %7468 = vmatprep.subr.bf16.mxu0 0
        %7469 = vmatpush2.bf16.msra.mxu0 %v7388
        %7470 = vmatprep.subr.bf16.mxu0 0
        %7471 = vmatpush2.bf16.msra.mxu0 %v7387
        %7472 = vmatprep.subr.bf16.mxu0 0
        %7473 = vmatpush2.bf16.msra.mxu0 %v7386
        %7474 = vmatprep.mubr.bf16.mxu0 %v7176
        %7475 = vmatmul.mubr.bf16.gmra.mxu0 %v7175
        %v7476 = vpop.f32.mrf.mxu0
        %v7477 = vadd.f32 %v7248, %v7476
        %v7478 = vpop.f32.mrf.mxu0
        %v7479 = vpop.f32.mrf.mxu0
        %v7480 = vpop.f32.mrf.mxu0
        %7481 = vdwg.mxu0
        %7482 = vmatprep.subr.bf16.mxu0 0
        %7483 = vmatpush1.bf16.msra.mxu0 %v7401
        %7484 = vmatprep.subr.bf16.mxu0 0
        %7485 = vmatpush1.bf16.msra.mxu0 %v7400
        %7486 = vmatprep.subr.bf16.mxu0 0
        %7487 = vmatpush1.bf16.msra.mxu0 %v7399
        %7488 = vmatprep.subr.bf16.mxu0 0
        %7489 = vmatpush1.bf16.msra.mxu0 %v7398
        %7490 = vmatprep.subr.bf16.mxu0 0
        %7491 = vmatpush1.bf16.msra.mxu0 %v7397
        %7492 = vmatprep.subr.bf16.mxu0 0
        %7493 = vmatpush1.bf16.msra.mxu0 %v7396
        %7494 = vmatprep.subr.bf16.mxu0 0
        %7495 = vmatpush1.bf16.msra.mxu0 %v7395
        %7496 = vmatprep.subr.bf16.mxu0 0
        %7497 = vmatpush1.bf16.msra.mxu0 %v7394
        %7498 = vmatprep.subr.bf16.mxu0 0
        %7499 = vmatpush2.bf16.msra.mxu0 %v7409
        %7500 = vmatprep.subr.bf16.mxu0 0
        %7501 = vmatpush2.bf16.msra.mxu0 %v7408
        %7502 = vmatprep.subr.bf16.mxu0 0
        %7503 = vmatpush2.bf16.msra.mxu0 %v7407
        %7504 = vmatprep.subr.bf16.mxu0 0
        %7505 = vmatpush2.bf16.msra.mxu0 %v7406
        %7506 = vmatprep.subr.bf16.mxu0 0
        %7507 = vmatpush2.bf16.msra.mxu0 %v7405
        %7508 = vmatprep.subr.bf16.mxu0 0
        %7509 = vmatpush2.bf16.msra.mxu0 %v7404
        %7510 = vmatprep.subr.bf16.mxu0 0
        %7511 = vmatpush2.bf16.msra.mxu0 %v7403
        %7512 = vmatprep.subr.bf16.mxu0 0
        %7513 = vmatpush2.bf16.msra.mxu0 %v7402
        %7514 = vmatprep.mubr.bf16.mxu0 %v7178
        %7515 = vmatmul.mubr.bf16.gmra.mxu0 %v7177
        %v7516 = vpop.f32.mrf.mxu0
        %v7517 = vadd.f32 %v7477, %v7516
        %v7518 = vpop.f32.mrf.mxu0
        %v7519 = vpop.f32.mrf.mxu0
        %v7520 = vpop.f32.mrf.mxu0
        %7521 = vdwg.mxu0
        %v7522 = vxor.u32 %v7517, 2147483648
        %v7523 = vmul.f32 %v7522, 1.442695
        %v7524 = vpow.pop %v7523
        %v7525 = vadd.f32 %v7524, 1.0
        %v7526 = vrcp.pop %v7525
        %v7527 = vmul.f32 1.0, %v7526
        %7528 = vst [vmem:[%s784] sm:$0xf] %v7527
        %s7529 = sand.u32 %s599, 1
        %s7530 = scalar_lea.sflag [#allocation3], %s7529
        %s7531 = sand.u32 %s599, 1
        %s7532 = smul.addr %s7531, 4
        %s7533 = scalar_lea.vmem [#allocation2], %s7532
        // Predicated region
        $region125: #{pallas_forward.1} parent=123 // pred_check
          %p7534 = pneg %p609
        $region126: #{pallas_forward.1} parent=123 // pred_check_branch
          %7536 = sbr.rel (%p7534) target = $region128
        $region127: #{pallas_forward.1} parent=123 // pred_region
          %s7538 = ssub.s32 64, 64
          %7539 = vsyncadd %s7530, %s7538
          %s7540 = smul.addr %s40, 64
          %s7541 = scalar_lea.hbm %s26, %s7540
          %s7543 = sshll.u32 %s7533, 4
          %s7544 = int_to_ptr.vmem [resolvable:$true] %s7543
          %7546 = dma.vmem_to_hbm [thread:$0]  %s7544, 64, %s7541, %s7530
        $region128: #{pallas_forward.1} parent=123 // pred_fallthru
          _
      $region124: #{pallas_forward.1} parent=5 // pred_fallthru
        _
      %p7547 = scmp.le.s32.totalorder 2, %s35
      // Predicated region
      $region129: #{pallas_forward.1} parent=5 // pred_check
        %p7548 = pneg %p7547
      $region130: #{pallas_forward.1} parent=5 // pred_check_branch
        %7550 = sbr.rel (%p7548) target = $region132
      $region131: #{pallas_forward.1} parent=5 // pred_region
        %s7551 = ssub.s32 %s35, 2
        // Predicated region
        $region133: #{pallas_forward.1} parent=131 // pred_check
          %p7552 = pneg %p615
        $region134: #{pallas_forward.1} parent=131 // pred_check_branch
          %7554 = sbr.rel (%p7552) target = $region136
        $region135: #{pallas_forward.1} parent=131 // pred_region
          %s7555 = sand.u32 %s600, 1
          %s7556 = scalar_lea.sflag [#allocation3], %s7555
          %s7557 = sand.u32 %s600, 1
          %s7558 = smul.addr %s7557, 4
          %s7559 = scalar_lea.vmem [#allocation2], %s7558
          %7560 = dma.done %s7556, 64
        $region136: #{pallas_forward.1} parent=131 // pred_fallthru
          _
      $region132: #{pallas_forward.1} parent=5 // pred_fallthru
        _
    $region6: #{pallas_forward.1} parent=1 // loop_footer
      %s39 = sadd.s32 1, %s35
    $region7: #{pallas_forward.1} parent=1 // loop_footer_branch
      %34 = sbr.rel target = $region3
    $region8: #{pallas_forward.1} parent=1 // loop_exit
      _
    %7561 = vsyncpa [#allocation3], 1
    %s7562 = scalar_lea.sflag [#allocation3], 1
    %7563 = vsyncpa %s7562, 1

</llo_original>
